<compile_context>
chip_gen: v6e
topology: v6e:2x2x1
jax: 0.10.0
libtpu: 0.0.40
codegen_flags: <defaults>
</compile_context>

<pallas_src>
import functools

import jax
import jax.numpy as jnp
from jax import lax
from jax.experimental import pallas as pl
from jax.experimental.pallas import tpu as pltpu


def _pick_batch_tile(n):
    """Largest batch tile <= 8 that divides n and keeps >= 2 grid steps."""
    best = 1
    for bt in range(1, 9):
        if n % bt == 0 and (n // bt >= 2 or n == 1):
            best = bt
    return best


def _pad_flatten_nhwc(x_nhwc, H, W):
    """NHWC -> bf16, zero-pad the halo (+1 extra bottom row so the junk-column
    over-reads stay in bounds) and flatten the padded (H+3, W+2) grid."""
    n, _, _, c = x_nhwc.shape
    xp = jnp.pad(x_nhwc.astype(jnp.bfloat16), ((0, 0), (1, 2), (1, 1), (0, 0)))
    return xp.reshape(n, (H + 3) * (W + 2), c)


def _accum_conv3x3(buf_ref, base, w_ref, *, H, W, bt):
    """3x3 "same" conv as nine accumulating matmuls over contiguous slices.

    buf_ref : (bt, P, Cin) bf16 — flattened zero-padded images (row stride
              W+2); flat index of padded pixel (r, c) is base + r*(W+2) + c.
    w_ref   : (9, Cin, Cout) bf16, tap order k = kh*3 + kw.
    returns : (bt*H*(W+2), Cout) f32.  Row p = i*(W+2) + q is output pixel
              (i, q) for q < W; columns q in {W, W+1} are junk.
    """
    Wp2 = W + 2
    Hext = H * Wp2
    cin = buf_ref.shape[-1]
    acc = None
    for kh in range(3):
        for kw in range(3):
            start = base + kh * Wp2 + kw
            tap = buf_ref[:, start:start + Hext, :].reshape(bt * Hext, cin)
            part = jnp.dot(tap, w_ref[kh * 3 + kw],
                           preferred_element_type=jnp.float32)
            acc = part if acc is None else acc + part
    return acc


def _fused_forward_kernel(x_ref, w1_ref, b1_ref, w2_ref, b2_ref, o_ref, fpad,
                          *, H, W, bt, off):
    """gen(relu(conv(x))) for one batch tile; feature map stays in VMEM.

    x_ref : (bt, (H+3)*(W+2), 3C) bf16  flattened, already zero-padded input
    o_ref : (bt, C, H*(W+2))      f32   lane-dense, 2 junk cols per row
    fpad  : (bt, P2, F)           bf16  flattened padded feature scratch
    """
    Wp2 = W + 2
    Hext = H * Wp2
    F = fpad.shape[-1]
    C = o_ref.shape[1]
    P2 = fpad.shape[1]

    # --- feature conv (input halo padded in the wrapper, base offset 0).
    acc1 = _accum_conv3x3(x_ref, 0, w1_ref, H=H, W=W, bt=bt)      # (bt*Hext, F)

    # Zero the 2 junk columns per row: they land exactly on the left/right
    # halo columns of the padded feature map below.
    q = lax.broadcasted_iota(jnp.int32, (bt * Hext, 1), 0) % Wp2
    feat = jnp.where(q < W, jnp.maximum(acc1 + b1_ref[...], 0.0), 0.0)

    # Re-zero only the small top/bottom halo row blocks (cheap, megacore-safe),
    # then write interior + column halo in one sublane-aligned contiguous store.
    bot = P2 - off - Hext
    fpad[:, :off, :] = jnp.zeros((bt, off, F), fpad.dtype)
    if bot > 0:
        fpad[:, off + Hext:, :] = jnp.zeros((bt, bot, F), fpad.dtype)
    fpad[:, off:off + Hext, :] = feat.astype(fpad.dtype).reshape(bt, Hext, F)

    # --- generation conv over the padded feature scratch.
    acc2 = _accum_conv3x3(fpad, off - Wp2 - 1, w2_ref, H=H, W=W, bt=bt)
    y = (acc2 + b2_ref[...]).reshape(bt, Hext, C)
    o_ref[...] = jnp.transpose(y, (0, 2, 1)).astype(o_ref.dtype)


def _single_conv_kernel(x_ref, w_ref, b_ref, o_ref, *, H, W, bt, relu):
    """Standalone 3x3 same conv (used by the sub-forward methods)."""
    Wp2 = W + 2
    Hext = H * Wp2
    cout = o_ref.shape[1]
    acc = _accum_conv3x3(x_ref, 0, w_ref, H=H, W=W, bt=bt)
    y = acc + b_ref[...]
    if relu:
        y = jnp.maximum(y, 0.0)
    o_ref[...] = jnp.transpose(y.reshape(bt, Hext, cout), (0, 2, 1)
                               ).astype(o_ref.dtype)


def _conv3x3_same_nchw(x_nchw, w, b, *, relu):
    """Standalone 3x3 same conv, NCHW in / NCHW out."""
    n, cin, H, W = x_nchw.shape
    cout = w.shape[-1]
    Wp2 = W + 2
    Hext = H * Wp2
    P = (H + 3) * Wp2
    bt = _pick_batch_tile(n)
    x = _pad_flatten_nhwc(jnp.transpose(x_nchw, (0, 2, 3, 1)), H, W)
    out = pl.pallas_call(
        functools.partial(_single_conv_kernel, H=H, W=W, bt=bt, relu=relu),
        out_shape=jax.ShapeDtypeStruct((n, cout, Hext), jnp.float32),
        grid_spec=pltpu.PrefetchScalarGridSpec(
            num_scalar_prefetch=0,
            grid=(n // bt,),
            in_specs=[
                pl.BlockSpec((bt, P, cin), lambda i: (i, 0, 0)),
                pl.BlockSpec((9, cin, cout), lambda i: (0, 0, 0)),
                pl.BlockSpec((1, cout), lambda i: (0, 0)),
            ],
            out_specs=pl.BlockSpec((bt, cout, Hext), lambda i: (i, 0, 0))),
        compiler_params=pltpu.CompilerParams(
            dimension_semantics=("parallel",)),
    )(x, w, b.reshape(1, cout))
    return out.reshape(n, cout, H, Wp2)[:, :, :, :W]


class FlowCatFrameGenModelPallas:
    """JAX/Pallas re-implementation of FlowCatFrameGenModel.forward."""

    def __init__(self, in_height, in_width, in_channels, feature_channels, key):
        self.in_h = in_height
        self.in_w = in_width
        self.C = in_channels
        self.F = feature_channels
        k1, k2, k3, k4 = jax.random.split(key, 4)
        cin1 = 3 * in_channels
        # Weights stored bf16 (MXU operand dtype), tap-major (9, Cin, Cout);
        # biases stay f32.
        self.w_feat = (jax.random.normal(k1, (9, cin1, feature_channels),
                                         jnp.float32)
                       * jnp.sqrt(2.0 / (9 * cin1))).astype(jnp.bfloat16)
        self.b_feat = 0.01 * jax.random.normal(k2, (feature_channels,),
                                               jnp.float32)
        self.w_gen = (jax.random.normal(k3, (9, feature_channels, in_channels),
                                        jnp.float32)
                      * jnp.sqrt(2.0 / (9 * feature_channels))
                      ).astype(jnp.bfloat16)
        self.b_gen = 0.01 * jax.random.normal(k4, (in_channels,), jnp.float32)

    @staticmethod
    def _make_batch(x):
        return x[None] if x.ndim == 3 else x

    def features_forward(self, x_nchw):
        return _conv3x3_same_nchw(self._make_batch(x_nchw),
                                  self.w_feat, self.b_feat, relu=True)

    def generation_forward(self, x_nchw):
        return _conv3x3_same_nchw(self._make_batch(x_nchw),
                                  self.w_gen, self.b_gen, relu=False)

    def forward(self, in_x_1, in_x_2, in_x_3):
        in_x_1 = self._make_batch(in_x_1)
        in_x_2 = self._make_batch(in_x_2)
        in_x_3 = self._make_batch(in_x_3)
        x = jnp.concatenate((in_x_1, in_x_2, in_x_3), axis=1)    # (N, 3C, H, W)
        n, cin1, H, W = x.shape
        C, F = self.C, self.F
        Wp2 = W + 2
        Hext = H * Wp2                        # lane-dense output width (>=128)
        P = (H + 3) * Wp2
        bt = _pick_batch_tile(n)

        # Feature scratch geometry: interior starts at a sublane-aligned
        # offset so the per-step feature store needs no sublane shift.
        off = ((Wp2 + 1 + 7) // 8) * 8
        p2 = max(off + Hext, (off - Wp2 - 1) + 2 * Wp2 + 2 + Hext)
        p2 = ((p2 + 7) // 8) * 8

        x_flat = _pad_flatten_nhwc(jnp.transpose(x, (0, 2, 3, 1)), H, W)

        out = pl.pallas_call(
            functools.partial(_fused_forward_kernel, H=H, W=W, bt=bt, off=off),
            out_shape=jax.ShapeDtypeStruct((n, C, Hext), jnp.float32),
            grid_spec=pltpu.PrefetchScalarGridSpec(
                num_scalar_prefetch=0,
                grid=(n // bt,),
                in_specs=[
                    pl.BlockSpec((bt, P, cin1), lambda i: (i, 0, 0)),
                    pl.BlockSpec((9, cin1, F), lambda i: (0, 0, 0)),
                    pl.BlockSpec((1, F), lambda i: (0, 0)),
                    pl.BlockSpec((9, F, C), lambda i: (0, 0, 0)),
                    pl.BlockSpec((1, C), lambda i: (0, 0)),
                ],
                out_specs=pl.BlockSpec((bt, C, Hext), lambda i: (i, 0, 0)),
                scratch_shapes=[pltpu.VMEM((bt, p2, F), jnp.bfloat16)]),
            compiler_params=pltpu.CompilerParams(
                dimension_semantics=("parallel",)),
        )(x_flat,
          self.w_feat, self.b_feat.reshape(1, F),
          self.w_gen, self.b_gen.reshape(1, C))

        # Drop the 2 junk columns per padded row (free XLA slice/reshape).
        return out.reshape(n, C, H, Wp2)[:, :, :, :W]

    # TODO(synk): backprop / Adam optimizers / loss evaluation are training-time
    # machinery, not part of the forward kernel; omitted.


def _reference_forward(model, x1, x2, x3):
    """Pure-JAX reference (lax.conv) matching the kernel's bf16/f32 precision."""
    x = jnp.concatenate((x1, x2, x3), axis=1)                     # NCHW f32
    x = jnp.transpose(x, (0, 2, 3, 1)).astype(jnp.bfloat16)       # NHWC bf16

    def conv(x_nhwc, w9, b, relu):
        cin, cout = w9.shape[1], w9.shape[2]
        w = w9.reshape(3, 3, cin, cout)                           # HWIO, bf16
        y = jax.lax.conv_general_dilated(
            x_nhwc, w, window_strides=(1, 1), padding="SAME",
            dimension_numbers=("NHWC", "HWIO", "NHWC"),
            preferred_element_type=jnp.float32)
        y = y + b[None, None, None, :]
        return jnp.maximum(y, 0.0) if relu else y

    f = conv(x, model.w_feat, model.b_feat, True).astype(jnp.bfloat16)
    y = conv(f, model.w_gen, model.b_gen, False)                  # (N,H,W,C) f32
    return jnp.transpose(y, (0, 3, 1, 2))                         # NCHW


if __name__ == "__main__":
    key = jax.random.PRNGKey(0)
    kx1, kx2, kx3, kp = jax.random.split(key, 4)

    N, C, H, W = 2, 4, 16, 16
    F = 32

    x1 = jax.random.normal(kx1, (N, C, H, W), jnp.float32)
    x2 = jax.random.normal(kx2, (N, C, H, W), jnp.float32)
    x3 = jax.random.normal(kx3, (N, C, H, W), jnp.float32)

    model = FlowCatFrameGenModelPallas(H, W, in_channels=C,
                                       feature_channels=F, key=kp)

    out = jax.block_until_ready(jax.jit(model.forward)(x1, x2, x3))
    assert out.shape == (N, C, H, W), out.shape

    ref = jax.block_until_ready(_reference_forward(model, x1, x2, x3))
    max_err = float(jnp.max(jnp.abs(out - ref)))
    assert jnp.allclose(out, ref, atol=5e-3, rtol=5e-3), max_err

    print("KERNEL_OK")
</pallas_src>

<mosaic_0001>
module attributes {stable_mosaic.version = 11 : i64} {
  func.func @_fused_forward_kernel(%arg0: i32, %arg1: memref<1x342x12xbf16, #tpu.memory_space<vmem>>, %arg2: memref<9x12x32xbf16, #tpu.memory_space<vmem>>, %arg3: memref<1x32xf32, #tpu.memory_space<vmem>>, %arg4: memref<9x32x4xbf16, #tpu.memory_space<vmem>>, %arg5: memref<1x4xf32, #tpu.memory_space<vmem>>, %arg6: memref<1x4x288xf32, #tpu.memory_space<vmem>>, %arg7: memref<1x336x32xbf16, #tpu.memory_space<vmem>>) attributes {dimension_semantics = [#tpu.dimension_semantics<parallel>], iteration_bounds = array<i64: 2>, scalar_prefetch = 0 : i64, scratch_operands = 1 : i64, tpu.core_type = #tpu.core_type<tc>, window_params = [{transform_indices = @transform_0, window_bounds = array<i64: 1, 342, 12>}, {pipeline_mode = #tpu.pipeline_mode<synchronous>, transform_indices = @transform_1, window_bounds = array<i64: 9, 12, 32>}, {pipeline_mode = #tpu.pipeline_mode<synchronous>, transform_indices = @transform_2, window_bounds = array<i64: 1, 32>}, {pipeline_mode = #tpu.pipeline_mode<synchronous>, transform_indices = @transform_3, window_bounds = array<i64: 9, 32, 4>}, {pipeline_mode = #tpu.pipeline_mode<synchronous>, transform_indices = @transform_4, window_bounds = array<i64: 1, 4>}, {transform_indices = @transform_5, window_bounds = array<i64: 1, 4, 288>}]} {
    %c0 = arith.constant 0 : index
    %c0_0 = arith.constant 0 : index
    %c0_1 = arith.constant 0 : index
    %0 = vector.load %arg1[%c0, %c0_0, %c0_1] : memref<1x342x12xbf16, #tpu.memory_space<vmem>>, vector<1x288x12xbf16>
    %1 = vector.shape_cast %0 : vector<1x288x12xbf16> to vector<288x12xbf16>
    %c0_2 = arith.constant 0 : index
    %c0_3 = arith.constant 0 : index
    %c0_4 = arith.constant 0 : index
    %2 = vector.load %arg2[%c0_2, %c0_3, %c0_4] : memref<9x12x32xbf16, #tpu.memory_space<vmem>>, vector<1x12x32xbf16>
    %3 = vector.shape_cast %2 : vector<1x12x32xbf16> to vector<12x32xbf16>
    %cst = arith.constant dense<0.000000e+00> : vector<288x32xf32>
    %4 = tpu.matmul %1, %3, %cst {dimension_numbers = #tpu.dot_dimension_numbers<[1], [0], [0], [1], [0, 0, 1, 1], [], []>} : vector<288x12xbf16>, vector<12x32xbf16>, vector<288x32xf32> -> vector<288x32xf32>
    %c0_5 = arith.constant 0 : index
    %c1 = arith.constant 1 : index
    %c0_6 = arith.constant 0 : index
    %5 = vector.load %arg1[%c0_5, %c1, %c0_6] : memref<1x342x12xbf16, #tpu.memory_space<vmem>>, vector<1x288x12xbf16>
    %6 = vector.shape_cast %5 : vector<1x288x12xbf16> to vector<288x12xbf16>
    %c1_7 = arith.constant 1 : index
    %c0_8 = arith.constant 0 : index
    %c0_9 = arith.constant 0 : index
    %7 = vector.load %arg2[%c1_7, %c0_8, %c0_9] : memref<9x12x32xbf16, #tpu.memory_space<vmem>>, vector<1x12x32xbf16>
    %8 = vector.shape_cast %7 : vector<1x12x32xbf16> to vector<12x32xbf16>
    %cst_10 = arith.constant dense<0.000000e+00> : vector<288x32xf32>
    %9 = tpu.matmul %6, %8, %cst_10 {dimension_numbers = #tpu.dot_dimension_numbers<[1], [0], [0], [1], [0, 0, 1, 1], [], []>} : vector<288x12xbf16>, vector<12x32xbf16>, vector<288x32xf32> -> vector<288x32xf32>
    %10 = arith.addf %4, %9 : vector<288x32xf32>
    %c0_11 = arith.constant 0 : index
    %c2 = arith.constant 2 : index
    %c0_12 = arith.constant 0 : index
    %11 = vector.load %arg1[%c0_11, %c2, %c0_12] : memref<1x342x12xbf16, #tpu.memory_space<vmem>>, vector<1x288x12xbf16>
    %12 = vector.shape_cast %11 : vector<1x288x12xbf16> to vector<288x12xbf16>
    %c2_13 = arith.constant 2 : index
    %c0_14 = arith.constant 0 : index
    %c0_15 = arith.constant 0 : index
    %13 = vector.load %arg2[%c2_13, %c0_14, %c0_15] : memref<9x12x32xbf16, #tpu.memory_space<vmem>>, vector<1x12x32xbf16>
    %14 = vector.shape_cast %13 : vector<1x12x32xbf16> to vector<12x32xbf16>
    %cst_16 = arith.constant dense<0.000000e+00> : vector<288x32xf32>
    %15 = tpu.matmul %12, %14, %cst_16 {dimension_numbers = #tpu.dot_dimension_numbers<[1], [0], [0], [1], [0, 0, 1, 1], [], []>} : vector<288x12xbf16>, vector<12x32xbf16>, vector<288x32xf32> -> vector<288x32xf32>
    %16 = arith.addf %10, %15 : vector<288x32xf32>
    %c0_17 = arith.constant 0 : index
    %c18 = arith.constant 18 : index
    %c0_18 = arith.constant 0 : index
    %17 = vector.load %arg1[%c0_17, %c18, %c0_18] : memref<1x342x12xbf16, #tpu.memory_space<vmem>>, vector<1x288x12xbf16>
    %18 = vector.shape_cast %17 : vector<1x288x12xbf16> to vector<288x12xbf16>
    %c3 = arith.constant 3 : index
    %c0_19 = arith.constant 0 : index
    %c0_20 = arith.constant 0 : index
    %19 = vector.load %arg2[%c3, %c0_19, %c0_20] : memref<9x12x32xbf16, #tpu.memory_space<vmem>>, vector<1x12x32xbf16>
    %20 = vector.shape_cast %19 : vector<1x12x32xbf16> to vector<12x32xbf16>
    %cst_21 = arith.constant dense<0.000000e+00> : vector<288x32xf32>
    %21 = tpu.matmul %18, %20, %cst_21 {dimension_numbers = #tpu.dot_dimension_numbers<[1], [0], [0], [1], [0, 0, 1, 1], [], []>} : vector<288x12xbf16>, vector<12x32xbf16>, vector<288x32xf32> -> vector<288x32xf32>
    %22 = arith.addf %16, %21 : vector<288x32xf32>
    %c0_22 = arith.constant 0 : index
    %c19 = arith.constant 19 : index
    %c0_23 = arith.constant 0 : index
    %23 = vector.load %arg1[%c0_22, %c19, %c0_23] : memref<1x342x12xbf16, #tpu.memory_space<vmem>>, vector<1x288x12xbf16>
    %24 = vector.shape_cast %23 : vector<1x288x12xbf16> to vector<288x12xbf16>
    %c4 = arith.constant 4 : index
    %c0_24 = arith.constant 0 : index
    %c0_25 = arith.constant 0 : index
    %25 = vector.load %arg2[%c4, %c0_24, %c0_25] : memref<9x12x32xbf16, #tpu.memory_space<vmem>>, vector<1x12x32xbf16>
    %26 = vector.shape_cast %25 : vector<1x12x32xbf16> to vector<12x32xbf16>
    %cst_26 = arith.constant dense<0.000000e+00> : vector<288x32xf32>
    %27 = tpu.matmul %24, %26, %cst_26 {dimension_numbers = #tpu.dot_dimension_numbers<[1], [0], [0], [1], [0, 0, 1, 1], [], []>} : vector<288x12xbf16>, vector<12x32xbf16>, vector<288x32xf32> -> vector<288x32xf32>
    %28 = arith.addf %22, %27 : vector<288x32xf32>
    %c0_27 = arith.constant 0 : index
    %c20 = arith.constant 20 : index
    %c0_28 = arith.constant 0 : index
    %29 = vector.load %arg1[%c0_27, %c20, %c0_28] : memref<1x342x12xbf16, #tpu.memory_space<vmem>>, vector<1x288x12xbf16>
    %30 = vector.shape_cast %29 : vector<1x288x12xbf16> to vector<288x12xbf16>
    %c5 = arith.constant 5 : index
    %c0_29 = arith.constant 0 : index
    %c0_30 = arith.constant 0 : index
    %31 = vector.load %arg2[%c5, %c0_29, %c0_30] : memref<9x12x32xbf16, #tpu.memory_space<vmem>>, vector<1x12x32xbf16>
    %32 = vector.shape_cast %31 : vector<1x12x32xbf16> to vector<12x32xbf16>
    %cst_31 = arith.constant dense<0.000000e+00> : vector<288x32xf32>
    %33 = tpu.matmul %30, %32, %cst_31 {dimension_numbers = #tpu.dot_dimension_numbers<[1], [0], [0], [1], [0, 0, 1, 1], [], []>} : vector<288x12xbf16>, vector<12x32xbf16>, vector<288x32xf32> -> vector<288x32xf32>
    %34 = arith.addf %28, %33 : vector<288x32xf32>
    %c0_32 = arith.constant 0 : index
    %c36 = arith.constant 36 : index
    %c0_33 = arith.constant 0 : index
    %35 = vector.load %arg1[%c0_32, %c36, %c0_33] : memref<1x342x12xbf16, #tpu.memory_space<vmem>>, vector<1x288x12xbf16>
    %36 = vector.shape_cast %35 : vector<1x288x12xbf16> to vector<288x12xbf16>
    %c6 = arith.constant 6 : index
    %c0_34 = arith.constant 0 : index
    %c0_35 = arith.constant 0 : index
    %37 = vector.load %arg2[%c6, %c0_34, %c0_35] : memref<9x12x32xbf16, #tpu.memory_space<vmem>>, vector<1x12x32xbf16>
    %38 = vector.shape_cast %37 : vector<1x12x32xbf16> to vector<12x32xbf16>
    %cst_36 = arith.constant dense<0.000000e+00> : vector<288x32xf32>
    %39 = tpu.matmul %36, %38, %cst_36 {dimension_numbers = #tpu.dot_dimension_numbers<[1], [0], [0], [1], [0, 0, 1, 1], [], []>} : vector<288x12xbf16>, vector<12x32xbf16>, vector<288x32xf32> -> vector<288x32xf32>
    %40 = arith.addf %34, %39 : vector<288x32xf32>
    %c0_37 = arith.constant 0 : index
    %c37 = arith.constant 37 : index
    %c0_38 = arith.constant 0 : index
    %41 = vector.load %arg1[%c0_37, %c37, %c0_38] : memref<1x342x12xbf16, #tpu.memory_space<vmem>>, vector<1x288x12xbf16>
    %42 = vector.shape_cast %41 : vector<1x288x12xbf16> to vector<288x12xbf16>
    %c7 = arith.constant 7 : index
    %c0_39 = arith.constant 0 : index
    %c0_40 = arith.constant 0 : index
    %43 = vector.load %arg2[%c7, %c0_39, %c0_40] : memref<9x12x32xbf16, #tpu.memory_space<vmem>>, vector<1x12x32xbf16>
    %44 = vector.shape_cast %43 : vector<1x12x32xbf16> to vector<12x32xbf16>
    %cst_41 = arith.constant dense<0.000000e+00> : vector<288x32xf32>
    %45 = tpu.matmul %42, %44, %cst_41 {dimension_numbers = #tpu.dot_dimension_numbers<[1], [0], [0], [1], [0, 0, 1, 1], [], []>} : vector<288x12xbf16>, vector<12x32xbf16>, vector<288x32xf32> -> vector<288x32xf32>
    %46 = arith.addf %40, %45 : vector<288x32xf32>
    %c0_42 = arith.constant 0 : index
    %c38 = arith.constant 38 : index
    %c0_43 = arith.constant 0 : index
    %47 = vector.load %arg1[%c0_42, %c38, %c0_43] : memref<1x342x12xbf16, #tpu.memory_space<vmem>>, vector<1x288x12xbf16>
    %48 = vector.shape_cast %47 : vector<1x288x12xbf16> to vector<288x12xbf16>
    %c8 = arith.constant 8 : index
    %c0_44 = arith.constant 0 : index
    %c0_45 = arith.constant 0 : index
    %49 = vector.load %arg2[%c8, %c0_44, %c0_45] : memref<9x12x32xbf16, #tpu.memory_space<vmem>>, vector<1x12x32xbf16>
    %50 = vector.shape_cast %49 : vector<1x12x32xbf16> to vector<12x32xbf16>
    %cst_46 = arith.constant dense<0.000000e+00> : vector<288x32xf32>
    %51 = tpu.matmul %48, %50, %cst_46 {dimension_numbers = #tpu.dot_dimension_numbers<[1], [0], [0], [1], [0, 0, 1, 1], [], []>} : vector<288x12xbf16>, vector<12x32xbf16>, vector<288x32xf32> -> vector<288x32xf32>
    %52 = arith.addf %46, %51 : vector<288x32xf32>
    %53 = tpu.iota {dimensions = array<i32: 0>} : vector<288x1xi32>
    %c18_i32 = arith.constant 18 : i32
    %c0_i32 = arith.constant 0 : i32
    %54 = arith.cmpi eq, %c18_i32, %c0_i32 : i32
    %c1_i32 = arith.constant 1 : i32
    %55 = arith.select %54, %c1_i32, %c18_i32 : i32
    %56 = vector.broadcast %55 : i32 to vector<288x1xi32>
    %57 = arith.remsi %53, %56 : vector<288x1xi32>
    %c0_i32_47 = arith.constant 0 : i32
    %58 = vector.broadcast %c0_i32_47 : i32 to vector<288x1xi32>
    %59 = arith.cmpi ne, %57, %58 : vector<288x1xi32>
    %c0_i32_48 = arith.constant 0 : i32
    %60 = vector.broadcast %c0_i32_48 : i32 to vector<288x1xi32>
    %61 = arith.cmpi slt, %57, %60 : vector<288x1xi32>
    %c0_i32_49 = arith.constant 0 : i32
    %62 = arith.cmpi slt, %55, %c0_i32_49 : i32
    %63 = vector.broadcast %62 : i1 to vector<288x1xi1>
    %64 = vector.broadcast %63 : vector<288x1xi1> to vector<288x1xi1>
    %65 = arith.xori %61, %64 : vector<288x1xi1>
    %66 = arith.andi %65, %59 : vector<288x1xi1>
    %67 = vector.broadcast %55 : i32 to vector<288x1xi32>
    %68 = arith.addi %57, %67 : vector<288x1xi32>
    %69 = arith.select %66, %68, %57 : vector<288x1xi1>, vector<288x1xi32>
    %c16_i32 = arith.constant 16 : i32
    %70 = vector.broadcast %c16_i32 : i32 to vector<288x1xi32>
    %71 = arith.cmpi slt, %69, %70 : vector<288x1xi32>
    %c0_50 = arith.constant 0 : index
    %c0_51 = arith.constant 0 : index
    %72 = vector.load %arg3[%c0_50, %c0_51] : memref<1x32xf32, #tpu.memory_space<vmem>>, vector<1x32xf32>
    %73 = vector.broadcast %72 : vector<1x32xf32> to vector<288x32xf32>
    %74 = arith.addf %52, %73 : vector<288x32xf32>
    %cst_52 = arith.constant 0.000000e+00 : f32
    %75 = vector.broadcast %cst_52 : f32 to vector<288x32xf32>
    %76 = arith.maximumf %74, %75 : vector<288x32xf32>
    %cst_53 = arith.constant 0.000000e+00 : f32
    %77 = vector.shape_cast %71 : vector<288x1xi1> to vector<288x1xi1>
    %78 = vector.broadcast %77 : vector<288x1xi1> to vector<288x32xi1>
    %79 = vector.broadcast %cst_53 : f32 to vector<288x32xf32>
    %80 = arith.select %78, %76, %79 : vector<288x32xi1>, vector<288x32xf32>
    %cst_54 = arith.constant 0.000000e+00 : bf16
    %81 = vector.broadcast %cst_54 : bf16 to vector<1x24x32xbf16>
    %c0_55 = arith.constant 0 : index
    %c0_56 = arith.constant 0 : index
    %c0_57 = arith.constant 0 : index
    %82 = vector.load %arg7[%c0_55, %c0_56, %c0_57] : memref<1x336x32xbf16, #tpu.memory_space<vmem>>, vector<1x24x32xbf16>
    tpu.vector_store %arg7[%c0_55, %c0_56, %c0_57], %81 {strides = array<i32>} : memref<1x336x32xbf16, #tpu.memory_space<vmem>>, vector<1x24x32xbf16>,
    %cst_58 = arith.constant 0.000000e+00 : bf16
    %83 = vector.broadcast %cst_58 : bf16 to vector<1x24x32xbf16>
    %c0_59 = arith.constant 0 : index
    %c312 = arith.constant 312 : index
    %c0_60 = arith.constant 0 : index
    %84 = vector.load %arg7[%c0_59, %c312, %c0_60] : memref<1x336x32xbf16, #tpu.memory_space<vmem>>, vector<1x24x32xbf16>
    tpu.vector_store %arg7[%c0_59, %c312, %c0_60], %83 {strides = array<i32>} : memref<1x336x32xbf16, #tpu.memory_space<vmem>>, vector<1x24x32xbf16>,
    %85 = arith.truncf %80 : vector<288x32xf32> to vector<288x32xbf16>
    %86 = vector.shape_cast %85 : vector<288x32xbf16> to vector<1x288x32xbf16>
    %c0_61 = arith.constant 0 : index
    %c24 = arith.constant 24 : index
    %c0_62 = arith.constant 0 : index
    %87 = vector.load %arg7[%c0_61, %c24, %c0_62] : memref<1x336x32xbf16, #tpu.memory_space<vmem>>, vector<1x288x32xbf16>
    tpu.vector_store %arg7[%c0_61, %c24, %c0_62], %86 {strides = array<i32>} : memref<1x336x32xbf16, #tpu.memory_space<vmem>>, vector<1x288x32xbf16>,
    %c0_63 = arith.constant 0 : index
    %c5_64 = arith.constant 5 : index
    %c0_65 = arith.constant 0 : index
    %88 = vector.load %arg7[%c0_63, %c5_64, %c0_65] : memref<1x336x32xbf16, #tpu.memory_space<vmem>>, vector<1x288x32xbf16>
    %89 = vector.shape_cast %88 : vector<1x288x32xbf16> to vector<288x32xbf16>
    %c0_66 = arith.constant 0 : index
    %c0_67 = arith.constant 0 : index
    %c0_68 = arith.constant 0 : index
    %90 = vector.load %arg4[%c0_66, %c0_67, %c0_68] : memref<9x32x4xbf16, #tpu.memory_space<vmem>>, vector<1x32x4xbf16>
    %91 = vector.shape_cast %90 : vector<1x32x4xbf16> to vector<32x4xbf16>
    %cst_69 = arith.constant dense<0.000000e+00> : vector<288x4xf32>
    %92 = tpu.matmul %89, %91, %cst_69 {dimension_numbers = #tpu.dot_dimension_numbers<[1], [0], [0], [1], [0, 0, 1, 1], [], []>} : vector<288x32xbf16>, vector<32x4xbf16>, vector<288x4xf32> -> vector<288x4xf32>
    %c0_70 = arith.constant 0 : index
    %c6_71 = arith.constant 6 : index
    %c0_72 = arith.constant 0 : index
    %93 = vector.load %arg7[%c0_70, %c6_71, %c0_72] : memref<1x336x32xbf16, #tpu.memory_space<vmem>>, vector<1x288x32xbf16>
    %94 = vector.shape_cast %93 : vector<1x288x32xbf16> to vector<288x32xbf16>
    %c1_73 = arith.constant 1 : index
    %c0_74 = arith.constant 0 : index
    %c0_75 = arith.constant 0 : index
    %95 = vector.load %arg4[%c1_73, %c0_74, %c0_75] : memref<9x32x4xbf16, #tpu.memory_space<vmem>>, vector<1x32x4xbf16>
    %96 = vector.shape_cast %95 : vector<1x32x4xbf16> to vector<32x4xbf16>
    %cst_76 = arith.constant dense<0.000000e+00> : vector<288x4xf32>
    %97 = tpu.matmul %94, %96, %cst_76 {dimension_numbers = #tpu.dot_dimension_numbers<[1], [0], [0], [1], [0, 0, 1, 1], [], []>} : vector<288x32xbf16>, vector<32x4xbf16>, vector<288x4xf32> -> vector<288x4xf32>
    %98 = arith.addf %92, %97 : vector<288x4xf32>
    %c0_77 = arith.constant 0 : index
    %c7_78 = arith.constant 7 : index
    %c0_79 = arith.constant 0 : index
    %99 = vector.load %arg7[%c0_77, %c7_78, %c0_79] : memref<1x336x32xbf16, #tpu.memory_space<vmem>>, vector<1x288x32xbf16>
    %100 = vector.shape_cast %99 : vector<1x288x32xbf16> to vector<288x32xbf16>
    %c2_80 = arith.constant 2 : index
    %c0_81 = arith.constant 0 : index
    %c0_82 = arith.constant 0 : index
    %101 = vector.load %arg4[%c2_80, %c0_81, %c0_82] : memref<9x32x4xbf16, #tpu.memory_space<vmem>>, vector<1x32x4xbf16>
    %102 = vector.shape_cast %101 : vector<1x32x4xbf16> to vector<32x4xbf16>
    %cst_83 = arith.constant dense<0.000000e+00> : vector<288x4xf32>
    %103 = tpu.matmul %100, %102, %cst_83 {dimension_numbers = #tpu.dot_dimension_numbers<[1], [0], [0], [1], [0, 0, 1, 1], [], []>} : vector<288x32xbf16>, vector<32x4xbf16>, vector<288x4xf32> -> vector<288x4xf32>
    %104 = arith.addf %98, %103 : vector<288x4xf32>
    %c0_84 = arith.constant 0 : index
    %c23 = arith.constant 23 : index
    %c0_85 = arith.constant 0 : index
    %105 = vector.load %arg7[%c0_84, %c23, %c0_85] : memref<1x336x32xbf16, #tpu.memory_space<vmem>>, vector<1x288x32xbf16>
    %106 = vector.shape_cast %105 : vector<1x288x32xbf16> to vector<288x32xbf16>
    %c3_86 = arith.constant 3 : index
    %c0_87 = arith.constant 0 : index
    %c0_88 = arith.constant 0 : index
    %107 = vector.load %arg4[%c3_86, %c0_87, %c0_88] : memref<9x32x4xbf16, #tpu.memory_space<vmem>>, vector<1x32x4xbf16>
    %108 = vector.shape_cast %107 : vector<1x32x4xbf16> to vector<32x4xbf16>
    %cst_89 = arith.constant dense<0.000000e+00> : vector<288x4xf32>
    %109 = tpu.matmul %106, %108, %cst_89 {dimension_numbers = #tpu.dot_dimension_numbers<[1], [0], [0], [1], [0, 0, 1, 1], [], []>} : vector<288x32xbf16>, vector<32x4xbf16>, vector<288x4xf32> -> vector<288x4xf32>
    %110 = arith.addf %104, %109 : vector<288x4xf32>
    %c0_90 = arith.constant 0 : index
    %c24_91 = arith.constant 24 : index
    %c0_92 = arith.constant 0 : index
    %111 = vector.load %arg7[%c0_90, %c24_91, %c0_92] : memref<1x336x32xbf16, #tpu.memory_space<vmem>>, vector<1x288x32xbf16>
    %112 = vector.shape_cast %111 : vector<1x288x32xbf16> to vector<288x32xbf16>
    %c4_93 = arith.constant 4 : index
    %c0_94 = arith.constant 0 : index
    %c0_95 = arith.constant 0 : index
    %113 = vector.load %arg4[%c4_93, %c0_94, %c0_95] : memref<9x32x4xbf16, #tpu.memory_space<vmem>>, vector<1x32x4xbf16>
    %114 = vector.shape_cast %113 : vector<1x32x4xbf16> to vector<32x4xbf16>
    %cst_96 = arith.constant dense<0.000000e+00> : vector<288x4xf32>
    %115 = tpu.matmul %112, %114, %cst_96 {dimension_numbers = #tpu.dot_dimension_numbers<[1], [0], [0], [1], [0, 0, 1, 1], [], []>} : vector<288x32xbf16>, vector<32x4xbf16>, vector<288x4xf32> -> vector<288x4xf32>
    %116 = arith.addf %110, %115 : vector<288x4xf32>
    %c0_97 = arith.constant 0 : index
    %c25 = arith.constant 25 : index
    %c0_98 = arith.constant 0 : index
    %117 = vector.load %arg7[%c0_97, %c25, %c0_98] : memref<1x336x32xbf16, #tpu.memory_space<vmem>>, vector<1x288x32xbf16>
    %118 = vector.shape_cast %117 : vector<1x288x32xbf16> to vector<288x32xbf16>
    %c5_99 = arith.constant 5 : index
    %c0_100 = arith.constant 0 : index
    %c0_101 = arith.constant 0 : index
    %119 = vector.load %arg4[%c5_99, %c0_100, %c0_101] : memref<9x32x4xbf16, #tpu.memory_space<vmem>>, vector<1x32x4xbf16>
    %120 = vector.shape_cast %119 : vector<1x32x4xbf16> to vector<32x4xbf16>
    %cst_102 = arith.constant dense<0.000000e+00> : vector<288x4xf32>
    %121 = tpu.matmul %118, %120, %cst_102 {dimension_numbers = #tpu.dot_dimension_numbers<[1], [0], [0], [1], [0, 0, 1, 1], [], []>} : vector<288x32xbf16>, vector<32x4xbf16>, vector<288x4xf32> -> vector<288x4xf32>
    %122 = arith.addf %116, %121 : vector<288x4xf32>
    %c0_103 = arith.constant 0 : index
    %c41 = arith.constant 41 : index
    %c0_104 = arith.constant 0 : index
    %123 = vector.load %arg7[%c0_103, %c41, %c0_104] : memref<1x336x32xbf16, #tpu.memory_space<vmem>>, vector<1x288x32xbf16>
    %124 = vector.shape_cast %123 : vector<1x288x32xbf16> to vector<288x32xbf16>
    %c6_105 = arith.constant 6 : index
    %c0_106 = arith.constant 0 : index
    %c0_107 = arith.constant 0 : index
    %125 = vector.load %arg4[%c6_105, %c0_106, %c0_107] : memref<9x32x4xbf16, #tpu.memory_space<vmem>>, vector<1x32x4xbf16>
    %126 = vector.shape_cast %125 : vector<1x32x4xbf16> to vector<32x4xbf16>
    %cst_108 = arith.constant dense<0.000000e+00> : vector<288x4xf32>
    %127 = tpu.matmul %124, %126, %cst_108 {dimension_numbers = #tpu.dot_dimension_numbers<[1], [0], [0], [1], [0, 0, 1, 1], [], []>} : vector<288x32xbf16>, vector<32x4xbf16>, vector<288x4xf32> -> vector<288x4xf32>
    %128 = arith.addf %122, %127 : vector<288x4xf32>
    %c0_109 = arith.constant 0 : index
    %c42 = arith.constant 42 : index
    %c0_110 = arith.constant 0 : index
    %129 = vector.load %arg7[%c0_109, %c42, %c0_110] : memref<1x336x32xbf16, #tpu.memory_space<vmem>>, vector<1x288x32xbf16>
    %130 = vector.shape_cast %129 : vector<1x288x32xbf16> to vector<288x32xbf16>
    %c7_111 = arith.constant 7 : index
    %c0_112 = arith.constant 0 : index
    %c0_113 = arith.constant 0 : index
    %131 = vector.load %arg4[%c7_111, %c0_112, %c0_113] : memref<9x32x4xbf16, #tpu.memory_space<vmem>>, vector<1x32x4xbf16>
    %132 = vector.shape_cast %131 : vector<1x32x4xbf16> to vector<32x4xbf16>
    %cst_114 = arith.constant dense<0.000000e+00> : vector<288x4xf32>
    %133 = tpu.matmul %130, %132, %cst_114 {dimension_numbers = #tpu.dot_dimension_numbers<[1], [0], [0], [1], [0, 0, 1, 1], [], []>} : vector<288x32xbf16>, vector<32x4xbf16>, vector<288x4xf32> -> vector<288x4xf32>
    %134 = arith.addf %128, %133 : vector<288x4xf32>
    %c0_115 = arith.constant 0 : index
    %c43 = arith.constant 43 : index
    %c0_116 = arith.constant 0 : index
    %135 = vector.load %arg7[%c0_115, %c43, %c0_116] : memref<1x336x32xbf16, #tpu.memory_space<vmem>>, vector<1x288x32xbf16>
    %136 = vector.shape_cast %135 : vector<1x288x32xbf16> to vector<288x32xbf16>
    %c8_117 = arith.constant 8 : index
    %c0_118 = arith.constant 0 : index
    %c0_119 = arith.constant 0 : index
    %137 = vector.load %arg4[%c8_117, %c0_118, %c0_119] : memref<9x32x4xbf16, #tpu.memory_space<vmem>>, vector<1x32x4xbf16>
    %138 = vector.shape_cast %137 : vector<1x32x4xbf16> to vector<32x4xbf16>
    %cst_120 = arith.constant dense<0.000000e+00> : vector<288x4xf32>
    %139 = tpu.matmul %136, %138, %cst_120 {dimension_numbers = #tpu.dot_dimension_numbers<[1], [0], [0], [1], [0, 0, 1, 1], [], []>} : vector<288x32xbf16>, vector<32x4xbf16>, vector<288x4xf32> -> vector<288x4xf32>
    %140 = arith.addf %134, %139 : vector<288x4xf32>
    %c0_121 = arith.constant 0 : index
    %c0_122 = arith.constant 0 : index
    %141 = vector.load %arg5[%c0_121, %c0_122] : memref<1x4xf32, #tpu.memory_space<vmem>>, vector<1x4xf32>
    %142 = vector.broadcast %141 : vector<1x4xf32> to vector<288x4xf32>
    %143 = arith.addf %140, %142 : vector<288x4xf32>
    %144 = vector.shape_cast %143 : vector<288x4xf32> to vector<1x288x4xf32>
    %145 = tpu.transpose %144, [0, 2, 1] : vector<1x288x4xf32> -> vector<1x4x288xf32>
    %c0_123 = arith.constant 0 : index
    %c0_124 = arith.constant 0 : index
    %c0_125 = arith.constant 0 : index
    %146 = vector.load %arg6[%c0_123, %c0_124, %c0_125] : memref<1x4x288xf32, #tpu.memory_space<vmem>>, vector<1x4x288xf32>
    tpu.vector_store %arg6[%c0_123, %c0_124, %c0_125], %145 {strides = array<i32>} : memref<1x4x288xf32, #tpu.memory_space<vmem>>, vector<1x4x288xf32>,
    return
  }
  func.func @transform_0(%arg0: i32) -> (i32, i32, i32) {
    %c0_i32 = arith.constant 0 : i32
    %c0_i32_0 = arith.constant 0 : i32
    %c0_i32_1 = arith.constant 0 : i32
    return %arg0, %c0_i32, %c0_i32_0 : i32, i32, i32
  }
  func.func @transform_1(%arg0: i32) -> (i32, i32, i32) {
    %c0_i32 = arith.constant 0 : i32
    %c0_i32_0 = arith.constant 0 : i32
    %c0_i32_1 = arith.constant 0 : i32
    %c0_i32_2 = arith.constant 0 : i32
    return %c0_i32, %c0_i32_0, %c0_i32_1 : i32, i32, i32
  }
  func.func @transform_2(%arg0: i32) -> (i32, i32) {
    %c0_i32 = arith.constant 0 : i32
    %c0_i32_0 = arith.constant 0 : i32
    %c0_i32_1 = arith.constant 0 : i32
    return %c0_i32, %c0_i32_0 : i32, i32
  }
  func.func @transform_3(%arg0: i32) -> (i32, i32, i32) {
    %c0_i32 = arith.constant 0 : i32
    %c0_i32_0 = arith.constant 0 : i32
    %c0_i32_1 = arith.constant 0 : i32
    %c0_i32_2 = arith.constant 0 : i32
    return %c0_i32, %c0_i32_0, %c0_i32_1 : i32, i32, i32
  }
  func.func @transform_4(%arg0: i32) -> (i32, i32) {
    %c0_i32 = arith.constant 0 : i32
    %c0_i32_0 = arith.constant 0 : i32
    %c0_i32_1 = arith.constant 0 : i32
    return %c0_i32, %c0_i32_0 : i32, i32
  }
  func.func @transform_5(%arg0: i32) -> (i32, i32, i32) {
    %c0_i32 = arith.constant 0 : i32
    %c0_i32_0 = arith.constant 0 : i32
    %c0_i32_1 = arith.constant 0 : i32
    return %arg0, %c0_i32, %c0_i32_0 : i32, i32, i32
  }
}

</mosaic_0001>

<llo_original>
// kernel: forward.1
$region0: #{forward.1}
  #allocation0 [shape = 'u32[]', space=smem, size = 0x4, offset = 0x4, fixed_abs, tag = 'smem constant byte address 0x4 - core index']
  #allocation1 [shape = 'u32[144,128]{1,0:T(1,128)}', space=vmem, size = 0x12000, scoped, tag = 'internal scratch']
  #allocation2 [shape = 'bf16[1,336,32]{2,1,0:T(8,128)(2,1)}', space=vmem, size = 0x15000, scoped, tag = 'scratch operand']
  %s0 = inlined_call_operand.vmem [shape: bf16[2,342,12], index: 0, kind: input, shape index: {}]
  %s1 = inlined_call_operand.vmem [shape: bf16[9,12,32], index: 1, kind: input, shape index: {}]
  %s2 = inlined_call_operand.vmem [shape: f32[1,32], index: 2, kind: input, shape index: {}]
  %s3 = inlined_call_operand.vmem [shape: bf16[9,32,4], index: 3, kind: input, shape index: {}]
  %s4 = inlined_call_operand.vmem [shape: f32[1,4], index: 4, kind: input, shape index: {}]
  %s5 = inlined_call_operand.vmem [shape: f32[2,4,288], index: 5, kind: output, shape index: {}]
  %s6 = sld [smem:[#allocation0]]
  $region53: #{forward.1} parent=0
    _
  %s8 = ssub.s32 1, %s6
  %s9 = scalar_select 0, %s8, %s6
  loop: start=0, step=1, limit=4
  $region2: #{forward.1} parent=0 // loop_pre_header
    _
  $region3: #{forward.1} parent=0 // loop_header
    %s11 = sphi 0, %s15
    %p12 = scmp.ge.s32.totalorder %s11, 4
    %s21 = sphi 0, %s23
    %s24 = sphi 0, %s21
    %s25 = sphi 0, %s24
    %s41 = sphi 0, %s25
    %s45 = sphi 0, %s45
    %s47 = sphi 0, %s45
    %s48 = sphi 0, %s47
    %s62 = sphi 0, %s48
    %s66 = sphi 0, %s66
    %s68 = sphi 0, %s66
    %s69 = sphi 0, %s68
    %s83 = sphi 0, %s69
    %s87 = sphi 0, %s87
    %s89 = sphi 0, %s87
    %s90 = sphi 0, %s89
    %s104 = sphi 0, %s90
    %s108 = sphi 0, %s108
    %s110 = sphi 0, %s108
    %s111 = sphi 0, %s110
    %s125 = sphi 0, %s111
    %s131 = sphi 0, %s133
    %s134 = sphi 0, %s131
    %s135 = sphi 0, %s134
    %s151 = sphi 0, %s135
  $region4: #{forward.1} parent=0 // loop_header_branch
    %14 = sbr.rel (%p12) target = $region8
  $region5: #{forward.1} parent=0 // loop_body
    %s16 = ssub.s32 %s11, 1
    %s17 = ssub.s32 %s11, 2
    %s18 = sadd.s32 %s11, 1
    %s19 = ssub.s32 %s11, %s18
    %p20 = scmp.eq.s32.totalorder %s19, 0
    %s22 = sadd.s32 %s21, 1
    %s23 = scalar_select %p20, %s21, %s22
    %p26 = pneg %p20
    %p27 = scmp.eq.s32.totalorder %s11, 1
    %p28 = por %p26, %p27
    %p29 = scmp.ne.s32.totalorder %s21, %s24
    %p30 = scmp.eq.s32.totalorder %s11, 0
    %p31 = por %p29, %p30
    %p32 = scmp.ne.s32.totalorder %s21, %s24
    %p33 = scmp.eq.s32.totalorder %s16, 1
    %p34 = por %p32, %p33
    %p35 = scmp.ne.s32.totalorder %s24, %s25
    %p36 = scmp.eq.s32.totalorder %s16, 0
    %p37 = por %p35, %p36
    %p38 = scmp.ne.s32.totalorder %s24, %s25
    %p39 = scmp.eq.s32.totalorder %s17, 1
    %p40 = por %p38, %p39
    %p42 = scmp.ne.s32.totalorder %s25, %s41
    %p43 = scmp.eq.s32.totalorder %s17, 0
    %p44 = por %p42, %p43
    %s46 = sadd.s32 %s45, 1
    %p49 = scmp.eq.s32.totalorder %s11, 1
    %p50 = scmp.ne.s32.totalorder %s45, %s47
    %p51 = scmp.eq.s32.totalorder %s11, 0
    %p52 = por %p50, %p51
    %p53 = scmp.ne.s32.totalorder %s45, %s47
    %p54 = scmp.eq.s32.totalorder %s16, 1
    %p55 = por %p53, %p54
    %p56 = scmp.ne.s32.totalorder %s47, %s48
    %p57 = scmp.eq.s32.totalorder %s16, 0
    %p58 = por %p56, %p57
    %p59 = scmp.ne.s32.totalorder %s47, %s48
    %p60 = scmp.eq.s32.totalorder %s17, 1
    %p61 = por %p59, %p60
    %p63 = scmp.ne.s32.totalorder %s48, %s62
    %p64 = scmp.eq.s32.totalorder %s17, 0
    %p65 = por %p63, %p64
    %s67 = sadd.s32 %s66, 1
    %p70 = scmp.eq.s32.totalorder %s11, 1
    %p71 = scmp.ne.s32.totalorder %s66, %s68
    %p72 = scmp.eq.s32.totalorder %s11, 0
    %p73 = por %p71, %p72
    %p74 = scmp.ne.s32.totalorder %s66, %s68
    %p75 = scmp.eq.s32.totalorder %s16, 1
    %p76 = por %p74, %p75
    %p77 = scmp.ne.s32.totalorder %s68, %s69
    %p78 = scmp.eq.s32.totalorder %s16, 0
    %p79 = por %p77, %p78
    %p80 = scmp.ne.s32.totalorder %s68, %s69
    %p81 = scmp.eq.s32.totalorder %s17, 1
    %p82 = por %p80, %p81
    %p84 = scmp.ne.s32.totalorder %s69, %s83
    %p85 = scmp.eq.s32.totalorder %s17, 0
    %p86 = por %p84, %p85
    %s88 = sadd.s32 %s87, 1
    %p91 = scmp.eq.s32.totalorder %s11, 1
    %p92 = scmp.ne.s32.totalorder %s87, %s89
    %p93 = scmp.eq.s32.totalorder %s11, 0
    %p94 = por %p92, %p93
    %p95 = scmp.ne.s32.totalorder %s87, %s89
    %p96 = scmp.eq.s32.totalorder %s16, 1
    %p97 = por %p95, %p96
    %p98 = scmp.ne.s32.totalorder %s89, %s90
    %p99 = scmp.eq.s32.totalorder %s16, 0
    %p100 = por %p98, %p99
    %p101 = scmp.ne.s32.totalorder %s89, %s90
    %p102 = scmp.eq.s32.totalorder %s17, 1
    %p103 = por %p101, %p102
    %p105 = scmp.ne.s32.totalorder %s90, %s104
    %p106 = scmp.eq.s32.totalorder %s17, 0
    %p107 = por %p105, %p106
    %s109 = sadd.s32 %s108, 1
    %p112 = scmp.eq.s32.totalorder %s11, 1
    %p113 = scmp.ne.s32.totalorder %s108, %s110
    %p114 = scmp.eq.s32.totalorder %s11, 0
    %p115 = por %p113, %p114
    %p116 = scmp.ne.s32.totalorder %s108, %s110
    %p117 = scmp.eq.s32.totalorder %s16, 1
    %p118 = por %p116, %p117
    %p119 = scmp.ne.s32.totalorder %s110, %s111
    %p120 = scmp.eq.s32.totalorder %s16, 0
    %p121 = por %p119, %p120
    %p122 = scmp.ne.s32.totalorder %s110, %s111
    %p123 = scmp.eq.s32.totalorder %s17, 1
    %p124 = por %p122, %p123
    %p126 = scmp.ne.s32.totalorder %s111, %s125
    %p127 = scmp.eq.s32.totalorder %s17, 0
    %p128 = por %p126, %p127
    %s129 = ssub.s32 %s11, %s18
    %p130 = scmp.eq.s32.totalorder %s129, 0
    %s132 = sadd.s32 %s131, 1
    %s133 = scalar_select %p130, %s131, %s132
    %p136 = pneg %p130
    %p137 = scmp.eq.s32.totalorder %s11, 1
    %p138 = por %p136, %p137
    %p139 = scmp.ne.s32.totalorder %s131, %s134
    %p140 = scmp.eq.s32.totalorder %s11, 0
    %p141 = por %p139, %p140
    %p142 = scmp.ne.s32.totalorder %s131, %s134
    %p143 = scmp.eq.s32.totalorder %s16, 1
    %p144 = por %p142, %p143
    %p145 = scmp.ne.s32.totalorder %s134, %s135
    %p146 = scmp.eq.s32.totalorder %s16, 0
    %p147 = por %p145, %p146
    %p148 = scmp.ne.s32.totalorder %s134, %s135
    %p149 = scmp.eq.s32.totalorder %s17, 1
    %p150 = por %p148, %p149
    %p152 = scmp.ne.s32.totalorder %s135, %s151
    %p153 = scmp.eq.s32.totalorder %s17, 0
    %p154 = por %p152, %p153
    %p155 = scmp.le.s32.totalorder 1, %s11
    %p156 = scmp.lt.s32.totalorder %s11, 3
    %p157 = pnand %p155, %p156
    %p158 = pneg %p157
    // Predicated region
    $region9: #{forward.1} parent=5 // pred_check
      _
    $region10: #{forward.1} parent=5 // pred_check_branch
      %160 = sbr.rel (%p157) target = $region12
    $region11: #{forward.1} parent=5 // pred_region
      %s161 = ssub.s32 %s11, 1
      // Predicated region
      $region13: #{forward.1} parent=11 // pred_check
        %p162 = pneg %p58
      $region14: #{forward.1} parent=11 // pred_check_branch
        %164 = sbr.rel (%p162) target = $region16
      $region15: #{forward.1} parent=11 // pred_region
        _
      $region16: #{forward.1} parent=11 // pred_fallthru
        _
      // Predicated region
      $region17: #{forward.1} parent=11 // pred_check
        %p165 = pneg %p79
      $region18: #{forward.1} parent=11 // pred_check_branch
        %167 = sbr.rel (%p165) target = $region20
      $region19: #{forward.1} parent=11 // pred_region
        _
      $region20: #{forward.1} parent=11 // pred_fallthru
        _
      // Predicated region
      $region21: #{forward.1} parent=11 // pred_check
        %p168 = pneg %p100
      $region22: #{forward.1} parent=11 // pred_check_branch
        %170 = sbr.rel (%p168) target = $region24
      $region23: #{forward.1} parent=11 // pred_region
        _
      $region24: #{forward.1} parent=11 // pred_fallthru
        _
      // Predicated region
      $region25: #{forward.1} parent=11 // pred_check
        %p171 = pneg %p121
      $region26: #{forward.1} parent=11 // pred_check_branch
        %173 = sbr.rel (%p171) target = $region28
      $region27: #{forward.1} parent=11 // pred_region
        _
      $region28: #{forward.1} parent=11 // pred_fallthru
        _
    $region12: #{forward.1} parent=5 // pred_fallthru
      _
    %p174 = scmp.lt.s32.totalorder %s11, 2
    // Predicated region
    $region29: #{forward.1} parent=5 // pred_check
      %p175 = pneg %p174
    $region30: #{forward.1} parent=5 // pred_check_branch
      %177 = sbr.rel (%p175) target = $region32
    $region31: #{forward.1} parent=5 // pred_region
      // Predicated region
      $region33: #{forward.1} parent=31 // pred_check
        %p178 = pneg %p31
      $region34: #{forward.1} parent=31 // pred_check_branch
        %180 = sbr.rel (%p178) target = $region36
      $region35: #{forward.1} parent=31 // pred_region
        %p181 = scmp.lt.s32.totalorder %s11, 1
        %s182 = scalar_select %p181, %s11, 1
        %s183 = smul.addr %s182, 43
        %s184 = smul.addr %s183, 4
        %s185 = scalar_lea.vmem %s0, %s184
      $region36: #{forward.1} parent=31 // pred_fallthru
        _
    $region32: #{forward.1} parent=5 // pred_fallthru
      _
    %p186 = scmp.le.s32.totalorder 1, %s11
    %p187 = scmp.lt.s32.totalorder %s11, 3
    %p188 = pnand %p186, %p187
    %p189 = pneg %p188
    // Predicated region
    $region37: #{forward.1} parent=5 // pred_check
      _
    $region38: #{forward.1} parent=5 // pred_check_branch
      %191 = sbr.rel (%p188) target = $region40
    $region39: #{forward.1} parent=5 // pred_region
      %s192 = ssub.s32 %s11, 1
      %p193 = scmp.lt.s32.totalorder %s16, 1
      %s194 = scalar_select %p193, %s16, 1
      %s195 = smul.addr %s194, 43
      %s196 = smul.addr %s195, 4
      %s197 = scalar_lea.vmem %s0, %s196
      %p198 = pneg %p37
      %p199 = pneg %p34
      %p200 = pneg %p58
      %p201 = pneg %p55
      %p202 = pneg %p79
      %p203 = pneg %p76
      %p204 = pneg %p100
      %p205 = pneg %p97
      %p206 = pneg %p121
      %p207 = pneg %p118
      %p208 = pneg %p147
      %p209 = pneg %p144
      %p210 = scmp.lt.s32.totalorder %s16, 1
      %s211 = scalar_select %p210, %s16, 1
      %s212 = smul.addr %s211, 3
      %s213 = smul.addr %s212, 4
      %s214 = scalar_lea.vmem %s5, %s213
      %p215 = scmp.lt.s32.totalorder %s16, 1
      %s216 = scalar_select %p215, %s16, 1
      %s217 = smul.addr %s216, 43
      %s218 = smul.addr %s217, 4
      %s219 = scalar_lea.vmem %s0, %s218
      %p220 = scmp.lt.s32.totalorder %s16, 1
      %s221 = scalar_select %p220, %s16, 1
      %s222 = smul.addr %s221, 3
      %s223 = smul.addr %s222, 4
      %s224 = scalar_lea.vmem %s5, %s223
      %v226 = vld [vmem:[%s219] sm:$0xf]
      %v227 = vld [vmem:[%s219 + $0x4] sm:$0xf]
      %v228 = vld [vmem:[%s219 + $0x8] sm:$0xf]
      %v229 = vld [vmem:[%s219 + $0xc] sm:$0xf]
      %v230 = vld [vmem:[%s219 + $0x10] sm:$0xf]
      %v231 = vld [vmem:[%s219 + $0x14] sm:$0xf]
      %v232 = vld [vmem:[%s219 + $0x18] sm:$0xf]
      %v233 = vld [vmem:[%s219 + $0x1c] sm:$0xf]
      %v234 = vld [vmem:[%s219 + $0x20] sm:$0xf]
      %v235 = vld [vmem:[%s219 + $0x24] sm:$0xf]
      %v236 = vld [vmem:[%s219 + $0x28] sm:$0xf]
      %v237 = vld [vmem:[%s219 + $0x2c] sm:$0xf]
      %v238 = vld [vmem:[%s219 + $0x30] sm:$0xf]
      %v239 = vld [vmem:[%s219 + $0x34] sm:$0xf]
      %v240 = vld [vmem:[%s219 + $0x38] sm:$0xf]
      %v241 = vld [vmem:[%s219 + $0x3c] sm:$0xf]
      %v242 = vld [vmem:[%s219 + $0x40] sm:$0xf]
      %v243 = vld [vmem:[%s219 + $0x44] sm:$0xf]
      %v244 = vld [vmem:[%s219 + $0x48] sm:$0xf]
      %v245 = vld [vmem:[%s219 + $0x4c] sm:$0xf]
      %v246 = vld [vmem:[%s219 + $0x50] sm:$0xf]
      %v247 = vld [vmem:[%s219 + $0x54] sm:$0xf]
      %v248 = vld [vmem:[%s219 + $0x58] sm:$0xf]
      %v249 = vld [vmem:[%s219 + $0x5c] sm:$0xf]
      %v250 = vld [vmem:[%s219 + $0x60] sm:$0xf]
      %v251 = vld [vmem:[%s219 + $0x64] sm:$0xf]
      %v252 = vld [vmem:[%s219 + $0x68] sm:$0xf]
      %v253 = vld [vmem:[%s219 + $0x6c] sm:$0xf]
      %v254 = vld [vmem:[%s219 + $0x70] sm:$0xf]
      %v255 = vld [vmem:[%s219 + $0x74] sm:$0xf]
      %v256 = vld [vmem:[%s219 + $0x78] sm:$0xf]
      %v257 = vld [vmem:[%s219 + $0x7c] sm:$0xf]
      %v258 = vld [vmem:[%s219 + $0x80] sm:$0xf]
      %v259 = vld [vmem:[%s219 + $0x84] sm:$0xf]
      %v260 = vld [vmem:[%s219 + $0x88] sm:$0xf]
      %v261 = vld [vmem:[%s219 + $0x8c] sm:$0xf]
      %v262 = vld [vmem:[%s1] sm:$0xf]
      %v263 = vld [vmem:[%s1 + $0x4] sm:$0x3]
      %v264 = vld [vmem:[%s219 + $0x90] sm:$0x1]
      %s265 = scalar_lea.vmem %s1, 8
      %v266 = vld [vmem:[%s265] sm:$0xf]
      %v267 = vld [vmem:[%s265 + $0x4] sm:$0x3]
      %v305 = vunpack.c.l.b16 %v226
      %v306 = vunpack.c.l.b16 %v227
      %v307 = vunpack.c.l.b16 %v228
      %v308 = vunpack.c.l.b16 %v229
      %v309 = vunpack.c.l.b16 %v230
      %v310 = vunpack.c.l.b16 %v231
      %v311 = vunpack.c.l.b16 %v232
      %v312 = vunpack.c.l.b16 %v233
      %v313 = vunpack.c.l.b16 %v234
      %v314 = vunpack.c.l.b16 %v235
      %v315 = vunpack.c.l.b16 %v236
      %v316 = vunpack.c.l.b16 %v237
      %v317 = vunpack.c.l.b16 %v238
      %v318 = vunpack.c.l.b16 %v239
      %v319 = vunpack.c.l.b16 %v240
      %v320 = vunpack.c.l.b16 %v241
      %v321 = vunpack.c.l.b16 %v242
      %v322 = vunpack.c.l.b16 %v243
      %v323 = vunpack.c.l.b16 %v244
      %v324 = vunpack.c.l.b16 %v245
      %v325 = vunpack.c.l.b16 %v246
      %v326 = vunpack.c.l.b16 %v247
      %v327 = vunpack.c.l.b16 %v248
      %v328 = vunpack.c.l.b16 %v249
      %v329 = vunpack.c.l.b16 %v250
      %v330 = vunpack.c.l.b16 %v251
      %v331 = vunpack.c.l.b16 %v252
      %v332 = vunpack.c.l.b16 %v253
      %v333 = vunpack.c.l.b16 %v254
      %v334 = vunpack.c.l.b16 %v255
      %v335 = vunpack.c.l.b16 %v256
      %v336 = vunpack.c.l.b16 %v257
      %v337 = vunpack.c.l.b16 %v258
      %v338 = vunpack.c.l.b16 %v259
      %v339 = vunpack.c.l.b16 %v260
      %v340 = vunpack.c.l.b16 %v261
      %v341 = vunpack.c.l.b16 %v264
      %v342 = vpack.c.b16 %v306, %v305
      %v343 = vpack.c.b16 %v308, %v307
      %v344 = vpack.c.b16 %v310, %v309
      %v345 = vpack.c.b16 %v312, %v311
      %v346 = vpack.c.b16 %v314, %v313
      %v347 = vpack.c.b16 %v316, %v315
      %v348 = vpack.c.b16 %v318, %v317
      %v349 = vpack.c.b16 %v320, %v319
      %v350 = vpack.c.b16 %v322, %v321
      %v351 = vpack.c.b16 %v324, %v323
      %v352 = vpack.c.b16 %v326, %v325
      %v353 = vpack.c.b16 %v328, %v327
      %v354 = vpack.c.b16 %v330, %v329
      %v355 = vpack.c.b16 %v332, %v331
      %v356 = vpack.c.b16 %v334, %v333
      %v357 = vpack.c.b16 %v336, %v335
      %v358 = vpack.c.b16 %v338, %v337
      %v359 = vpack.c.b16 %v340, %v339
      %v360 = vpack.c.b16 %v341, %v341
      %vm361 = vsmask.f32 7424
      %v363 = vshrl.u32 %v342, 16
      %v365 = vshll.u32 %v342, 16
      %v367 = vrot.slane %v365, 1
      %v368 = vor.u32 %v363, %v367
      %v370 = vshll.u32 %v343, 16
      %v372 = vrot.slane %v370, 1
      %v373 = vsel %vm361, %v368, %v372
      %v374 = vshrl.u32 %v343, 16
      %v376 = vor.u32 %v374, %v372
      %v378 = vshll.u32 %v344, 16
      %v380 = vrot.slane %v378, 1
      %v381 = vsel %vm361, %v376, %v380
      %v382 = vshrl.u32 %v344, 16
      %v384 = vor.u32 %v382, %v380
      %v386 = vshll.u32 %v345, 16
      %v388 = vrot.slane %v386, 1
      %v389 = vsel %vm361, %v384, %v388
      %v390 = vshrl.u32 %v345, 16
      %v392 = vor.u32 %v390, %v388
      %v394 = vshll.u32 %v346, 16
      %v396 = vrot.slane %v394, 1
      %v397 = vsel %vm361, %v392, %v396
      %v398 = vshrl.u32 %v346, 16
      %v400 = vor.u32 %v398, %v396
      %v402 = vshll.u32 %v347, 16
      %v404 = vrot.slane %v402, 1
      %v405 = vsel %vm361, %v400, %v404
      %v406 = vshrl.u32 %v347, 16
      %v408 = vor.u32 %v406, %v404
      %v410 = vshll.u32 %v348, 16
      %v412 = vrot.slane %v410, 1
      %v413 = vsel %vm361, %v408, %v412
      %v414 = vshrl.u32 %v348, 16
      %v416 = vor.u32 %v414, %v412
      %v418 = vshll.u32 %v349, 16
      %v420 = vrot.slane %v418, 1
      %v421 = vsel %vm361, %v416, %v420
      %v422 = vshrl.u32 %v349, 16
      %v424 = vor.u32 %v422, %v420
      %v426 = vshll.u32 %v350, 16
      %v428 = vrot.slane %v426, 1
      %v429 = vsel %vm361, %v424, %v428
      %v430 = vshrl.u32 %v350, 16
      %v432 = vor.u32 %v430, %v428
      %v434 = vshll.u32 %v351, 16
      %v436 = vrot.slane %v434, 1
      %v437 = vsel %vm361, %v432, %v436
      %v438 = vshrl.u32 %v351, 16
      %v440 = vor.u32 %v438, %v436
      %v442 = vshll.u32 %v352, 16
      %v444 = vrot.slane %v442, 1
      %v445 = vsel %vm361, %v440, %v444
      %v446 = vshrl.u32 %v352, 16
      %v448 = vor.u32 %v446, %v444
      %v450 = vshll.u32 %v353, 16
      %v452 = vrot.slane %v450, 1
      %v453 = vsel %vm361, %v448, %v452
      %v454 = vshrl.u32 %v353, 16
      %v456 = vor.u32 %v454, %v452
      %v458 = vshll.u32 %v354, 16
      %v460 = vrot.slane %v458, 1
      %v461 = vsel %vm361, %v456, %v460
      %v462 = vshrl.u32 %v354, 16
      %v464 = vor.u32 %v462, %v460
      %v466 = vshll.u32 %v355, 16
      %v468 = vrot.slane %v466, 1
      %v469 = vsel %vm361, %v464, %v468
      %v470 = vshrl.u32 %v355, 16
      %v472 = vor.u32 %v470, %v468
      %v474 = vshll.u32 %v356, 16
      %v476 = vrot.slane %v474, 1
      %v477 = vsel %vm361, %v472, %v476
      %v478 = vshrl.u32 %v356, 16
      %v480 = vor.u32 %v478, %v476
      %v482 = vshll.u32 %v357, 16
      %v484 = vrot.slane %v482, 1
      %v485 = vsel %vm361, %v480, %v484
      %v486 = vshrl.u32 %v357, 16
      %v488 = vor.u32 %v486, %v484
      %v490 = vshll.u32 %v358, 16
      %v492 = vrot.slane %v490, 1
      %v493 = vsel %vm361, %v488, %v492
      %v494 = vshrl.u32 %v358, 16
      %v496 = vor.u32 %v494, %v492
      %v498 = vshll.u32 %v359, 16
      %v500 = vrot.slane %v498, 1
      %v501 = vsel %vm361, %v496, %v500
      %v502 = vshrl.u32 %v359, 16
      %v504 = vor.u32 %v502, %v500
      %v506 = vshll.u32 %v360, 16
      %v508 = vrot.slane %v506, 1
      %v509 = vsel %vm361, %v504, %v508
      %v512 = vunpack.c.l.b16 %v266
      %v513 = vunpack.c.l.b16 %v267
      %v514 = vpack.c.b16 %v513, %v512
      %vm515 = vcmask 97280
      %v517 = vsel %vm515, %v373, 0
      %v520 = vsel %vm515, %v381, 0
      %v523 = vsel %vm515, %v389, 0
      %v526 = vsel %vm515, %v397, 0
      %v529 = vsel %vm515, %v405, 0
      %v532 = vsel %vm515, %v413, 0
      %v535 = vsel %vm515, %v421, 0
      %v538 = vsel %vm515, %v429, 0
      %v541 = vsel %vm515, %v437, 0
      %v544 = vsel %vm515, %v445, 0
      %v547 = vsel %vm515, %v453, 0
      %v550 = vsel %vm515, %v461, 0
      %v553 = vsel %vm515, %v469, 0
      %v556 = vsel %vm515, %v477, 0
      %v559 = vsel %vm515, %v485, 0
      %v562 = vsel %vm515, %v493, 0
      %v565 = vsel %vm515, %v501, 0
      %v568 = vsel %vm515, %v509, 0
      %vm570 = vcmask 1045504
      %v572 = vsel %vm570, %v514, 0
      %574 = vmatprep.subr.bf16.mxu0 0
      %575 = vmatpush1.bf16.msra.mxu0 0
      %576 = vmatprep.subr.bf16.mxu0 0
      %577 = vmatpush1.bf16.msra.mxu0 0
      %578 = vmatprep.subr.bf16.mxu0 0
      %579 = vmatpush1.bf16.msra.mxu0 0
      %580 = vmatprep.subr.bf16.mxu0 0
      %581 = vmatpush1.bf16.msra.mxu0 0
      %582 = vmatprep.subr.bf16.mxu0 0
      %583 = vmatpush1.bf16.msra.mxu0 0
      %584 = vmatprep.subr.bf16.mxu0 0
      %585 = vmatpush1.bf16.msra.mxu0 0
      %586 = vmatprep.subr.bf16.mxu0 0
      %587 = vmatpush1.bf16.msra.mxu0 0
      %588 = vmatprep.subr.bf16.mxu0 0
      %589 = vmatpush1.bf16.msra.mxu0 %v572
      %590 = vmatprep.subr.bf16.mxu0 0
      %591 = vmatpush2.bf16.msra.mxu0 0
      %592 = vmatprep.subr.bf16.mxu0 0
      %593 = vmatpush2.bf16.msra.mxu0 0
      %594 = vmatprep.subr.bf16.mxu0 0
      %595 = vmatpush2.bf16.msra.mxu0 0
      %596 = vmatprep.subr.bf16.mxu0 0
      %597 = vmatpush2.bf16.msra.mxu0 0
      %598 = vmatprep.subr.bf16.mxu0 0
      %599 = vmatpush2.bf16.msra.mxu0 0
      %600 = vmatprep.subr.bf16.mxu0 0
      %601 = vmatpush2.bf16.msra.mxu0 0
      %602 = vmatprep.subr.bf16.mxu0 0
      %603 = vmatpush2.bf16.msra.mxu0 0
      %604 = vmatprep.subr.bf16.mxu0 0
      %605 = vmatpush2.bf16.msra.mxu0 0
      %606 = vmatprep.mubr.bf16.mxu0 0
      %607 = vmatmul.mubr.bf16.gmra.mxu0 %v517
      %v608 = vpop.f32.mrf.mxu0
      %v609 = vadd.f32 0.0, %v608
      %v610 = vpop.f32.mrf.mxu0
      %v611 = vpop.f32.mrf.mxu0
      %v612 = vadd.f32 0.0, %v611
      %v613 = vpop.f32.mrf.mxu0
      %614 = vmatprep.mubr.bf16.mxu0 0
      %615 = vmatmul.mubr.bf16.gmra.mxu0 %v520
      %v616 = vpop.f32.mrf.mxu0
      %v617 = vadd.f32 0.0, %v616
      %v618 = vpop.f32.mrf.mxu0
      %v619 = vpop.f32.mrf.mxu0
      %v620 = vadd.f32 0.0, %v619
      %v621 = vpop.f32.mrf.mxu0
      %622 = vmatprep.mubr.bf16.mxu0 0
      %623 = vmatmul.mubr.bf16.gmra.mxu0 %v523
      %v624 = vpop.f32.mrf.mxu0
      %v625 = vadd.f32 0.0, %v624
      %v626 = vpop.f32.mrf.mxu0
      %v627 = vpop.f32.mrf.mxu0
      %v628 = vadd.f32 0.0, %v627
      %v629 = vpop.f32.mrf.mxu0
      %630 = vmatprep.mubr.bf16.mxu0 0
      %631 = vmatmul.mubr.bf16.gmra.mxu0 %v526
      %v632 = vpop.f32.mrf.mxu0
      %v633 = vadd.f32 0.0, %v632
      %v634 = vpop.f32.mrf.mxu0
      %v635 = vpop.f32.mrf.mxu0
      %v636 = vadd.f32 0.0, %v635
      %v637 = vpop.f32.mrf.mxu0
      %638 = vmatprep.mubr.bf16.mxu0 0
      %639 = vmatmul.mubr.bf16.gmra.mxu0 %v529
      %v640 = vpop.f32.mrf.mxu0
      %v641 = vadd.f32 0.0, %v640
      %v642 = vpop.f32.mrf.mxu0
      %v643 = vpop.f32.mrf.mxu0
      %v644 = vadd.f32 0.0, %v643
      %v645 = vpop.f32.mrf.mxu0
      %646 = vmatprep.mubr.bf16.mxu0 0
      %647 = vmatmul.mubr.bf16.gmra.mxu0 %v532
      %v648 = vpop.f32.mrf.mxu0
      %v649 = vadd.f32 0.0, %v648
      %v650 = vpop.f32.mrf.mxu0
      %v651 = vpop.f32.mrf.mxu0
      %v652 = vadd.f32 0.0, %v651
      %v653 = vpop.f32.mrf.mxu0
      %654 = vmatprep.mubr.bf16.mxu0 0
      %655 = vmatmul.mubr.bf16.gmra.mxu0 %v535
      %v656 = vpop.f32.mrf.mxu0
      %v657 = vadd.f32 0.0, %v656
      %v658 = vpop.f32.mrf.mxu0
      %v659 = vpop.f32.mrf.mxu0
      %v660 = vadd.f32 0.0, %v659
      %v661 = vpop.f32.mrf.mxu0
      %662 = vmatprep.mubr.bf16.mxu0 0
      %663 = vmatmul.mubr.bf16.gmra.mxu0 %v538
      %v664 = vpop.f32.mrf.mxu0
      %v665 = vadd.f32 0.0, %v664
      %v666 = vpop.f32.mrf.mxu0
      %v667 = vpop.f32.mrf.mxu0
      %v668 = vadd.f32 0.0, %v667
      %v669 = vpop.f32.mrf.mxu0
      %670 = vmatprep.mubr.bf16.mxu0 0
      %671 = vmatmul.mubr.bf16.gmra.mxu0 %v541
      %v672 = vpop.f32.mrf.mxu0
      %v673 = vadd.f32 0.0, %v672
      %v674 = vpop.f32.mrf.mxu0
      %v675 = vpop.f32.mrf.mxu0
      %v676 = vadd.f32 0.0, %v675
      %v677 = vpop.f32.mrf.mxu0
      %678 = vmatprep.mubr.bf16.mxu0 0
      %679 = vmatmul.mubr.bf16.gmra.mxu0 %v544
      %v680 = vpop.f32.mrf.mxu0
      %v681 = vadd.f32 0.0, %v680
      %v682 = vpop.f32.mrf.mxu0
      %v683 = vpop.f32.mrf.mxu0
      %v684 = vadd.f32 0.0, %v683
      %v685 = vpop.f32.mrf.mxu0
      %686 = vmatprep.mubr.bf16.mxu0 0
      %687 = vmatmul.mubr.bf16.gmra.mxu0 %v547
      %v688 = vpop.f32.mrf.mxu0
      %v689 = vadd.f32 0.0, %v688
      %v690 = vpop.f32.mrf.mxu0
      %v691 = vpop.f32.mrf.mxu0
      %v692 = vadd.f32 0.0, %v691
      %v693 = vpop.f32.mrf.mxu0
      %694 = vmatprep.mubr.bf16.mxu0 0
      %695 = vmatmul.mubr.bf16.gmra.mxu0 %v550
      %v696 = vpop.f32.mrf.mxu0
      %v697 = vadd.f32 0.0, %v696
      %v698 = vpop.f32.mrf.mxu0
      %v699 = vpop.f32.mrf.mxu0
      %v700 = vadd.f32 0.0, %v699
      %v701 = vpop.f32.mrf.mxu0
      %702 = vmatprep.mubr.bf16.mxu0 0
      %703 = vmatmul.mubr.bf16.gmra.mxu0 %v553
      %v704 = vpop.f32.mrf.mxu0
      %v705 = vadd.f32 0.0, %v704
      %v706 = vpop.f32.mrf.mxu0
      %v707 = vpop.f32.mrf.mxu0
      %v708 = vadd.f32 0.0, %v707
      %v709 = vpop.f32.mrf.mxu0
      %710 = vmatprep.mubr.bf16.mxu0 0
      %711 = vmatmul.mubr.bf16.gmra.mxu0 %v556
      %v712 = vpop.f32.mrf.mxu0
      %v713 = vadd.f32 0.0, %v712
      %v714 = vpop.f32.mrf.mxu0
      %v715 = vpop.f32.mrf.mxu0
      %v716 = vadd.f32 0.0, %v715
      %v717 = vpop.f32.mrf.mxu0
      %718 = vmatprep.mubr.bf16.mxu0 0
      %719 = vmatmul.mubr.bf16.gmra.mxu0 %v559
      %v720 = vpop.f32.mrf.mxu0
      %v721 = vadd.f32 0.0, %v720
      %v722 = vpop.f32.mrf.mxu0
      %v723 = vpop.f32.mrf.mxu0
      %v724 = vadd.f32 0.0, %v723
      %v725 = vpop.f32.mrf.mxu0
      %726 = vmatprep.mubr.bf16.mxu0 0
      %727 = vmatmul.mubr.bf16.gmra.mxu0 %v562
      %v728 = vpop.f32.mrf.mxu0
      %v729 = vadd.f32 0.0, %v728
      %v730 = vpop.f32.mrf.mxu0
      %v731 = vpop.f32.mrf.mxu0
      %v732 = vadd.f32 0.0, %v731
      %v733 = vpop.f32.mrf.mxu0
      %734 = vmatprep.mubr.bf16.mxu0 0
      %735 = vmatmul.mubr.bf16.gmra.mxu0 %v565
      %v736 = vpop.f32.mrf.mxu0
      %v737 = vadd.f32 0.0, %v736
      %v738 = vpop.f32.mrf.mxu0
      %v739 = vpop.f32.mrf.mxu0
      %v740 = vadd.f32 0.0, %v739
      %v741 = vpop.f32.mrf.mxu0
      %742 = vmatprep.mubr.bf16.mxu0 0
      %743 = vmatmul.mubr.bf16.gmra.mxu0 %v568
      %v744 = vpop.f32.mrf.mxu0
      %v745 = vadd.f32 0.0, %v744
      %v746 = vpop.f32.mrf.mxu0
      %v747 = vpop.f32.mrf.mxu0
      %v748 = vadd.f32 0.0, %v747
      %v749 = vpop.f32.mrf.mxu0
      %750 = vdwg.mxu0
      %v753 = vunpack.c.l.b16 %v262
      %v754 = vunpack.c.l.b16 %v263
      %v755 = vpack.c.b16 %v754, %v753
      %v756 = vsel %vm515, %v342, 0
      %v758 = vsel %vm515, %v343, 0
      %v760 = vsel %vm515, %v344, 0
      %v762 = vsel %vm515, %v345, 0
      %v764 = vsel %vm515, %v346, 0
      %v766 = vsel %vm515, %v347, 0
      %v768 = vsel %vm515, %v348, 0
      %v770 = vsel %vm515, %v349, 0
      %v772 = vsel %vm515, %v350, 0
      %v774 = vsel %vm515, %v351, 0
      %v776 = vsel %vm515, %v352, 0
      %v778 = vsel %vm515, %v353, 0
      %v780 = vsel %vm515, %v354, 0
      %v782 = vsel %vm515, %v355, 0
      %v784 = vsel %vm515, %v356, 0
      %v786 = vsel %vm515, %v357, 0
      %v788 = vsel %vm515, %v358, 0
      %v790 = vsel %vm515, %v359, 0
      %v793 = vsel %vm570, %v755, 0
      %795 = vmatprep.subr.bf16.mxu0 0
      %796 = vmatpush1.bf16.msra.mxu0 0
      %797 = vmatprep.subr.bf16.mxu0 0
      %798 = vmatpush1.bf16.msra.mxu0 0
      %799 = vmatprep.subr.bf16.mxu0 0
      %800 = vmatpush1.bf16.msra.mxu0 0
      %801 = vmatprep.subr.bf16.mxu0 0
      %802 = vmatpush1.bf16.msra.mxu0 0
      %803 = vmatprep.subr.bf16.mxu0 0
      %804 = vmatpush1.bf16.msra.mxu0 0
      %805 = vmatprep.subr.bf16.mxu0 0
      %806 = vmatpush1.bf16.msra.mxu0 0
      %807 = vmatprep.subr.bf16.mxu0 0
      %808 = vmatpush1.bf16.msra.mxu0 0
      %809 = vmatprep.subr.bf16.mxu0 0
      %810 = vmatpush1.bf16.msra.mxu0 %v793
      %811 = vmatprep.subr.bf16.mxu0 0
      %812 = vmatpush2.bf16.msra.mxu0 0
      %813 = vmatprep.subr.bf16.mxu0 0
      %814 = vmatpush2.bf16.msra.mxu0 0
      %815 = vmatprep.subr.bf16.mxu0 0
      %816 = vmatpush2.bf16.msra.mxu0 0
      %817 = vmatprep.subr.bf16.mxu0 0
      %818 = vmatpush2.bf16.msra.mxu0 0
      %819 = vmatprep.subr.bf16.mxu0 0
      %820 = vmatpush2.bf16.msra.mxu0 0
      %821 = vmatprep.subr.bf16.mxu0 0
      %822 = vmatpush2.bf16.msra.mxu0 0
      %823 = vmatprep.subr.bf16.mxu0 0
      %824 = vmatpush2.bf16.msra.mxu0 0
      %825 = vmatprep.subr.bf16.mxu0 0
      %826 = vmatpush2.bf16.msra.mxu0 0
      %827 = vmatprep.mubr.bf16.mxu0 0
      %828 = vmatmul.mubr.bf16.gmra.mxu0 %v756
      %v829 = vpop.f32.mrf.mxu0
      %v830 = vadd.f32 %v609, %v829
      %v831 = vpop.f32.mrf.mxu0
      %v832 = vpop.f32.mrf.mxu0
      %v833 = vadd.f32 %v612, %v832
      %v834 = vpop.f32.mrf.mxu0
      %835 = vmatprep.mubr.bf16.mxu0 0
      %836 = vmatmul.mubr.bf16.gmra.mxu0 %v758
      %v837 = vpop.f32.mrf.mxu0
      %v838 = vadd.f32 %v617, %v837
      %v839 = vpop.f32.mrf.mxu0
      %v840 = vpop.f32.mrf.mxu0
      %v841 = vadd.f32 %v620, %v840
      %v842 = vpop.f32.mrf.mxu0
      %843 = vmatprep.mubr.bf16.mxu0 0
      %844 = vmatmul.mubr.bf16.gmra.mxu0 %v760
      %v845 = vpop.f32.mrf.mxu0
      %v846 = vadd.f32 %v625, %v845
      %v847 = vpop.f32.mrf.mxu0
      %v848 = vpop.f32.mrf.mxu0
      %v849 = vadd.f32 %v628, %v848
      %v850 = vpop.f32.mrf.mxu0
      %851 = vmatprep.mubr.bf16.mxu0 0
      %852 = vmatmul.mubr.bf16.gmra.mxu0 %v762
      %v853 = vpop.f32.mrf.mxu0
      %v854 = vadd.f32 %v633, %v853
      %v855 = vpop.f32.mrf.mxu0
      %v856 = vpop.f32.mrf.mxu0
      %v857 = vadd.f32 %v636, %v856
      %v858 = vpop.f32.mrf.mxu0
      %859 = vmatprep.mubr.bf16.mxu0 0
      %860 = vmatmul.mubr.bf16.gmra.mxu0 %v764
      %v861 = vpop.f32.mrf.mxu0
      %v862 = vadd.f32 %v641, %v861
      %v863 = vpop.f32.mrf.mxu0
      %v864 = vpop.f32.mrf.mxu0
      %v865 = vadd.f32 %v644, %v864
      %v866 = vpop.f32.mrf.mxu0
      %867 = vmatprep.mubr.bf16.mxu0 0
      %868 = vmatmul.mubr.bf16.gmra.mxu0 %v766
      %v869 = vpop.f32.mrf.mxu0
      %v870 = vadd.f32 %v649, %v869
      %v871 = vpop.f32.mrf.mxu0
      %v872 = vpop.f32.mrf.mxu0
      %v873 = vadd.f32 %v652, %v872
      %v874 = vpop.f32.mrf.mxu0
      %875 = vmatprep.mubr.bf16.mxu0 0
      %876 = vmatmul.mubr.bf16.gmra.mxu0 %v768
      %v877 = vpop.f32.mrf.mxu0
      %v878 = vadd.f32 %v657, %v877
      %v879 = vpop.f32.mrf.mxu0
      %v880 = vpop.f32.mrf.mxu0
      %v881 = vadd.f32 %v660, %v880
      %v882 = vpop.f32.mrf.mxu0
      %883 = vmatprep.mubr.bf16.mxu0 0
      %884 = vmatmul.mubr.bf16.gmra.mxu0 %v770
      %v885 = vpop.f32.mrf.mxu0
      %v886 = vadd.f32 %v665, %v885
      %v887 = vpop.f32.mrf.mxu0
      %v888 = vpop.f32.mrf.mxu0
      %v889 = vadd.f32 %v668, %v888
      %v890 = vpop.f32.mrf.mxu0
      %891 = vmatprep.mubr.bf16.mxu0 0
      %892 = vmatmul.mubr.bf16.gmra.mxu0 %v772
      %v893 = vpop.f32.mrf.mxu0
      %v894 = vadd.f32 %v673, %v893
      %v895 = vpop.f32.mrf.mxu0
      %v896 = vpop.f32.mrf.mxu0
      %v897 = vadd.f32 %v676, %v896
      %v898 = vpop.f32.mrf.mxu0
      %899 = vmatprep.mubr.bf16.mxu0 0
      %900 = vmatmul.mubr.bf16.gmra.mxu0 %v774
      %v901 = vpop.f32.mrf.mxu0
      %v902 = vadd.f32 %v681, %v901
      %v903 = vpop.f32.mrf.mxu0
      %v904 = vpop.f32.mrf.mxu0
      %v905 = vadd.f32 %v684, %v904
      %v906 = vpop.f32.mrf.mxu0
      %907 = vmatprep.mubr.bf16.mxu0 0
      %908 = vmatmul.mubr.bf16.gmra.mxu0 %v776
      %v909 = vpop.f32.mrf.mxu0
      %v910 = vadd.f32 %v689, %v909
      %v911 = vpop.f32.mrf.mxu0
      %v912 = vpop.f32.mrf.mxu0
      %v913 = vadd.f32 %v692, %v912
      %v914 = vpop.f32.mrf.mxu0
      %915 = vmatprep.mubr.bf16.mxu0 0
      %916 = vmatmul.mubr.bf16.gmra.mxu0 %v778
      %v917 = vpop.f32.mrf.mxu0
      %v918 = vadd.f32 %v697, %v917
      %v919 = vpop.f32.mrf.mxu0
      %v920 = vpop.f32.mrf.mxu0
      %v921 = vadd.f32 %v700, %v920
      %v922 = vpop.f32.mrf.mxu0
      %923 = vmatprep.mubr.bf16.mxu0 0
      %924 = vmatmul.mubr.bf16.gmra.mxu0 %v780
      %v925 = vpop.f32.mrf.mxu0
      %v926 = vadd.f32 %v705, %v925
      %v927 = vpop.f32.mrf.mxu0
      %v928 = vpop.f32.mrf.mxu0
      %v929 = vadd.f32 %v708, %v928
      %v930 = vpop.f32.mrf.mxu0
      %931 = vmatprep.mubr.bf16.mxu0 0
      %932 = vmatmul.mubr.bf16.gmra.mxu0 %v782
      %v933 = vpop.f32.mrf.mxu0
      %v934 = vadd.f32 %v713, %v933
      %v935 = vpop.f32.mrf.mxu0
      %v936 = vpop.f32.mrf.mxu0
      %v937 = vadd.f32 %v716, %v936
      %v938 = vpop.f32.mrf.mxu0
      %939 = vmatprep.mubr.bf16.mxu0 0
      %940 = vmatmul.mubr.bf16.gmra.mxu0 %v784
      %v941 = vpop.f32.mrf.mxu0
      %v942 = vadd.f32 %v721, %v941
      %v943 = vpop.f32.mrf.mxu0
      %v944 = vpop.f32.mrf.mxu0
      %v945 = vadd.f32 %v724, %v944
      %v946 = vpop.f32.mrf.mxu0
      %947 = vmatprep.mubr.bf16.mxu0 0
      %948 = vmatmul.mubr.bf16.gmra.mxu0 %v786
      %v949 = vpop.f32.mrf.mxu0
      %v950 = vadd.f32 %v729, %v949
      %v951 = vpop.f32.mrf.mxu0
      %v952 = vpop.f32.mrf.mxu0
      %v953 = vadd.f32 %v732, %v952
      %v954 = vpop.f32.mrf.mxu0
      %955 = vmatprep.mubr.bf16.mxu0 0
      %956 = vmatmul.mubr.bf16.gmra.mxu0 %v788
      %v957 = vpop.f32.mrf.mxu0
      %v958 = vadd.f32 %v737, %v957
      %v959 = vpop.f32.mrf.mxu0
      %v960 = vpop.f32.mrf.mxu0
      %v961 = vadd.f32 %v740, %v960
      %v962 = vpop.f32.mrf.mxu0
      %963 = vmatprep.mubr.bf16.mxu0 0
      %964 = vmatmul.mubr.bf16.gmra.mxu0 %v790
      %v965 = vpop.f32.mrf.mxu0
      %v966 = vadd.f32 %v745, %v965
      %v967 = vpop.f32.mrf.mxu0
      %v968 = vpop.f32.mrf.mxu0
      %v969 = vadd.f32 %v748, %v968
      %v970 = vpop.f32.mrf.mxu0
      %971 = vdwg.mxu0
      %v972 = vld [vmem:[%s219] sm:$0xe]
      %s973 = scalar_lea.vmem %s1, 16
      %v974 = vld [vmem:[%s973] sm:$0xf]
      %v975 = vld [vmem:[%s973 + $0x4] sm:$0x3]
      %v977 = vunpack.c.l.b16 %v972
      %v978 = vpack.c.b16 %v306, %v977
      %vm979 = vcmask 1046528
      %v980 = vrot.slane %v978, 1
      %v981 = vrot.slane %v343, 1
      %v982 = vsel %vm979, %v980, %v981
      %v983 = vrot.slane %v344, 1
      %v984 = vsel %vm979, %v981, %v983
      %v985 = vrot.slane %v345, 1
      %v986 = vsel %vm979, %v983, %v985
      %v987 = vrot.slane %v346, 1
      %v988 = vsel %vm979, %v985, %v987
      %v989 = vrot.slane %v347, 1
      %v990 = vsel %vm979, %v987, %v989
      %v991 = vrot.slane %v348, 1
      %v992 = vsel %vm979, %v989, %v991
      %v993 = vrot.slane %v349, 1
      %v994 = vsel %vm979, %v991, %v993
      %v995 = vrot.slane %v350, 1
      %v996 = vsel %vm979, %v993, %v995
      %v997 = vrot.slane %v351, 1
      %v998 = vsel %vm979, %v995, %v997
      %v999 = vrot.slane %v352, 1
      %v1000 = vsel %vm979, %v997, %v999
      %v1001 = vrot.slane %v353, 1
      %v1002 = vsel %vm979, %v999, %v1001
      %v1003 = vrot.slane %v354, 1
      %v1004 = vsel %vm979, %v1001, %v1003
      %v1005 = vrot.slane %v355, 1
      %v1006 = vsel %vm979, %v1003, %v1005
      %v1007 = vrot.slane %v356, 1
      %v1008 = vsel %vm979, %v1005, %v1007
      %v1009 = vrot.slane %v357, 1
      %v1010 = vsel %vm979, %v1007, %v1009
      %v1011 = vrot.slane %v358, 1
      %v1012 = vsel %vm979, %v1009, %v1011
      %v1013 = vrot.slane %v359, 1
      %v1014 = vsel %vm979, %v1011, %v1013
      %v1015 = vrot.slane %v360, 1
      %v1016 = vsel %vm979, %v1013, %v1015
      %v1019 = vunpack.c.l.b16 %v974
      %v1020 = vunpack.c.l.b16 %v975
      %v1021 = vpack.c.b16 %v1020, %v1019
      %v1023 = vsel %vm515, %v982, 0
      %v1026 = vsel %vm515, %v984, 0
      %v1029 = vsel %vm515, %v986, 0
      %v1032 = vsel %vm515, %v988, 0
      %v1035 = vsel %vm515, %v990, 0
      %v1038 = vsel %vm515, %v992, 0
      %v1041 = vsel %vm515, %v994, 0
      %v1044 = vsel %vm515, %v996, 0
      %v1047 = vsel %vm515, %v998, 0
      %v1050 = vsel %vm515, %v1000, 0
      %v1053 = vsel %vm515, %v1002, 0
      %v1056 = vsel %vm515, %v1004, 0
      %v1059 = vsel %vm515, %v1006, 0
      %v1062 = vsel %vm515, %v1008, 0
      %v1065 = vsel %vm515, %v1010, 0
      %v1068 = vsel %vm515, %v1012, 0
      %v1071 = vsel %vm515, %v1014, 0
      %v1074 = vsel %vm515, %v1016, 0
      %v1077 = vsel %vm570, %v1021, 0
      %1079 = vmatprep.subr.bf16.mxu0 0
      %1080 = vmatpush1.bf16.msra.mxu0 0
      %1081 = vmatprep.subr.bf16.mxu0 0
      %1082 = vmatpush1.bf16.msra.mxu0 0
      %1083 = vmatprep.subr.bf16.mxu0 0
      %1084 = vmatpush1.bf16.msra.mxu0 0
      %1085 = vmatprep.subr.bf16.mxu0 0
      %1086 = vmatpush1.bf16.msra.mxu0 0
      %1087 = vmatprep.subr.bf16.mxu0 0
      %1088 = vmatpush1.bf16.msra.mxu0 0
      %1089 = vmatprep.subr.bf16.mxu0 0
      %1090 = vmatpush1.bf16.msra.mxu0 0
      %1091 = vmatprep.subr.bf16.mxu0 0
      %1092 = vmatpush1.bf16.msra.mxu0 0
      %1093 = vmatprep.subr.bf16.mxu0 0
      %1094 = vmatpush1.bf16.msra.mxu0 %v1077
      %1095 = vmatprep.subr.bf16.mxu0 0
      %1096 = vmatpush2.bf16.msra.mxu0 0
      %1097 = vmatprep.subr.bf16.mxu0 0
      %1098 = vmatpush2.bf16.msra.mxu0 0
      %1099 = vmatprep.subr.bf16.mxu0 0
      %1100 = vmatpush2.bf16.msra.mxu0 0
      %1101 = vmatprep.subr.bf16.mxu0 0
      %1102 = vmatpush2.bf16.msra.mxu0 0
      %1103 = vmatprep.subr.bf16.mxu0 0
      %1104 = vmatpush2.bf16.msra.mxu0 0
      %1105 = vmatprep.subr.bf16.mxu0 0
      %1106 = vmatpush2.bf16.msra.mxu0 0
      %1107 = vmatprep.subr.bf16.mxu0 0
      %1108 = vmatpush2.bf16.msra.mxu0 0
      %1109 = vmatprep.subr.bf16.mxu0 0
      %1110 = vmatpush2.bf16.msra.mxu0 0
      %1111 = vmatprep.mubr.bf16.mxu0 0
      %1112 = vmatmul.mubr.bf16.gmra.mxu0 %v1023
      %v1113 = vpop.f32.mrf.mxu0
      %v1114 = vadd.f32 0.0, %v1113
      %v1115 = vpop.f32.mrf.mxu0
      %v1116 = vpop.f32.mrf.mxu0
      %v1117 = vadd.f32 0.0, %v1116
      %v1118 = vpop.f32.mrf.mxu0
      %1119 = vmatprep.mubr.bf16.mxu0 0
      %1120 = vmatmul.mubr.bf16.gmra.mxu0 %v1026
      %v1121 = vpop.f32.mrf.mxu0
      %v1122 = vadd.f32 0.0, %v1121
      %v1123 = vpop.f32.mrf.mxu0
      %v1124 = vpop.f32.mrf.mxu0
      %v1125 = vadd.f32 0.0, %v1124
      %v1126 = vpop.f32.mrf.mxu0
      %1127 = vmatprep.mubr.bf16.mxu0 0
      %1128 = vmatmul.mubr.bf16.gmra.mxu0 %v1029
      %v1129 = vpop.f32.mrf.mxu0
      %v1130 = vadd.f32 0.0, %v1129
      %v1131 = vpop.f32.mrf.mxu0
      %v1132 = vpop.f32.mrf.mxu0
      %v1133 = vadd.f32 0.0, %v1132
      %v1134 = vpop.f32.mrf.mxu0
      %1135 = vmatprep.mubr.bf16.mxu0 0
      %1136 = vmatmul.mubr.bf16.gmra.mxu0 %v1032
      %v1137 = vpop.f32.mrf.mxu0
      %v1138 = vadd.f32 0.0, %v1137
      %v1139 = vpop.f32.mrf.mxu0
      %v1140 = vpop.f32.mrf.mxu0
      %v1141 = vadd.f32 0.0, %v1140
      %v1142 = vpop.f32.mrf.mxu0
      %1143 = vmatprep.mubr.bf16.mxu0 0
      %1144 = vmatmul.mubr.bf16.gmra.mxu0 %v1035
      %v1145 = vpop.f32.mrf.mxu0
      %v1146 = vadd.f32 0.0, %v1145
      %v1147 = vpop.f32.mrf.mxu0
      %v1148 = vpop.f32.mrf.mxu0
      %v1149 = vadd.f32 0.0, %v1148
      %v1150 = vpop.f32.mrf.mxu0
      %1151 = vmatprep.mubr.bf16.mxu0 0
      %1152 = vmatmul.mubr.bf16.gmra.mxu0 %v1038
      %v1153 = vpop.f32.mrf.mxu0
      %v1154 = vadd.f32 0.0, %v1153
      %v1155 = vpop.f32.mrf.mxu0
      %v1156 = vpop.f32.mrf.mxu0
      %v1157 = vadd.f32 0.0, %v1156
      %v1158 = vpop.f32.mrf.mxu0
      %1159 = vmatprep.mubr.bf16.mxu0 0
      %1160 = vmatmul.mubr.bf16.gmra.mxu0 %v1041
      %v1161 = vpop.f32.mrf.mxu0
      %v1162 = vadd.f32 0.0, %v1161
      %v1163 = vpop.f32.mrf.mxu0
      %v1164 = vpop.f32.mrf.mxu0
      %v1165 = vadd.f32 0.0, %v1164
      %v1166 = vpop.f32.mrf.mxu0
      %1167 = vmatprep.mubr.bf16.mxu0 0
      %1168 = vmatmul.mubr.bf16.gmra.mxu0 %v1044
      %v1169 = vpop.f32.mrf.mxu0
      %v1170 = vadd.f32 0.0, %v1169
      %v1171 = vpop.f32.mrf.mxu0
      %v1172 = vpop.f32.mrf.mxu0
      %v1173 = vadd.f32 0.0, %v1172
      %v1174 = vpop.f32.mrf.mxu0
      %1175 = vmatprep.mubr.bf16.mxu0 0
      %1176 = vmatmul.mubr.bf16.gmra.mxu0 %v1047
      %v1177 = vpop.f32.mrf.mxu0
      %v1178 = vadd.f32 0.0, %v1177
      %v1179 = vpop.f32.mrf.mxu0
      %v1180 = vpop.f32.mrf.mxu0
      %v1181 = vadd.f32 0.0, %v1180
      %v1182 = vpop.f32.mrf.mxu0
      %1183 = vmatprep.mubr.bf16.mxu0 0
      %1184 = vmatmul.mubr.bf16.gmra.mxu0 %v1050
      %v1185 = vpop.f32.mrf.mxu0
      %v1186 = vadd.f32 0.0, %v1185
      %v1187 = vpop.f32.mrf.mxu0
      %v1188 = vpop.f32.mrf.mxu0
      %v1189 = vadd.f32 0.0, %v1188
      %v1190 = vpop.f32.mrf.mxu0
      %1191 = vmatprep.mubr.bf16.mxu0 0
      %1192 = vmatmul.mubr.bf16.gmra.mxu0 %v1053
      %v1193 = vpop.f32.mrf.mxu0
      %v1194 = vadd.f32 0.0, %v1193
      %v1195 = vpop.f32.mrf.mxu0
      %v1196 = vpop.f32.mrf.mxu0
      %v1197 = vadd.f32 0.0, %v1196
      %v1198 = vpop.f32.mrf.mxu0
      %1199 = vmatprep.mubr.bf16.mxu0 0
      %1200 = vmatmul.mubr.bf16.gmra.mxu0 %v1056
      %v1201 = vpop.f32.mrf.mxu0
      %v1202 = vadd.f32 0.0, %v1201
      %v1203 = vpop.f32.mrf.mxu0
      %v1204 = vpop.f32.mrf.mxu0
      %v1205 = vadd.f32 0.0, %v1204
      %v1206 = vpop.f32.mrf.mxu0
      %1207 = vmatprep.mubr.bf16.mxu0 0
      %1208 = vmatmul.mubr.bf16.gmra.mxu0 %v1059
      %v1209 = vpop.f32.mrf.mxu0
      %v1210 = vadd.f32 0.0, %v1209
      %v1211 = vpop.f32.mrf.mxu0
      %v1212 = vpop.f32.mrf.mxu0
      %v1213 = vadd.f32 0.0, %v1212
      %v1214 = vpop.f32.mrf.mxu0
      %1215 = vmatprep.mubr.bf16.mxu0 0
      %1216 = vmatmul.mubr.bf16.gmra.mxu0 %v1062
      %v1217 = vpop.f32.mrf.mxu0
      %v1218 = vadd.f32 0.0, %v1217
      %v1219 = vpop.f32.mrf.mxu0
      %v1220 = vpop.f32.mrf.mxu0
      %v1221 = vadd.f32 0.0, %v1220
      %v1222 = vpop.f32.mrf.mxu0
      %1223 = vmatprep.mubr.bf16.mxu0 0
      %1224 = vmatmul.mubr.bf16.gmra.mxu0 %v1065
      %v1225 = vpop.f32.mrf.mxu0
      %v1226 = vadd.f32 0.0, %v1225
      %v1227 = vpop.f32.mrf.mxu0
      %v1228 = vpop.f32.mrf.mxu0
      %v1229 = vadd.f32 0.0, %v1228
      %v1230 = vpop.f32.mrf.mxu0
      %1231 = vmatprep.mubr.bf16.mxu0 0
      %1232 = vmatmul.mubr.bf16.gmra.mxu0 %v1068
      %v1233 = vpop.f32.mrf.mxu0
      %v1234 = vadd.f32 0.0, %v1233
      %v1235 = vpop.f32.mrf.mxu0
      %v1236 = vpop.f32.mrf.mxu0
      %v1237 = vadd.f32 0.0, %v1236
      %v1238 = vpop.f32.mrf.mxu0
      %1239 = vmatprep.mubr.bf16.mxu0 0
      %1240 = vmatmul.mubr.bf16.gmra.mxu0 %v1071
      %v1241 = vpop.f32.mrf.mxu0
      %v1242 = vadd.f32 0.0, %v1241
      %v1243 = vpop.f32.mrf.mxu0
      %v1244 = vpop.f32.mrf.mxu0
      %v1245 = vadd.f32 0.0, %v1244
      %v1246 = vpop.f32.mrf.mxu0
      %1247 = vmatprep.mubr.bf16.mxu0 0
      %1248 = vmatmul.mubr.bf16.gmra.mxu0 %v1074
      %v1249 = vpop.f32.mrf.mxu0
      %v1250 = vadd.f32 0.0, %v1249
      %v1251 = vpop.f32.mrf.mxu0
      %v1252 = vpop.f32.mrf.mxu0
      %v1253 = vadd.f32 0.0, %v1252
      %v1254 = vpop.f32.mrf.mxu0
      %1255 = vdwg.mxu0
      %v1256 = vadd.f32 %v830, %v1114
      %v1257 = vadd.f32 %v833, %v1117
      %v1258 = vadd.f32 %v838, %v1122
      %v1259 = vadd.f32 %v841, %v1125
      %v1260 = vadd.f32 %v846, %v1130
      %v1261 = vadd.f32 %v849, %v1133
      %v1262 = vadd.f32 %v854, %v1138
      %v1263 = vadd.f32 %v857, %v1141
      %v1264 = vadd.f32 %v862, %v1146
      %v1265 = vadd.f32 %v865, %v1149
      %v1266 = vadd.f32 %v870, %v1154
      %v1267 = vadd.f32 %v873, %v1157
      %v1268 = vadd.f32 %v878, %v1162
      %v1269 = vadd.f32 %v881, %v1165
      %v1270 = vadd.f32 %v886, %v1170
      %v1271 = vadd.f32 %v889, %v1173
      %v1272 = vadd.f32 %v894, %v1178
      %v1273 = vadd.f32 %v897, %v1181
      %v1274 = vadd.f32 %v902, %v1186
      %v1275 = vadd.f32 %v905, %v1189
      %v1276 = vadd.f32 %v910, %v1194
      %v1277 = vadd.f32 %v913, %v1197
      %v1278 = vadd.f32 %v918, %v1202
      %v1279 = vadd.f32 %v921, %v1205
      %v1280 = vadd.f32 %v926, %v1210
      %v1281 = vadd.f32 %v929, %v1213
      %v1282 = vadd.f32 %v934, %v1218
      %v1283 = vadd.f32 %v937, %v1221
      %v1284 = vadd.f32 %v942, %v1226
      %v1285 = vadd.f32 %v945, %v1229
      %v1286 = vadd.f32 %v950, %v1234
      %v1287 = vadd.f32 %v953, %v1237
      %v1288 = vadd.f32 %v958, %v1242
      %v1289 = vadd.f32 %v961, %v1245
      %v1290 = vadd.f32 %v966, %v1250
      %v1291 = vadd.f32 %v969, %v1253
      %v1292 = vld [vmem:[%s219 + $0x8] sm:$0xe]
      %v1293 = vld [vmem:[%s219 + $0xc] sm:$0xf]
      %v1294 = vld [vmem:[%s219 + $0x10] sm:$0xf]
      %v1295 = vld [vmem:[%s219 + $0x14] sm:$0xf]
      %v1296 = vld [vmem:[%s219 + $0x18] sm:$0xf]
      %v1297 = vld [vmem:[%s219 + $0x1c] sm:$0xf]
      %v1298 = vld [vmem:[%s219 + $0x20] sm:$0xf]
      %v1299 = vld [vmem:[%s219 + $0x24] sm:$0xf]
      %v1300 = vld [vmem:[%s219 + $0x28] sm:$0xf]
      %v1301 = vld [vmem:[%s219 + $0x2c] sm:$0xf]
      %v1302 = vld [vmem:[%s219 + $0x30] sm:$0xf]
      %v1303 = vld [vmem:[%s219 + $0x34] sm:$0xf]
      %v1304 = vld [vmem:[%s219 + $0x38] sm:$0xf]
      %v1305 = vld [vmem:[%s219 + $0x3c] sm:$0xf]
      %v1306 = vld [vmem:[%s219 + $0x40] sm:$0xf]
      %v1307 = vld [vmem:[%s219 + $0x44] sm:$0xf]
      %v1308 = vld [vmem:[%s219 + $0x48] sm:$0xf]
      %v1309 = vld [vmem:[%s219 + $0x4c] sm:$0xf]
      %v1310 = vld [vmem:[%s219 + $0x50] sm:$0xf]
      %v1311 = vld [vmem:[%s219 + $0x54] sm:$0xf]
      %v1312 = vld [vmem:[%s219 + $0x58] sm:$0xf]
      %v1313 = vld [vmem:[%s219 + $0x5c] sm:$0xf]
      %v1314 = vld [vmem:[%s219 + $0x60] sm:$0xf]
      %v1315 = vld [vmem:[%s219 + $0x64] sm:$0xf]
      %v1316 = vld [vmem:[%s219 + $0x68] sm:$0xf]
      %v1317 = vld [vmem:[%s219 + $0x6c] sm:$0xf]
      %v1318 = vld [vmem:[%s219 + $0x70] sm:$0xf]
      %v1319 = vld [vmem:[%s219 + $0x74] sm:$0xf]
      %v1320 = vld [vmem:[%s219 + $0x78] sm:$0xf]
      %v1321 = vld [vmem:[%s219 + $0x7c] sm:$0xf]
      %v1322 = vld [vmem:[%s219 + $0x80] sm:$0xf]
      %v1323 = vld [vmem:[%s219 + $0x84] sm:$0xf]
      %v1324 = vld [vmem:[%s219 + $0x88] sm:$0xf]
      %v1325 = vld [vmem:[%s219 + $0x8c] sm:$0xf]
      %v1326 = vld [vmem:[%s219 + $0x90] sm:$0xf]
      %v1327 = vld [vmem:[%s219 + $0x94] sm:$0xf]
      %v1328 = vld [vmem:[%s219 + $0x98] sm:$0x1]
      %s1329 = scalar_lea.vmem %s1, 24
      %v1330 = vld [vmem:[%s1329] sm:$0xf]
      %v1331 = vld [vmem:[%s1329 + $0x4] sm:$0x3]
      %v1369 = vunpack.c.l.b16 %v1292
      %v1370 = vunpack.c.l.b16 %v1293
      %v1371 = vunpack.c.l.b16 %v1294
      %v1372 = vunpack.c.l.b16 %v1295
      %v1373 = vunpack.c.l.b16 %v1296
      %v1374 = vunpack.c.l.b16 %v1297
      %v1375 = vunpack.c.l.b16 %v1298
      %v1376 = vunpack.c.l.b16 %v1299
      %v1377 = vunpack.c.l.b16 %v1300
      %v1378 = vunpack.c.l.b16 %v1301
      %v1379 = vunpack.c.l.b16 %v1302
      %v1380 = vunpack.c.l.b16 %v1303
      %v1381 = vunpack.c.l.b16 %v1304
      %v1382 = vunpack.c.l.b16 %v1305
      %v1383 = vunpack.c.l.b16 %v1306
      %v1384 = vunpack.c.l.b16 %v1307
      %v1385 = vunpack.c.l.b16 %v1308
      %v1386 = vunpack.c.l.b16 %v1309
      %v1387 = vunpack.c.l.b16 %v1310
      %v1388 = vunpack.c.l.b16 %v1311
      %v1389 = vunpack.c.l.b16 %v1312
      %v1390 = vunpack.c.l.b16 %v1313
      %v1391 = vunpack.c.l.b16 %v1314
      %v1392 = vunpack.c.l.b16 %v1315
      %v1393 = vunpack.c.l.b16 %v1316
      %v1394 = vunpack.c.l.b16 %v1317
      %v1395 = vunpack.c.l.b16 %v1318
      %v1396 = vunpack.c.l.b16 %v1319
      %v1397 = vunpack.c.l.b16 %v1320
      %v1398 = vunpack.c.l.b16 %v1321
      %v1399 = vunpack.c.l.b16 %v1322
      %v1400 = vunpack.c.l.b16 %v1323
      %v1401 = vunpack.c.l.b16 %v1324
      %v1402 = vunpack.c.l.b16 %v1325
      %v1403 = vunpack.c.l.b16 %v1326
      %v1404 = vunpack.c.l.b16 %v1327
      %v1405 = vunpack.c.l.b16 %v1328
      %v1406 = vpack.c.b16 %v1370, %v1369
      %v1407 = vpack.c.b16 %v1372, %v1371
      %v1408 = vpack.c.b16 %v1374, %v1373
      %v1409 = vpack.c.b16 %v1376, %v1375
      %v1410 = vpack.c.b16 %v1378, %v1377
      %v1411 = vpack.c.b16 %v1380, %v1379
      %v1412 = vpack.c.b16 %v1382, %v1381
      %v1413 = vpack.c.b16 %v1384, %v1383
      %v1414 = vpack.c.b16 %v1386, %v1385
      %v1415 = vpack.c.b16 %v1388, %v1387
      %v1416 = vpack.c.b16 %v1390, %v1389
      %v1417 = vpack.c.b16 %v1392, %v1391
      %v1418 = vpack.c.b16 %v1394, %v1393
      %v1419 = vpack.c.b16 %v1396, %v1395
      %v1420 = vpack.c.b16 %v1398, %v1397
      %v1421 = vpack.c.b16 %v1400, %v1399
      %v1422 = vpack.c.b16 %v1402, %v1401
      %v1423 = vpack.c.b16 %v1404, %v1403
      %v1424 = vpack.c.b16 %v1405, %v1405
      %v1425 = vrot.slane %v1406, 1
      %v1426 = vrot.slane %v1407, 1
      %v1427 = vsel %vm979, %v1425, %v1426
      %v1428 = vrot.slane %v1408, 1
      %v1429 = vsel %vm979, %v1426, %v1428
      %v1430 = vrot.slane %v1409, 1
      %v1431 = vsel %vm979, %v1428, %v1430
      %v1432 = vrot.slane %v1410, 1
      %v1433 = vsel %vm979, %v1430, %v1432
      %v1434 = vrot.slane %v1411, 1
      %v1435 = vsel %vm979, %v1432, %v1434
      %v1436 = vrot.slane %v1412, 1
      %v1437 = vsel %vm979, %v1434, %v1436
      %v1438 = vrot.slane %v1413, 1
      %v1439 = vsel %vm979, %v1436, %v1438
      %v1440 = vrot.slane %v1414, 1
      %v1441 = vsel %vm979, %v1438, %v1440
      %v1442 = vrot.slane %v1415, 1
      %v1443 = vsel %vm979, %v1440, %v1442
      %v1444 = vrot.slane %v1416, 1
      %v1445 = vsel %vm979, %v1442, %v1444
      %v1446 = vrot.slane %v1417, 1
      %v1447 = vsel %vm979, %v1444, %v1446
      %v1448 = vrot.slane %v1418, 1
      %v1449 = vsel %vm979, %v1446, %v1448
      %v1450 = vrot.slane %v1419, 1
      %v1451 = vsel %vm979, %v1448, %v1450
      %v1452 = vrot.slane %v1420, 1
      %v1453 = vsel %vm979, %v1450, %v1452
      %v1454 = vrot.slane %v1421, 1
      %v1455 = vsel %vm979, %v1452, %v1454
      %v1456 = vrot.slane %v1422, 1
      %v1457 = vsel %vm979, %v1454, %v1456
      %v1458 = vrot.slane %v1423, 1
      %v1459 = vsel %vm979, %v1456, %v1458
      %v1460 = vrot.slane %v1424, 1
      %v1461 = vsel %vm979, %v1458, %v1460
      %v1464 = vunpack.c.l.b16 %v1330
      %v1465 = vunpack.c.l.b16 %v1331
      %v1466 = vpack.c.b16 %v1465, %v1464
      %v1468 = vsel %vm515, %v1427, 0
      %v1471 = vsel %vm515, %v1429, 0
      %v1474 = vsel %vm515, %v1431, 0
      %v1477 = vsel %vm515, %v1433, 0
      %v1480 = vsel %vm515, %v1435, 0
      %v1483 = vsel %vm515, %v1437, 0
      %v1486 = vsel %vm515, %v1439, 0
      %v1489 = vsel %vm515, %v1441, 0
      %v1492 = vsel %vm515, %v1443, 0
      %v1495 = vsel %vm515, %v1445, 0
      %v1498 = vsel %vm515, %v1447, 0
      %v1501 = vsel %vm515, %v1449, 0
      %v1504 = vsel %vm515, %v1451, 0
      %v1507 = vsel %vm515, %v1453, 0
      %v1510 = vsel %vm515, %v1455, 0
      %v1513 = vsel %vm515, %v1457, 0
      %v1516 = vsel %vm515, %v1459, 0
      %v1519 = vsel %vm515, %v1461, 0
      %v1522 = vsel %vm570, %v1466, 0
      %1524 = vmatprep.subr.bf16.mxu0 0
      %1525 = vmatpush1.bf16.msra.mxu0 0
      %1526 = vmatprep.subr.bf16.mxu0 0
      %1527 = vmatpush1.bf16.msra.mxu0 0
      %1528 = vmatprep.subr.bf16.mxu0 0
      %1529 = vmatpush1.bf16.msra.mxu0 0
      %1530 = vmatprep.subr.bf16.mxu0 0
      %1531 = vmatpush1.bf16.msra.mxu0 0
      %1532 = vmatprep.subr.bf16.mxu0 0
      %1533 = vmatpush1.bf16.msra.mxu0 0
      %1534 = vmatprep.subr.bf16.mxu0 0
      %1535 = vmatpush1.bf16.msra.mxu0 0
      %1536 = vmatprep.subr.bf16.mxu0 0
      %1537 = vmatpush1.bf16.msra.mxu0 0
      %1538 = vmatprep.subr.bf16.mxu0 0
      %1539 = vmatpush1.bf16.msra.mxu0 %v1522
      %1540 = vmatprep.subr.bf16.mxu0 0
      %1541 = vmatpush2.bf16.msra.mxu0 0
      %1542 = vmatprep.subr.bf16.mxu0 0
      %1543 = vmatpush2.bf16.msra.mxu0 0
      %1544 = vmatprep.subr.bf16.mxu0 0
      %1545 = vmatpush2.bf16.msra.mxu0 0
      %1546 = vmatprep.subr.bf16.mxu0 0
      %1547 = vmatpush2.bf16.msra.mxu0 0
      %1548 = vmatprep.subr.bf16.mxu0 0
      %1549 = vmatpush2.bf16.msra.mxu0 0
      %1550 = vmatprep.subr.bf16.mxu0 0
      %1551 = vmatpush2.bf16.msra.mxu0 0
      %1552 = vmatprep.subr.bf16.mxu0 0
      %1553 = vmatpush2.bf16.msra.mxu0 0
      %1554 = vmatprep.subr.bf16.mxu0 0
      %1555 = vmatpush2.bf16.msra.mxu0 0
      %1556 = vmatprep.mubr.bf16.mxu0 0
      %1557 = vmatmul.mubr.bf16.gmra.mxu0 %v1468
      %v1558 = vpop.f32.mrf.mxu0
      %v1559 = vadd.f32 0.0, %v1558
      %v1560 = vpop.f32.mrf.mxu0
      %v1561 = vpop.f32.mrf.mxu0
      %v1562 = vadd.f32 0.0, %v1561
      %v1563 = vpop.f32.mrf.mxu0
      %1564 = vmatprep.mubr.bf16.mxu0 0
      %1565 = vmatmul.mubr.bf16.gmra.mxu0 %v1471
      %v1566 = vpop.f32.mrf.mxu0
      %v1567 = vadd.f32 0.0, %v1566
      %v1568 = vpop.f32.mrf.mxu0
      %v1569 = vpop.f32.mrf.mxu0
      %v1570 = vadd.f32 0.0, %v1569
      %v1571 = vpop.f32.mrf.mxu0
      %1572 = vmatprep.mubr.bf16.mxu0 0
      %1573 = vmatmul.mubr.bf16.gmra.mxu0 %v1474
      %v1574 = vpop.f32.mrf.mxu0
      %v1575 = vadd.f32 0.0, %v1574
      %v1576 = vpop.f32.mrf.mxu0
      %v1577 = vpop.f32.mrf.mxu0
      %v1578 = vadd.f32 0.0, %v1577
      %v1579 = vpop.f32.mrf.mxu0
      %1580 = vmatprep.mubr.bf16.mxu0 0
      %1581 = vmatmul.mubr.bf16.gmra.mxu0 %v1477
      %v1582 = vpop.f32.mrf.mxu0
      %v1583 = vadd.f32 0.0, %v1582
      %v1584 = vpop.f32.mrf.mxu0
      %v1585 = vpop.f32.mrf.mxu0
      %v1586 = vadd.f32 0.0, %v1585
      %v1587 = vpop.f32.mrf.mxu0
      %1588 = vmatprep.mubr.bf16.mxu0 0
      %1589 = vmatmul.mubr.bf16.gmra.mxu0 %v1480
      %v1590 = vpop.f32.mrf.mxu0
      %v1591 = vadd.f32 0.0, %v1590
      %v1592 = vpop.f32.mrf.mxu0
      %v1593 = vpop.f32.mrf.mxu0
      %v1594 = vadd.f32 0.0, %v1593
      %v1595 = vpop.f32.mrf.mxu0
      %1596 = vmatprep.mubr.bf16.mxu0 0
      %1597 = vmatmul.mubr.bf16.gmra.mxu0 %v1483
      %v1598 = vpop.f32.mrf.mxu0
      %v1599 = vadd.f32 0.0, %v1598
      %v1600 = vpop.f32.mrf.mxu0
      %v1601 = vpop.f32.mrf.mxu0
      %v1602 = vadd.f32 0.0, %v1601
      %v1603 = vpop.f32.mrf.mxu0
      %1604 = vmatprep.mubr.bf16.mxu0 0
      %1605 = vmatmul.mubr.bf16.gmra.mxu0 %v1486
      %v1606 = vpop.f32.mrf.mxu0
      %v1607 = vadd.f32 0.0, %v1606
      %v1608 = vpop.f32.mrf.mxu0
      %v1609 = vpop.f32.mrf.mxu0
      %v1610 = vadd.f32 0.0, %v1609
      %v1611 = vpop.f32.mrf.mxu0
      %1612 = vmatprep.mubr.bf16.mxu0 0
      %1613 = vmatmul.mubr.bf16.gmra.mxu0 %v1489
      %v1614 = vpop.f32.mrf.mxu0
      %v1615 = vadd.f32 0.0, %v1614
      %v1616 = vpop.f32.mrf.mxu0
      %v1617 = vpop.f32.mrf.mxu0
      %v1618 = vadd.f32 0.0, %v1617
      %v1619 = vpop.f32.mrf.mxu0
      %1620 = vmatprep.mubr.bf16.mxu0 0
      %1621 = vmatmul.mubr.bf16.gmra.mxu0 %v1492
      %v1622 = vpop.f32.mrf.mxu0
      %v1623 = vadd.f32 0.0, %v1622
      %v1624 = vpop.f32.mrf.mxu0
      %v1625 = vpop.f32.mrf.mxu0
      %v1626 = vadd.f32 0.0, %v1625
      %v1627 = vpop.f32.mrf.mxu0
      %1628 = vmatprep.mubr.bf16.mxu0 0
      %1629 = vmatmul.mubr.bf16.gmra.mxu0 %v1495
      %v1630 = vpop.f32.mrf.mxu0
      %v1631 = vadd.f32 0.0, %v1630
      %v1632 = vpop.f32.mrf.mxu0
      %v1633 = vpop.f32.mrf.mxu0
      %v1634 = vadd.f32 0.0, %v1633
      %v1635 = vpop.f32.mrf.mxu0
      %1636 = vmatprep.mubr.bf16.mxu0 0
      %1637 = vmatmul.mubr.bf16.gmra.mxu0 %v1498
      %v1638 = vpop.f32.mrf.mxu0
      %v1639 = vadd.f32 0.0, %v1638
      %v1640 = vpop.f32.mrf.mxu0
      %v1641 = vpop.f32.mrf.mxu0
      %v1642 = vadd.f32 0.0, %v1641
      %v1643 = vpop.f32.mrf.mxu0
      %1644 = vmatprep.mubr.bf16.mxu0 0
      %1645 = vmatmul.mubr.bf16.gmra.mxu0 %v1501
      %v1646 = vpop.f32.mrf.mxu0
      %v1647 = vadd.f32 0.0, %v1646
      %v1648 = vpop.f32.mrf.mxu0
      %v1649 = vpop.f32.mrf.mxu0
      %v1650 = vadd.f32 0.0, %v1649
      %v1651 = vpop.f32.mrf.mxu0
      %1652 = vmatprep.mubr.bf16.mxu0 0
      %1653 = vmatmul.mubr.bf16.gmra.mxu0 %v1504
      %v1654 = vpop.f32.mrf.mxu0
      %v1655 = vadd.f32 0.0, %v1654
      %v1656 = vpop.f32.mrf.mxu0
      %v1657 = vpop.f32.mrf.mxu0
      %v1658 = vadd.f32 0.0, %v1657
      %v1659 = vpop.f32.mrf.mxu0
      %1660 = vmatprep.mubr.bf16.mxu0 0
      %1661 = vmatmul.mubr.bf16.gmra.mxu0 %v1507
      %v1662 = vpop.f32.mrf.mxu0
      %v1663 = vadd.f32 0.0, %v1662
      %v1664 = vpop.f32.mrf.mxu0
      %v1665 = vpop.f32.mrf.mxu0
      %v1666 = vadd.f32 0.0, %v1665
      %v1667 = vpop.f32.mrf.mxu0
      %1668 = vmatprep.mubr.bf16.mxu0 0
      %1669 = vmatmul.mubr.bf16.gmra.mxu0 %v1510
      %v1670 = vpop.f32.mrf.mxu0
      %v1671 = vadd.f32 0.0, %v1670
      %v1672 = vpop.f32.mrf.mxu0
      %v1673 = vpop.f32.mrf.mxu0
      %v1674 = vadd.f32 0.0, %v1673
      %v1675 = vpop.f32.mrf.mxu0
      %1676 = vmatprep.mubr.bf16.mxu0 0
      %1677 = vmatmul.mubr.bf16.gmra.mxu0 %v1513
      %v1678 = vpop.f32.mrf.mxu0
      %v1679 = vadd.f32 0.0, %v1678
      %v1680 = vpop.f32.mrf.mxu0
      %v1681 = vpop.f32.mrf.mxu0
      %v1682 = vadd.f32 0.0, %v1681
      %v1683 = vpop.f32.mrf.mxu0
      %1684 = vmatprep.mubr.bf16.mxu0 0
      %1685 = vmatmul.mubr.bf16.gmra.mxu0 %v1516
      %v1686 = vpop.f32.mrf.mxu0
      %v1687 = vadd.f32 0.0, %v1686
      %v1688 = vpop.f32.mrf.mxu0
      %v1689 = vpop.f32.mrf.mxu0
      %v1690 = vadd.f32 0.0, %v1689
      %v1691 = vpop.f32.mrf.mxu0
      %1692 = vmatprep.mubr.bf16.mxu0 0
      %1693 = vmatmul.mubr.bf16.gmra.mxu0 %v1519
      %v1694 = vpop.f32.mrf.mxu0
      %v1695 = vadd.f32 0.0, %v1694
      %v1696 = vpop.f32.mrf.mxu0
      %v1697 = vpop.f32.mrf.mxu0
      %v1698 = vadd.f32 0.0, %v1697
      %v1699 = vpop.f32.mrf.mxu0
      %1700 = vdwg.mxu0
      %v1701 = vadd.f32 %v1256, %v1559
      %v1702 = vadd.f32 %v1257, %v1562
      %v1703 = vadd.f32 %v1258, %v1567
      %v1704 = vadd.f32 %v1259, %v1570
      %v1705 = vadd.f32 %v1260, %v1575
      %v1706 = vadd.f32 %v1261, %v1578
      %v1707 = vadd.f32 %v1262, %v1583
      %v1708 = vadd.f32 %v1263, %v1586
      %v1709 = vadd.f32 %v1264, %v1591
      %v1710 = vadd.f32 %v1265, %v1594
      %v1711 = vadd.f32 %v1266, %v1599
      %v1712 = vadd.f32 %v1267, %v1602
      %v1713 = vadd.f32 %v1268, %v1607
      %v1714 = vadd.f32 %v1269, %v1610
      %v1715 = vadd.f32 %v1270, %v1615
      %v1716 = vadd.f32 %v1271, %v1618
      %v1717 = vadd.f32 %v1272, %v1623
      %v1718 = vadd.f32 %v1273, %v1626
      %v1719 = vadd.f32 %v1274, %v1631
      %v1720 = vadd.f32 %v1275, %v1634
      %v1721 = vadd.f32 %v1276, %v1639
      %v1722 = vadd.f32 %v1277, %v1642
      %v1723 = vadd.f32 %v1278, %v1647
      %v1724 = vadd.f32 %v1279, %v1650
      %v1725 = vadd.f32 %v1280, %v1655
      %v1726 = vadd.f32 %v1281, %v1658
      %v1727 = vadd.f32 %v1282, %v1663
      %v1728 = vadd.f32 %v1283, %v1666
      %v1729 = vadd.f32 %v1284, %v1671
      %v1730 = vadd.f32 %v1285, %v1674
      %v1731 = vadd.f32 %v1286, %v1679
      %v1732 = vadd.f32 %v1287, %v1682
      %v1733 = vadd.f32 %v1288, %v1687
      %v1734 = vadd.f32 %v1289, %v1690
      %v1735 = vadd.f32 %v1290, %v1695
      %v1736 = vadd.f32 %v1291, %v1698
      %v1737 = vld [vmem:[%s219 + $0x98] sm:$0x3]
      %s1738 = scalar_lea.vmem %s1, 32
      %v1739 = vld [vmem:[%s1738] sm:$0xf]
      %v1740 = vld [vmem:[%s1738 + $0x4] sm:$0x3]
      %v1742 = vunpack.c.l.b16 %v1737
      %v1743 = vpack.c.b16 %v1742, %v1742
      %vm1744 = vsmask.f32 6400
      %v1746 = vshrl.u32 %v1406, 16
      %v1748 = vrot.slane %v1746, 1
      %v1749 = vshll.u32 %v1406, 16
      %v1751 = vrot.slane %v1749, 2
      %v1752 = vor.u32 %v1748, %v1751
      %v1754 = vshrl.u32 %v1407, 16
      %v1756 = vrot.slane %v1754, 1
      %v1757 = vshll.u32 %v1407, 16
      %v1759 = vrot.slane %v1757, 2
      %v1760 = vor.u32 %v1756, %v1759
      %v1761 = vsel %vm1744, %v1752, %v1760
      %v1763 = vshrl.u32 %v1408, 16
      %v1765 = vrot.slane %v1763, 1
      %v1766 = vshll.u32 %v1408, 16
      %v1768 = vrot.slane %v1766, 2
      %v1769 = vor.u32 %v1765, %v1768
      %v1770 = vsel %vm1744, %v1760, %v1769
      %v1772 = vshrl.u32 %v1409, 16
      %v1774 = vrot.slane %v1772, 1
      %v1775 = vshll.u32 %v1409, 16
      %v1777 = vrot.slane %v1775, 2
      %v1778 = vor.u32 %v1774, %v1777
      %v1779 = vsel %vm1744, %v1769, %v1778
      %v1781 = vshrl.u32 %v1410, 16
      %v1783 = vrot.slane %v1781, 1
      %v1784 = vshll.u32 %v1410, 16
      %v1786 = vrot.slane %v1784, 2
      %v1787 = vor.u32 %v1783, %v1786
      %v1788 = vsel %vm1744, %v1778, %v1787
      %v1790 = vshrl.u32 %v1411, 16
      %v1792 = vrot.slane %v1790, 1
      %v1793 = vshll.u32 %v1411, 16
      %v1795 = vrot.slane %v1793, 2
      %v1796 = vor.u32 %v1792, %v1795
      %v1797 = vsel %vm1744, %v1787, %v1796
      %v1799 = vshrl.u32 %v1412, 16
      %v1801 = vrot.slane %v1799, 1
      %v1802 = vshll.u32 %v1412, 16
      %v1804 = vrot.slane %v1802, 2
      %v1805 = vor.u32 %v1801, %v1804
      %v1806 = vsel %vm1744, %v1796, %v1805
      %v1808 = vshrl.u32 %v1413, 16
      %v1810 = vrot.slane %v1808, 1
      %v1811 = vshll.u32 %v1413, 16
      %v1813 = vrot.slane %v1811, 2
      %v1814 = vor.u32 %v1810, %v1813
      %v1815 = vsel %vm1744, %v1805, %v1814
      %v1817 = vshrl.u32 %v1414, 16
      %v1819 = vrot.slane %v1817, 1
      %v1820 = vshll.u32 %v1414, 16
      %v1822 = vrot.slane %v1820, 2
      %v1823 = vor.u32 %v1819, %v1822
      %v1824 = vsel %vm1744, %v1814, %v1823
      %v1826 = vshrl.u32 %v1415, 16
      %v1828 = vrot.slane %v1826, 1
      %v1829 = vshll.u32 %v1415, 16
      %v1831 = vrot.slane %v1829, 2
      %v1832 = vor.u32 %v1828, %v1831
      %v1833 = vsel %vm1744, %v1823, %v1832
      %v1835 = vshrl.u32 %v1416, 16
      %v1837 = vrot.slane %v1835, 1
      %v1838 = vshll.u32 %v1416, 16
      %v1840 = vrot.slane %v1838, 2
      %v1841 = vor.u32 %v1837, %v1840
      %v1842 = vsel %vm1744, %v1832, %v1841
      %v1844 = vshrl.u32 %v1417, 16
      %v1846 = vrot.slane %v1844, 1
      %v1847 = vshll.u32 %v1417, 16
      %v1849 = vrot.slane %v1847, 2
      %v1850 = vor.u32 %v1846, %v1849
      %v1851 = vsel %vm1744, %v1841, %v1850
      %v1853 = vshrl.u32 %v1418, 16
      %v1855 = vrot.slane %v1853, 1
      %v1856 = vshll.u32 %v1418, 16
      %v1858 = vrot.slane %v1856, 2
      %v1859 = vor.u32 %v1855, %v1858
      %v1860 = vsel %vm1744, %v1850, %v1859
      %v1862 = vshrl.u32 %v1419, 16
      %v1864 = vrot.slane %v1862, 1
      %v1865 = vshll.u32 %v1419, 16
      %v1867 = vrot.slane %v1865, 2
      %v1868 = vor.u32 %v1864, %v1867
      %v1869 = vsel %vm1744, %v1859, %v1868
      %v1871 = vshrl.u32 %v1420, 16
      %v1873 = vrot.slane %v1871, 1
      %v1874 = vshll.u32 %v1420, 16
      %v1876 = vrot.slane %v1874, 2
      %v1877 = vor.u32 %v1873, %v1876
      %v1878 = vsel %vm1744, %v1868, %v1877
      %v1880 = vshrl.u32 %v1421, 16
      %v1882 = vrot.slane %v1880, 1
      %v1883 = vshll.u32 %v1421, 16
      %v1885 = vrot.slane %v1883, 2
      %v1886 = vor.u32 %v1882, %v1885
      %v1887 = vsel %vm1744, %v1877, %v1886
      %v1889 = vshrl.u32 %v1422, 16
      %v1891 = vrot.slane %v1889, 1
      %v1892 = vshll.u32 %v1422, 16
      %v1894 = vrot.slane %v1892, 2
      %v1895 = vor.u32 %v1891, %v1894
      %v1896 = vsel %vm1744, %v1886, %v1895
      %v1898 = vshrl.u32 %v1423, 16
      %v1900 = vrot.slane %v1898, 1
      %v1901 = vshll.u32 %v1423, 16
      %v1903 = vrot.slane %v1901, 2
      %v1904 = vor.u32 %v1900, %v1903
      %v1905 = vsel %vm1744, %v1895, %v1904
      %v1907 = vshrl.u32 %v1743, 16
      %v1909 = vrot.slane %v1907, 1
      %v1910 = vshll.u32 %v1743, 16
      %v1912 = vrot.slane %v1910, 2
      %v1913 = vor.u32 %v1909, %v1912
      %v1914 = vsel %vm1744, %v1904, %v1913
      %v1917 = vunpack.c.l.b16 %v1739
      %v1918 = vunpack.c.l.b16 %v1740
      %v1919 = vpack.c.b16 %v1918, %v1917
      %v1921 = vsel %vm515, %v1761, 0
      %v1924 = vsel %vm515, %v1770, 0
      %v1927 = vsel %vm515, %v1779, 0
      %v1930 = vsel %vm515, %v1788, 0
      %v1933 = vsel %vm515, %v1797, 0
      %v1936 = vsel %vm515, %v1806, 0
      %v1939 = vsel %vm515, %v1815, 0
      %v1942 = vsel %vm515, %v1824, 0
      %v1945 = vsel %vm515, %v1833, 0
      %v1948 = vsel %vm515, %v1842, 0
      %v1951 = vsel %vm515, %v1851, 0
      %v1954 = vsel %vm515, %v1860, 0
      %v1957 = vsel %vm515, %v1869, 0
      %v1960 = vsel %vm515, %v1878, 0
      %v1963 = vsel %vm515, %v1887, 0
      %v1966 = vsel %vm515, %v1896, 0
      %v1969 = vsel %vm515, %v1905, 0
      %v1972 = vsel %vm515, %v1914, 0
      %v1975 = vsel %vm570, %v1919, 0
      %1977 = vmatprep.subr.bf16.mxu0 0
      %1978 = vmatpush1.bf16.msra.mxu0 0
      %1979 = vmatprep.subr.bf16.mxu0 0
      %1980 = vmatpush1.bf16.msra.mxu0 0
      %1981 = vmatprep.subr.bf16.mxu0 0
      %1982 = vmatpush1.bf16.msra.mxu0 0
      %1983 = vmatprep.subr.bf16.mxu0 0
      %1984 = vmatpush1.bf16.msra.mxu0 0
      %1985 = vmatprep.subr.bf16.mxu0 0
      %1986 = vmatpush1.bf16.msra.mxu0 0
      %1987 = vmatprep.subr.bf16.mxu0 0
      %1988 = vmatpush1.bf16.msra.mxu0 0
      %1989 = vmatprep.subr.bf16.mxu0 0
      %1990 = vmatpush1.bf16.msra.mxu0 0
      %1991 = vmatprep.subr.bf16.mxu0 0
      %1992 = vmatpush1.bf16.msra.mxu0 %v1975
      %1993 = vmatprep.subr.bf16.mxu0 0
      %1994 = vmatpush2.bf16.msra.mxu0 0
      %1995 = vmatprep.subr.bf16.mxu0 0
      %1996 = vmatpush2.bf16.msra.mxu0 0
      %1997 = vmatprep.subr.bf16.mxu0 0
      %1998 = vmatpush2.bf16.msra.mxu0 0
      %1999 = vmatprep.subr.bf16.mxu0 0
      %2000 = vmatpush2.bf16.msra.mxu0 0
      %2001 = vmatprep.subr.bf16.mxu0 0
      %2002 = vmatpush2.bf16.msra.mxu0 0
      %2003 = vmatprep.subr.bf16.mxu0 0
      %2004 = vmatpush2.bf16.msra.mxu0 0
      %2005 = vmatprep.subr.bf16.mxu0 0
      %2006 = vmatpush2.bf16.msra.mxu0 0
      %2007 = vmatprep.subr.bf16.mxu0 0
      %2008 = vmatpush2.bf16.msra.mxu0 0
      %2009 = vmatprep.mubr.bf16.mxu0 0
      %2010 = vmatmul.mubr.bf16.gmra.mxu0 %v1921
      %v2011 = vpop.f32.mrf.mxu0
      %v2012 = vadd.f32 0.0, %v2011
      %v2013 = vpop.f32.mrf.mxu0
      %v2014 = vpop.f32.mrf.mxu0
      %v2015 = vadd.f32 0.0, %v2014
      %v2016 = vpop.f32.mrf.mxu0
      %2017 = vmatprep.mubr.bf16.mxu0 0
      %2018 = vmatmul.mubr.bf16.gmra.mxu0 %v1924
      %v2019 = vpop.f32.mrf.mxu0
      %v2020 = vadd.f32 0.0, %v2019
      %v2021 = vpop.f32.mrf.mxu0
      %v2022 = vpop.f32.mrf.mxu0
      %v2023 = vadd.f32 0.0, %v2022
      %v2024 = vpop.f32.mrf.mxu0
      %2025 = vmatprep.mubr.bf16.mxu0 0
      %2026 = vmatmul.mubr.bf16.gmra.mxu0 %v1927
      %v2027 = vpop.f32.mrf.mxu0
      %v2028 = vadd.f32 0.0, %v2027
      %v2029 = vpop.f32.mrf.mxu0
      %v2030 = vpop.f32.mrf.mxu0
      %v2031 = vadd.f32 0.0, %v2030
      %v2032 = vpop.f32.mrf.mxu0
      %2033 = vmatprep.mubr.bf16.mxu0 0
      %2034 = vmatmul.mubr.bf16.gmra.mxu0 %v1930
      %v2035 = vpop.f32.mrf.mxu0
      %v2036 = vadd.f32 0.0, %v2035
      %v2037 = vpop.f32.mrf.mxu0
      %v2038 = vpop.f32.mrf.mxu0
      %v2039 = vadd.f32 0.0, %v2038
      %v2040 = vpop.f32.mrf.mxu0
      %2041 = vmatprep.mubr.bf16.mxu0 0
      %2042 = vmatmul.mubr.bf16.gmra.mxu0 %v1933
      %v2043 = vpop.f32.mrf.mxu0
      %v2044 = vadd.f32 0.0, %v2043
      %v2045 = vpop.f32.mrf.mxu0
      %v2046 = vpop.f32.mrf.mxu0
      %v2047 = vadd.f32 0.0, %v2046
      %v2048 = vpop.f32.mrf.mxu0
      %2049 = vmatprep.mubr.bf16.mxu0 0
      %2050 = vmatmul.mubr.bf16.gmra.mxu0 %v1936
      %v2051 = vpop.f32.mrf.mxu0
      %v2052 = vadd.f32 0.0, %v2051
      %v2053 = vpop.f32.mrf.mxu0
      %v2054 = vpop.f32.mrf.mxu0
      %v2055 = vadd.f32 0.0, %v2054
      %v2056 = vpop.f32.mrf.mxu0
      %2057 = vmatprep.mubr.bf16.mxu0 0
      %2058 = vmatmul.mubr.bf16.gmra.mxu0 %v1939
      %v2059 = vpop.f32.mrf.mxu0
      %v2060 = vadd.f32 0.0, %v2059
      %v2061 = vpop.f32.mrf.mxu0
      %v2062 = vpop.f32.mrf.mxu0
      %v2063 = vadd.f32 0.0, %v2062
      %v2064 = vpop.f32.mrf.mxu0
      %2065 = vmatprep.mubr.bf16.mxu0 0
      %2066 = vmatmul.mubr.bf16.gmra.mxu0 %v1942
      %v2067 = vpop.f32.mrf.mxu0
      %v2068 = vadd.f32 0.0, %v2067
      %v2069 = vpop.f32.mrf.mxu0
      %v2070 = vpop.f32.mrf.mxu0
      %v2071 = vadd.f32 0.0, %v2070
      %v2072 = vpop.f32.mrf.mxu0
      %2073 = vmatprep.mubr.bf16.mxu0 0
      %2074 = vmatmul.mubr.bf16.gmra.mxu0 %v1945
      %v2075 = vpop.f32.mrf.mxu0
      %v2076 = vadd.f32 0.0, %v2075
      %v2077 = vpop.f32.mrf.mxu0
      %v2078 = vpop.f32.mrf.mxu0
      %v2079 = vadd.f32 0.0, %v2078
      %v2080 = vpop.f32.mrf.mxu0
      %2081 = vmatprep.mubr.bf16.mxu0 0
      %2082 = vmatmul.mubr.bf16.gmra.mxu0 %v1948
      %v2083 = vpop.f32.mrf.mxu0
      %v2084 = vadd.f32 0.0, %v2083
      %v2085 = vpop.f32.mrf.mxu0
      %v2086 = vpop.f32.mrf.mxu0
      %v2087 = vadd.f32 0.0, %v2086
      %v2088 = vpop.f32.mrf.mxu0
      %2089 = vmatprep.mubr.bf16.mxu0 0
      %2090 = vmatmul.mubr.bf16.gmra.mxu0 %v1951
      %v2091 = vpop.f32.mrf.mxu0
      %v2092 = vadd.f32 0.0, %v2091
      %v2093 = vpop.f32.mrf.mxu0
      %v2094 = vpop.f32.mrf.mxu0
      %v2095 = vadd.f32 0.0, %v2094
      %v2096 = vpop.f32.mrf.mxu0
      %2097 = vmatprep.mubr.bf16.mxu0 0
      %2098 = vmatmul.mubr.bf16.gmra.mxu0 %v1954
      %v2099 = vpop.f32.mrf.mxu0
      %v2100 = vadd.f32 0.0, %v2099
      %v2101 = vpop.f32.mrf.mxu0
      %v2102 = vpop.f32.mrf.mxu0
      %v2103 = vadd.f32 0.0, %v2102
      %v2104 = vpop.f32.mrf.mxu0
      %2105 = vmatprep.mubr.bf16.mxu0 0
      %2106 = vmatmul.mubr.bf16.gmra.mxu0 %v1957
      %v2107 = vpop.f32.mrf.mxu0
      %v2108 = vadd.f32 0.0, %v2107
      %v2109 = vpop.f32.mrf.mxu0
      %v2110 = vpop.f32.mrf.mxu0
      %v2111 = vadd.f32 0.0, %v2110
      %v2112 = vpop.f32.mrf.mxu0
      %2113 = vmatprep.mubr.bf16.mxu0 0
      %2114 = vmatmul.mubr.bf16.gmra.mxu0 %v1960
      %v2115 = vpop.f32.mrf.mxu0
      %v2116 = vadd.f32 0.0, %v2115
      %v2117 = vpop.f32.mrf.mxu0
      %v2118 = vpop.f32.mrf.mxu0
      %v2119 = vadd.f32 0.0, %v2118
      %v2120 = vpop.f32.mrf.mxu0
      %2121 = vmatprep.mubr.bf16.mxu0 0
      %2122 = vmatmul.mubr.bf16.gmra.mxu0 %v1963
      %v2123 = vpop.f32.mrf.mxu0
      %v2124 = vadd.f32 0.0, %v2123
      %v2125 = vpop.f32.mrf.mxu0
      %v2126 = vpop.f32.mrf.mxu0
      %v2127 = vadd.f32 0.0, %v2126
      %v2128 = vpop.f32.mrf.mxu0
      %2129 = vmatprep.mubr.bf16.mxu0 0
      %2130 = vmatmul.mubr.bf16.gmra.mxu0 %v1966
      %v2131 = vpop.f32.mrf.mxu0
      %v2132 = vadd.f32 0.0, %v2131
      %v2133 = vpop.f32.mrf.mxu0
      %v2134 = vpop.f32.mrf.mxu0
      %v2135 = vadd.f32 0.0, %v2134
      %v2136 = vpop.f32.mrf.mxu0
      %2137 = vmatprep.mubr.bf16.mxu0 0
      %2138 = vmatmul.mubr.bf16.gmra.mxu0 %v1969
      %v2139 = vpop.f32.mrf.mxu0
      %v2140 = vadd.f32 0.0, %v2139
      %v2141 = vpop.f32.mrf.mxu0
      %v2142 = vpop.f32.mrf.mxu0
      %v2143 = vadd.f32 0.0, %v2142
      %v2144 = vpop.f32.mrf.mxu0
      %2145 = vmatprep.mubr.bf16.mxu0 0
      %2146 = vmatmul.mubr.bf16.gmra.mxu0 %v1972
      %v2147 = vpop.f32.mrf.mxu0
      %v2148 = vadd.f32 0.0, %v2147
      %v2149 = vpop.f32.mrf.mxu0
      %v2150 = vpop.f32.mrf.mxu0
      %v2151 = vadd.f32 0.0, %v2150
      %v2152 = vpop.f32.mrf.mxu0
      %2153 = vdwg.mxu0
      %v2154 = vadd.f32 %v1701, %v2012
      %v2155 = vadd.f32 %v1702, %v2015
      %v2156 = vadd.f32 %v1703, %v2020
      %v2157 = vadd.f32 %v1704, %v2023
      %v2158 = vadd.f32 %v1705, %v2028
      %v2159 = vadd.f32 %v1706, %v2031
      %v2160 = vadd.f32 %v1707, %v2036
      %v2161 = vadd.f32 %v1708, %v2039
      %v2162 = vadd.f32 %v1709, %v2044
      %v2163 = vadd.f32 %v1710, %v2047
      %v2164 = vadd.f32 %v1711, %v2052
      %v2165 = vadd.f32 %v1712, %v2055
      %v2166 = vadd.f32 %v1713, %v2060
      %v2167 = vadd.f32 %v1714, %v2063
      %v2168 = vadd.f32 %v1715, %v2068
      %v2169 = vadd.f32 %v1716, %v2071
      %v2170 = vadd.f32 %v1717, %v2076
      %v2171 = vadd.f32 %v1718, %v2079
      %v2172 = vadd.f32 %v1719, %v2084
      %v2173 = vadd.f32 %v1720, %v2087
      %v2174 = vadd.f32 %v1721, %v2092
      %v2175 = vadd.f32 %v1722, %v2095
      %v2176 = vadd.f32 %v1723, %v2100
      %v2177 = vadd.f32 %v1724, %v2103
      %v2178 = vadd.f32 %v1725, %v2108
      %v2179 = vadd.f32 %v1726, %v2111
      %v2180 = vadd.f32 %v1727, %v2116
      %v2181 = vadd.f32 %v1728, %v2119
      %v2182 = vadd.f32 %v1729, %v2124
      %v2183 = vadd.f32 %v1730, %v2127
      %v2184 = vadd.f32 %v1731, %v2132
      %v2185 = vadd.f32 %v1732, %v2135
      %v2186 = vadd.f32 %v1733, %v2140
      %v2187 = vadd.f32 %v1734, %v2143
      %v2188 = vadd.f32 %v1735, %v2148
      %v2189 = vadd.f32 %v1736, %v2151
      %v2190 = vld [vmem:[%s219 + $0x8] sm:$0xc]
      %s2191 = scalar_lea.vmem %s1, 40
      %v2192 = vld [vmem:[%s2191] sm:$0xf]
      %v2193 = vld [vmem:[%s2191 + $0x4] sm:$0x3]
      %v2195 = vunpack.c.l.b16 %v2190
      %v2196 = vpack.c.b16 %v1370, %v2195
      %vm2197 = vcmask 1045504
      %v2198 = vrot.slane %v2196, 2
      %v2199 = vrot.slane %v1407, 2
      %v2200 = vsel %vm2197, %v2198, %v2199
      %v2201 = vrot.slane %v1408, 2
      %v2202 = vsel %vm2197, %v2199, %v2201
      %v2203 = vrot.slane %v1409, 2
      %v2204 = vsel %vm2197, %v2201, %v2203
      %v2205 = vrot.slane %v1410, 2
      %v2206 = vsel %vm2197, %v2203, %v2205
      %v2207 = vrot.slane %v1411, 2
      %v2208 = vsel %vm2197, %v2205, %v2207
      %v2209 = vrot.slane %v1412, 2
      %v2210 = vsel %vm2197, %v2207, %v2209
      %v2211 = vrot.slane %v1413, 2
      %v2212 = vsel %vm2197, %v2209, %v2211
      %v2213 = vrot.slane %v1414, 2
      %v2214 = vsel %vm2197, %v2211, %v2213
      %v2215 = vrot.slane %v1415, 2
      %v2216 = vsel %vm2197, %v2213, %v2215
      %v2217 = vrot.slane %v1416, 2
      %v2218 = vsel %vm2197, %v2215, %v2217
      %v2219 = vrot.slane %v1417, 2
      %v2220 = vsel %vm2197, %v2217, %v2219
      %v2221 = vrot.slane %v1418, 2
      %v2222 = vsel %vm2197, %v2219, %v2221
      %v2223 = vrot.slane %v1419, 2
      %v2224 = vsel %vm2197, %v2221, %v2223
      %v2225 = vrot.slane %v1420, 2
      %v2226 = vsel %vm2197, %v2223, %v2225
      %v2227 = vrot.slane %v1421, 2
      %v2228 = vsel %vm2197, %v2225, %v2227
      %v2229 = vrot.slane %v1422, 2
      %v2230 = vsel %vm2197, %v2227, %v2229
      %v2231 = vrot.slane %v1423, 2
      %v2232 = vsel %vm2197, %v2229, %v2231
      %v2233 = vrot.slane %v1743, 2
      %v2234 = vsel %vm2197, %v2231, %v2233
      %v2237 = vunpack.c.l.b16 %v2192
      %v2238 = vunpack.c.l.b16 %v2193
      %v2239 = vpack.c.b16 %v2238, %v2237
      %v2241 = vsel %vm515, %v2200, 0
      %v2244 = vsel %vm515, %v2202, 0
      %v2247 = vsel %vm515, %v2204, 0
      %v2250 = vsel %vm515, %v2206, 0
      %v2253 = vsel %vm515, %v2208, 0
      %v2256 = vsel %vm515, %v2210, 0
      %v2259 = vsel %vm515, %v2212, 0
      %v2262 = vsel %vm515, %v2214, 0
      %v2265 = vsel %vm515, %v2216, 0
      %v2268 = vsel %vm515, %v2218, 0
      %v2271 = vsel %vm515, %v2220, 0
      %v2274 = vsel %vm515, %v2222, 0
      %v2277 = vsel %vm515, %v2224, 0
      %v2280 = vsel %vm515, %v2226, 0
      %v2283 = vsel %vm515, %v2228, 0
      %v2286 = vsel %vm515, %v2230, 0
      %v2289 = vsel %vm515, %v2232, 0
      %v2292 = vsel %vm515, %v2234, 0
      %v2295 = vsel %vm570, %v2239, 0
      %2297 = vmatprep.subr.bf16.mxu0 0
      %2298 = vmatpush1.bf16.msra.mxu0 0
      %2299 = vmatprep.subr.bf16.mxu0 0
      %2300 = vmatpush1.bf16.msra.mxu0 0
      %2301 = vmatprep.subr.bf16.mxu0 0
      %2302 = vmatpush1.bf16.msra.mxu0 0
      %2303 = vmatprep.subr.bf16.mxu0 0
      %2304 = vmatpush1.bf16.msra.mxu0 0
      %2305 = vmatprep.subr.bf16.mxu0 0
      %2306 = vmatpush1.bf16.msra.mxu0 0
      %2307 = vmatprep.subr.bf16.mxu0 0
      %2308 = vmatpush1.bf16.msra.mxu0 0
      %2309 = vmatprep.subr.bf16.mxu0 0
      %2310 = vmatpush1.bf16.msra.mxu0 0
      %2311 = vmatprep.subr.bf16.mxu0 0
      %2312 = vmatpush1.bf16.msra.mxu0 %v2295
      %2313 = vmatprep.subr.bf16.mxu0 0
      %2314 = vmatpush2.bf16.msra.mxu0 0
      %2315 = vmatprep.subr.bf16.mxu0 0
      %2316 = vmatpush2.bf16.msra.mxu0 0
      %2317 = vmatprep.subr.bf16.mxu0 0
      %2318 = vmatpush2.bf16.msra.mxu0 0
      %2319 = vmatprep.subr.bf16.mxu0 0
      %2320 = vmatpush2.bf16.msra.mxu0 0
      %2321 = vmatprep.subr.bf16.mxu0 0
      %2322 = vmatpush2.bf16.msra.mxu0 0
      %2323 = vmatprep.subr.bf16.mxu0 0
      %2324 = vmatpush2.bf16.msra.mxu0 0
      %2325 = vmatprep.subr.bf16.mxu0 0
      %2326 = vmatpush2.bf16.msra.mxu0 0
      %2327 = vmatprep.subr.bf16.mxu0 0
      %2328 = vmatpush2.bf16.msra.mxu0 0
      %2329 = vmatprep.mubr.bf16.mxu0 0
      %2330 = vmatmul.mubr.bf16.gmra.mxu0 %v2241
      %v2331 = vpop.f32.mrf.mxu0
      %v2332 = vadd.f32 0.0, %v2331
      %v2333 = vpop.f32.mrf.mxu0
      %v2334 = vpop.f32.mrf.mxu0
      %v2335 = vadd.f32 0.0, %v2334
      %v2336 = vpop.f32.mrf.mxu0
      %2337 = vmatprep.mubr.bf16.mxu0 0
      %2338 = vmatmul.mubr.bf16.gmra.mxu0 %v2244
      %v2339 = vpop.f32.mrf.mxu0
      %v2340 = vadd.f32 0.0, %v2339
      %v2341 = vpop.f32.mrf.mxu0
      %v2342 = vpop.f32.mrf.mxu0
      %v2343 = vadd.f32 0.0, %v2342
      %v2344 = vpop.f32.mrf.mxu0
      %2345 = vmatprep.mubr.bf16.mxu0 0
      %2346 = vmatmul.mubr.bf16.gmra.mxu0 %v2247
      %v2347 = vpop.f32.mrf.mxu0
      %v2348 = vadd.f32 0.0, %v2347
      %v2349 = vpop.f32.mrf.mxu0
      %v2350 = vpop.f32.mrf.mxu0
      %v2351 = vadd.f32 0.0, %v2350
      %v2352 = vpop.f32.mrf.mxu0
      %2353 = vmatprep.mubr.bf16.mxu0 0
      %2354 = vmatmul.mubr.bf16.gmra.mxu0 %v2250
      %v2355 = vpop.f32.mrf.mxu0
      %v2356 = vadd.f32 0.0, %v2355
      %v2357 = vpop.f32.mrf.mxu0
      %v2358 = vpop.f32.mrf.mxu0
      %v2359 = vadd.f32 0.0, %v2358
      %v2360 = vpop.f32.mrf.mxu0
      %2361 = vmatprep.mubr.bf16.mxu0 0
      %2362 = vmatmul.mubr.bf16.gmra.mxu0 %v2253
      %v2363 = vpop.f32.mrf.mxu0
      %v2364 = vadd.f32 0.0, %v2363
      %v2365 = vpop.f32.mrf.mxu0
      %v2366 = vpop.f32.mrf.mxu0
      %v2367 = vadd.f32 0.0, %v2366
      %v2368 = vpop.f32.mrf.mxu0
      %2369 = vmatprep.mubr.bf16.mxu0 0
      %2370 = vmatmul.mubr.bf16.gmra.mxu0 %v2256
      %v2371 = vpop.f32.mrf.mxu0
      %v2372 = vadd.f32 0.0, %v2371
      %v2373 = vpop.f32.mrf.mxu0
      %v2374 = vpop.f32.mrf.mxu0
      %v2375 = vadd.f32 0.0, %v2374
      %v2376 = vpop.f32.mrf.mxu0
      %2377 = vmatprep.mubr.bf16.mxu0 0
      %2378 = vmatmul.mubr.bf16.gmra.mxu0 %v2259
      %v2379 = vpop.f32.mrf.mxu0
      %v2380 = vadd.f32 0.0, %v2379
      %v2381 = vpop.f32.mrf.mxu0
      %v2382 = vpop.f32.mrf.mxu0
      %v2383 = vadd.f32 0.0, %v2382
      %v2384 = vpop.f32.mrf.mxu0
      %2385 = vmatprep.mubr.bf16.mxu0 0
      %2386 = vmatmul.mubr.bf16.gmra.mxu0 %v2262
      %v2387 = vpop.f32.mrf.mxu0
      %v2388 = vadd.f32 0.0, %v2387
      %v2389 = vpop.f32.mrf.mxu0
      %v2390 = vpop.f32.mrf.mxu0
      %v2391 = vadd.f32 0.0, %v2390
      %v2392 = vpop.f32.mrf.mxu0
      %2393 = vmatprep.mubr.bf16.mxu0 0
      %2394 = vmatmul.mubr.bf16.gmra.mxu0 %v2265
      %v2395 = vpop.f32.mrf.mxu0
      %v2396 = vadd.f32 0.0, %v2395
      %v2397 = vpop.f32.mrf.mxu0
      %v2398 = vpop.f32.mrf.mxu0
      %v2399 = vadd.f32 0.0, %v2398
      %v2400 = vpop.f32.mrf.mxu0
      %2401 = vmatprep.mubr.bf16.mxu0 0
      %2402 = vmatmul.mubr.bf16.gmra.mxu0 %v2268
      %v2403 = vpop.f32.mrf.mxu0
      %v2404 = vadd.f32 0.0, %v2403
      %v2405 = vpop.f32.mrf.mxu0
      %v2406 = vpop.f32.mrf.mxu0
      %v2407 = vadd.f32 0.0, %v2406
      %v2408 = vpop.f32.mrf.mxu0
      %2409 = vmatprep.mubr.bf16.mxu0 0
      %2410 = vmatmul.mubr.bf16.gmra.mxu0 %v2271
      %v2411 = vpop.f32.mrf.mxu0
      %v2412 = vadd.f32 0.0, %v2411
      %v2413 = vpop.f32.mrf.mxu0
      %v2414 = vpop.f32.mrf.mxu0
      %v2415 = vadd.f32 0.0, %v2414
      %v2416 = vpop.f32.mrf.mxu0
      %2417 = vmatprep.mubr.bf16.mxu0 0
      %2418 = vmatmul.mubr.bf16.gmra.mxu0 %v2274
      %v2419 = vpop.f32.mrf.mxu0
      %v2420 = vadd.f32 0.0, %v2419
      %v2421 = vpop.f32.mrf.mxu0
      %v2422 = vpop.f32.mrf.mxu0
      %v2423 = vadd.f32 0.0, %v2422
      %v2424 = vpop.f32.mrf.mxu0
      %2425 = vmatprep.mubr.bf16.mxu0 0
      %2426 = vmatmul.mubr.bf16.gmra.mxu0 %v2277
      %v2427 = vpop.f32.mrf.mxu0
      %v2428 = vadd.f32 0.0, %v2427
      %v2429 = vpop.f32.mrf.mxu0
      %v2430 = vpop.f32.mrf.mxu0
      %v2431 = vadd.f32 0.0, %v2430
      %v2432 = vpop.f32.mrf.mxu0
      %2433 = vmatprep.mubr.bf16.mxu0 0
      %2434 = vmatmul.mubr.bf16.gmra.mxu0 %v2280
      %v2435 = vpop.f32.mrf.mxu0
      %v2436 = vadd.f32 0.0, %v2435
      %v2437 = vpop.f32.mrf.mxu0
      %v2438 = vpop.f32.mrf.mxu0
      %v2439 = vadd.f32 0.0, %v2438
      %v2440 = vpop.f32.mrf.mxu0
      %2441 = vmatprep.mubr.bf16.mxu0 0
      %2442 = vmatmul.mubr.bf16.gmra.mxu0 %v2283
      %v2443 = vpop.f32.mrf.mxu0
      %v2444 = vadd.f32 0.0, %v2443
      %v2445 = vpop.f32.mrf.mxu0
      %v2446 = vpop.f32.mrf.mxu0
      %v2447 = vadd.f32 0.0, %v2446
      %v2448 = vpop.f32.mrf.mxu0
      %2449 = vmatprep.mubr.bf16.mxu0 0
      %2450 = vmatmul.mubr.bf16.gmra.mxu0 %v2286
      %v2451 = vpop.f32.mrf.mxu0
      %v2452 = vadd.f32 0.0, %v2451
      %v2453 = vpop.f32.mrf.mxu0
      %v2454 = vpop.f32.mrf.mxu0
      %v2455 = vadd.f32 0.0, %v2454
      %v2456 = vpop.f32.mrf.mxu0
      %2457 = vmatprep.mubr.bf16.mxu0 0
      %2458 = vmatmul.mubr.bf16.gmra.mxu0 %v2289
      %v2459 = vpop.f32.mrf.mxu0
      %v2460 = vadd.f32 0.0, %v2459
      %v2461 = vpop.f32.mrf.mxu0
      %v2462 = vpop.f32.mrf.mxu0
      %v2463 = vadd.f32 0.0, %v2462
      %v2464 = vpop.f32.mrf.mxu0
      %2465 = vmatprep.mubr.bf16.mxu0 0
      %2466 = vmatmul.mubr.bf16.gmra.mxu0 %v2292
      %v2467 = vpop.f32.mrf.mxu0
      %v2468 = vadd.f32 0.0, %v2467
      %v2469 = vpop.f32.mrf.mxu0
      %v2470 = vpop.f32.mrf.mxu0
      %v2471 = vadd.f32 0.0, %v2470
      %v2472 = vpop.f32.mrf.mxu0
      %2473 = vdwg.mxu0
      %v2474 = vadd.f32 %v2154, %v2332
      %v2475 = vadd.f32 %v2155, %v2335
      %v2476 = vadd.f32 %v2156, %v2340
      %v2477 = vadd.f32 %v2157, %v2343
      %v2478 = vadd.f32 %v2158, %v2348
      %v2479 = vadd.f32 %v2159, %v2351
      %v2480 = vadd.f32 %v2160, %v2356
      %v2481 = vadd.f32 %v2161, %v2359
      %v2482 = vadd.f32 %v2162, %v2364
      %v2483 = vadd.f32 %v2163, %v2367
      %v2484 = vadd.f32 %v2164, %v2372
      %v2485 = vadd.f32 %v2165, %v2375
      %v2486 = vadd.f32 %v2166, %v2380
      %v2487 = vadd.f32 %v2167, %v2383
      %v2488 = vadd.f32 %v2168, %v2388
      %v2489 = vadd.f32 %v2169, %v2391
      %v2490 = vadd.f32 %v2170, %v2396
      %v2491 = vadd.f32 %v2171, %v2399
      %v2492 = vadd.f32 %v2172, %v2404
      %v2493 = vadd.f32 %v2173, %v2407
      %v2494 = vadd.f32 %v2174, %v2412
      %v2495 = vadd.f32 %v2175, %v2415
      %v2496 = vadd.f32 %v2176, %v2420
      %v2497 = vadd.f32 %v2177, %v2423
      %v2498 = vadd.f32 %v2178, %v2428
      %v2499 = vadd.f32 %v2179, %v2431
      %v2500 = vadd.f32 %v2180, %v2436
      %v2501 = vadd.f32 %v2181, %v2439
      %v2502 = vadd.f32 %v2182, %v2444
      %v2503 = vadd.f32 %v2183, %v2447
      %v2504 = vadd.f32 %v2184, %v2452
      %v2505 = vadd.f32 %v2185, %v2455
      %v2506 = vadd.f32 %v2186, %v2460
      %v2507 = vadd.f32 %v2187, %v2463
      %v2508 = vadd.f32 %v2188, %v2468
      %v2509 = vadd.f32 %v2189, %v2471
      %v2510 = vld [vmem:[%s219 + $0x10] sm:$0xc]
      %v2511 = vld [vmem:[%s219 + $0x14] sm:$0xf]
      %v2512 = vld [vmem:[%s219 + $0x18] sm:$0xf]
      %v2513 = vld [vmem:[%s219 + $0x1c] sm:$0xf]
      %v2514 = vld [vmem:[%s219 + $0x20] sm:$0xf]
      %v2515 = vld [vmem:[%s219 + $0x24] sm:$0xf]
      %v2516 = vld [vmem:[%s219 + $0x28] sm:$0xf]
      %v2517 = vld [vmem:[%s219 + $0x2c] sm:$0xf]
      %v2518 = vld [vmem:[%s219 + $0x30] sm:$0xf]
      %v2519 = vld [vmem:[%s219 + $0x34] sm:$0xf]
      %v2520 = vld [vmem:[%s219 + $0x38] sm:$0xf]
      %v2521 = vld [vmem:[%s219 + $0x3c] sm:$0xf]
      %v2522 = vld [vmem:[%s219 + $0x40] sm:$0xf]
      %v2523 = vld [vmem:[%s219 + $0x44] sm:$0xf]
      %v2524 = vld [vmem:[%s219 + $0x48] sm:$0xf]
      %v2525 = vld [vmem:[%s219 + $0x4c] sm:$0xf]
      %v2526 = vld [vmem:[%s219 + $0x50] sm:$0xf]
      %v2527 = vld [vmem:[%s219 + $0x54] sm:$0xf]
      %v2528 = vld [vmem:[%s219 + $0x58] sm:$0xf]
      %v2529 = vld [vmem:[%s219 + $0x5c] sm:$0xf]
      %v2530 = vld [vmem:[%s219 + $0x60] sm:$0xf]
      %v2531 = vld [vmem:[%s219 + $0x64] sm:$0xf]
      %v2532 = vld [vmem:[%s219 + $0x68] sm:$0xf]
      %v2533 = vld [vmem:[%s219 + $0x6c] sm:$0xf]
      %v2534 = vld [vmem:[%s219 + $0x70] sm:$0xf]
      %v2535 = vld [vmem:[%s219 + $0x74] sm:$0xf]
      %v2536 = vld [vmem:[%s219 + $0x78] sm:$0xf]
      %v2537 = vld [vmem:[%s219 + $0x7c] sm:$0xf]
      %v2538 = vld [vmem:[%s219 + $0x80] sm:$0xf]
      %v2539 = vld [vmem:[%s219 + $0x84] sm:$0xf]
      %v2540 = vld [vmem:[%s219 + $0x88] sm:$0xf]
      %v2541 = vld [vmem:[%s219 + $0x8c] sm:$0xf]
      %v2542 = vld [vmem:[%s219 + $0x90] sm:$0xf]
      %v2543 = vld [vmem:[%s219 + $0x94] sm:$0xf]
      %v2544 = vld [vmem:[%s219 + $0x98] sm:$0xf]
      %v2545 = vld [vmem:[%s219 + $0x9c] sm:$0xf]
      %v2546 = vld [vmem:[%s219 + $0xa0] sm:$0x3]
      %s2547 = scalar_lea.vmem %s1, 48
      %v2548 = vld [vmem:[%s2547] sm:$0xf]
      %v2549 = vld [vmem:[%s2547 + $0x4] sm:$0x3]
      %v2587 = vunpack.c.l.b16 %v2510
      %v2588 = vunpack.c.l.b16 %v2511
      %v2589 = vunpack.c.l.b16 %v2512
      %v2590 = vunpack.c.l.b16 %v2513
      %v2591 = vunpack.c.l.b16 %v2514
      %v2592 = vunpack.c.l.b16 %v2515
      %v2593 = vunpack.c.l.b16 %v2516
      %v2594 = vunpack.c.l.b16 %v2517
      %v2595 = vunpack.c.l.b16 %v2518
      %v2596 = vunpack.c.l.b16 %v2519
      %v2597 = vunpack.c.l.b16 %v2520
      %v2598 = vunpack.c.l.b16 %v2521
      %v2599 = vunpack.c.l.b16 %v2522
      %v2600 = vunpack.c.l.b16 %v2523
      %v2601 = vunpack.c.l.b16 %v2524
      %v2602 = vunpack.c.l.b16 %v2525
      %v2603 = vunpack.c.l.b16 %v2526
      %v2604 = vunpack.c.l.b16 %v2527
      %v2605 = vunpack.c.l.b16 %v2528
      %v2606 = vunpack.c.l.b16 %v2529
      %v2607 = vunpack.c.l.b16 %v2530
      %v2608 = vunpack.c.l.b16 %v2531
      %v2609 = vunpack.c.l.b16 %v2532
      %v2610 = vunpack.c.l.b16 %v2533
      %v2611 = vunpack.c.l.b16 %v2534
      %v2612 = vunpack.c.l.b16 %v2535
      %v2613 = vunpack.c.l.b16 %v2536
      %v2614 = vunpack.c.l.b16 %v2537
      %v2615 = vunpack.c.l.b16 %v2538
      %v2616 = vunpack.c.l.b16 %v2539
      %v2617 = vunpack.c.l.b16 %v2540
      %v2618 = vunpack.c.l.b16 %v2541
      %v2619 = vunpack.c.l.b16 %v2542
      %v2620 = vunpack.c.l.b16 %v2543
      %v2621 = vunpack.c.l.b16 %v2544
      %v2622 = vunpack.c.l.b16 %v2545
      %v2623 = vunpack.c.l.b16 %v2546
      %v2624 = vpack.c.b16 %v2588, %v2587
      %v2625 = vpack.c.b16 %v2590, %v2589
      %v2626 = vpack.c.b16 %v2592, %v2591
      %v2627 = vpack.c.b16 %v2594, %v2593
      %v2628 = vpack.c.b16 %v2596, %v2595
      %v2629 = vpack.c.b16 %v2598, %v2597
      %v2630 = vpack.c.b16 %v2600, %v2599
      %v2631 = vpack.c.b16 %v2602, %v2601
      %v2632 = vpack.c.b16 %v2604, %v2603
      %v2633 = vpack.c.b16 %v2606, %v2605
      %v2634 = vpack.c.b16 %v2608, %v2607
      %v2635 = vpack.c.b16 %v2610, %v2609
      %v2636 = vpack.c.b16 %v2612, %v2611
      %v2637 = vpack.c.b16 %v2614, %v2613
      %v2638 = vpack.c.b16 %v2616, %v2615
      %v2639 = vpack.c.b16 %v2618, %v2617
      %v2640 = vpack.c.b16 %v2620, %v2619
      %v2641 = vpack.c.b16 %v2622, %v2621
      %v2642 = vpack.c.b16 %v2623, %v2623
      %v2643 = vrot.slane %v2624, 2
      %v2644 = vrot.slane %v2625, 2
      %v2645 = vsel %vm2197, %v2643, %v2644
      %v2646 = vrot.slane %v2626, 2
      %v2647 = vsel %vm2197, %v2644, %v2646
      %v2648 = vrot.slane %v2627, 2
      %v2649 = vsel %vm2197, %v2646, %v2648
      %v2650 = vrot.slane %v2628, 2
      %v2651 = vsel %vm2197, %v2648, %v2650
      %v2652 = vrot.slane %v2629, 2
      %v2653 = vsel %vm2197, %v2650, %v2652
      %v2654 = vrot.slane %v2630, 2
      %v2655 = vsel %vm2197, %v2652, %v2654
      %v2656 = vrot.slane %v2631, 2
      %v2657 = vsel %vm2197, %v2654, %v2656
      %v2658 = vrot.slane %v2632, 2
      %v2659 = vsel %vm2197, %v2656, %v2658
      %v2660 = vrot.slane %v2633, 2
      %v2661 = vsel %vm2197, %v2658, %v2660
      %v2662 = vrot.slane %v2634, 2
      %v2663 = vsel %vm2197, %v2660, %v2662
      %v2664 = vrot.slane %v2635, 2
      %v2665 = vsel %vm2197, %v2662, %v2664
      %v2666 = vrot.slane %v2636, 2
      %v2667 = vsel %vm2197, %v2664, %v2666
      %v2668 = vrot.slane %v2637, 2
      %v2669 = vsel %vm2197, %v2666, %v2668
      %v2670 = vrot.slane %v2638, 2
      %v2671 = vsel %vm2197, %v2668, %v2670
      %v2672 = vrot.slane %v2639, 2
      %v2673 = vsel %vm2197, %v2670, %v2672
      %v2674 = vrot.slane %v2640, 2
      %v2675 = vsel %vm2197, %v2672, %v2674
      %v2676 = vrot.slane %v2641, 2
      %v2677 = vsel %vm2197, %v2674, %v2676
      %v2678 = vrot.slane %v2642, 2
      %v2679 = vsel %vm2197, %v2676, %v2678
      %v2682 = vunpack.c.l.b16 %v2548
      %v2683 = vunpack.c.l.b16 %v2549
      %v2684 = vpack.c.b16 %v2683, %v2682
      %v2686 = vsel %vm515, %v2645, 0
      %v2689 = vsel %vm515, %v2647, 0
      %v2692 = vsel %vm515, %v2649, 0
      %v2695 = vsel %vm515, %v2651, 0
      %v2698 = vsel %vm515, %v2653, 0
      %v2701 = vsel %vm515, %v2655, 0
      %v2704 = vsel %vm515, %v2657, 0
      %v2707 = vsel %vm515, %v2659, 0
      %v2710 = vsel %vm515, %v2661, 0
      %v2713 = vsel %vm515, %v2663, 0
      %v2716 = vsel %vm515, %v2665, 0
      %v2719 = vsel %vm515, %v2667, 0
      %v2722 = vsel %vm515, %v2669, 0
      %v2725 = vsel %vm515, %v2671, 0
      %v2728 = vsel %vm515, %v2673, 0
      %v2731 = vsel %vm515, %v2675, 0
      %v2734 = vsel %vm515, %v2677, 0
      %v2737 = vsel %vm515, %v2679, 0
      %v2740 = vsel %vm570, %v2684, 0
      %2742 = vmatprep.subr.bf16.mxu0 0
      %2743 = vmatpush1.bf16.msra.mxu0 0
      %2744 = vmatprep.subr.bf16.mxu0 0
      %2745 = vmatpush1.bf16.msra.mxu0 0
      %2746 = vmatprep.subr.bf16.mxu0 0
      %2747 = vmatpush1.bf16.msra.mxu0 0
      %2748 = vmatprep.subr.bf16.mxu0 0
      %2749 = vmatpush1.bf16.msra.mxu0 0
      %2750 = vmatprep.subr.bf16.mxu0 0
      %2751 = vmatpush1.bf16.msra.mxu0 0
      %2752 = vmatprep.subr.bf16.mxu0 0
      %2753 = vmatpush1.bf16.msra.mxu0 0
      %2754 = vmatprep.subr.bf16.mxu0 0
      %2755 = vmatpush1.bf16.msra.mxu0 0
      %2756 = vmatprep.subr.bf16.mxu0 0
      %2757 = vmatpush1.bf16.msra.mxu0 %v2740
      %2758 = vmatprep.subr.bf16.mxu0 0
      %2759 = vmatpush2.bf16.msra.mxu0 0
      %2760 = vmatprep.subr.bf16.mxu0 0
      %2761 = vmatpush2.bf16.msra.mxu0 0
      %2762 = vmatprep.subr.bf16.mxu0 0
      %2763 = vmatpush2.bf16.msra.mxu0 0
      %2764 = vmatprep.subr.bf16.mxu0 0
      %2765 = vmatpush2.bf16.msra.mxu0 0
      %2766 = vmatprep.subr.bf16.mxu0 0
      %2767 = vmatpush2.bf16.msra.mxu0 0
      %2768 = vmatprep.subr.bf16.mxu0 0
      %2769 = vmatpush2.bf16.msra.mxu0 0
      %2770 = vmatprep.subr.bf16.mxu0 0
      %2771 = vmatpush2.bf16.msra.mxu0 0
      %2772 = vmatprep.subr.bf16.mxu0 0
      %2773 = vmatpush2.bf16.msra.mxu0 0
      %2774 = vmatprep.mubr.bf16.mxu0 0
      %2775 = vmatmul.mubr.bf16.gmra.mxu0 %v2686
      %v2776 = vpop.f32.mrf.mxu0
      %v2777 = vadd.f32 0.0, %v2776
      %v2778 = vpop.f32.mrf.mxu0
      %v2779 = vpop.f32.mrf.mxu0
      %v2780 = vadd.f32 0.0, %v2779
      %v2781 = vpop.f32.mrf.mxu0
      %2782 = vmatprep.mubr.bf16.mxu0 0
      %2783 = vmatmul.mubr.bf16.gmra.mxu0 %v2689
      %v2784 = vpop.f32.mrf.mxu0
      %v2785 = vadd.f32 0.0, %v2784
      %v2786 = vpop.f32.mrf.mxu0
      %v2787 = vpop.f32.mrf.mxu0
      %v2788 = vadd.f32 0.0, %v2787
      %v2789 = vpop.f32.mrf.mxu0
      %2790 = vmatprep.mubr.bf16.mxu0 0
      %2791 = vmatmul.mubr.bf16.gmra.mxu0 %v2692
      %v2792 = vpop.f32.mrf.mxu0
      %v2793 = vadd.f32 0.0, %v2792
      %v2794 = vpop.f32.mrf.mxu0
      %v2795 = vpop.f32.mrf.mxu0
      %v2796 = vadd.f32 0.0, %v2795
      %v2797 = vpop.f32.mrf.mxu0
      %2798 = vmatprep.mubr.bf16.mxu0 0
      %2799 = vmatmul.mubr.bf16.gmra.mxu0 %v2695
      %v2800 = vpop.f32.mrf.mxu0
      %v2801 = vadd.f32 0.0, %v2800
      %v2802 = vpop.f32.mrf.mxu0
      %v2803 = vpop.f32.mrf.mxu0
      %v2804 = vadd.f32 0.0, %v2803
      %v2805 = vpop.f32.mrf.mxu0
      %2806 = vmatprep.mubr.bf16.mxu0 0
      %2807 = vmatmul.mubr.bf16.gmra.mxu0 %v2698
      %v2808 = vpop.f32.mrf.mxu0
      %v2809 = vadd.f32 0.0, %v2808
      %v2810 = vpop.f32.mrf.mxu0
      %v2811 = vpop.f32.mrf.mxu0
      %v2812 = vadd.f32 0.0, %v2811
      %v2813 = vpop.f32.mrf.mxu0
      %2814 = vmatprep.mubr.bf16.mxu0 0
      %2815 = vmatmul.mubr.bf16.gmra.mxu0 %v2701
      %v2816 = vpop.f32.mrf.mxu0
      %v2817 = vadd.f32 0.0, %v2816
      %v2818 = vpop.f32.mrf.mxu0
      %v2819 = vpop.f32.mrf.mxu0
      %v2820 = vadd.f32 0.0, %v2819
      %v2821 = vpop.f32.mrf.mxu0
      %2822 = vmatprep.mubr.bf16.mxu0 0
      %2823 = vmatmul.mubr.bf16.gmra.mxu0 %v2704
      %v2824 = vpop.f32.mrf.mxu0
      %v2825 = vadd.f32 0.0, %v2824
      %v2826 = vpop.f32.mrf.mxu0
      %v2827 = vpop.f32.mrf.mxu0
      %v2828 = vadd.f32 0.0, %v2827
      %v2829 = vpop.f32.mrf.mxu0
      %2830 = vmatprep.mubr.bf16.mxu0 0
      %2831 = vmatmul.mubr.bf16.gmra.mxu0 %v2707
      %v2832 = vpop.f32.mrf.mxu0
      %v2833 = vadd.f32 0.0, %v2832
      %v2834 = vpop.f32.mrf.mxu0
      %v2835 = vpop.f32.mrf.mxu0
      %v2836 = vadd.f32 0.0, %v2835
      %v2837 = vpop.f32.mrf.mxu0
      %2838 = vmatprep.mubr.bf16.mxu0 0
      %2839 = vmatmul.mubr.bf16.gmra.mxu0 %v2710
      %v2840 = vpop.f32.mrf.mxu0
      %v2841 = vadd.f32 0.0, %v2840
      %v2842 = vpop.f32.mrf.mxu0
      %v2843 = vpop.f32.mrf.mxu0
      %v2844 = vadd.f32 0.0, %v2843
      %v2845 = vpop.f32.mrf.mxu0
      %2846 = vmatprep.mubr.bf16.mxu0 0
      %2847 = vmatmul.mubr.bf16.gmra.mxu0 %v2713
      %v2848 = vpop.f32.mrf.mxu0
      %v2849 = vadd.f32 0.0, %v2848
      %v2850 = vpop.f32.mrf.mxu0
      %v2851 = vpop.f32.mrf.mxu0
      %v2852 = vadd.f32 0.0, %v2851
      %v2853 = vpop.f32.mrf.mxu0
      %2854 = vmatprep.mubr.bf16.mxu0 0
      %2855 = vmatmul.mubr.bf16.gmra.mxu0 %v2716
      %v2856 = vpop.f32.mrf.mxu0
      %v2857 = vadd.f32 0.0, %v2856
      %v2858 = vpop.f32.mrf.mxu0
      %v2859 = vpop.f32.mrf.mxu0
      %v2860 = vadd.f32 0.0, %v2859
      %v2861 = vpop.f32.mrf.mxu0
      %2862 = vmatprep.mubr.bf16.mxu0 0
      %2863 = vmatmul.mubr.bf16.gmra.mxu0 %v2719
      %v2864 = vpop.f32.mrf.mxu0
      %v2865 = vadd.f32 0.0, %v2864
      %v2866 = vpop.f32.mrf.mxu0
      %v2867 = vpop.f32.mrf.mxu0
      %v2868 = vadd.f32 0.0, %v2867
      %v2869 = vpop.f32.mrf.mxu0
      %2870 = vmatprep.mubr.bf16.mxu0 0
      %2871 = vmatmul.mubr.bf16.gmra.mxu0 %v2722
      %v2872 = vpop.f32.mrf.mxu0
      %v2873 = vadd.f32 0.0, %v2872
      %v2874 = vpop.f32.mrf.mxu0
      %v2875 = vpop.f32.mrf.mxu0
      %v2876 = vadd.f32 0.0, %v2875
      %v2877 = vpop.f32.mrf.mxu0
      %2878 = vmatprep.mubr.bf16.mxu0 0
      %2879 = vmatmul.mubr.bf16.gmra.mxu0 %v2725
      %v2880 = vpop.f32.mrf.mxu0
      %v2881 = vadd.f32 0.0, %v2880
      %v2882 = vpop.f32.mrf.mxu0
      %v2883 = vpop.f32.mrf.mxu0
      %v2884 = vadd.f32 0.0, %v2883
      %v2885 = vpop.f32.mrf.mxu0
      %2886 = vmatprep.mubr.bf16.mxu0 0
      %2887 = vmatmul.mubr.bf16.gmra.mxu0 %v2728
      %v2888 = vpop.f32.mrf.mxu0
      %v2889 = vadd.f32 0.0, %v2888
      %v2890 = vpop.f32.mrf.mxu0
      %v2891 = vpop.f32.mrf.mxu0
      %v2892 = vadd.f32 0.0, %v2891
      %v2893 = vpop.f32.mrf.mxu0
      %2894 = vmatprep.mubr.bf16.mxu0 0
      %2895 = vmatmul.mubr.bf16.gmra.mxu0 %v2731
      %v2896 = vpop.f32.mrf.mxu0
      %v2897 = vadd.f32 0.0, %v2896
      %v2898 = vpop.f32.mrf.mxu0
      %v2899 = vpop.f32.mrf.mxu0
      %v2900 = vadd.f32 0.0, %v2899
      %v2901 = vpop.f32.mrf.mxu0
      %2902 = vmatprep.mubr.bf16.mxu0 0
      %2903 = vmatmul.mubr.bf16.gmra.mxu0 %v2734
      %v2904 = vpop.f32.mrf.mxu0
      %v2905 = vadd.f32 0.0, %v2904
      %v2906 = vpop.f32.mrf.mxu0
      %v2907 = vpop.f32.mrf.mxu0
      %v2908 = vadd.f32 0.0, %v2907
      %v2909 = vpop.f32.mrf.mxu0
      %2910 = vmatprep.mubr.bf16.mxu0 0
      %2911 = vmatmul.mubr.bf16.gmra.mxu0 %v2737
      %v2912 = vpop.f32.mrf.mxu0
      %v2913 = vadd.f32 0.0, %v2912
      %v2914 = vpop.f32.mrf.mxu0
      %v2915 = vpop.f32.mrf.mxu0
      %v2916 = vadd.f32 0.0, %v2915
      %v2917 = vpop.f32.mrf.mxu0
      %2918 = vdwg.mxu0
      %v2919 = vadd.f32 %v2474, %v2777
      %v2920 = vadd.f32 %v2475, %v2780
      %v2921 = vadd.f32 %v2476, %v2785
      %v2922 = vadd.f32 %v2477, %v2788
      %v2923 = vadd.f32 %v2478, %v2793
      %v2924 = vadd.f32 %v2479, %v2796
      %v2925 = vadd.f32 %v2480, %v2801
      %v2926 = vadd.f32 %v2481, %v2804
      %v2927 = vadd.f32 %v2482, %v2809
      %v2928 = vadd.f32 %v2483, %v2812
      %v2929 = vadd.f32 %v2484, %v2817
      %v2930 = vadd.f32 %v2485, %v2820
      %v2931 = vadd.f32 %v2486, %v2825
      %v2932 = vadd.f32 %v2487, %v2828
      %v2933 = vadd.f32 %v2488, %v2833
      %v2934 = vadd.f32 %v2489, %v2836
      %v2935 = vadd.f32 %v2490, %v2841
      %v2936 = vadd.f32 %v2491, %v2844
      %v2937 = vadd.f32 %v2492, %v2849
      %v2938 = vadd.f32 %v2493, %v2852
      %v2939 = vadd.f32 %v2494, %v2857
      %v2940 = vadd.f32 %v2495, %v2860
      %v2941 = vadd.f32 %v2496, %v2865
      %v2942 = vadd.f32 %v2497, %v2868
      %v2943 = vadd.f32 %v2498, %v2873
      %v2944 = vadd.f32 %v2499, %v2876
      %v2945 = vadd.f32 %v2500, %v2881
      %v2946 = vadd.f32 %v2501, %v2884
      %v2947 = vadd.f32 %v2502, %v2889
      %v2948 = vadd.f32 %v2503, %v2892
      %v2949 = vadd.f32 %v2504, %v2897
      %v2950 = vadd.f32 %v2505, %v2900
      %v2951 = vadd.f32 %v2506, %v2905
      %v2952 = vadd.f32 %v2507, %v2908
      %v2953 = vadd.f32 %v2508, %v2913
      %v2954 = vadd.f32 %v2509, %v2916
      %v2955 = vld [vmem:[%s219 + $0xa0] sm:$0x7]
      %s2956 = scalar_lea.vmem %s1, 56
      %v2957 = vld [vmem:[%s2956] sm:$0xf]
      %v2958 = vld [vmem:[%s2956 + $0x4] sm:$0x3]
      %v2960 = vunpack.c.l.b16 %v2955
      %v2961 = vpack.c.b16 %v2960, %v2960
      %vm2962 = vsmask.f32 5376
      %v2964 = vshrl.u32 %v2624, 16
      %v2966 = vrot.slane %v2964, 2
      %v2967 = vshll.u32 %v2624, 16
      %v2969 = vrot.slane %v2967, 3
      %v2970 = vor.u32 %v2966, %v2969
      %v2972 = vshrl.u32 %v2625, 16
      %v2974 = vrot.slane %v2972, 2
      %v2975 = vshll.u32 %v2625, 16
      %v2977 = vrot.slane %v2975, 3
      %v2978 = vor.u32 %v2974, %v2977
      %v2979 = vsel %vm2962, %v2970, %v2978
      %v2981 = vshrl.u32 %v2626, 16
      %v2983 = vrot.slane %v2981, 2
      %v2984 = vshll.u32 %v2626, 16
      %v2986 = vrot.slane %v2984, 3
      %v2987 = vor.u32 %v2983, %v2986
      %v2988 = vsel %vm2962, %v2978, %v2987
      %v2990 = vshrl.u32 %v2627, 16
      %v2992 = vrot.slane %v2990, 2
      %v2993 = vshll.u32 %v2627, 16
      %v2995 = vrot.slane %v2993, 3
      %v2996 = vor.u32 %v2992, %v2995
      %v2997 = vsel %vm2962, %v2987, %v2996
      %v2999 = vshrl.u32 %v2628, 16
      %v3001 = vrot.slane %v2999, 2
      %v3002 = vshll.u32 %v2628, 16
      %v3004 = vrot.slane %v3002, 3
      %v3005 = vor.u32 %v3001, %v3004
      %v3006 = vsel %vm2962, %v2996, %v3005
      %v3008 = vshrl.u32 %v2629, 16
      %v3010 = vrot.slane %v3008, 2
      %v3011 = vshll.u32 %v2629, 16
      %v3013 = vrot.slane %v3011, 3
      %v3014 = vor.u32 %v3010, %v3013
      %v3015 = vsel %vm2962, %v3005, %v3014
      %v3017 = vshrl.u32 %v2630, 16
      %v3019 = vrot.slane %v3017, 2
      %v3020 = vshll.u32 %v2630, 16
      %v3022 = vrot.slane %v3020, 3
      %v3023 = vor.u32 %v3019, %v3022
      %v3024 = vsel %vm2962, %v3014, %v3023
      %v3026 = vshrl.u32 %v2631, 16
      %v3028 = vrot.slane %v3026, 2
      %v3029 = vshll.u32 %v2631, 16
      %v3031 = vrot.slane %v3029, 3
      %v3032 = vor.u32 %v3028, %v3031
      %v3033 = vsel %vm2962, %v3023, %v3032
      %v3035 = vshrl.u32 %v2632, 16
      %v3037 = vrot.slane %v3035, 2
      %v3038 = vshll.u32 %v2632, 16
      %v3040 = vrot.slane %v3038, 3
      %v3041 = vor.u32 %v3037, %v3040
      %v3042 = vsel %vm2962, %v3032, %v3041
      %v3044 = vshrl.u32 %v2633, 16
      %v3046 = vrot.slane %v3044, 2
      %v3047 = vshll.u32 %v2633, 16
      %v3049 = vrot.slane %v3047, 3
      %v3050 = vor.u32 %v3046, %v3049
      %v3051 = vsel %vm2962, %v3041, %v3050
      %v3053 = vshrl.u32 %v2634, 16
      %v3055 = vrot.slane %v3053, 2
      %v3056 = vshll.u32 %v2634, 16
      %v3058 = vrot.slane %v3056, 3
      %v3059 = vor.u32 %v3055, %v3058
      %v3060 = vsel %vm2962, %v3050, %v3059
      %v3062 = vshrl.u32 %v2635, 16
      %v3064 = vrot.slane %v3062, 2
      %v3065 = vshll.u32 %v2635, 16
      %v3067 = vrot.slane %v3065, 3
      %v3068 = vor.u32 %v3064, %v3067
      %v3069 = vsel %vm2962, %v3059, %v3068
      %v3071 = vshrl.u32 %v2636, 16
      %v3073 = vrot.slane %v3071, 2
      %v3074 = vshll.u32 %v2636, 16
      %v3076 = vrot.slane %v3074, 3
      %v3077 = vor.u32 %v3073, %v3076
      %v3078 = vsel %vm2962, %v3068, %v3077
      %v3080 = vshrl.u32 %v2637, 16
      %v3082 = vrot.slane %v3080, 2
      %v3083 = vshll.u32 %v2637, 16
      %v3085 = vrot.slane %v3083, 3
      %v3086 = vor.u32 %v3082, %v3085
      %v3087 = vsel %vm2962, %v3077, %v3086
      %v3089 = vshrl.u32 %v2638, 16
      %v3091 = vrot.slane %v3089, 2
      %v3092 = vshll.u32 %v2638, 16
      %v3094 = vrot.slane %v3092, 3
      %v3095 = vor.u32 %v3091, %v3094
      %v3096 = vsel %vm2962, %v3086, %v3095
      %v3098 = vshrl.u32 %v2639, 16
      %v3100 = vrot.slane %v3098, 2
      %v3101 = vshll.u32 %v2639, 16
      %v3103 = vrot.slane %v3101, 3
      %v3104 = vor.u32 %v3100, %v3103
      %v3105 = vsel %vm2962, %v3095, %v3104
      %v3107 = vshrl.u32 %v2640, 16
      %v3109 = vrot.slane %v3107, 2
      %v3110 = vshll.u32 %v2640, 16
      %v3112 = vrot.slane %v3110, 3
      %v3113 = vor.u32 %v3109, %v3112
      %v3114 = vsel %vm2962, %v3104, %v3113
      %v3116 = vshrl.u32 %v2641, 16
      %v3118 = vrot.slane %v3116, 2
      %v3119 = vshll.u32 %v2641, 16
      %v3121 = vrot.slane %v3119, 3
      %v3122 = vor.u32 %v3118, %v3121
      %v3123 = vsel %vm2962, %v3113, %v3122
      %v3125 = vshrl.u32 %v2961, 16
      %v3127 = vrot.slane %v3125, 2
      %v3128 = vshll.u32 %v2961, 16
      %v3130 = vrot.slane %v3128, 3
      %v3131 = vor.u32 %v3127, %v3130
      %v3132 = vsel %vm2962, %v3122, %v3131
      %v3135 = vunpack.c.l.b16 %v2957
      %v3136 = vunpack.c.l.b16 %v2958
      %v3137 = vpack.c.b16 %v3136, %v3135
      %v3139 = vsel %vm515, %v2979, 0
      %v3142 = vsel %vm515, %v2988, 0
      %v3145 = vsel %vm515, %v2997, 0
      %v3148 = vsel %vm515, %v3006, 0
      %v3151 = vsel %vm515, %v3015, 0
      %v3154 = vsel %vm515, %v3024, 0
      %v3157 = vsel %vm515, %v3033, 0
      %v3160 = vsel %vm515, %v3042, 0
      %v3163 = vsel %vm515, %v3051, 0
      %v3166 = vsel %vm515, %v3060, 0
      %v3169 = vsel %vm515, %v3069, 0
      %v3172 = vsel %vm515, %v3078, 0
      %v3175 = vsel %vm515, %v3087, 0
      %v3178 = vsel %vm515, %v3096, 0
      %v3181 = vsel %vm515, %v3105, 0
      %v3184 = vsel %vm515, %v3114, 0
      %v3187 = vsel %vm515, %v3123, 0
      %v3190 = vsel %vm515, %v3132, 0
      %v3193 = vsel %vm570, %v3137, 0
      %3195 = vmatprep.subr.bf16.mxu0 0
      %3196 = vmatpush1.bf16.msra.mxu0 0
      %3197 = vmatprep.subr.bf16.mxu0 0
      %3198 = vmatpush1.bf16.msra.mxu0 0
      %3199 = vmatprep.subr.bf16.mxu0 0
      %3200 = vmatpush1.bf16.msra.mxu0 0
      %3201 = vmatprep.subr.bf16.mxu0 0
      %3202 = vmatpush1.bf16.msra.mxu0 0
      %3203 = vmatprep.subr.bf16.mxu0 0
      %3204 = vmatpush1.bf16.msra.mxu0 0
      %3205 = vmatprep.subr.bf16.mxu0 0
      %3206 = vmatpush1.bf16.msra.mxu0 0
      %3207 = vmatprep.subr.bf16.mxu0 0
      %3208 = vmatpush1.bf16.msra.mxu0 0
      %3209 = vmatprep.subr.bf16.mxu0 0
      %3210 = vmatpush1.bf16.msra.mxu0 %v3193
      %3211 = vmatprep.subr.bf16.mxu0 0
      %3212 = vmatpush2.bf16.msra.mxu0 0
      %3213 = vmatprep.subr.bf16.mxu0 0
      %3214 = vmatpush2.bf16.msra.mxu0 0
      %3215 = vmatprep.subr.bf16.mxu0 0
      %3216 = vmatpush2.bf16.msra.mxu0 0
      %3217 = vmatprep.subr.bf16.mxu0 0
      %3218 = vmatpush2.bf16.msra.mxu0 0
      %3219 = vmatprep.subr.bf16.mxu0 0
      %3220 = vmatpush2.bf16.msra.mxu0 0
      %3221 = vmatprep.subr.bf16.mxu0 0
      %3222 = vmatpush2.bf16.msra.mxu0 0
      %3223 = vmatprep.subr.bf16.mxu0 0
      %3224 = vmatpush2.bf16.msra.mxu0 0
      %3225 = vmatprep.subr.bf16.mxu0 0
      %3226 = vmatpush2.bf16.msra.mxu0 0
      %3227 = vmatprep.mubr.bf16.mxu0 0
      %3228 = vmatmul.mubr.bf16.gmra.mxu0 %v3139
      %v3229 = vpop.f32.mrf.mxu0
      %v3230 = vadd.f32 0.0, %v3229
      %v3231 = vpop.f32.mrf.mxu0
      %v3232 = vpop.f32.mrf.mxu0
      %v3233 = vadd.f32 0.0, %v3232
      %v3234 = vpop.f32.mrf.mxu0
      %3235 = vmatprep.mubr.bf16.mxu0 0
      %3236 = vmatmul.mubr.bf16.gmra.mxu0 %v3142
      %v3237 = vpop.f32.mrf.mxu0
      %v3238 = vadd.f32 0.0, %v3237
      %v3239 = vpop.f32.mrf.mxu0
      %v3240 = vpop.f32.mrf.mxu0
      %v3241 = vadd.f32 0.0, %v3240
      %v3242 = vpop.f32.mrf.mxu0
      %3243 = vmatprep.mubr.bf16.mxu0 0
      %3244 = vmatmul.mubr.bf16.gmra.mxu0 %v3145
      %v3245 = vpop.f32.mrf.mxu0
      %v3246 = vadd.f32 0.0, %v3245
      %v3247 = vpop.f32.mrf.mxu0
      %v3248 = vpop.f32.mrf.mxu0
      %v3249 = vadd.f32 0.0, %v3248
      %v3250 = vpop.f32.mrf.mxu0
      %3251 = vmatprep.mubr.bf16.mxu0 0
      %3252 = vmatmul.mubr.bf16.gmra.mxu0 %v3148
      %v3253 = vpop.f32.mrf.mxu0
      %v3254 = vadd.f32 0.0, %v3253
      %v3255 = vpop.f32.mrf.mxu0
      %v3256 = vpop.f32.mrf.mxu0
      %v3257 = vadd.f32 0.0, %v3256
      %v3258 = vpop.f32.mrf.mxu0
      %3259 = vmatprep.mubr.bf16.mxu0 0
      %3260 = vmatmul.mubr.bf16.gmra.mxu0 %v3151
      %v3261 = vpop.f32.mrf.mxu0
      %v3262 = vadd.f32 0.0, %v3261
      %v3263 = vpop.f32.mrf.mxu0
      %v3264 = vpop.f32.mrf.mxu0
      %v3265 = vadd.f32 0.0, %v3264
      %v3266 = vpop.f32.mrf.mxu0
      %3267 = vmatprep.mubr.bf16.mxu0 0
      %3268 = vmatmul.mubr.bf16.gmra.mxu0 %v3154
      %v3269 = vpop.f32.mrf.mxu0
      %v3270 = vadd.f32 0.0, %v3269
      %v3271 = vpop.f32.mrf.mxu0
      %v3272 = vpop.f32.mrf.mxu0
      %v3273 = vadd.f32 0.0, %v3272
      %v3274 = vpop.f32.mrf.mxu0
      %3275 = vmatprep.mubr.bf16.mxu0 0
      %3276 = vmatmul.mubr.bf16.gmra.mxu0 %v3157
      %v3277 = vpop.f32.mrf.mxu0
      %v3278 = vadd.f32 0.0, %v3277
      %v3279 = vpop.f32.mrf.mxu0
      %v3280 = vpop.f32.mrf.mxu0
      %v3281 = vadd.f32 0.0, %v3280
      %v3282 = vpop.f32.mrf.mxu0
      %3283 = vmatprep.mubr.bf16.mxu0 0
      %3284 = vmatmul.mubr.bf16.gmra.mxu0 %v3160
      %v3285 = vpop.f32.mrf.mxu0
      %v3286 = vadd.f32 0.0, %v3285
      %v3287 = vpop.f32.mrf.mxu0
      %v3288 = vpop.f32.mrf.mxu0
      %v3289 = vadd.f32 0.0, %v3288
      %v3290 = vpop.f32.mrf.mxu0
      %3291 = vmatprep.mubr.bf16.mxu0 0
      %3292 = vmatmul.mubr.bf16.gmra.mxu0 %v3163
      %v3293 = vpop.f32.mrf.mxu0
      %v3294 = vadd.f32 0.0, %v3293
      %v3295 = vpop.f32.mrf.mxu0
      %v3296 = vpop.f32.mrf.mxu0
      %v3297 = vadd.f32 0.0, %v3296
      %v3298 = vpop.f32.mrf.mxu0
      %3299 = vmatprep.mubr.bf16.mxu0 0
      %3300 = vmatmul.mubr.bf16.gmra.mxu0 %v3166
      %v3301 = vpop.f32.mrf.mxu0
      %v3302 = vadd.f32 0.0, %v3301
      %v3303 = vpop.f32.mrf.mxu0
      %v3304 = vpop.f32.mrf.mxu0
      %v3305 = vadd.f32 0.0, %v3304
      %v3306 = vpop.f32.mrf.mxu0
      %3307 = vmatprep.mubr.bf16.mxu0 0
      %3308 = vmatmul.mubr.bf16.gmra.mxu0 %v3169
      %v3309 = vpop.f32.mrf.mxu0
      %v3310 = vadd.f32 0.0, %v3309
      %v3311 = vpop.f32.mrf.mxu0
      %v3312 = vpop.f32.mrf.mxu0
      %v3313 = vadd.f32 0.0, %v3312
      %v3314 = vpop.f32.mrf.mxu0
      %3315 = vmatprep.mubr.bf16.mxu0 0
      %3316 = vmatmul.mubr.bf16.gmra.mxu0 %v3172
      %v3317 = vpop.f32.mrf.mxu0
      %v3318 = vadd.f32 0.0, %v3317
      %v3319 = vpop.f32.mrf.mxu0
      %v3320 = vpop.f32.mrf.mxu0
      %v3321 = vadd.f32 0.0, %v3320
      %v3322 = vpop.f32.mrf.mxu0
      %3323 = vmatprep.mubr.bf16.mxu0 0
      %3324 = vmatmul.mubr.bf16.gmra.mxu0 %v3175
      %v3325 = vpop.f32.mrf.mxu0
      %v3326 = vadd.f32 0.0, %v3325
      %v3327 = vpop.f32.mrf.mxu0
      %v3328 = vpop.f32.mrf.mxu0
      %v3329 = vadd.f32 0.0, %v3328
      %v3330 = vpop.f32.mrf.mxu0
      %3331 = vmatprep.mubr.bf16.mxu0 0
      %3332 = vmatmul.mubr.bf16.gmra.mxu0 %v3178
      %v3333 = vpop.f32.mrf.mxu0
      %v3334 = vadd.f32 0.0, %v3333
      %v3335 = vpop.f32.mrf.mxu0
      %v3336 = vpop.f32.mrf.mxu0
      %v3337 = vadd.f32 0.0, %v3336
      %v3338 = vpop.f32.mrf.mxu0
      %3339 = vmatprep.mubr.bf16.mxu0 0
      %3340 = vmatmul.mubr.bf16.gmra.mxu0 %v3181
      %v3341 = vpop.f32.mrf.mxu0
      %v3342 = vadd.f32 0.0, %v3341
      %v3343 = vpop.f32.mrf.mxu0
      %v3344 = vpop.f32.mrf.mxu0
      %v3345 = vadd.f32 0.0, %v3344
      %v3346 = vpop.f32.mrf.mxu0
      %3347 = vmatprep.mubr.bf16.mxu0 0
      %3348 = vmatmul.mubr.bf16.gmra.mxu0 %v3184
      %v3349 = vpop.f32.mrf.mxu0
      %v3350 = vadd.f32 0.0, %v3349
      %v3351 = vpop.f32.mrf.mxu0
      %v3352 = vpop.f32.mrf.mxu0
      %v3353 = vadd.f32 0.0, %v3352
      %v3354 = vpop.f32.mrf.mxu0
      %3355 = vmatprep.mubr.bf16.mxu0 0
      %3356 = vmatmul.mubr.bf16.gmra.mxu0 %v3187
      %v3357 = vpop.f32.mrf.mxu0
      %v3358 = vadd.f32 0.0, %v3357
      %v3359 = vpop.f32.mrf.mxu0
      %v3360 = vpop.f32.mrf.mxu0
      %v3361 = vadd.f32 0.0, %v3360
      %v3362 = vpop.f32.mrf.mxu0
      %3363 = vmatprep.mubr.bf16.mxu0 0
      %3364 = vmatmul.mubr.bf16.gmra.mxu0 %v3190
      %v3365 = vpop.f32.mrf.mxu0
      %v3366 = vadd.f32 0.0, %v3365
      %v3367 = vpop.f32.mrf.mxu0
      %v3368 = vpop.f32.mrf.mxu0
      %v3369 = vadd.f32 0.0, %v3368
      %v3370 = vpop.f32.mrf.mxu0
      %3371 = vdwg.mxu0
      %v3372 = vadd.f32 %v2919, %v3230
      %v3373 = vadd.f32 %v2920, %v3233
      %v3374 = vadd.f32 %v2921, %v3238
      %v3375 = vadd.f32 %v2922, %v3241
      %v3376 = vadd.f32 %v2923, %v3246
      %v3377 = vadd.f32 %v2924, %v3249
      %v3378 = vadd.f32 %v2925, %v3254
      %v3379 = vadd.f32 %v2926, %v3257
      %v3380 = vadd.f32 %v2927, %v3262
      %v3381 = vadd.f32 %v2928, %v3265
      %v3382 = vadd.f32 %v2929, %v3270
      %v3383 = vadd.f32 %v2930, %v3273
      %v3384 = vadd.f32 %v2931, %v3278
      %v3385 = vadd.f32 %v2932, %v3281
      %v3386 = vadd.f32 %v2933, %v3286
      %v3387 = vadd.f32 %v2934, %v3289
      %v3388 = vadd.f32 %v2935, %v3294
      %v3389 = vadd.f32 %v2936, %v3297
      %v3390 = vadd.f32 %v2937, %v3302
      %v3391 = vadd.f32 %v2938, %v3305
      %v3392 = vadd.f32 %v2939, %v3310
      %v3393 = vadd.f32 %v2940, %v3313
      %v3394 = vadd.f32 %v2941, %v3318
      %v3395 = vadd.f32 %v2942, %v3321
      %v3396 = vadd.f32 %v2943, %v3326
      %v3397 = vadd.f32 %v2944, %v3329
      %v3398 = vadd.f32 %v2945, %v3334
      %v3399 = vadd.f32 %v2946, %v3337
      %v3400 = vadd.f32 %v2947, %v3342
      %v3401 = vadd.f32 %v2948, %v3345
      %v3402 = vadd.f32 %v2949, %v3350
      %v3403 = vadd.f32 %v2950, %v3353
      %v3404 = vadd.f32 %v2951, %v3358
      %v3405 = vadd.f32 %v2952, %v3361
      %v3406 = vadd.f32 %v2953, %v3366
      %v3407 = vadd.f32 %v2954, %v3369
      %v3408 = vld [vmem:[%s219 + $0x10] sm:$0x8]
      %s3409 = scalar_lea.vmem %s1, 64
      %v3410 = vld [vmem:[%s3409] sm:$0xf]
      %v3411 = vld [vmem:[%s3409 + $0x4] sm:$0x3]
      %v3413 = vunpack.c.l.b16 %v3408
      %v3414 = vpack.c.b16 %v2588, %v3413
      %vm3415 = vcmask 1044480
      %v3416 = vrot.slane %v3414, 3
      %v3417 = vrot.slane %v2625, 3
      %v3418 = vsel %vm3415, %v3416, %v3417
      %v3419 = vrot.slane %v2626, 3
      %v3420 = vsel %vm3415, %v3417, %v3419
      %v3421 = vrot.slane %v2627, 3
      %v3422 = vsel %vm3415, %v3419, %v3421
      %v3423 = vrot.slane %v2628, 3
      %v3424 = vsel %vm3415, %v3421, %v3423
      %v3425 = vrot.slane %v2629, 3
      %v3426 = vsel %vm3415, %v3423, %v3425
      %v3427 = vrot.slane %v2630, 3
      %v3428 = vsel %vm3415, %v3425, %v3427
      %v3429 = vrot.slane %v2631, 3
      %v3430 = vsel %vm3415, %v3427, %v3429
      %v3431 = vrot.slane %v2632, 3
      %v3432 = vsel %vm3415, %v3429, %v3431
      %v3433 = vrot.slane %v2633, 3
      %v3434 = vsel %vm3415, %v3431, %v3433
      %v3435 = vrot.slane %v2634, 3
      %v3436 = vsel %vm3415, %v3433, %v3435
      %v3437 = vrot.slane %v2635, 3
      %v3438 = vsel %vm3415, %v3435, %v3437
      %v3439 = vrot.slane %v2636, 3
      %v3440 = vsel %vm3415, %v3437, %v3439
      %v3441 = vrot.slane %v2637, 3
      %v3442 = vsel %vm3415, %v3439, %v3441
      %v3443 = vrot.slane %v2638, 3
      %v3444 = vsel %vm3415, %v3441, %v3443
      %v3445 = vrot.slane %v2639, 3
      %v3446 = vsel %vm3415, %v3443, %v3445
      %v3447 = vrot.slane %v2640, 3
      %v3448 = vsel %vm3415, %v3445, %v3447
      %v3449 = vrot.slane %v2641, 3
      %v3450 = vsel %vm3415, %v3447, %v3449
      %v3451 = vrot.slane %v2961, 3
      %v3452 = vsel %vm3415, %v3449, %v3451
      %v3455 = vunpack.c.l.b16 %v3410
      %v3456 = vunpack.c.l.b16 %v3411
      %v3457 = vpack.c.b16 %v3456, %v3455
      %v3459 = vsel %vm515, %v3418, 0
      %v3462 = vsel %vm515, %v3420, 0
      %v3465 = vsel %vm515, %v3422, 0
      %v3468 = vsel %vm515, %v3424, 0
      %v3471 = vsel %vm515, %v3426, 0
      %v3474 = vsel %vm515, %v3428, 0
      %v3477 = vsel %vm515, %v3430, 0
      %v3480 = vsel %vm515, %v3432, 0
      %v3483 = vsel %vm515, %v3434, 0
      %v3486 = vsel %vm515, %v3436, 0
      %v3489 = vsel %vm515, %v3438, 0
      %v3492 = vsel %vm515, %v3440, 0
      %v3495 = vsel %vm515, %v3442, 0
      %v3498 = vsel %vm515, %v3444, 0
      %v3501 = vsel %vm515, %v3446, 0
      %v3504 = vsel %vm515, %v3448, 0
      %v3507 = vsel %vm515, %v3450, 0
      %v3510 = vsel %vm515, %v3452, 0
      %v3513 = vsel %vm570, %v3457, 0
      %3515 = vmatprep.subr.bf16.mxu0 0
      %3516 = vmatpush1.bf16.msra.mxu0 0
      %3517 = vmatprep.subr.bf16.mxu0 0
      %3518 = vmatpush1.bf16.msra.mxu0 0
      %3519 = vmatprep.subr.bf16.mxu0 0
      %3520 = vmatpush1.bf16.msra.mxu0 0
      %3521 = vmatprep.subr.bf16.mxu0 0
      %3522 = vmatpush1.bf16.msra.mxu0 0
      %3523 = vmatprep.subr.bf16.mxu0 0
      %3524 = vmatpush1.bf16.msra.mxu0 0
      %3525 = vmatprep.subr.bf16.mxu0 0
      %3526 = vmatpush1.bf16.msra.mxu0 0
      %3527 = vmatprep.subr.bf16.mxu0 0
      %3528 = vmatpush1.bf16.msra.mxu0 0
      %3529 = vmatprep.subr.bf16.mxu0 0
      %3530 = vmatpush1.bf16.msra.mxu0 %v3513
      %3531 = vmatprep.subr.bf16.mxu0 0
      %3532 = vmatpush2.bf16.msra.mxu0 0
      %3533 = vmatprep.subr.bf16.mxu0 0
      %3534 = vmatpush2.bf16.msra.mxu0 0
      %3535 = vmatprep.subr.bf16.mxu0 0
      %3536 = vmatpush2.bf16.msra.mxu0 0
      %3537 = vmatprep.subr.bf16.mxu0 0
      %3538 = vmatpush2.bf16.msra.mxu0 0
      %3539 = vmatprep.subr.bf16.mxu0 0
      %3540 = vmatpush2.bf16.msra.mxu0 0
      %3541 = vmatprep.subr.bf16.mxu0 0
      %3542 = vmatpush2.bf16.msra.mxu0 0
      %3543 = vmatprep.subr.bf16.mxu0 0
      %3544 = vmatpush2.bf16.msra.mxu0 0
      %3545 = vmatprep.subr.bf16.mxu0 0
      %3546 = vmatpush2.bf16.msra.mxu0 0
      %3547 = vmatprep.mubr.bf16.mxu0 0
      %3548 = vmatmul.mubr.bf16.gmra.mxu0 %v3459
      %v3549 = vpop.f32.mrf.mxu0
      %v3550 = vadd.f32 0.0, %v3549
      %v3551 = vpop.f32.mrf.mxu0
      %v3552 = vpop.f32.mrf.mxu0
      %v3553 = vadd.f32 0.0, %v3552
      %v3554 = vpop.f32.mrf.mxu0
      %3555 = vmatprep.mubr.bf16.mxu0 0
      %3556 = vmatmul.mubr.bf16.gmra.mxu0 %v3462
      %v3557 = vpop.f32.mrf.mxu0
      %v3558 = vadd.f32 0.0, %v3557
      %v3559 = vpop.f32.mrf.mxu0
      %v3560 = vpop.f32.mrf.mxu0
      %v3561 = vadd.f32 0.0, %v3560
      %v3562 = vpop.f32.mrf.mxu0
      %3563 = vmatprep.mubr.bf16.mxu0 0
      %3564 = vmatmul.mubr.bf16.gmra.mxu0 %v3465
      %v3565 = vpop.f32.mrf.mxu0
      %v3566 = vadd.f32 0.0, %v3565
      %v3567 = vpop.f32.mrf.mxu0
      %v3568 = vpop.f32.mrf.mxu0
      %v3569 = vadd.f32 0.0, %v3568
      %v3570 = vpop.f32.mrf.mxu0
      %3571 = vmatprep.mubr.bf16.mxu0 0
      %3572 = vmatmul.mubr.bf16.gmra.mxu0 %v3468
      %v3573 = vpop.f32.mrf.mxu0
      %v3574 = vadd.f32 0.0, %v3573
      %v3575 = vpop.f32.mrf.mxu0
      %v3576 = vpop.f32.mrf.mxu0
      %v3577 = vadd.f32 0.0, %v3576
      %v3578 = vpop.f32.mrf.mxu0
      %3579 = vmatprep.mubr.bf16.mxu0 0
      %3580 = vmatmul.mubr.bf16.gmra.mxu0 %v3471
      %v3581 = vpop.f32.mrf.mxu0
      %v3582 = vadd.f32 0.0, %v3581
      %v3583 = vpop.f32.mrf.mxu0
      %v3584 = vpop.f32.mrf.mxu0
      %v3585 = vadd.f32 0.0, %v3584
      %v3586 = vpop.f32.mrf.mxu0
      %3587 = vmatprep.mubr.bf16.mxu0 0
      %3588 = vmatmul.mubr.bf16.gmra.mxu0 %v3474
      %v3589 = vpop.f32.mrf.mxu0
      %v3590 = vadd.f32 0.0, %v3589
      %v3591 = vpop.f32.mrf.mxu0
      %v3592 = vpop.f32.mrf.mxu0
      %v3593 = vadd.f32 0.0, %v3592
      %v3594 = vpop.f32.mrf.mxu0
      %3595 = vmatprep.mubr.bf16.mxu0 0
      %3596 = vmatmul.mubr.bf16.gmra.mxu0 %v3477
      %v3597 = vpop.f32.mrf.mxu0
      %v3598 = vadd.f32 0.0, %v3597
      %v3599 = vpop.f32.mrf.mxu0
      %v3600 = vpop.f32.mrf.mxu0
      %v3601 = vadd.f32 0.0, %v3600
      %v3602 = vpop.f32.mrf.mxu0
      %3603 = vmatprep.mubr.bf16.mxu0 0
      %3604 = vmatmul.mubr.bf16.gmra.mxu0 %v3480
      %v3605 = vpop.f32.mrf.mxu0
      %v3606 = vadd.f32 0.0, %v3605
      %v3607 = vpop.f32.mrf.mxu0
      %v3608 = vpop.f32.mrf.mxu0
      %v3609 = vadd.f32 0.0, %v3608
      %v3610 = vpop.f32.mrf.mxu0
      %3611 = vmatprep.mubr.bf16.mxu0 0
      %3612 = vmatmul.mubr.bf16.gmra.mxu0 %v3483
      %v3613 = vpop.f32.mrf.mxu0
      %v3614 = vadd.f32 0.0, %v3613
      %v3615 = vpop.f32.mrf.mxu0
      %v3616 = vpop.f32.mrf.mxu0
      %v3617 = vadd.f32 0.0, %v3616
      %v3618 = vpop.f32.mrf.mxu0
      %3619 = vmatprep.mubr.bf16.mxu0 0
      %3620 = vmatmul.mubr.bf16.gmra.mxu0 %v3486
      %v3621 = vpop.f32.mrf.mxu0
      %v3622 = vadd.f32 0.0, %v3621
      %v3623 = vpop.f32.mrf.mxu0
      %v3624 = vpop.f32.mrf.mxu0
      %v3625 = vadd.f32 0.0, %v3624
      %v3626 = vpop.f32.mrf.mxu0
      %3627 = vmatprep.mubr.bf16.mxu0 0
      %3628 = vmatmul.mubr.bf16.gmra.mxu0 %v3489
      %v3629 = vpop.f32.mrf.mxu0
      %v3630 = vadd.f32 0.0, %v3629
      %v3631 = vpop.f32.mrf.mxu0
      %v3632 = vpop.f32.mrf.mxu0
      %v3633 = vadd.f32 0.0, %v3632
      %v3634 = vpop.f32.mrf.mxu0
      %3635 = vmatprep.mubr.bf16.mxu0 0
      %3636 = vmatmul.mubr.bf16.gmra.mxu0 %v3492
      %v3637 = vpop.f32.mrf.mxu0
      %v3638 = vadd.f32 0.0, %v3637
      %v3639 = vpop.f32.mrf.mxu0
      %v3640 = vpop.f32.mrf.mxu0
      %v3641 = vadd.f32 0.0, %v3640
      %v3642 = vpop.f32.mrf.mxu0
      %3643 = vmatprep.mubr.bf16.mxu0 0
      %3644 = vmatmul.mubr.bf16.gmra.mxu0 %v3495
      %v3645 = vpop.f32.mrf.mxu0
      %v3646 = vadd.f32 0.0, %v3645
      %v3647 = vpop.f32.mrf.mxu0
      %v3648 = vpop.f32.mrf.mxu0
      %v3649 = vadd.f32 0.0, %v3648
      %v3650 = vpop.f32.mrf.mxu0
      %3651 = vmatprep.mubr.bf16.mxu0 0
      %3652 = vmatmul.mubr.bf16.gmra.mxu0 %v3498
      %v3653 = vpop.f32.mrf.mxu0
      %v3654 = vadd.f32 0.0, %v3653
      %v3655 = vpop.f32.mrf.mxu0
      %v3656 = vpop.f32.mrf.mxu0
      %v3657 = vadd.f32 0.0, %v3656
      %v3658 = vpop.f32.mrf.mxu0
      %3659 = vmatprep.mubr.bf16.mxu0 0
      %3660 = vmatmul.mubr.bf16.gmra.mxu0 %v3501
      %v3661 = vpop.f32.mrf.mxu0
      %v3662 = vadd.f32 0.0, %v3661
      %v3663 = vpop.f32.mrf.mxu0
      %v3664 = vpop.f32.mrf.mxu0
      %v3665 = vadd.f32 0.0, %v3664
      %v3666 = vpop.f32.mrf.mxu0
      %3667 = vmatprep.mubr.bf16.mxu0 0
      %3668 = vmatmul.mubr.bf16.gmra.mxu0 %v3504
      %v3669 = vpop.f32.mrf.mxu0
      %v3670 = vadd.f32 0.0, %v3669
      %v3671 = vpop.f32.mrf.mxu0
      %v3672 = vpop.f32.mrf.mxu0
      %v3673 = vadd.f32 0.0, %v3672
      %v3674 = vpop.f32.mrf.mxu0
      %3675 = vmatprep.mubr.bf16.mxu0 0
      %3676 = vmatmul.mubr.bf16.gmra.mxu0 %v3507
      %v3677 = vpop.f32.mrf.mxu0
      %v3678 = vadd.f32 0.0, %v3677
      %v3679 = vpop.f32.mrf.mxu0
      %v3680 = vpop.f32.mrf.mxu0
      %v3681 = vadd.f32 0.0, %v3680
      %v3682 = vpop.f32.mrf.mxu0
      %3683 = vmatprep.mubr.bf16.mxu0 0
      %3684 = vmatmul.mubr.bf16.gmra.mxu0 %v3510
      %v3685 = vpop.f32.mrf.mxu0
      %v3686 = vadd.f32 0.0, %v3685
      %v3687 = vpop.f32.mrf.mxu0
      %v3688 = vpop.f32.mrf.mxu0
      %v3689 = vadd.f32 0.0, %v3688
      %v3690 = vpop.f32.mrf.mxu0
      %3691 = vdwg.mxu0
      %v3692 = vadd.f32 %v3372, %v3550
      %v3693 = vadd.f32 %v3373, %v3553
      %v3694 = vadd.f32 %v3374, %v3558
      %v3695 = vadd.f32 %v3375, %v3561
      %v3696 = vadd.f32 %v3376, %v3566
      %v3697 = vadd.f32 %v3377, %v3569
      %v3698 = vadd.f32 %v3378, %v3574
      %v3699 = vadd.f32 %v3379, %v3577
      %v3700 = vadd.f32 %v3380, %v3582
      %v3701 = vadd.f32 %v3381, %v3585
      %v3702 = vadd.f32 %v3382, %v3590
      %v3703 = vadd.f32 %v3383, %v3593
      %v3704 = vadd.f32 %v3384, %v3598
      %v3705 = vadd.f32 %v3385, %v3601
      %v3706 = vadd.f32 %v3386, %v3606
      %v3707 = vadd.f32 %v3387, %v3609
      %v3708 = vadd.f32 %v3388, %v3614
      %v3709 = vadd.f32 %v3389, %v3617
      %v3710 = vadd.f32 %v3390, %v3622
      %v3711 = vadd.f32 %v3391, %v3625
      %v3712 = vadd.f32 %v3392, %v3630
      %v3713 = vadd.f32 %v3393, %v3633
      %v3714 = vadd.f32 %v3394, %v3638
      %v3715 = vadd.f32 %v3395, %v3641
      %v3716 = vadd.f32 %v3396, %v3646
      %v3717 = vadd.f32 %v3397, %v3649
      %v3718 = vadd.f32 %v3398, %v3654
      %v3719 = vadd.f32 %v3399, %v3657
      %v3720 = vadd.f32 %v3400, %v3662
      %v3721 = vadd.f32 %v3401, %v3665
      %v3722 = vadd.f32 %v3402, %v3670
      %v3723 = vadd.f32 %v3403, %v3673
      %v3724 = vadd.f32 %v3404, %v3678
      %v3725 = vadd.f32 %v3405, %v3681
      %v3726 = vadd.f32 %v3406, %v3686
      %v3727 = vadd.f32 %v3407, %v3689
      %v3728 = vlaneseq
      %v3729 = vshrl.u32 %v3728, 7
      %v3730 = vadd.s32 %v3729, 8
      %v3731 = vadd.s32 %v3729, 16
      %v3732 = vadd.s32 %v3729, 24
      %v3733 = vadd.s32 %v3729, 32
      %v3734 = vadd.s32 %v3729, 40
      %v3735 = vadd.s32 %v3729, 48
      %v3736 = vadd.s32 %v3729, 56
      %v3737 = vadd.s32 %v3729, 64
      %v3738 = vadd.s32 %v3729, 72
      %v3739 = vadd.s32 %v3729, 80
      %v3740 = vadd.s32 %v3729, 88
      %v3741 = vadd.s32 %v3729, 96
      %v3742 = vadd.s32 %v3729, 104
      %v3743 = vadd.s32 %v3729, 112
      %v3744 = vadd.s32 %v3729, 120
      %v3745 = vadd.s32 %v3729, 128
      %v3746 = vadd.s32 %v3729, 136
      %v3747 = vadd.s32 %v3729, 144
      %v3748 = vadd.s32 %v3729, 152
      %v3749 = vadd.s32 %v3729, 160
      %v3750 = vadd.s32 %v3729, 168
      %v3751 = vadd.s32 %v3729, 176
      %v3752 = vadd.s32 %v3729, 184
      %v3753 = vadd.s32 %v3729, 192
      %v3754 = vadd.s32 %v3729, 200
      %v3755 = vadd.s32 %v3729, 208
      %v3756 = vadd.s32 %v3729, 216
      %v3757 = vadd.s32 %v3729, 224
      %v3758 = vadd.s32 %v3729, 232
      %v3759 = vadd.s32 %v3729, 240
      %v3760 = vadd.s32 %v3729, 248
      %v3761 = vadd.s32 %v3729, 256
      %v3762 = vadd.s32 %v3729, 264
      %v3763 = vadd.s32 %v3729, 272
      %v3764 = vadd.s32 %v3729, 280
      %vm3765 = vcmp.lt.s32.totalorder %v3729, 0
      %v3766 = vsub.s32 0, %v3729
      %v3767 = vsel %vm3765, %v3766, %v3729
      %v3768 = vmul.u32.u64.compose %v3767, 3817748708
      %v3769 = vextract.low.u32 %v3768
      %v3770 = vextract.high.u32 %v3768
      %v3771 = vshrl.u32 %v3770, 4
      %v3772 = vmul.u32 %v3771, 18
      %v3773 = vsub.s32 %v3767, %v3772
      %v3774 = vsub.s32 0, %v3773
      %v3775 = vsel %vm3765, %v3774, %v3773
      %vm3776 = vcmp.lt.s32.totalorder %v3730, 0
      %v3777 = vsub.s32 0, %v3730
      %v3778 = vsel %vm3776, %v3777, %v3730
      %v3779 = vmul.u32.u64.compose %v3778, 3817748708
      %v3780 = vextract.low.u32 %v3779
      %v3781 = vextract.high.u32 %v3779
      %v3782 = vshrl.u32 %v3781, 4
      %v3783 = vmul.u32 %v3782, 18
      %v3784 = vsub.s32 %v3778, %v3783
      %v3785 = vsub.s32 0, %v3784
      %v3786 = vsel %vm3776, %v3785, %v3784
      %vm3787 = vcmp.lt.s32.totalorder %v3731, 0
      %v3788 = vsub.s32 0, %v3731
      %v3789 = vsel %vm3787, %v3788, %v3731
      %v3790 = vmul.u32.u64.compose %v3789, 3817748708
      %v3791 = vextract.low.u32 %v3790
      %v3792 = vextract.high.u32 %v3790
      %v3793 = vshrl.u32 %v3792, 4
      %v3794 = vmul.u32 %v3793, 18
      %v3795 = vsub.s32 %v3789, %v3794
      %v3796 = vsub.s32 0, %v3795
      %v3797 = vsel %vm3787, %v3796, %v3795
      %vm3798 = vcmp.lt.s32.totalorder %v3732, 0
      %v3799 = vsub.s32 0, %v3732
      %v3800 = vsel %vm3798, %v3799, %v3732
      %v3801 = vmul.u32.u64.compose %v3800, 3817748708
      %v3802 = vextract.low.u32 %v3801
      %v3803 = vextract.high.u32 %v3801
      %v3804 = vshrl.u32 %v3803, 4
      %v3805 = vmul.u32 %v3804, 18
      %v3806 = vsub.s32 %v3800, %v3805
      %v3807 = vsub.s32 0, %v3806
      %v3808 = vsel %vm3798, %v3807, %v3806
      %vm3809 = vcmp.lt.s32.totalorder %v3733, 0
      %v3810 = vsub.s32 0, %v3733
      %v3811 = vsel %vm3809, %v3810, %v3733
      %v3812 = vmul.u32.u64.compose %v3811, 3817748708
      %v3813 = vextract.low.u32 %v3812
      %v3814 = vextract.high.u32 %v3812
      %v3815 = vshrl.u32 %v3814, 4
      %v3816 = vmul.u32 %v3815, 18
      %v3817 = vsub.s32 %v3811, %v3816
      %v3818 = vsub.s32 0, %v3817
      %v3819 = vsel %vm3809, %v3818, %v3817
      %vm3820 = vcmp.lt.s32.totalorder %v3734, 0
      %v3821 = vsub.s32 0, %v3734
      %v3822 = vsel %vm3820, %v3821, %v3734
      %v3823 = vmul.u32.u64.compose %v3822, 3817748708
      %v3824 = vextract.low.u32 %v3823
      %v3825 = vextract.high.u32 %v3823
      %v3826 = vshrl.u32 %v3825, 4
      %v3827 = vmul.u32 %v3826, 18
      %v3828 = vsub.s32 %v3822, %v3827
      %v3829 = vsub.s32 0, %v3828
      %v3830 = vsel %vm3820, %v3829, %v3828
      %vm3831 = vcmp.lt.s32.totalorder %v3735, 0
      %v3832 = vsub.s32 0, %v3735
      %v3833 = vsel %vm3831, %v3832, %v3735
      %v3834 = vmul.u32.u64.compose %v3833, 3817748708
      %v3835 = vextract.low.u32 %v3834
      %v3836 = vextract.high.u32 %v3834
      %v3837 = vshrl.u32 %v3836, 4
      %v3838 = vmul.u32 %v3837, 18
      %v3839 = vsub.s32 %v3833, %v3838
      %v3840 = vsub.s32 0, %v3839
      %v3841 = vsel %vm3831, %v3840, %v3839
      %vm3842 = vcmp.lt.s32.totalorder %v3736, 0
      %v3843 = vsub.s32 0, %v3736
      %v3844 = vsel %vm3842, %v3843, %v3736
      %v3845 = vmul.u32.u64.compose %v3844, 3817748708
      %v3846 = vextract.low.u32 %v3845
      %v3847 = vextract.high.u32 %v3845
      %v3848 = vshrl.u32 %v3847, 4
      %v3849 = vmul.u32 %v3848, 18
      %v3850 = vsub.s32 %v3844, %v3849
      %v3851 = vsub.s32 0, %v3850
      %v3852 = vsel %vm3842, %v3851, %v3850
      %vm3853 = vcmp.lt.s32.totalorder %v3737, 0
      %v3854 = vsub.s32 0, %v3737
      %v3855 = vsel %vm3853, %v3854, %v3737
      %v3856 = vmul.u32.u64.compose %v3855, 3817748708
      %v3857 = vextract.low.u32 %v3856
      %v3858 = vextract.high.u32 %v3856
      %v3859 = vshrl.u32 %v3858, 4
      %v3860 = vmul.u32 %v3859, 18
      %v3861 = vsub.s32 %v3855, %v3860
      %v3862 = vsub.s32 0, %v3861
      %v3863 = vsel %vm3853, %v3862, %v3861
      %vm3864 = vcmp.lt.s32.totalorder %v3738, 0
      %v3865 = vsub.s32 0, %v3738
      %v3866 = vsel %vm3864, %v3865, %v3738
      %v3867 = vmul.u32.u64.compose %v3866, 3817748708
      %v3868 = vextract.low.u32 %v3867
      %v3869 = vextract.high.u32 %v3867
      %v3870 = vshrl.u32 %v3869, 4
      %v3871 = vmul.u32 %v3870, 18
      %v3872 = vsub.s32 %v3866, %v3871
      %v3873 = vsub.s32 0, %v3872
      %v3874 = vsel %vm3864, %v3873, %v3872
      %vm3875 = vcmp.lt.s32.totalorder %v3739, 0
      %v3876 = vsub.s32 0, %v3739
      %v3877 = vsel %vm3875, %v3876, %v3739
      %v3878 = vmul.u32.u64.compose %v3877, 3817748708
      %v3879 = vextract.low.u32 %v3878
      %v3880 = vextract.high.u32 %v3878
      %v3881 = vshrl.u32 %v3880, 4
      %v3882 = vmul.u32 %v3881, 18
      %v3883 = vsub.s32 %v3877, %v3882
      %v3884 = vsub.s32 0, %v3883
      %v3885 = vsel %vm3875, %v3884, %v3883
      %vm3886 = vcmp.lt.s32.totalorder %v3740, 0
      %v3887 = vsub.s32 0, %v3740
      %v3888 = vsel %vm3886, %v3887, %v3740
      %v3889 = vmul.u32.u64.compose %v3888, 3817748708
      %v3890 = vextract.low.u32 %v3889
      %v3891 = vextract.high.u32 %v3889
      %v3892 = vshrl.u32 %v3891, 4
      %v3893 = vmul.u32 %v3892, 18
      %v3894 = vsub.s32 %v3888, %v3893
      %v3895 = vsub.s32 0, %v3894
      %v3896 = vsel %vm3886, %v3895, %v3894
      %vm3897 = vcmp.lt.s32.totalorder %v3741, 0
      %v3898 = vsub.s32 0, %v3741
      %v3899 = vsel %vm3897, %v3898, %v3741
      %v3900 = vmul.u32.u64.compose %v3899, 3817748708
      %v3901 = vextract.low.u32 %v3900
      %v3902 = vextract.high.u32 %v3900
      %v3903 = vshrl.u32 %v3902, 4
      %v3904 = vmul.u32 %v3903, 18
      %v3905 = vsub.s32 %v3899, %v3904
      %v3906 = vsub.s32 0, %v3905
      %v3907 = vsel %vm3897, %v3906, %v3905
      %vm3908 = vcmp.lt.s32.totalorder %v3742, 0
      %v3909 = vsub.s32 0, %v3742
      %v3910 = vsel %vm3908, %v3909, %v3742
      %v3911 = vmul.u32.u64.compose %v3910, 3817748708
      %v3912 = vextract.low.u32 %v3911
      %v3913 = vextract.high.u32 %v3911
      %v3914 = vshrl.u32 %v3913, 4
      %v3915 = vmul.u32 %v3914, 18
      %v3916 = vsub.s32 %v3910, %v3915
      %v3917 = vsub.s32 0, %v3916
      %v3918 = vsel %vm3908, %v3917, %v3916
      %vm3919 = vcmp.lt.s32.totalorder %v3743, 0
      %v3920 = vsub.s32 0, %v3743
      %v3921 = vsel %vm3919, %v3920, %v3743
      %v3922 = vmul.u32.u64.compose %v3921, 3817748708
      %v3923 = vextract.low.u32 %v3922
      %v3924 = vextract.high.u32 %v3922
      %v3925 = vshrl.u32 %v3924, 4
      %v3926 = vmul.u32 %v3925, 18
      %v3927 = vsub.s32 %v3921, %v3926
      %v3928 = vsub.s32 0, %v3927
      %v3929 = vsel %vm3919, %v3928, %v3927
      %vm3930 = vcmp.lt.s32.totalorder %v3744, 0
      %v3931 = vsub.s32 0, %v3744
      %v3932 = vsel %vm3930, %v3931, %v3744
      %v3933 = vmul.u32.u64.compose %v3932, 3817748708
      %v3934 = vextract.low.u32 %v3933
      %v3935 = vextract.high.u32 %v3933
      %v3936 = vshrl.u32 %v3935, 4
      %v3937 = vmul.u32 %v3936, 18
      %v3938 = vsub.s32 %v3932, %v3937
      %v3939 = vsub.s32 0, %v3938
      %v3940 = vsel %vm3930, %v3939, %v3938
      %vm3941 = vcmp.lt.s32.totalorder %v3745, 0
      %v3942 = vsub.s32 0, %v3745
      %v3943 = vsel %vm3941, %v3942, %v3745
      %v3944 = vmul.u32.u64.compose %v3943, 3817748708
      %v3945 = vextract.low.u32 %v3944
      %v3946 = vextract.high.u32 %v3944
      %v3947 = vshrl.u32 %v3946, 4
      %v3948 = vmul.u32 %v3947, 18
      %v3949 = vsub.s32 %v3943, %v3948
      %v3950 = vsub.s32 0, %v3949
      %v3951 = vsel %vm3941, %v3950, %v3949
      %vm3952 = vcmp.lt.s32.totalorder %v3746, 0
      %v3953 = vsub.s32 0, %v3746
      %v3954 = vsel %vm3952, %v3953, %v3746
      %v3955 = vmul.u32.u64.compose %v3954, 3817748708
      %v3956 = vextract.low.u32 %v3955
      %v3957 = vextract.high.u32 %v3955
      %v3958 = vshrl.u32 %v3957, 4
      %v3959 = vmul.u32 %v3958, 18
      %v3960 = vsub.s32 %v3954, %v3959
      %v3961 = vsub.s32 0, %v3960
      %v3962 = vsel %vm3952, %v3961, %v3960
      %vm3963 = vcmp.lt.s32.totalorder %v3747, 0
      %v3964 = vsub.s32 0, %v3747
      %v3965 = vsel %vm3963, %v3964, %v3747
      %v3966 = vmul.u32.u64.compose %v3965, 3817748708
      %v3967 = vextract.low.u32 %v3966
      %v3968 = vextract.high.u32 %v3966
      %v3969 = vshrl.u32 %v3968, 4
      %v3970 = vmul.u32 %v3969, 18
      %v3971 = vsub.s32 %v3965, %v3970
      %v3972 = vsub.s32 0, %v3971
      %v3973 = vsel %vm3963, %v3972, %v3971
      %vm3974 = vcmp.lt.s32.totalorder %v3748, 0
      %v3975 = vsub.s32 0, %v3748
      %v3976 = vsel %vm3974, %v3975, %v3748
      %v3977 = vmul.u32.u64.compose %v3976, 3817748708
      %v3978 = vextract.low.u32 %v3977
      %v3979 = vextract.high.u32 %v3977
      %v3980 = vshrl.u32 %v3979, 4
      %v3981 = vmul.u32 %v3980, 18
      %v3982 = vsub.s32 %v3976, %v3981
      %v3983 = vsub.s32 0, %v3982
      %v3984 = vsel %vm3974, %v3983, %v3982
      %vm3985 = vcmp.lt.s32.totalorder %v3749, 0
      %v3986 = vsub.s32 0, %v3749
      %v3987 = vsel %vm3985, %v3986, %v3749
      %v3988 = vmul.u32.u64.compose %v3987, 3817748708
      %v3989 = vextract.low.u32 %v3988
      %v3990 = vextract.high.u32 %v3988
      %v3991 = vshrl.u32 %v3990, 4
      %v3992 = vmul.u32 %v3991, 18
      %v3993 = vsub.s32 %v3987, %v3992
      %v3994 = vsub.s32 0, %v3993
      %v3995 = vsel %vm3985, %v3994, %v3993
      %vm3996 = vcmp.lt.s32.totalorder %v3750, 0
      %v3997 = vsub.s32 0, %v3750
      %v3998 = vsel %vm3996, %v3997, %v3750
      %v3999 = vmul.u32.u64.compose %v3998, 3817748708
      %v4000 = vextract.low.u32 %v3999
      %v4001 = vextract.high.u32 %v3999
      %v4002 = vshrl.u32 %v4001, 4
      %v4003 = vmul.u32 %v4002, 18
      %v4004 = vsub.s32 %v3998, %v4003
      %v4005 = vsub.s32 0, %v4004
      %v4006 = vsel %vm3996, %v4005, %v4004
      %vm4007 = vcmp.lt.s32.totalorder %v3751, 0
      %v4008 = vsub.s32 0, %v3751
      %v4009 = vsel %vm4007, %v4008, %v3751
      %v4010 = vmul.u32.u64.compose %v4009, 3817748708
      %v4011 = vextract.low.u32 %v4010
      %v4012 = vextract.high.u32 %v4010
      %v4013 = vshrl.u32 %v4012, 4
      %v4014 = vmul.u32 %v4013, 18
      %v4015 = vsub.s32 %v4009, %v4014
      %v4016 = vsub.s32 0, %v4015
      %v4017 = vsel %vm4007, %v4016, %v4015
      %vm4018 = vcmp.lt.s32.totalorder %v3752, 0
      %v4019 = vsub.s32 0, %v3752
      %v4020 = vsel %vm4018, %v4019, %v3752
      %v4021 = vmul.u32.u64.compose %v4020, 3817748708
      %v4022 = vextract.low.u32 %v4021
      %v4023 = vextract.high.u32 %v4021
      %v4024 = vshrl.u32 %v4023, 4
      %v4025 = vmul.u32 %v4024, 18
      %v4026 = vsub.s32 %v4020, %v4025
      %v4027 = vsub.s32 0, %v4026
      %v4028 = vsel %vm4018, %v4027, %v4026
      %vm4029 = vcmp.lt.s32.totalorder %v3753, 0
      %v4030 = vsub.s32 0, %v3753
      %v4031 = vsel %vm4029, %v4030, %v3753
      %v4032 = vmul.u32.u64.compose %v4031, 3817748708
      %v4033 = vextract.low.u32 %v4032
      %v4034 = vextract.high.u32 %v4032
      %v4035 = vshrl.u32 %v4034, 4
      %v4036 = vmul.u32 %v4035, 18
      %v4037 = vsub.s32 %v4031, %v4036
      %v4038 = vsub.s32 0, %v4037
      %v4039 = vsel %vm4029, %v4038, %v4037
      %vm4040 = vcmp.lt.s32.totalorder %v3754, 0
      %v4041 = vsub.s32 0, %v3754
      %v4042 = vsel %vm4040, %v4041, %v3754
      %v4043 = vmul.u32.u64.compose %v4042, 3817748708
      %v4044 = vextract.low.u32 %v4043
      %v4045 = vextract.high.u32 %v4043
      %v4046 = vshrl.u32 %v4045, 4
      %v4047 = vmul.u32 %v4046, 18
      %v4048 = vsub.s32 %v4042, %v4047
      %v4049 = vsub.s32 0, %v4048
      %v4050 = vsel %vm4040, %v4049, %v4048
      %vm4051 = vcmp.lt.s32.totalorder %v3755, 0
      %v4052 = vsub.s32 0, %v3755
      %v4053 = vsel %vm4051, %v4052, %v3755
      %v4054 = vmul.u32.u64.compose %v4053, 3817748708
      %v4055 = vextract.low.u32 %v4054
      %v4056 = vextract.high.u32 %v4054
      %v4057 = vshrl.u32 %v4056, 4
      %v4058 = vmul.u32 %v4057, 18
      %v4059 = vsub.s32 %v4053, %v4058
      %v4060 = vsub.s32 0, %v4059
      %v4061 = vsel %vm4051, %v4060, %v4059
      %vm4062 = vcmp.lt.s32.totalorder %v3756, 0
      %v4063 = vsub.s32 0, %v3756
      %v4064 = vsel %vm4062, %v4063, %v3756
      %v4065 = vmul.u32.u64.compose %v4064, 3817748708
      %v4066 = vextract.low.u32 %v4065
      %v4067 = vextract.high.u32 %v4065
      %v4068 = vshrl.u32 %v4067, 4
      %v4069 = vmul.u32 %v4068, 18
      %v4070 = vsub.s32 %v4064, %v4069
      %v4071 = vsub.s32 0, %v4070
      %v4072 = vsel %vm4062, %v4071, %v4070
      %vm4073 = vcmp.lt.s32.totalorder %v3757, 0
      %v4074 = vsub.s32 0, %v3757
      %v4075 = vsel %vm4073, %v4074, %v3757
      %v4076 = vmul.u32.u64.compose %v4075, 3817748708
      %v4077 = vextract.low.u32 %v4076
      %v4078 = vextract.high.u32 %v4076
      %v4079 = vshrl.u32 %v4078, 4
      %v4080 = vmul.u32 %v4079, 18
      %v4081 = vsub.s32 %v4075, %v4080
      %v4082 = vsub.s32 0, %v4081
      %v4083 = vsel %vm4073, %v4082, %v4081
      %vm4084 = vcmp.lt.s32.totalorder %v3758, 0
      %v4085 = vsub.s32 0, %v3758
      %v4086 = vsel %vm4084, %v4085, %v3758
      %v4087 = vmul.u32.u64.compose %v4086, 3817748708
      %v4088 = vextract.low.u32 %v4087
      %v4089 = vextract.high.u32 %v4087
      %v4090 = vshrl.u32 %v4089, 4
      %v4091 = vmul.u32 %v4090, 18
      %v4092 = vsub.s32 %v4086, %v4091
      %v4093 = vsub.s32 0, %v4092
      %v4094 = vsel %vm4084, %v4093, %v4092
      %vm4095 = vcmp.lt.s32.totalorder %v3759, 0
      %v4096 = vsub.s32 0, %v3759
      %v4097 = vsel %vm4095, %v4096, %v3759
      %v4098 = vmul.u32.u64.compose %v4097, 3817748708
      %v4099 = vextract.low.u32 %v4098
      %v4100 = vextract.high.u32 %v4098
      %v4101 = vshrl.u32 %v4100, 4
      %v4102 = vmul.u32 %v4101, 18
      %v4103 = vsub.s32 %v4097, %v4102
      %v4104 = vsub.s32 0, %v4103
      %v4105 = vsel %vm4095, %v4104, %v4103
      %vm4106 = vcmp.lt.s32.totalorder %v3760, 0
      %v4107 = vsub.s32 0, %v3760
      %v4108 = vsel %vm4106, %v4107, %v3760
      %v4109 = vmul.u32.u64.compose %v4108, 3817748708
      %v4110 = vextract.low.u32 %v4109
      %v4111 = vextract.high.u32 %v4109
      %v4112 = vshrl.u32 %v4111, 4
      %v4113 = vmul.u32 %v4112, 18
      %v4114 = vsub.s32 %v4108, %v4113
      %v4115 = vsub.s32 0, %v4114
      %v4116 = vsel %vm4106, %v4115, %v4114
      %vm4117 = vcmp.lt.s32.totalorder %v3761, 0
      %v4118 = vsub.s32 0, %v3761
      %v4119 = vsel %vm4117, %v4118, %v3761
      %v4120 = vmul.u32.u64.compose %v4119, 3817748708
      %v4121 = vextract.low.u32 %v4120
      %v4122 = vextract.high.u32 %v4120
      %v4123 = vshrl.u32 %v4122, 4
      %v4124 = vmul.u32 %v4123, 18
      %v4125 = vsub.s32 %v4119, %v4124
      %v4126 = vsub.s32 0, %v4125
      %v4127 = vsel %vm4117, %v4126, %v4125
      %vm4128 = vcmp.lt.s32.totalorder %v3762, 0
      %v4129 = vsub.s32 0, %v3762
      %v4130 = vsel %vm4128, %v4129, %v3762
      %v4131 = vmul.u32.u64.compose %v4130, 3817748708
      %v4132 = vextract.low.u32 %v4131
      %v4133 = vextract.high.u32 %v4131
      %v4134 = vshrl.u32 %v4133, 4
      %v4135 = vmul.u32 %v4134, 18
      %v4136 = vsub.s32 %v4130, %v4135
      %v4137 = vsub.s32 0, %v4136
      %v4138 = vsel %vm4128, %v4137, %v4136
      %vm4139 = vcmp.lt.s32.totalorder %v3763, 0
      %v4140 = vsub.s32 0, %v3763
      %v4141 = vsel %vm4139, %v4140, %v3763
      %v4142 = vmul.u32.u64.compose %v4141, 3817748708
      %v4143 = vextract.low.u32 %v4142
      %v4144 = vextract.high.u32 %v4142
      %v4145 = vshrl.u32 %v4144, 4
      %v4146 = vmul.u32 %v4145, 18
      %v4147 = vsub.s32 %v4141, %v4146
      %v4148 = vsub.s32 0, %v4147
      %v4149 = vsel %vm4139, %v4148, %v4147
      %vm4150 = vcmp.lt.s32.totalorder %v3764, 0
      %v4151 = vsub.s32 0, %v3764
      %v4152 = vsel %vm4150, %v4151, %v3764
      %v4153 = vmul.u32.u64.compose %v4152, 3817748708
      %v4154 = vextract.low.u32 %v4153
      %v4155 = vextract.high.u32 %v4153
      %v4156 = vshrl.u32 %v4155, 4
      %v4157 = vmul.u32 %v4156, 18
      %v4158 = vsub.s32 %v4152, %v4157
      %v4159 = vsub.s32 0, %v4158
      %v4160 = vsel %vm4150, %v4159, %v4158
      %vm4161 = vcmp.ne.s32.totalorder %v3775, 0
      %vm4162 = vcmp.ne.s32.totalorder %v3786, 0
      %vm4163 = vcmp.ne.s32.totalorder %v3797, 0
      %vm4164 = vcmp.ne.s32.totalorder %v3808, 0
      %vm4165 = vcmp.ne.s32.totalorder %v3819, 0
      %vm4166 = vcmp.ne.s32.totalorder %v3830, 0
      %vm4167 = vcmp.ne.s32.totalorder %v3841, 0
      %vm4168 = vcmp.ne.s32.totalorder %v3852, 0
      %vm4169 = vcmp.ne.s32.totalorder %v3863, 0
      %vm4170 = vcmp.ne.s32.totalorder %v3874, 0
      %vm4171 = vcmp.ne.s32.totalorder %v3885, 0
      %vm4172 = vcmp.ne.s32.totalorder %v3896, 0
      %vm4173 = vcmp.ne.s32.totalorder %v3907, 0
      %vm4174 = vcmp.ne.s32.totalorder %v3918, 0
      %vm4175 = vcmp.ne.s32.totalorder %v3929, 0
      %vm4176 = vcmp.ne.s32.totalorder %v3940, 0
      %vm4177 = vcmp.ne.s32.totalorder %v3951, 0
      %vm4178 = vcmp.ne.s32.totalorder %v3962, 0
      %vm4179 = vcmp.ne.s32.totalorder %v3973, 0
      %vm4180 = vcmp.ne.s32.totalorder %v3984, 0
      %vm4181 = vcmp.ne.s32.totalorder %v3995, 0
      %vm4182 = vcmp.ne.s32.totalorder %v4006, 0
      %vm4183 = vcmp.ne.s32.totalorder %v4017, 0
      %vm4184 = vcmp.ne.s32.totalorder %v4028, 0
      %vm4185 = vcmp.ne.s32.totalorder %v4039, 0
      %vm4186 = vcmp.ne.s32.totalorder %v4050, 0
      %vm4187 = vcmp.ne.s32.totalorder %v4061, 0
      %vm4188 = vcmp.ne.s32.totalorder %v4072, 0
      %vm4189 = vcmp.ne.s32.totalorder %v4083, 0
      %vm4190 = vcmp.ne.s32.totalorder %v4094, 0
      %vm4191 = vcmp.ne.s32.totalorder %v4105, 0
      %vm4192 = vcmp.ne.s32.totalorder %v4116, 0
      %vm4193 = vcmp.ne.s32.totalorder %v4127, 0
      %vm4194 = vcmp.ne.s32.totalorder %v4138, 0
      %vm4195 = vcmp.ne.s32.totalorder %v4149, 0
      %vm4196 = vcmp.ne.s32.totalorder %v4160, 0
      %vm4197 = vcmp.lt.s32.totalorder %v3775, 0
      %vm4198 = vcmp.lt.s32.totalorder %v3786, 0
      %vm4199 = vcmp.lt.s32.totalorder %v3797, 0
      %vm4200 = vcmp.lt.s32.totalorder %v3808, 0
      %vm4201 = vcmp.lt.s32.totalorder %v3819, 0
      %vm4202 = vcmp.lt.s32.totalorder %v3830, 0
      %vm4203 = vcmp.lt.s32.totalorder %v3841, 0
      %vm4204 = vcmp.lt.s32.totalorder %v3852, 0
      %vm4205 = vcmp.lt.s32.totalorder %v3863, 0
      %vm4206 = vcmp.lt.s32.totalorder %v3874, 0
      %vm4207 = vcmp.lt.s32.totalorder %v3885, 0
      %vm4208 = vcmp.lt.s32.totalorder %v3896, 0
      %vm4209 = vcmp.lt.s32.totalorder %v3907, 0
      %vm4210 = vcmp.lt.s32.totalorder %v3918, 0
      %vm4211 = vcmp.lt.s32.totalorder %v3929, 0
      %vm4212 = vcmp.lt.s32.totalorder %v3940, 0
      %vm4213 = vcmp.lt.s32.totalorder %v3951, 0
      %vm4214 = vcmp.lt.s32.totalorder %v3962, 0
      %vm4215 = vcmp.lt.s32.totalorder %v3973, 0
      %vm4216 = vcmp.lt.s32.totalorder %v3984, 0
      %vm4217 = vcmp.lt.s32.totalorder %v3995, 0
      %vm4218 = vcmp.lt.s32.totalorder %v4006, 0
      %vm4219 = vcmp.lt.s32.totalorder %v4017, 0
      %vm4220 = vcmp.lt.s32.totalorder %v4028, 0
      %vm4221 = vcmp.lt.s32.totalorder %v4039, 0
      %vm4222 = vcmp.lt.s32.totalorder %v4050, 0
      %vm4223 = vcmp.lt.s32.totalorder %v4061, 0
      %vm4224 = vcmp.lt.s32.totalorder %v4072, 0
      %vm4225 = vcmp.lt.s32.totalorder %v4083, 0
      %vm4226 = vcmp.lt.s32.totalorder %v4094, 0
      %vm4227 = vcmp.lt.s32.totalorder %v4105, 0
      %vm4228 = vcmp.lt.s32.totalorder %v4116, 0
      %vm4229 = vcmp.lt.s32.totalorder %v4127, 0
      %vm4230 = vcmp.lt.s32.totalorder %v4138, 0
      %vm4231 = vcmp.lt.s32.totalorder %v4149, 0
      %vm4232 = vcmp.lt.s32.totalorder %v4160, 0
      %vm4233 = vmand %vm4197, %vm4161
      %vm4234 = vmand %vm4198, %vm4162
      %vm4235 = vmand %vm4199, %vm4163
      %vm4236 = vmand %vm4200, %vm4164
      %vm4237 = vmand %vm4201, %vm4165
      %vm4238 = vmand %vm4202, %vm4166
      %vm4239 = vmand %vm4203, %vm4167
      %vm4240 = vmand %vm4204, %vm4168
      %vm4241 = vmand %vm4205, %vm4169
      %vm4242 = vmand %vm4206, %vm4170
      %vm4243 = vmand %vm4207, %vm4171
      %vm4244 = vmand %vm4208, %vm4172
      %vm4245 = vmand %vm4209, %vm4173
      %vm4246 = vmand %vm4210, %vm4174
      %vm4247 = vmand %vm4211, %vm4175
      %vm4248 = vmand %vm4212, %vm4176
      %vm4249 = vmand %vm4213, %vm4177
      %vm4250 = vmand %vm4214, %vm4178
      %vm4251 = vmand %vm4215, %vm4179
      %vm4252 = vmand %vm4216, %vm4180
      %vm4253 = vmand %vm4217, %vm4181
      %vm4254 = vmand %vm4218, %vm4182
      %vm4255 = vmand %vm4219, %vm4183
      %vm4256 = vmand %vm4220, %vm4184
      %vm4257 = vmand %vm4221, %vm4185
      %vm4258 = vmand %vm4222, %vm4186
      %vm4259 = vmand %vm4223, %vm4187
      %vm4260 = vmand %vm4224, %vm4188
      %vm4261 = vmand %vm4225, %vm4189
      %vm4262 = vmand %vm4226, %vm4190
      %vm4263 = vmand %vm4227, %vm4191
      %vm4264 = vmand %vm4228, %vm4192
      %vm4265 = vmand %vm4229, %vm4193
      %vm4266 = vmand %vm4230, %vm4194
      %vm4267 = vmand %vm4231, %vm4195
      %vm4268 = vmand %vm4232, %vm4196
      %v4269 = vadd.s32 %v3775, 18
      %v4270 = vadd.s32 %v3786, 18
      %v4271 = vadd.s32 %v3797, 18
      %v4272 = vadd.s32 %v3808, 18
      %v4273 = vadd.s32 %v3819, 18
      %v4274 = vadd.s32 %v3830, 18
      %v4275 = vadd.s32 %v3841, 18
      %v4276 = vadd.s32 %v3852, 18
      %v4277 = vadd.s32 %v3863, 18
      %v4278 = vadd.s32 %v3874, 18
      %v4279 = vadd.s32 %v3885, 18
      %v4280 = vadd.s32 %v3896, 18
      %v4281 = vadd.s32 %v3907, 18
      %v4282 = vadd.s32 %v3918, 18
      %v4283 = vadd.s32 %v3929, 18
      %v4284 = vadd.s32 %v3940, 18
      %v4285 = vadd.s32 %v3951, 18
      %v4286 = vadd.s32 %v3962, 18
      %v4287 = vadd.s32 %v3973, 18
      %v4288 = vadd.s32 %v3984, 18
      %v4289 = vadd.s32 %v3995, 18
      %v4290 = vadd.s32 %v4006, 18
      %v4291 = vadd.s32 %v4017, 18
      %v4292 = vadd.s32 %v4028, 18
      %v4293 = vadd.s32 %v4039, 18
      %v4294 = vadd.s32 %v4050, 18
      %v4295 = vadd.s32 %v4061, 18
      %v4296 = vadd.s32 %v4072, 18
      %v4297 = vadd.s32 %v4083, 18
      %v4298 = vadd.s32 %v4094, 18
      %v4299 = vadd.s32 %v4105, 18
      %v4300 = vadd.s32 %v4116, 18
      %v4301 = vadd.s32 %v4127, 18
      %v4302 = vadd.s32 %v4138, 18
      %v4303 = vadd.s32 %v4149, 18
      %v4304 = vadd.s32 %v4160, 18
      %v4305 = vsel %vm4233, %v4269, %v3775
      %v4306 = vsel %vm4234, %v4270, %v3786
      %v4307 = vsel %vm4235, %v4271, %v3797
      %v4308 = vsel %vm4236, %v4272, %v3808
      %v4309 = vsel %vm4237, %v4273, %v3819
      %v4310 = vsel %vm4238, %v4274, %v3830
      %v4311 = vsel %vm4239, %v4275, %v3841
      %v4312 = vsel %vm4240, %v4276, %v3852
      %v4313 = vsel %vm4241, %v4277, %v3863
      %v4314 = vsel %vm4242, %v4278, %v3874
      %v4315 = vsel %vm4243, %v4279, %v3885
      %v4316 = vsel %vm4244, %v4280, %v3896
      %v4317 = vsel %vm4245, %v4281, %v3907
      %v4318 = vsel %vm4246, %v4282, %v3918
      %v4319 = vsel %vm4247, %v4283, %v3929
      %v4320 = vsel %vm4248, %v4284, %v3940
      %v4321 = vsel %vm4249, %v4285, %v3951
      %v4322 = vsel %vm4250, %v4286, %v3962
      %v4323 = vsel %vm4251, %v4287, %v3973
      %v4324 = vsel %vm4252, %v4288, %v3984
      %v4325 = vsel %vm4253, %v4289, %v3995
      %v4326 = vsel %vm4254, %v4290, %v4006
      %v4327 = vsel %vm4255, %v4291, %v4017
      %v4328 = vsel %vm4256, %v4292, %v4028
      %v4329 = vsel %vm4257, %v4293, %v4039
      %v4330 = vsel %vm4258, %v4294, %v4050
      %v4331 = vsel %vm4259, %v4295, %v4061
      %v4332 = vsel %vm4260, %v4296, %v4072
      %v4333 = vsel %vm4261, %v4297, %v4083
      %v4334 = vsel %vm4262, %v4298, %v4094
      %v4335 = vsel %vm4263, %v4299, %v4105
      %v4336 = vsel %vm4264, %v4300, %v4116
      %v4337 = vsel %vm4265, %v4301, %v4127
      %v4338 = vsel %vm4266, %v4302, %v4138
      %v4339 = vsel %vm4267, %v4303, %v4149
      %v4340 = vsel %vm4268, %v4304, %v4160
      %vm4341 = vcmp.lt.s32.totalorder %v4305, 16
      %vm4342 = vcmp.lt.s32.totalorder %v4306, 16
      %vm4343 = vcmp.lt.s32.totalorder %v4307, 16
      %vm4344 = vcmp.lt.s32.totalorder %v4308, 16
      %vm4345 = vcmp.lt.s32.totalorder %v4309, 16
      %vm4346 = vcmp.lt.s32.totalorder %v4310, 16
      %vm4347 = vcmp.lt.s32.totalorder %v4311, 16
      %vm4348 = vcmp.lt.s32.totalorder %v4312, 16
      %vm4349 = vcmp.lt.s32.totalorder %v4313, 16
      %vm4350 = vcmp.lt.s32.totalorder %v4314, 16
      %vm4351 = vcmp.lt.s32.totalorder %v4315, 16
      %vm4352 = vcmp.lt.s32.totalorder %v4316, 16
      %vm4353 = vcmp.lt.s32.totalorder %v4317, 16
      %vm4354 = vcmp.lt.s32.totalorder %v4318, 16
      %vm4355 = vcmp.lt.s32.totalorder %v4319, 16
      %vm4356 = vcmp.lt.s32.totalorder %v4320, 16
      %vm4357 = vcmp.lt.s32.totalorder %v4321, 16
      %vm4358 = vcmp.lt.s32.totalorder %v4322, 16
      %vm4359 = vcmp.lt.s32.totalorder %v4323, 16
      %vm4360 = vcmp.lt.s32.totalorder %v4324, 16
      %vm4361 = vcmp.lt.s32.totalorder %v4325, 16
      %vm4362 = vcmp.lt.s32.totalorder %v4326, 16
      %vm4363 = vcmp.lt.s32.totalorder %v4327, 16
      %vm4364 = vcmp.lt.s32.totalorder %v4328, 16
      %vm4365 = vcmp.lt.s32.totalorder %v4329, 16
      %vm4366 = vcmp.lt.s32.totalorder %v4330, 16
      %vm4367 = vcmp.lt.s32.totalorder %v4331, 16
      %vm4368 = vcmp.lt.s32.totalorder %v4332, 16
      %vm4369 = vcmp.lt.s32.totalorder %v4333, 16
      %vm4370 = vcmp.lt.s32.totalorder %v4334, 16
      %vm4371 = vcmp.lt.s32.totalorder %v4335, 16
      %vm4372 = vcmp.lt.s32.totalorder %v4336, 16
      %vm4373 = vcmp.lt.s32.totalorder %v4337, 16
      %vm4374 = vcmp.lt.s32.totalorder %v4338, 16
      %vm4375 = vcmp.lt.s32.totalorder %v4339, 16
      %vm4376 = vcmp.lt.s32.totalorder %v4340, 16
      %v4377 = vld [vmem:[%s2] sm:$0x1]
      %v4379 = vlaneseq
      %v4380 = vshrl.u32 %v4379, 7
      %v4381 = vsub.s32 0, %v4380
      %v4382 = vrot.slane %v4377, %v4381
      %v4384 = vadd.f32 %v3692, %v4382
      %v4385 = vadd.f32 %v3693, %v4382
      %v4386 = vadd.f32 %v3694, %v4382
      %v4387 = vadd.f32 %v3695, %v4382
      %v4388 = vadd.f32 %v3696, %v4382
      %v4389 = vadd.f32 %v3697, %v4382
      %v4390 = vadd.f32 %v3698, %v4382
      %v4391 = vadd.f32 %v3699, %v4382
      %v4392 = vadd.f32 %v3700, %v4382
      %v4393 = vadd.f32 %v3701, %v4382
      %v4394 = vadd.f32 %v3702, %v4382
      %v4395 = vadd.f32 %v3703, %v4382
      %v4396 = vadd.f32 %v3704, %v4382
      %v4397 = vadd.f32 %v3705, %v4382
      %v4398 = vadd.f32 %v3706, %v4382
      %v4399 = vadd.f32 %v3707, %v4382
      %v4400 = vadd.f32 %v3708, %v4382
      %v4401 = vadd.f32 %v3709, %v4382
      %v4402 = vadd.f32 %v3710, %v4382
      %v4403 = vadd.f32 %v3711, %v4382
      %v4404 = vadd.f32 %v3712, %v4382
      %v4405 = vadd.f32 %v3713, %v4382
      %v4406 = vadd.f32 %v3714, %v4382
      %v4407 = vadd.f32 %v3715, %v4382
      %v4408 = vadd.f32 %v3716, %v4382
      %v4409 = vadd.f32 %v3717, %v4382
      %v4410 = vadd.f32 %v3718, %v4382
      %v4411 = vadd.f32 %v3719, %v4382
      %v4412 = vadd.f32 %v3720, %v4382
      %v4413 = vadd.f32 %v3721, %v4382
      %v4414 = vadd.f32 %v3722, %v4382
      %v4415 = vadd.f32 %v3723, %v4382
      %v4416 = vadd.f32 %v3724, %v4382
      %v4417 = vadd.f32 %v3725, %v4382
      %v4418 = vadd.f32 %v3726, %v4382
      %v4419 = vadd.f32 %v3727, %v4382
      %v4420 = vmax.f32 %v4384, 0.0
      %v4421 = vmax.f32 %v4385, 0.0
      %v4422 = vmax.f32 %v4386, 0.0
      %v4423 = vmax.f32 %v4387, 0.0
      %v4424 = vmax.f32 %v4388, 0.0
      %v4425 = vmax.f32 %v4389, 0.0
      %v4426 = vmax.f32 %v4390, 0.0
      %v4427 = vmax.f32 %v4391, 0.0
      %v4428 = vmax.f32 %v4392, 0.0
      %v4429 = vmax.f32 %v4393, 0.0
      %v4430 = vmax.f32 %v4394, 0.0
      %v4431 = vmax.f32 %v4395, 0.0
      %v4432 = vmax.f32 %v4396, 0.0
      %v4433 = vmax.f32 %v4397, 0.0
      %v4434 = vmax.f32 %v4398, 0.0
      %v4435 = vmax.f32 %v4399, 0.0
      %v4436 = vmax.f32 %v4400, 0.0
      %v4437 = vmax.f32 %v4401, 0.0
      %v4438 = vmax.f32 %v4402, 0.0
      %v4439 = vmax.f32 %v4403, 0.0
      %v4440 = vmax.f32 %v4404, 0.0
      %v4441 = vmax.f32 %v4405, 0.0
      %v4442 = vmax.f32 %v4406, 0.0
      %v4443 = vmax.f32 %v4407, 0.0
      %v4444 = vmax.f32 %v4408, 0.0
      %v4445 = vmax.f32 %v4409, 0.0
      %v4446 = vmax.f32 %v4410, 0.0
      %v4447 = vmax.f32 %v4411, 0.0
      %v4448 = vmax.f32 %v4412, 0.0
      %v4449 = vmax.f32 %v4413, 0.0
      %v4450 = vmax.f32 %v4414, 0.0
      %v4451 = vmax.f32 %v4415, 0.0
      %v4452 = vmax.f32 %v4416, 0.0
      %v4453 = vmax.f32 %v4417, 0.0
      %v4454 = vmax.f32 %v4418, 0.0
      %v4455 = vmax.f32 %v4419, 0.0
      %v4456 = vsel %vm4341, 1, 0
      %v4457 = vsel %vm4342, 1, 0
      %v4458 = vsel %vm4343, 1, 0
      %v4459 = vsel %vm4344, 1, 0
      %v4460 = vsel %vm4345, 1, 0
      %v4461 = vsel %vm4346, 1, 0
      %v4462 = vsel %vm4347, 1, 0
      %v4463 = vsel %vm4348, 1, 0
      %v4464 = vsel %vm4349, 1, 0
      %v4465 = vsel %vm4350, 1, 0
      %v4466 = vsel %vm4351, 1, 0
      %v4467 = vsel %vm4352, 1, 0
      %v4468 = vsel %vm4353, 1, 0
      %v4469 = vsel %vm4354, 1, 0
      %v4470 = vsel %vm4355, 1, 0
      %v4471 = vsel %vm4356, 1, 0
      %v4472 = vsel %vm4357, 1, 0
      %v4473 = vsel %vm4358, 1, 0
      %v4474 = vsel %vm4359, 1, 0
      %v4475 = vsel %vm4360, 1, 0
      %v4476 = vsel %vm4361, 1, 0
      %v4477 = vsel %vm4362, 1, 0
      %v4478 = vsel %vm4363, 1, 0
      %v4479 = vsel %vm4364, 1, 0
      %v4480 = vsel %vm4365, 1, 0
      %v4481 = vsel %vm4366, 1, 0
      %v4482 = vsel %vm4367, 1, 0
      %v4483 = vsel %vm4368, 1, 0
      %v4484 = vsel %vm4369, 1, 0
      %v4485 = vsel %vm4370, 1, 0
      %v4486 = vsel %vm4371, 1, 0
      %v4487 = vsel %vm4372, 1, 0
      %v4488 = vsel %vm4373, 1, 0
      %v4489 = vsel %vm4374, 1, 0
      %v4490 = vsel %vm4375, 1, 0
      %v4491 = vsel %vm4376, 1, 0
      %vm4492 = vcmp.eq.s32.totalorder %v4456, 1
      %vm4493 = vcmp.eq.s32.totalorder %v4457, 1
      %vm4494 = vcmp.eq.s32.totalorder %v4458, 1
      %vm4495 = vcmp.eq.s32.totalorder %v4459, 1
      %vm4496 = vcmp.eq.s32.totalorder %v4460, 1
      %vm4497 = vcmp.eq.s32.totalorder %v4461, 1
      %vm4498 = vcmp.eq.s32.totalorder %v4462, 1
      %vm4499 = vcmp.eq.s32.totalorder %v4463, 1
      %vm4500 = vcmp.eq.s32.totalorder %v4464, 1
      %vm4501 = vcmp.eq.s32.totalorder %v4465, 1
      %vm4502 = vcmp.eq.s32.totalorder %v4466, 1
      %vm4503 = vcmp.eq.s32.totalorder %v4467, 1
      %vm4504 = vcmp.eq.s32.totalorder %v4468, 1
      %vm4505 = vcmp.eq.s32.totalorder %v4469, 1
      %vm4506 = vcmp.eq.s32.totalorder %v4470, 1
      %vm4507 = vcmp.eq.s32.totalorder %v4471, 1
      %vm4508 = vcmp.eq.s32.totalorder %v4472, 1
      %vm4509 = vcmp.eq.s32.totalorder %v4473, 1
      %vm4510 = vcmp.eq.s32.totalorder %v4474, 1
      %vm4511 = vcmp.eq.s32.totalorder %v4475, 1
      %vm4512 = vcmp.eq.s32.totalorder %v4476, 1
      %vm4513 = vcmp.eq.s32.totalorder %v4477, 1
      %vm4514 = vcmp.eq.s32.totalorder %v4478, 1
      %vm4515 = vcmp.eq.s32.totalorder %v4479, 1
      %vm4516 = vcmp.eq.s32.totalorder %v4480, 1
      %vm4517 = vcmp.eq.s32.totalorder %v4481, 1
      %vm4518 = vcmp.eq.s32.totalorder %v4482, 1
      %vm4519 = vcmp.eq.s32.totalorder %v4483, 1
      %vm4520 = vcmp.eq.s32.totalorder %v4484, 1
      %vm4521 = vcmp.eq.s32.totalorder %v4485, 1
      %vm4522 = vcmp.eq.s32.totalorder %v4486, 1
      %vm4523 = vcmp.eq.s32.totalorder %v4487, 1
      %vm4524 = vcmp.eq.s32.totalorder %v4488, 1
      %vm4525 = vcmp.eq.s32.totalorder %v4489, 1
      %vm4526 = vcmp.eq.s32.totalorder %v4490, 1
      %vm4527 = vcmp.eq.s32.totalorder %v4491, 1
      %v4528 = vsel %vm4492, %v4420, 0.0
      %v4529 = vsel %vm4493, %v4421, 0.0
      %v4530 = vsel %vm4494, %v4422, 0.0
      %v4531 = vsel %vm4495, %v4423, 0.0
      %v4532 = vsel %vm4496, %v4424, 0.0
      %v4533 = vsel %vm4497, %v4425, 0.0
      %v4534 = vsel %vm4498, %v4426, 0.0
      %v4535 = vsel %vm4499, %v4427, 0.0
      %v4536 = vsel %vm4500, %v4428, 0.0
      %v4537 = vsel %vm4501, %v4429, 0.0
      %v4538 = vsel %vm4502, %v4430, 0.0
      %v4539 = vsel %vm4503, %v4431, 0.0
      %v4540 = vsel %vm4504, %v4432, 0.0
      %v4541 = vsel %vm4505, %v4433, 0.0
      %v4542 = vsel %vm4506, %v4434, 0.0
      %v4543 = vsel %vm4507, %v4435, 0.0
      %v4544 = vsel %vm4508, %v4436, 0.0
      %v4545 = vsel %vm4509, %v4437, 0.0
      %v4546 = vsel %vm4510, %v4438, 0.0
      %v4547 = vsel %vm4511, %v4439, 0.0
      %v4548 = vsel %vm4512, %v4440, 0.0
      %v4549 = vsel %vm4513, %v4441, 0.0
      %v4550 = vsel %vm4514, %v4442, 0.0
      %v4551 = vsel %vm4515, %v4443, 0.0
      %v4552 = vsel %vm4516, %v4444, 0.0
      %v4553 = vsel %vm4517, %v4445, 0.0
      %v4554 = vsel %vm4518, %v4446, 0.0
      %v4555 = vsel %vm4519, %v4447, 0.0
      %v4556 = vsel %vm4520, %v4448, 0.0
      %v4557 = vsel %vm4521, %v4449, 0.0
      %v4558 = vsel %vm4522, %v4450, 0.0
      %v4559 = vsel %vm4523, %v4451, 0.0
      %v4560 = vsel %vm4524, %v4452, 0.0
      %v4561 = vsel %vm4525, %v4453, 0.0
      %v4562 = vsel %vm4526, %v4454, 0.0
      %v4563 = vsel %vm4527, %v4455, 0.0
      %vm4564 = vcmask 257024
      %4565 = vst.msk [vmem:[#allocation2] sm:$0xf] %vm4564, 0
      %4566 = vst.msk [vmem:[#allocation2 + $0x4] sm:$0xf] %vm4564, 0
      %4567 = vst.msk [vmem:[#allocation2 + $0x8] sm:$0xf] %vm4564, 0
      %4568 = vst.msk [vmem:[#allocation2 + $0x9c] sm:$0xf] %vm4564, 0
      %4569 = vst.msk [vmem:[#allocation2 + $0xa0] sm:$0xf] %vm4564, 0
      %4570 = vst.msk [vmem:[#allocation2 + $0xa4] sm:$0xf] %vm4564, 0
      %v4571 = vpack.c.bf16 %v4529, %v4528
      %v4572 = vpack.c.bf16 %v4531, %v4530
      %v4573 = vpack.c.bf16 %v4533, %v4532
      %v4574 = vpack.c.bf16 %v4535, %v4534
      %v4575 = vpack.c.bf16 %v4537, %v4536
      %v4576 = vpack.c.bf16 %v4539, %v4538
      %v4577 = vpack.c.bf16 %v4541, %v4540
      %v4578 = vpack.c.bf16 %v4543, %v4542
      %v4579 = vpack.c.bf16 %v4545, %v4544
      %v4580 = vpack.c.bf16 %v4547, %v4546
      %v4581 = vpack.c.bf16 %v4549, %v4548
      %v4582 = vpack.c.bf16 %v4551, %v4550
      %v4583 = vpack.c.bf16 %v4553, %v4552
      %v4584 = vpack.c.bf16 %v4555, %v4554
      %v4585 = vpack.c.bf16 %v4557, %v4556
      %v4586 = vpack.c.bf16 %v4559, %v4558
      %v4587 = vpack.c.bf16 %v4561, %v4560
      %v4588 = vpack.c.bf16 %v4563, %v4562
      %v4607 = vunpack.c.l.b16 %v4571
      %v4608 = vunpack.c.h.b16 %v4571
      %v4609 = vunpack.c.l.b16 %v4572
      %v4610 = vunpack.c.h.b16 %v4572
      %v4611 = vunpack.c.l.b16 %v4573
      %v4612 = vunpack.c.h.b16 %v4573
      %v4613 = vunpack.c.l.b16 %v4574
      %v4614 = vunpack.c.h.b16 %v4574
      %v4615 = vunpack.c.l.b16 %v4575
      %v4616 = vunpack.c.h.b16 %v4575
      %v4617 = vunpack.c.l.b16 %v4576
      %v4618 = vunpack.c.h.b16 %v4576
      %v4619 = vunpack.c.l.b16 %v4577
      %v4620 = vunpack.c.h.b16 %v4577
      %v4621 = vunpack.c.l.b16 %v4578
      %v4622 = vunpack.c.h.b16 %v4578
      %v4623 = vunpack.c.l.b16 %v4579
      %v4624 = vunpack.c.h.b16 %v4579
      %v4625 = vunpack.c.l.b16 %v4580
      %v4626 = vunpack.c.h.b16 %v4580
      %v4627 = vunpack.c.l.b16 %v4581
      %v4628 = vunpack.c.h.b16 %v4581
      %v4629 = vunpack.c.l.b16 %v4582
      %v4630 = vunpack.c.h.b16 %v4582
      %v4631 = vunpack.c.l.b16 %v4583
      %v4632 = vunpack.c.h.b16 %v4583
      %v4633 = vunpack.c.l.b16 %v4584
      %v4634 = vunpack.c.h.b16 %v4584
      %v4635 = vunpack.c.l.b16 %v4585
      %v4636 = vunpack.c.h.b16 %v4585
      %v4637 = vunpack.c.l.b16 %v4586
      %v4638 = vunpack.c.h.b16 %v4586
      %v4639 = vunpack.c.l.b16 %v4587
      %v4640 = vunpack.c.h.b16 %v4587
      %v4641 = vunpack.c.l.b16 %v4588
      %v4642 = vunpack.c.h.b16 %v4588
      %v4643 = vpack.c.b16 %v4607, %v4607
      %v4644 = vpack.c.b16 %v4608, %v4608
      %v4645 = vpack.c.b16 %v4609, %v4609
      %v4646 = vpack.c.b16 %v4610, %v4610
      %v4647 = vpack.c.b16 %v4611, %v4611
      %v4648 = vpack.c.b16 %v4612, %v4612
      %v4649 = vpack.c.b16 %v4613, %v4613
      %v4650 = vpack.c.b16 %v4614, %v4614
      %v4651 = vpack.c.b16 %v4615, %v4615
      %v4652 = vpack.c.b16 %v4616, %v4616
      %v4653 = vpack.c.b16 %v4617, %v4617
      %v4654 = vpack.c.b16 %v4618, %v4618
      %v4655 = vpack.c.b16 %v4619, %v4619
      %v4656 = vpack.c.b16 %v4620, %v4620
      %v4657 = vpack.c.b16 %v4621, %v4621
      %v4658 = vpack.c.b16 %v4622, %v4622
      %v4659 = vpack.c.b16 %v4623, %v4623
      %v4660 = vpack.c.b16 %v4624, %v4624
      %v4661 = vpack.c.b16 %v4625, %v4625
      %v4662 = vpack.c.b16 %v4626, %v4626
      %v4663 = vpack.c.b16 %v4627, %v4627
      %v4664 = vpack.c.b16 %v4628, %v4628
      %v4665 = vpack.c.b16 %v4629, %v4629
      %v4666 = vpack.c.b16 %v4630, %v4630
      %v4667 = vpack.c.b16 %v4631, %v4631
      %v4668 = vpack.c.b16 %v4632, %v4632
      %v4669 = vpack.c.b16 %v4633, %v4633
      %v4670 = vpack.c.b16 %v4634, %v4634
      %v4671 = vpack.c.b16 %v4635, %v4635
      %v4672 = vpack.c.b16 %v4636, %v4636
      %v4673 = vpack.c.b16 %v4637, %v4637
      %v4674 = vpack.c.b16 %v4638, %v4638
      %v4675 = vpack.c.b16 %v4639, %v4639
      %v4676 = vpack.c.b16 %v4640, %v4640
      %v4677 = vpack.c.b16 %v4641, %v4641
      %v4678 = vpack.c.b16 %v4642, %v4642
      %4715 = vst.msk [vmem:[#allocation2 + $0xc] sm:$0xf] %vm4564, %v4643
      %4716 = vst.msk [vmem:[#allocation2 + $0x10] sm:$0xf] %vm4564, %v4644
      %4717 = vst.msk [vmem:[#allocation2 + $0x14] sm:$0xf] %vm4564, %v4645
      %4718 = vst.msk [vmem:[#allocation2 + $0x18] sm:$0xf] %vm4564, %v4646
      %4719 = vst.msk [vmem:[#allocation2 + $0x1c] sm:$0xf] %vm4564, %v4647
      %4720 = vst.msk [vmem:[#allocation2 + $0x20] sm:$0xf] %vm4564, %v4648
      %4721 = vst.msk [vmem:[#allocation2 + $0x24] sm:$0xf] %vm4564, %v4649
      %4722 = vst.msk [vmem:[#allocation2 + $0x28] sm:$0xf] %vm4564, %v4650
      %4723 = vst.msk [vmem:[#allocation2 + $0x2c] sm:$0xf] %vm4564, %v4651
      %4724 = vst.msk [vmem:[#allocation2 + $0x30] sm:$0xf] %vm4564, %v4652
      %4725 = vst.msk [vmem:[#allocation2 + $0x34] sm:$0xf] %vm4564, %v4653
      %4726 = vst.msk [vmem:[#allocation2 + $0x38] sm:$0xf] %vm4564, %v4654
      %4727 = vst.msk [vmem:[#allocation2 + $0x3c] sm:$0xf] %vm4564, %v4655
      %4728 = vst.msk [vmem:[#allocation2 + $0x40] sm:$0xf] %vm4564, %v4656
      %4729 = vst.msk [vmem:[#allocation2 + $0x44] sm:$0xf] %vm4564, %v4657
      %4730 = vst.msk [vmem:[#allocation2 + $0x48] sm:$0xf] %vm4564, %v4658
      %4731 = vst.msk [vmem:[#allocation2 + $0x4c] sm:$0xf] %vm4564, %v4659
      %4732 = vst.msk [vmem:[#allocation2 + $0x50] sm:$0xf] %vm4564, %v4660
      %4733 = vst.msk [vmem:[#allocation2 + $0x54] sm:$0xf] %vm4564, %v4661
      %4734 = vst.msk [vmem:[#allocation2 + $0x58] sm:$0xf] %vm4564, %v4662
      %4735 = vst.msk [vmem:[#allocation2 + $0x5c] sm:$0xf] %vm4564, %v4663
      %4736 = vst.msk [vmem:[#allocation2 + $0x60] sm:$0xf] %vm4564, %v4664
      %4737 = vst.msk [vmem:[#allocation2 + $0x64] sm:$0xf] %vm4564, %v4665
      %4738 = vst.msk [vmem:[#allocation2 + $0x68] sm:$0xf] %vm4564, %v4666
      %4739 = vst.msk [vmem:[#allocation2 + $0x6c] sm:$0xf] %vm4564, %v4667
      %4740 = vst.msk [vmem:[#allocation2 + $0x70] sm:$0xf] %vm4564, %v4668
      %4741 = vst.msk [vmem:[#allocation2 + $0x74] sm:$0xf] %vm4564, %v4669
      %4742 = vst.msk [vmem:[#allocation2 + $0x78] sm:$0xf] %vm4564, %v4670
      %4743 = vst.msk [vmem:[#allocation2 + $0x7c] sm:$0xf] %vm4564, %v4671
      %4744 = vst.msk [vmem:[#allocation2 + $0x80] sm:$0xf] %vm4564, %v4672
      %4745 = vst.msk [vmem:[#allocation2 + $0x84] sm:$0xf] %vm4564, %v4673
      %4746 = vst.msk [vmem:[#allocation2 + $0x88] sm:$0xf] %vm4564, %v4674
      %4747 = vst.msk [vmem:[#allocation2 + $0x8c] sm:$0xf] %vm4564, %v4675
      %4748 = vst.msk [vmem:[#allocation2 + $0x90] sm:$0xf] %vm4564, %v4676
      %4749 = vst.msk [vmem:[#allocation2 + $0x94] sm:$0xf] %vm4564, %v4677
      %4750 = vst.msk [vmem:[#allocation2 + $0x98] sm:$0xf] %vm4564, %v4678
      %v4751 = vld [vmem:[#allocation2] sm:$0xc]
      %v4752 = vld [vmem:[#allocation2 + $0x4] sm:$0xf]
      %v4753 = vld [vmem:[#allocation2 + $0x8] sm:$0xf]
      %v4754 = vld [vmem:[#allocation2 + $0xc] sm:$0xf]
      %v4755 = vld [vmem:[#allocation2 + $0x10] sm:$0xf]
      %v4756 = vld [vmem:[#allocation2 + $0x14] sm:$0xf]
      %v4757 = vld [vmem:[#allocation2 + $0x18] sm:$0xf]
      %v4758 = vld [vmem:[#allocation2 + $0x1c] sm:$0xf]
      %v4759 = vld [vmem:[#allocation2 + $0x20] sm:$0xf]
      %v4760 = vld [vmem:[#allocation2 + $0x24] sm:$0xf]
      %v4761 = vld [vmem:[#allocation2 + $0x28] sm:$0xf]
      %v4762 = vld [vmem:[#allocation2 + $0x2c] sm:$0xf]
      %v4763 = vld [vmem:[#allocation2 + $0x30] sm:$0xf]
      %v4764 = vld [vmem:[#allocation2 + $0x34] sm:$0xf]
      %v4765 = vld [vmem:[#allocation2 + $0x38] sm:$0xf]
      %v4766 = vld [vmem:[#allocation2 + $0x3c] sm:$0xf]
      %v4767 = vld [vmem:[#allocation2 + $0x40] sm:$0xf]
      %v4768 = vld [vmem:[#allocation2 + $0x44] sm:$0xf]
      %v4769 = vld [vmem:[#allocation2 + $0x48] sm:$0xf]
      %v4770 = vld [vmem:[#allocation2 + $0x4c] sm:$0xf]
      %v4771 = vld [vmem:[#allocation2 + $0x50] sm:$0xf]
      %v4772 = vld [vmem:[#allocation2 + $0x54] sm:$0xf]
      %v4773 = vld [vmem:[#allocation2 + $0x58] sm:$0xf]
      %v4774 = vld [vmem:[#allocation2 + $0x5c] sm:$0xf]
      %v4775 = vld [vmem:[#allocation2 + $0x60] sm:$0xf]
      %v4776 = vld [vmem:[#allocation2 + $0x64] sm:$0xf]
      %v4777 = vld [vmem:[#allocation2 + $0x68] sm:$0xf]
      %v4778 = vld [vmem:[#allocation2 + $0x6c] sm:$0xf]
      %v4779 = vld [vmem:[#allocation2 + $0x70] sm:$0xf]
      %v4780 = vld [vmem:[#allocation2 + $0x74] sm:$0xf]
      %v4781 = vld [vmem:[#allocation2 + $0x78] sm:$0xf]
      %v4782 = vld [vmem:[#allocation2 + $0x7c] sm:$0xf]
      %v4783 = vld [vmem:[#allocation2 + $0x80] sm:$0xf]
      %v4784 = vld [vmem:[#allocation2 + $0x84] sm:$0xf]
      %v4785 = vld [vmem:[#allocation2 + $0x88] sm:$0xf]
      %v4786 = vld [vmem:[#allocation2 + $0x8c] sm:$0xf]
      %v4787 = vld [vmem:[#allocation2 + $0x90] sm:$0x7]
      %v4788 = vld [vmem:[%s3] sm:$0xf]
      %v4789 = vld [vmem:[%s3 + $0x4] sm:$0xf]
      %v4790 = vld [vmem:[%s3 + $0x8] sm:$0xf]
      %v4791 = vld [vmem:[%s3 + $0xc] sm:$0xf]
      %v4792 = vld [vmem:[#allocation2] sm:$0x8]
      %s4793 = scalar_lea.vmem %s3, 16
      %v4794 = vld [vmem:[%s4793] sm:$0xf]
      %v4795 = vld [vmem:[%s4793 + $0x4] sm:$0xf]
      %v4796 = vld [vmem:[%s4793 + $0x8] sm:$0xf]
      %v4797 = vld [vmem:[%s4793 + $0xc] sm:$0xf]
      %v4835 = vunpack.c.l.b16 %v4792
      %v4836 = vunpack.c.l.b16 %v4752
      %v4837 = vunpack.c.l.b16 %v4753
      %v4838 = vunpack.c.l.b16 %v4754
      %v4839 = vunpack.c.l.b16 %v4755
      %v4840 = vunpack.c.l.b16 %v4756
      %v4841 = vunpack.c.l.b16 %v4757
      %v4842 = vunpack.c.l.b16 %v4758
      %v4843 = vunpack.c.l.b16 %v4759
      %v4844 = vunpack.c.l.b16 %v4760
      %v4845 = vunpack.c.l.b16 %v4761
      %v4846 = vunpack.c.l.b16 %v4762
      %v4847 = vunpack.c.l.b16 %v4763
      %v4848 = vunpack.c.l.b16 %v4764
      %v4849 = vunpack.c.l.b16 %v4765
      %v4850 = vunpack.c.l.b16 %v4766
      %v4851 = vunpack.c.l.b16 %v4767
      %v4852 = vunpack.c.l.b16 %v4768
      %v4853 = vunpack.c.l.b16 %v4769
      %v4854 = vunpack.c.l.b16 %v4770
      %v4855 = vunpack.c.l.b16 %v4771
      %v4856 = vunpack.c.l.b16 %v4772
      %v4857 = vunpack.c.l.b16 %v4773
      %v4858 = vunpack.c.l.b16 %v4774
      %v4859 = vunpack.c.l.b16 %v4775
      %v4860 = vunpack.c.l.b16 %v4776
      %v4861 = vunpack.c.l.b16 %v4777
      %v4862 = vunpack.c.l.b16 %v4778
      %v4863 = vunpack.c.l.b16 %v4779
      %v4864 = vunpack.c.l.b16 %v4780
      %v4865 = vunpack.c.l.b16 %v4781
      %v4866 = vunpack.c.l.b16 %v4782
      %v4867 = vunpack.c.l.b16 %v4783
      %v4868 = vunpack.c.l.b16 %v4784
      %v4869 = vunpack.c.l.b16 %v4785
      %v4870 = vunpack.c.l.b16 %v4786
      %v4871 = vunpack.c.l.b16 %v4787
      %v4872 = vpack.c.b16 %v4836, %v4835
      %v4873 = vpack.c.b16 %v4838, %v4837
      %v4874 = vpack.c.b16 %v4840, %v4839
      %v4875 = vpack.c.b16 %v4842, %v4841
      %v4876 = vpack.c.b16 %v4844, %v4843
      %v4877 = vpack.c.b16 %v4846, %v4845
      %v4878 = vpack.c.b16 %v4848, %v4847
      %v4879 = vpack.c.b16 %v4850, %v4849
      %v4880 = vpack.c.b16 %v4852, %v4851
      %v4881 = vpack.c.b16 %v4854, %v4853
      %v4882 = vpack.c.b16 %v4856, %v4855
      %v4883 = vpack.c.b16 %v4858, %v4857
      %v4884 = vpack.c.b16 %v4860, %v4859
      %v4885 = vpack.c.b16 %v4862, %v4861
      %v4886 = vpack.c.b16 %v4864, %v4863
      %v4887 = vpack.c.b16 %v4866, %v4865
      %v4888 = vpack.c.b16 %v4868, %v4867
      %v4889 = vpack.c.b16 %v4870, %v4869
      %v4890 = vpack.c.b16 %v4871, %v4871
      %v4891 = vrot.slane %v4872, 3
      %v4892 = vrot.slane %v4873, 3
      %v4893 = vsel %vm3415, %v4891, %v4892
      %v4894 = vrot.slane %v4874, 3
      %v4895 = vsel %vm3415, %v4892, %v4894
      %v4896 = vrot.slane %v4875, 3
      %v4897 = vsel %vm3415, %v4894, %v4896
      %v4898 = vrot.slane %v4876, 3
      %v4899 = vsel %vm3415, %v4896, %v4898
      %v4900 = vrot.slane %v4877, 3
      %v4901 = vsel %vm3415, %v4898, %v4900
      %v4902 = vrot.slane %v4878, 3
      %v4903 = vsel %vm3415, %v4900, %v4902
      %v4904 = vrot.slane %v4879, 3
      %v4905 = vsel %vm3415, %v4902, %v4904
      %v4906 = vrot.slane %v4880, 3
      %v4907 = vsel %vm3415, %v4904, %v4906
      %v4908 = vrot.slane %v4881, 3
      %v4909 = vsel %vm3415, %v4906, %v4908
      %v4910 = vrot.slane %v4882, 3
      %v4911 = vsel %vm3415, %v4908, %v4910
      %v4912 = vrot.slane %v4883, 3
      %v4913 = vsel %vm3415, %v4910, %v4912
      %v4914 = vrot.slane %v4884, 3
      %v4915 = vsel %vm3415, %v4912, %v4914
      %v4916 = vrot.slane %v4885, 3
      %v4917 = vsel %vm3415, %v4914, %v4916
      %v4918 = vrot.slane %v4886, 3
      %v4919 = vsel %vm3415, %v4916, %v4918
      %v4920 = vrot.slane %v4887, 3
      %v4921 = vsel %vm3415, %v4918, %v4920
      %v4922 = vrot.slane %v4888, 3
      %v4923 = vsel %vm3415, %v4920, %v4922
      %v4924 = vrot.slane %v4889, 3
      %v4925 = vsel %vm3415, %v4922, %v4924
      %v4926 = vrot.slane %v4890, 3
      %v4927 = vsel %vm3415, %v4924, %v4926
      %v4932 = vunpack.c.l.b16 %v4794
      %v4933 = vunpack.c.l.b16 %v4795
      %v4934 = vunpack.c.l.b16 %v4796
      %v4935 = vunpack.c.l.b16 %v4797
      %v4936 = vpack.c.b16 %v4933, %v4932
      %v4937 = vpack.c.b16 %v4935, %v4934
      %vm4940 = vcmask 261120
      %v4942 = vsel %vm4940, %v4893, 0
      %v4945 = vsel %vm4940, %v4895, 0
      %v4948 = vsel %vm4940, %v4897, 0
      %v4951 = vsel %vm4940, %v4899, 0
      %v4954 = vsel %vm4940, %v4901, 0
      %v4957 = vsel %vm4940, %v4903, 0
      %v4960 = vsel %vm4940, %v4905, 0
      %v4963 = vsel %vm4940, %v4907, 0
      %v4966 = vsel %vm4940, %v4909, 0
      %v4969 = vsel %vm4940, %v4911, 0
      %v4972 = vsel %vm4940, %v4913, 0
      %v4975 = vsel %vm4940, %v4915, 0
      %v4978 = vsel %vm4940, %v4917, 0
      %v4981 = vsel %vm4940, %v4919, 0
      %v4984 = vsel %vm4940, %v4921, 0
      %v4987 = vsel %vm4940, %v4923, 0
      %v4990 = vsel %vm4940, %v4925, 0
      %v4993 = vsel %vm4940, %v4927, 0
      %4995 = vmatprep.subr.bf16.mxu0 0
      %4996 = vmatpush1.bf16.msra.mxu0 0
      %4997 = vmatprep.subr.bf16.mxu0 0
      %4998 = vmatpush1.bf16.msra.mxu0 0
      %4999 = vmatprep.subr.bf16.mxu0 0
      %5000 = vmatpush1.bf16.msra.mxu0 0
      %5001 = vmatprep.subr.bf16.mxu0 0
      %5002 = vmatpush1.bf16.msra.mxu0 0
      %5003 = vmatprep.subr.bf16.mxu0 0
      %5004 = vmatpush1.bf16.msra.mxu0 0
      %5005 = vmatprep.subr.bf16.mxu0 0
      %5006 = vmatpush1.bf16.msra.mxu0 0
      %5007 = vmatprep.subr.bf16.mxu0 0
      %5008 = vmatpush1.bf16.msra.mxu0 %v4937
      %5009 = vmatprep.subr.bf16.mxu0 0
      %5010 = vmatpush1.bf16.msra.mxu0 %v4936
      %5011 = vmatprep.subr.bf16.mxu0 0
      %5012 = vmatpush2.bf16.msra.mxu0 0
      %5013 = vmatprep.subr.bf16.mxu0 0
      %5014 = vmatpush2.bf16.msra.mxu0 0
      %5015 = vmatprep.subr.bf16.mxu0 0
      %5016 = vmatpush2.bf16.msra.mxu0 0
      %5017 = vmatprep.subr.bf16.mxu0 0
      %5018 = vmatpush2.bf16.msra.mxu0 0
      %5019 = vmatprep.subr.bf16.mxu0 0
      %5020 = vmatpush2.bf16.msra.mxu0 0
      %5021 = vmatprep.subr.bf16.mxu0 0
      %5022 = vmatpush2.bf16.msra.mxu0 0
      %5023 = vmatprep.subr.bf16.mxu0 0
      %5024 = vmatpush2.bf16.msra.mxu0 0
      %5025 = vmatprep.subr.bf16.mxu0 0
      %5026 = vmatpush2.bf16.msra.mxu0 0
      %5027 = vmatprep.mubr.bf16.mxu0 0
      %5028 = vmatmul.mubr.bf16.gmra.mxu0 %v4942
      %v5029 = vpop.f32.mrf.mxu0
      %v5030 = vadd.f32 0.0, %v5029
      %v5031 = vpop.f32.mrf.mxu0
      %v5032 = vpop.f32.mrf.mxu0
      %v5033 = vadd.f32 0.0, %v5032
      %v5034 = vpop.f32.mrf.mxu0
      %5035 = vmatprep.mubr.bf16.mxu0 0
      %5036 = vmatmul.mubr.bf16.gmra.mxu0 %v4945
      %v5037 = vpop.f32.mrf.mxu0
      %v5038 = vadd.f32 0.0, %v5037
      %v5039 = vpop.f32.mrf.mxu0
      %v5040 = vpop.f32.mrf.mxu0
      %v5041 = vadd.f32 0.0, %v5040
      %v5042 = vpop.f32.mrf.mxu0
      %5043 = vmatprep.mubr.bf16.mxu0 0
      %5044 = vmatmul.mubr.bf16.gmra.mxu0 %v4948
      %v5045 = vpop.f32.mrf.mxu0
      %v5046 = vadd.f32 0.0, %v5045
      %v5047 = vpop.f32.mrf.mxu0
      %v5048 = vpop.f32.mrf.mxu0
      %v5049 = vadd.f32 0.0, %v5048
      %v5050 = vpop.f32.mrf.mxu0
      %5051 = vmatprep.mubr.bf16.mxu0 0
      %5052 = vmatmul.mubr.bf16.gmra.mxu0 %v4951
      %v5053 = vpop.f32.mrf.mxu0
      %v5054 = vadd.f32 0.0, %v5053
      %v5055 = vpop.f32.mrf.mxu0
      %v5056 = vpop.f32.mrf.mxu0
      %v5057 = vadd.f32 0.0, %v5056
      %v5058 = vpop.f32.mrf.mxu0
      %5059 = vmatprep.mubr.bf16.mxu0 0
      %5060 = vmatmul.mubr.bf16.gmra.mxu0 %v4954
      %v5061 = vpop.f32.mrf.mxu0
      %v5062 = vadd.f32 0.0, %v5061
      %v5063 = vpop.f32.mrf.mxu0
      %v5064 = vpop.f32.mrf.mxu0
      %v5065 = vadd.f32 0.0, %v5064
      %v5066 = vpop.f32.mrf.mxu0
      %5067 = vmatprep.mubr.bf16.mxu0 0
      %5068 = vmatmul.mubr.bf16.gmra.mxu0 %v4957
      %v5069 = vpop.f32.mrf.mxu0
      %v5070 = vadd.f32 0.0, %v5069
      %v5071 = vpop.f32.mrf.mxu0
      %v5072 = vpop.f32.mrf.mxu0
      %v5073 = vadd.f32 0.0, %v5072
      %v5074 = vpop.f32.mrf.mxu0
      %5075 = vmatprep.mubr.bf16.mxu0 0
      %5076 = vmatmul.mubr.bf16.gmra.mxu0 %v4960
      %v5077 = vpop.f32.mrf.mxu0
      %v5078 = vadd.f32 0.0, %v5077
      %v5079 = vpop.f32.mrf.mxu0
      %v5080 = vpop.f32.mrf.mxu0
      %v5081 = vadd.f32 0.0, %v5080
      %v5082 = vpop.f32.mrf.mxu0
      %5083 = vmatprep.mubr.bf16.mxu0 0
      %5084 = vmatmul.mubr.bf16.gmra.mxu0 %v4963
      %v5085 = vpop.f32.mrf.mxu0
      %v5086 = vadd.f32 0.0, %v5085
      %v5087 = vpop.f32.mrf.mxu0
      %v5088 = vpop.f32.mrf.mxu0
      %v5089 = vadd.f32 0.0, %v5088
      %v5090 = vpop.f32.mrf.mxu0
      %5091 = vmatprep.mubr.bf16.mxu0 0
      %5092 = vmatmul.mubr.bf16.gmra.mxu0 %v4966
      %v5093 = vpop.f32.mrf.mxu0
      %v5094 = vadd.f32 0.0, %v5093
      %v5095 = vpop.f32.mrf.mxu0
      %v5096 = vpop.f32.mrf.mxu0
      %v5097 = vadd.f32 0.0, %v5096
      %v5098 = vpop.f32.mrf.mxu0
      %5099 = vmatprep.mubr.bf16.mxu0 0
      %5100 = vmatmul.mubr.bf16.gmra.mxu0 %v4969
      %v5101 = vpop.f32.mrf.mxu0
      %v5102 = vadd.f32 0.0, %v5101
      %v5103 = vpop.f32.mrf.mxu0
      %v5104 = vpop.f32.mrf.mxu0
      %v5105 = vadd.f32 0.0, %v5104
      %v5106 = vpop.f32.mrf.mxu0
      %5107 = vmatprep.mubr.bf16.mxu0 0
      %5108 = vmatmul.mubr.bf16.gmra.mxu0 %v4972
      %v5109 = vpop.f32.mrf.mxu0
      %v5110 = vadd.f32 0.0, %v5109
      %v5111 = vpop.f32.mrf.mxu0
      %v5112 = vpop.f32.mrf.mxu0
      %v5113 = vadd.f32 0.0, %v5112
      %v5114 = vpop.f32.mrf.mxu0
      %5115 = vmatprep.mubr.bf16.mxu0 0
      %5116 = vmatmul.mubr.bf16.gmra.mxu0 %v4975
      %v5117 = vpop.f32.mrf.mxu0
      %v5118 = vadd.f32 0.0, %v5117
      %v5119 = vpop.f32.mrf.mxu0
      %v5120 = vpop.f32.mrf.mxu0
      %v5121 = vadd.f32 0.0, %v5120
      %v5122 = vpop.f32.mrf.mxu0
      %5123 = vmatprep.mubr.bf16.mxu0 0
      %5124 = vmatmul.mubr.bf16.gmra.mxu0 %v4978
      %v5125 = vpop.f32.mrf.mxu0
      %v5126 = vadd.f32 0.0, %v5125
      %v5127 = vpop.f32.mrf.mxu0
      %v5128 = vpop.f32.mrf.mxu0
      %v5129 = vadd.f32 0.0, %v5128
      %v5130 = vpop.f32.mrf.mxu0
      %5131 = vmatprep.mubr.bf16.mxu0 0
      %5132 = vmatmul.mubr.bf16.gmra.mxu0 %v4981
      %v5133 = vpop.f32.mrf.mxu0
      %v5134 = vadd.f32 0.0, %v5133
      %v5135 = vpop.f32.mrf.mxu0
      %v5136 = vpop.f32.mrf.mxu0
      %v5137 = vadd.f32 0.0, %v5136
      %v5138 = vpop.f32.mrf.mxu0
      %5139 = vmatprep.mubr.bf16.mxu0 0
      %5140 = vmatmul.mubr.bf16.gmra.mxu0 %v4984
      %v5141 = vpop.f32.mrf.mxu0
      %v5142 = vadd.f32 0.0, %v5141
      %v5143 = vpop.f32.mrf.mxu0
      %v5144 = vpop.f32.mrf.mxu0
      %v5145 = vadd.f32 0.0, %v5144
      %v5146 = vpop.f32.mrf.mxu0
      %5147 = vmatprep.mubr.bf16.mxu0 0
      %5148 = vmatmul.mubr.bf16.gmra.mxu0 %v4987
      %v5149 = vpop.f32.mrf.mxu0
      %v5150 = vadd.f32 0.0, %v5149
      %v5151 = vpop.f32.mrf.mxu0
      %v5152 = vpop.f32.mrf.mxu0
      %v5153 = vadd.f32 0.0, %v5152
      %v5154 = vpop.f32.mrf.mxu0
      %5155 = vmatprep.mubr.bf16.mxu0 0
      %5156 = vmatmul.mubr.bf16.gmra.mxu0 %v4990
      %v5157 = vpop.f32.mrf.mxu0
      %v5158 = vadd.f32 0.0, %v5157
      %v5159 = vpop.f32.mrf.mxu0
      %v5160 = vpop.f32.mrf.mxu0
      %v5161 = vadd.f32 0.0, %v5160
      %v5162 = vpop.f32.mrf.mxu0
      %5163 = vmatprep.mubr.bf16.mxu0 0
      %5164 = vmatmul.mubr.bf16.gmra.mxu0 %v4993
      %v5165 = vpop.f32.mrf.mxu0
      %v5166 = vadd.f32 0.0, %v5165
      %v5167 = vpop.f32.mrf.mxu0
      %v5168 = vpop.f32.mrf.mxu0
      %v5169 = vadd.f32 0.0, %v5168
      %v5170 = vpop.f32.mrf.mxu0
      %5171 = vdwg.mxu0
      %v5173 = vunpack.c.l.b16 %v4751
      %v5174 = vpack.c.b16 %v4836, %v5173
      %v5176 = vshrl.u32 %v5174, 16
      %v5178 = vrot.slane %v5176, 2
      %v5179 = vshll.u32 %v5174, 16
      %v5181 = vrot.slane %v5179, 3
      %v5182 = vor.u32 %v5178, %v5181
      %v5184 = vshrl.u32 %v4873, 16
      %v5186 = vrot.slane %v5184, 2
      %v5187 = vshll.u32 %v4873, 16
      %v5189 = vrot.slane %v5187, 3
      %v5190 = vor.u32 %v5186, %v5189
      %v5191 = vsel %vm2962, %v5182, %v5190
      %v5193 = vshrl.u32 %v4874, 16
      %v5195 = vrot.slane %v5193, 2
      %v5196 = vshll.u32 %v4874, 16
      %v5198 = vrot.slane %v5196, 3
      %v5199 = vor.u32 %v5195, %v5198
      %v5200 = vsel %vm2962, %v5190, %v5199
      %v5202 = vshrl.u32 %v4875, 16
      %v5204 = vrot.slane %v5202, 2
      %v5205 = vshll.u32 %v4875, 16
      %v5207 = vrot.slane %v5205, 3
      %v5208 = vor.u32 %v5204, %v5207
      %v5209 = vsel %vm2962, %v5199, %v5208
      %v5211 = vshrl.u32 %v4876, 16
      %v5213 = vrot.slane %v5211, 2
      %v5214 = vshll.u32 %v4876, 16
      %v5216 = vrot.slane %v5214, 3
      %v5217 = vor.u32 %v5213, %v5216
      %v5218 = vsel %vm2962, %v5208, %v5217
      %v5220 = vshrl.u32 %v4877, 16
      %v5222 = vrot.slane %v5220, 2
      %v5223 = vshll.u32 %v4877, 16
      %v5225 = vrot.slane %v5223, 3
      %v5226 = vor.u32 %v5222, %v5225
      %v5227 = vsel %vm2962, %v5217, %v5226
      %v5229 = vshrl.u32 %v4878, 16
      %v5231 = vrot.slane %v5229, 2
      %v5232 = vshll.u32 %v4878, 16
      %v5234 = vrot.slane %v5232, 3
      %v5235 = vor.u32 %v5231, %v5234
      %v5236 = vsel %vm2962, %v5226, %v5235
      %v5238 = vshrl.u32 %v4879, 16
      %v5240 = vrot.slane %v5238, 2
      %v5241 = vshll.u32 %v4879, 16
      %v5243 = vrot.slane %v5241, 3
      %v5244 = vor.u32 %v5240, %v5243
      %v5245 = vsel %vm2962, %v5235, %v5244
      %v5247 = vshrl.u32 %v4880, 16
      %v5249 = vrot.slane %v5247, 2
      %v5250 = vshll.u32 %v4880, 16
      %v5252 = vrot.slane %v5250, 3
      %v5253 = vor.u32 %v5249, %v5252
      %v5254 = vsel %vm2962, %v5244, %v5253
      %v5256 = vshrl.u32 %v4881, 16
      %v5258 = vrot.slane %v5256, 2
      %v5259 = vshll.u32 %v4881, 16
      %v5261 = vrot.slane %v5259, 3
      %v5262 = vor.u32 %v5258, %v5261
      %v5263 = vsel %vm2962, %v5253, %v5262
      %v5265 = vshrl.u32 %v4882, 16
      %v5267 = vrot.slane %v5265, 2
      %v5268 = vshll.u32 %v4882, 16
      %v5270 = vrot.slane %v5268, 3
      %v5271 = vor.u32 %v5267, %v5270
      %v5272 = vsel %vm2962, %v5262, %v5271
      %v5274 = vshrl.u32 %v4883, 16
      %v5276 = vrot.slane %v5274, 2
      %v5277 = vshll.u32 %v4883, 16
      %v5279 = vrot.slane %v5277, 3
      %v5280 = vor.u32 %v5276, %v5279
      %v5281 = vsel %vm2962, %v5271, %v5280
      %v5283 = vshrl.u32 %v4884, 16
      %v5285 = vrot.slane %v5283, 2
      %v5286 = vshll.u32 %v4884, 16
      %v5288 = vrot.slane %v5286, 3
      %v5289 = vor.u32 %v5285, %v5288
      %v5290 = vsel %vm2962, %v5280, %v5289
      %v5292 = vshrl.u32 %v4885, 16
      %v5294 = vrot.slane %v5292, 2
      %v5295 = vshll.u32 %v4885, 16
      %v5297 = vrot.slane %v5295, 3
      %v5298 = vor.u32 %v5294, %v5297
      %v5299 = vsel %vm2962, %v5289, %v5298
      %v5301 = vshrl.u32 %v4886, 16
      %v5303 = vrot.slane %v5301, 2
      %v5304 = vshll.u32 %v4886, 16
      %v5306 = vrot.slane %v5304, 3
      %v5307 = vor.u32 %v5303, %v5306
      %v5308 = vsel %vm2962, %v5298, %v5307
      %v5310 = vshrl.u32 %v4887, 16
      %v5312 = vrot.slane %v5310, 2
      %v5313 = vshll.u32 %v4887, 16
      %v5315 = vrot.slane %v5313, 3
      %v5316 = vor.u32 %v5312, %v5315
      %v5317 = vsel %vm2962, %v5307, %v5316
      %v5319 = vshrl.u32 %v4888, 16
      %v5321 = vrot.slane %v5319, 2
      %v5322 = vshll.u32 %v4888, 16
      %v5324 = vrot.slane %v5322, 3
      %v5325 = vor.u32 %v5321, %v5324
      %v5326 = vsel %vm2962, %v5316, %v5325
      %v5328 = vshrl.u32 %v4889, 16
      %v5330 = vrot.slane %v5328, 2
      %v5331 = vshll.u32 %v4889, 16
      %v5333 = vrot.slane %v5331, 3
      %v5334 = vor.u32 %v5330, %v5333
      %v5335 = vsel %vm2962, %v5325, %v5334
      %v5337 = vshrl.u32 %v4890, 16
      %v5339 = vrot.slane %v5337, 2
      %v5340 = vshll.u32 %v4890, 16
      %v5342 = vrot.slane %v5340, 3
      %v5343 = vor.u32 %v5339, %v5342
      %v5344 = vsel %vm2962, %v5334, %v5343
      %v5349 = vunpack.c.l.b16 %v4788
      %v5350 = vunpack.c.l.b16 %v4789
      %v5351 = vunpack.c.l.b16 %v4790
      %v5352 = vunpack.c.l.b16 %v4791
      %v5353 = vpack.c.b16 %v5350, %v5349
      %v5354 = vpack.c.b16 %v5352, %v5351
      %v5358 = vsel %vm4940, %v5191, 0
      %v5361 = vsel %vm4940, %v5200, 0
      %v5364 = vsel %vm4940, %v5209, 0
      %v5367 = vsel %vm4940, %v5218, 0
      %v5370 = vsel %vm4940, %v5227, 0
      %v5373 = vsel %vm4940, %v5236, 0
      %v5376 = vsel %vm4940, %v5245, 0
      %v5379 = vsel %vm4940, %v5254, 0
      %v5382 = vsel %vm4940, %v5263, 0
      %v5385 = vsel %vm4940, %v5272, 0
      %v5388 = vsel %vm4940, %v5281, 0
      %v5391 = vsel %vm4940, %v5290, 0
      %v5394 = vsel %vm4940, %v5299, 0
      %v5397 = vsel %vm4940, %v5308, 0
      %v5400 = vsel %vm4940, %v5317, 0
      %v5403 = vsel %vm4940, %v5326, 0
      %v5406 = vsel %vm4940, %v5335, 0
      %v5409 = vsel %vm4940, %v5344, 0
      %5411 = vmatprep.subr.bf16.mxu0 0
      %5412 = vmatpush1.bf16.msra.mxu0 0
      %5413 = vmatprep.subr.bf16.mxu0 0
      %5414 = vmatpush1.bf16.msra.mxu0 0
      %5415 = vmatprep.subr.bf16.mxu0 0
      %5416 = vmatpush1.bf16.msra.mxu0 0
      %5417 = vmatprep.subr.bf16.mxu0 0
      %5418 = vmatpush1.bf16.msra.mxu0 0
      %5419 = vmatprep.subr.bf16.mxu0 0
      %5420 = vmatpush1.bf16.msra.mxu0 0
      %5421 = vmatprep.subr.bf16.mxu0 0
      %5422 = vmatpush1.bf16.msra.mxu0 0
      %5423 = vmatprep.subr.bf16.mxu0 0
      %5424 = vmatpush1.bf16.msra.mxu0 %v5354
      %5425 = vmatprep.subr.bf16.mxu0 0
      %5426 = vmatpush1.bf16.msra.mxu0 %v5353
      %5427 = vmatprep.subr.bf16.mxu0 0
      %5428 = vmatpush2.bf16.msra.mxu0 0
      %5429 = vmatprep.subr.bf16.mxu0 0
      %5430 = vmatpush2.bf16.msra.mxu0 0
      %5431 = vmatprep.subr.bf16.mxu0 0
      %5432 = vmatpush2.bf16.msra.mxu0 0
      %5433 = vmatprep.subr.bf16.mxu0 0
      %5434 = vmatpush2.bf16.msra.mxu0 0
      %5435 = vmatprep.subr.bf16.mxu0 0
      %5436 = vmatpush2.bf16.msra.mxu0 0
      %5437 = vmatprep.subr.bf16.mxu0 0
      %5438 = vmatpush2.bf16.msra.mxu0 0
      %5439 = vmatprep.subr.bf16.mxu0 0
      %5440 = vmatpush2.bf16.msra.mxu0 0
      %5441 = vmatprep.subr.bf16.mxu0 0
      %5442 = vmatpush2.bf16.msra.mxu0 0
      %5443 = vmatprep.mubr.bf16.mxu0 0
      %5444 = vmatmul.mubr.bf16.gmra.mxu0 %v5358
      %v5445 = vpop.f32.mrf.mxu0
      %v5446 = vadd.f32 %v5030, %v5445
      %v5447 = vpop.f32.mrf.mxu0
      %v5448 = vpop.f32.mrf.mxu0
      %v5449 = vadd.f32 %v5033, %v5448
      %v5450 = vpop.f32.mrf.mxu0
      %5451 = vmatprep.mubr.bf16.mxu0 0
      %5452 = vmatmul.mubr.bf16.gmra.mxu0 %v5361
      %v5453 = vpop.f32.mrf.mxu0
      %v5454 = vadd.f32 %v5038, %v5453
      %v5455 = vpop.f32.mrf.mxu0
      %v5456 = vpop.f32.mrf.mxu0
      %v5457 = vadd.f32 %v5041, %v5456
      %v5458 = vpop.f32.mrf.mxu0
      %5459 = vmatprep.mubr.bf16.mxu0 0
      %5460 = vmatmul.mubr.bf16.gmra.mxu0 %v5364
      %v5461 = vpop.f32.mrf.mxu0
      %v5462 = vadd.f32 %v5046, %v5461
      %v5463 = vpop.f32.mrf.mxu0
      %v5464 = vpop.f32.mrf.mxu0
      %v5465 = vadd.f32 %v5049, %v5464
      %v5466 = vpop.f32.mrf.mxu0
      %5467 = vmatprep.mubr.bf16.mxu0 0
      %5468 = vmatmul.mubr.bf16.gmra.mxu0 %v5367
      %v5469 = vpop.f32.mrf.mxu0
      %v5470 = vadd.f32 %v5054, %v5469
      %v5471 = vpop.f32.mrf.mxu0
      %v5472 = vpop.f32.mrf.mxu0
      %v5473 = vadd.f32 %v5057, %v5472
      %v5474 = vpop.f32.mrf.mxu0
      %5475 = vmatprep.mubr.bf16.mxu0 0
      %5476 = vmatmul.mubr.bf16.gmra.mxu0 %v5370
      %v5477 = vpop.f32.mrf.mxu0
      %v5478 = vadd.f32 %v5062, %v5477
      %v5479 = vpop.f32.mrf.mxu0
      %v5480 = vpop.f32.mrf.mxu0
      %v5481 = vadd.f32 %v5065, %v5480
      %v5482 = vpop.f32.mrf.mxu0
      %5483 = vmatprep.mubr.bf16.mxu0 0
      %5484 = vmatmul.mubr.bf16.gmra.mxu0 %v5373
      %v5485 = vpop.f32.mrf.mxu0
      %v5486 = vadd.f32 %v5070, %v5485
      %v5487 = vpop.f32.mrf.mxu0
      %v5488 = vpop.f32.mrf.mxu0
      %v5489 = vadd.f32 %v5073, %v5488
      %v5490 = vpop.f32.mrf.mxu0
      %5491 = vmatprep.mubr.bf16.mxu0 0
      %5492 = vmatmul.mubr.bf16.gmra.mxu0 %v5376
      %v5493 = vpop.f32.mrf.mxu0
      %v5494 = vadd.f32 %v5078, %v5493
      %v5495 = vpop.f32.mrf.mxu0
      %v5496 = vpop.f32.mrf.mxu0
      %v5497 = vadd.f32 %v5081, %v5496
      %v5498 = vpop.f32.mrf.mxu0
      %5499 = vmatprep.mubr.bf16.mxu0 0
      %5500 = vmatmul.mubr.bf16.gmra.mxu0 %v5379
      %v5501 = vpop.f32.mrf.mxu0
      %v5502 = vadd.f32 %v5086, %v5501
      %v5503 = vpop.f32.mrf.mxu0
      %v5504 = vpop.f32.mrf.mxu0
      %v5505 = vadd.f32 %v5089, %v5504
      %v5506 = vpop.f32.mrf.mxu0
      %5507 = vmatprep.mubr.bf16.mxu0 0
      %5508 = vmatmul.mubr.bf16.gmra.mxu0 %v5382
      %v5509 = vpop.f32.mrf.mxu0
      %v5510 = vadd.f32 %v5094, %v5509
      %v5511 = vpop.f32.mrf.mxu0
      %v5512 = vpop.f32.mrf.mxu0
      %v5513 = vadd.f32 %v5097, %v5512
      %v5514 = vpop.f32.mrf.mxu0
      %5515 = vmatprep.mubr.bf16.mxu0 0
      %5516 = vmatmul.mubr.bf16.gmra.mxu0 %v5385
      %v5517 = vpop.f32.mrf.mxu0
      %v5518 = vadd.f32 %v5102, %v5517
      %v5519 = vpop.f32.mrf.mxu0
      %v5520 = vpop.f32.mrf.mxu0
      %v5521 = vadd.f32 %v5105, %v5520
      %v5522 = vpop.f32.mrf.mxu0
      %5523 = vmatprep.mubr.bf16.mxu0 0
      %5524 = vmatmul.mubr.bf16.gmra.mxu0 %v5388
      %v5525 = vpop.f32.mrf.mxu0
      %v5526 = vadd.f32 %v5110, %v5525
      %v5527 = vpop.f32.mrf.mxu0
      %v5528 = vpop.f32.mrf.mxu0
      %v5529 = vadd.f32 %v5113, %v5528
      %v5530 = vpop.f32.mrf.mxu0
      %5531 = vmatprep.mubr.bf16.mxu0 0
      %5532 = vmatmul.mubr.bf16.gmra.mxu0 %v5391
      %v5533 = vpop.f32.mrf.mxu0
      %v5534 = vadd.f32 %v5118, %v5533
      %v5535 = vpop.f32.mrf.mxu0
      %v5536 = vpop.f32.mrf.mxu0
      %v5537 = vadd.f32 %v5121, %v5536
      %v5538 = vpop.f32.mrf.mxu0
      %5539 = vmatprep.mubr.bf16.mxu0 0
      %5540 = vmatmul.mubr.bf16.gmra.mxu0 %v5394
      %v5541 = vpop.f32.mrf.mxu0
      %v5542 = vadd.f32 %v5126, %v5541
      %v5543 = vpop.f32.mrf.mxu0
      %v5544 = vpop.f32.mrf.mxu0
      %v5545 = vadd.f32 %v5129, %v5544
      %v5546 = vpop.f32.mrf.mxu0
      %5547 = vmatprep.mubr.bf16.mxu0 0
      %5548 = vmatmul.mubr.bf16.gmra.mxu0 %v5397
      %v5549 = vpop.f32.mrf.mxu0
      %v5550 = vadd.f32 %v5134, %v5549
      %v5551 = vpop.f32.mrf.mxu0
      %v5552 = vpop.f32.mrf.mxu0
      %v5553 = vadd.f32 %v5137, %v5552
      %v5554 = vpop.f32.mrf.mxu0
      %5555 = vmatprep.mubr.bf16.mxu0 0
      %5556 = vmatmul.mubr.bf16.gmra.mxu0 %v5400
      %v5557 = vpop.f32.mrf.mxu0
      %v5558 = vadd.f32 %v5142, %v5557
      %v5559 = vpop.f32.mrf.mxu0
      %v5560 = vpop.f32.mrf.mxu0
      %v5561 = vadd.f32 %v5145, %v5560
      %v5562 = vpop.f32.mrf.mxu0
      %5563 = vmatprep.mubr.bf16.mxu0 0
      %5564 = vmatmul.mubr.bf16.gmra.mxu0 %v5403
      %v5565 = vpop.f32.mrf.mxu0
      %v5566 = vadd.f32 %v5150, %v5565
      %v5567 = vpop.f32.mrf.mxu0
      %v5568 = vpop.f32.mrf.mxu0
      %v5569 = vadd.f32 %v5153, %v5568
      %v5570 = vpop.f32.mrf.mxu0
      %5571 = vmatprep.mubr.bf16.mxu0 0
      %5572 = vmatmul.mubr.bf16.gmra.mxu0 %v5406
      %v5573 = vpop.f32.mrf.mxu0
      %v5574 = vadd.f32 %v5158, %v5573
      %v5575 = vpop.f32.mrf.mxu0
      %v5576 = vpop.f32.mrf.mxu0
      %v5577 = vadd.f32 %v5161, %v5576
      %v5578 = vpop.f32.mrf.mxu0
      %5579 = vmatprep.mubr.bf16.mxu0 0
      %5580 = vmatmul.mubr.bf16.gmra.mxu0 %v5409
      %v5581 = vpop.f32.mrf.mxu0
      %v5582 = vadd.f32 %v5166, %v5581
      %v5583 = vpop.f32.mrf.mxu0
      %v5584 = vpop.f32.mrf.mxu0
      %v5585 = vadd.f32 %v5169, %v5584
      %v5586 = vpop.f32.mrf.mxu0
      %5587 = vdwg.mxu0
      %v5588 = vld [vmem:[#allocation2 + $0x90] sm:$0xf]
      %s5589 = scalar_lea.vmem %s3, 32
      %v5590 = vld [vmem:[%s5589] sm:$0xf]
      %v5591 = vld [vmem:[%s5589 + $0x4] sm:$0xf]
      %v5592 = vld [vmem:[%s5589 + $0x8] sm:$0xf]
      %v5593 = vld [vmem:[%s5589 + $0xc] sm:$0xf]
      %v5595 = vunpack.c.l.b16 %v5588
      %v5596 = vpack.c.b16 %v5595, %v5595
      %vm5597 = vsmask.f32 4352
      %v5599 = vshrl.u32 %v4872, 16
      %v5601 = vrot.slane %v5599, 3
      %v5602 = vshll.u32 %v4872, 16
      %v5604 = vrot.slane %v5602, 4
      %v5605 = vor.u32 %v5601, %v5604
      %v5606 = vrot.slane %v5184, 3
      %v5607 = vrot.slane %v5187, 4
      %v5608 = vor.u32 %v5606, %v5607
      %v5609 = vsel %vm5597, %v5605, %v5608
      %v5610 = vrot.slane %v5193, 3
      %v5611 = vrot.slane %v5196, 4
      %v5612 = vor.u32 %v5610, %v5611
      %v5613 = vsel %vm5597, %v5608, %v5612
      %v5614 = vrot.slane %v5202, 3
      %v5615 = vrot.slane %v5205, 4
      %v5616 = vor.u32 %v5614, %v5615
      %v5617 = vsel %vm5597, %v5612, %v5616
      %v5618 = vrot.slane %v5211, 3
      %v5619 = vrot.slane %v5214, 4
      %v5620 = vor.u32 %v5618, %v5619
      %v5621 = vsel %vm5597, %v5616, %v5620
      %v5622 = vrot.slane %v5220, 3
      %v5623 = vrot.slane %v5223, 4
      %v5624 = vor.u32 %v5622, %v5623
      %v5625 = vsel %vm5597, %v5620, %v5624
      %v5626 = vrot.slane %v5229, 3
      %v5627 = vrot.slane %v5232, 4
      %v5628 = vor.u32 %v5626, %v5627
      %v5629 = vsel %vm5597, %v5624, %v5628
      %v5630 = vrot.slane %v5238, 3
      %v5631 = vrot.slane %v5241, 4
      %v5632 = vor.u32 %v5630, %v5631
      %v5633 = vsel %vm5597, %v5628, %v5632
      %v5634 = vrot.slane %v5247, 3
      %v5635 = vrot.slane %v5250, 4
      %v5636 = vor.u32 %v5634, %v5635
      %v5637 = vsel %vm5597, %v5632, %v5636
      %v5638 = vrot.slane %v5256, 3
      %v5639 = vrot.slane %v5259, 4
      %v5640 = vor.u32 %v5638, %v5639
      %v5641 = vsel %vm5597, %v5636, %v5640
      %v5642 = vrot.slane %v5265, 3
      %v5643 = vrot.slane %v5268, 4
      %v5644 = vor.u32 %v5642, %v5643
      %v5645 = vsel %vm5597, %v5640, %v5644
      %v5646 = vrot.slane %v5274, 3
      %v5647 = vrot.slane %v5277, 4
      %v5648 = vor.u32 %v5646, %v5647
      %v5649 = vsel %vm5597, %v5644, %v5648
      %v5650 = vrot.slane %v5283, 3
      %v5651 = vrot.slane %v5286, 4
      %v5652 = vor.u32 %v5650, %v5651
      %v5653 = vsel %vm5597, %v5648, %v5652
      %v5654 = vrot.slane %v5292, 3
      %v5655 = vrot.slane %v5295, 4
      %v5656 = vor.u32 %v5654, %v5655
      %v5657 = vsel %vm5597, %v5652, %v5656
      %v5658 = vrot.slane %v5301, 3
      %v5659 = vrot.slane %v5304, 4
      %v5660 = vor.u32 %v5658, %v5659
      %v5661 = vsel %vm5597, %v5656, %v5660
      %v5662 = vrot.slane %v5310, 3
      %v5663 = vrot.slane %v5313, 4
      %v5664 = vor.u32 %v5662, %v5663
      %v5665 = vsel %vm5597, %v5660, %v5664
      %v5666 = vrot.slane %v5319, 3
      %v5667 = vrot.slane %v5322, 4
      %v5668 = vor.u32 %v5666, %v5667
      %v5669 = vsel %vm5597, %v5664, %v5668
      %v5670 = vrot.slane %v5328, 3
      %v5671 = vrot.slane %v5331, 4
      %v5672 = vor.u32 %v5670, %v5671
      %v5673 = vsel %vm5597, %v5668, %v5672
      %v5675 = vshrl.u32 %v5596, 16
      %v5677 = vrot.slane %v5675, 3
      %v5678 = vshll.u32 %v5596, 16
      %v5680 = vrot.slane %v5678, 4
      %v5681 = vor.u32 %v5677, %v5680
      %v5682 = vsel %vm5597, %v5672, %v5681
      %v5687 = vunpack.c.l.b16 %v5590
      %v5688 = vunpack.c.l.b16 %v5591
      %v5689 = vunpack.c.l.b16 %v5592
      %v5690 = vunpack.c.l.b16 %v5593
      %v5691 = vpack.c.b16 %v5688, %v5687
      %v5692 = vpack.c.b16 %v5690, %v5689
      %v5696 = vsel %vm4940, %v5609, 0
      %v5699 = vsel %vm4940, %v5613, 0
      %v5702 = vsel %vm4940, %v5617, 0
      %v5705 = vsel %vm4940, %v5621, 0
      %v5708 = vsel %vm4940, %v5625, 0
      %v5711 = vsel %vm4940, %v5629, 0
      %v5714 = vsel %vm4940, %v5633, 0
      %v5717 = vsel %vm4940, %v5637, 0
      %v5720 = vsel %vm4940, %v5641, 0
      %v5723 = vsel %vm4940, %v5645, 0
      %v5726 = vsel %vm4940, %v5649, 0
      %v5729 = vsel %vm4940, %v5653, 0
      %v5732 = vsel %vm4940, %v5657, 0
      %v5735 = vsel %vm4940, %v5661, 0
      %v5738 = vsel %vm4940, %v5665, 0
      %v5741 = vsel %vm4940, %v5669, 0
      %v5744 = vsel %vm4940, %v5673, 0
      %v5747 = vsel %vm4940, %v5682, 0
      %5749 = vmatprep.subr.bf16.mxu0 0
      %5750 = vmatpush1.bf16.msra.mxu0 0
      %5751 = vmatprep.subr.bf16.mxu0 0
      %5752 = vmatpush1.bf16.msra.mxu0 0
      %5753 = vmatprep.subr.bf16.mxu0 0
      %5754 = vmatpush1.bf16.msra.mxu0 0
      %5755 = vmatprep.subr.bf16.mxu0 0
      %5756 = vmatpush1.bf16.msra.mxu0 0
      %5757 = vmatprep.subr.bf16.mxu0 0
      %5758 = vmatpush1.bf16.msra.mxu0 0
      %5759 = vmatprep.subr.bf16.mxu0 0
      %5760 = vmatpush1.bf16.msra.mxu0 0
      %5761 = vmatprep.subr.bf16.mxu0 0
      %5762 = vmatpush1.bf16.msra.mxu0 %v5692
      %5763 = vmatprep.subr.bf16.mxu0 0
      %5764 = vmatpush1.bf16.msra.mxu0 %v5691
      %5765 = vmatprep.subr.bf16.mxu0 0
      %5766 = vmatpush2.bf16.msra.mxu0 0
      %5767 = vmatprep.subr.bf16.mxu0 0
      %5768 = vmatpush2.bf16.msra.mxu0 0
      %5769 = vmatprep.subr.bf16.mxu0 0
      %5770 = vmatpush2.bf16.msra.mxu0 0
      %5771 = vmatprep.subr.bf16.mxu0 0
      %5772 = vmatpush2.bf16.msra.mxu0 0
      %5773 = vmatprep.subr.bf16.mxu0 0
      %5774 = vmatpush2.bf16.msra.mxu0 0
      %5775 = vmatprep.subr.bf16.mxu0 0
      %5776 = vmatpush2.bf16.msra.mxu0 0
      %5777 = vmatprep.subr.bf16.mxu0 0
      %5778 = vmatpush2.bf16.msra.mxu0 0
      %5779 = vmatprep.subr.bf16.mxu0 0
      %5780 = vmatpush2.bf16.msra.mxu0 0
      %5781 = vmatprep.mubr.bf16.mxu0 0
      %5782 = vmatmul.mubr.bf16.gmra.mxu0 %v5696
      %v5783 = vpop.f32.mrf.mxu0
      %v5784 = vadd.f32 0.0, %v5783
      %v5785 = vpop.f32.mrf.mxu0
      %v5786 = vpop.f32.mrf.mxu0
      %v5787 = vadd.f32 0.0, %v5786
      %v5788 = vpop.f32.mrf.mxu0
      %5789 = vmatprep.mubr.bf16.mxu0 0
      %5790 = vmatmul.mubr.bf16.gmra.mxu0 %v5699
      %v5791 = vpop.f32.mrf.mxu0
      %v5792 = vadd.f32 0.0, %v5791
      %v5793 = vpop.f32.mrf.mxu0
      %v5794 = vpop.f32.mrf.mxu0
      %v5795 = vadd.f32 0.0, %v5794
      %v5796 = vpop.f32.mrf.mxu0
      %5797 = vmatprep.mubr.bf16.mxu0 0
      %5798 = vmatmul.mubr.bf16.gmra.mxu0 %v5702
      %v5799 = vpop.f32.mrf.mxu0
      %v5800 = vadd.f32 0.0, %v5799
      %v5801 = vpop.f32.mrf.mxu0
      %v5802 = vpop.f32.mrf.mxu0
      %v5803 = vadd.f32 0.0, %v5802
      %v5804 = vpop.f32.mrf.mxu0
      %5805 = vmatprep.mubr.bf16.mxu0 0
      %5806 = vmatmul.mubr.bf16.gmra.mxu0 %v5705
      %v5807 = vpop.f32.mrf.mxu0
      %v5808 = vadd.f32 0.0, %v5807
      %v5809 = vpop.f32.mrf.mxu0
      %v5810 = vpop.f32.mrf.mxu0
      %v5811 = vadd.f32 0.0, %v5810
      %v5812 = vpop.f32.mrf.mxu0
      %5813 = vmatprep.mubr.bf16.mxu0 0
      %5814 = vmatmul.mubr.bf16.gmra.mxu0 %v5708
      %v5815 = vpop.f32.mrf.mxu0
      %v5816 = vadd.f32 0.0, %v5815
      %v5817 = vpop.f32.mrf.mxu0
      %v5818 = vpop.f32.mrf.mxu0
      %v5819 = vadd.f32 0.0, %v5818
      %v5820 = vpop.f32.mrf.mxu0
      %5821 = vmatprep.mubr.bf16.mxu0 0
      %5822 = vmatmul.mubr.bf16.gmra.mxu0 %v5711
      %v5823 = vpop.f32.mrf.mxu0
      %v5824 = vadd.f32 0.0, %v5823
      %v5825 = vpop.f32.mrf.mxu0
      %v5826 = vpop.f32.mrf.mxu0
      %v5827 = vadd.f32 0.0, %v5826
      %v5828 = vpop.f32.mrf.mxu0
      %5829 = vmatprep.mubr.bf16.mxu0 0
      %5830 = vmatmul.mubr.bf16.gmra.mxu0 %v5714
      %v5831 = vpop.f32.mrf.mxu0
      %v5832 = vadd.f32 0.0, %v5831
      %v5833 = vpop.f32.mrf.mxu0
      %v5834 = vpop.f32.mrf.mxu0
      %v5835 = vadd.f32 0.0, %v5834
      %v5836 = vpop.f32.mrf.mxu0
      %5837 = vmatprep.mubr.bf16.mxu0 0
      %5838 = vmatmul.mubr.bf16.gmra.mxu0 %v5717
      %v5839 = vpop.f32.mrf.mxu0
      %v5840 = vadd.f32 0.0, %v5839
      %v5841 = vpop.f32.mrf.mxu0
      %v5842 = vpop.f32.mrf.mxu0
      %v5843 = vadd.f32 0.0, %v5842
      %v5844 = vpop.f32.mrf.mxu0
      %5845 = vmatprep.mubr.bf16.mxu0 0
      %5846 = vmatmul.mubr.bf16.gmra.mxu0 %v5720
      %v5847 = vpop.f32.mrf.mxu0
      %v5848 = vadd.f32 0.0, %v5847
      %v5849 = vpop.f32.mrf.mxu0
      %v5850 = vpop.f32.mrf.mxu0
      %v5851 = vadd.f32 0.0, %v5850
      %v5852 = vpop.f32.mrf.mxu0
      %5853 = vmatprep.mubr.bf16.mxu0 0
      %5854 = vmatmul.mubr.bf16.gmra.mxu0 %v5723
      %v5855 = vpop.f32.mrf.mxu0
      %v5856 = vadd.f32 0.0, %v5855
      %v5857 = vpop.f32.mrf.mxu0
      %v5858 = vpop.f32.mrf.mxu0
      %v5859 = vadd.f32 0.0, %v5858
      %v5860 = vpop.f32.mrf.mxu0
      %5861 = vmatprep.mubr.bf16.mxu0 0
      %5862 = vmatmul.mubr.bf16.gmra.mxu0 %v5726
      %v5863 = vpop.f32.mrf.mxu0
      %v5864 = vadd.f32 0.0, %v5863
      %v5865 = vpop.f32.mrf.mxu0
      %v5866 = vpop.f32.mrf.mxu0
      %v5867 = vadd.f32 0.0, %v5866
      %v5868 = vpop.f32.mrf.mxu0
      %5869 = vmatprep.mubr.bf16.mxu0 0
      %5870 = vmatmul.mubr.bf16.gmra.mxu0 %v5729
      %v5871 = vpop.f32.mrf.mxu0
      %v5872 = vadd.f32 0.0, %v5871
      %v5873 = vpop.f32.mrf.mxu0
      %v5874 = vpop.f32.mrf.mxu0
      %v5875 = vadd.f32 0.0, %v5874
      %v5876 = vpop.f32.mrf.mxu0
      %5877 = vmatprep.mubr.bf16.mxu0 0
      %5878 = vmatmul.mubr.bf16.gmra.mxu0 %v5732
      %v5879 = vpop.f32.mrf.mxu0
      %v5880 = vadd.f32 0.0, %v5879
      %v5881 = vpop.f32.mrf.mxu0
      %v5882 = vpop.f32.mrf.mxu0
      %v5883 = vadd.f32 0.0, %v5882
      %v5884 = vpop.f32.mrf.mxu0
      %5885 = vmatprep.mubr.bf16.mxu0 0
      %5886 = vmatmul.mubr.bf16.gmra.mxu0 %v5735
      %v5887 = vpop.f32.mrf.mxu0
      %v5888 = vadd.f32 0.0, %v5887
      %v5889 = vpop.f32.mrf.mxu0
      %v5890 = vpop.f32.mrf.mxu0
      %v5891 = vadd.f32 0.0, %v5890
      %v5892 = vpop.f32.mrf.mxu0
      %5893 = vmatprep.mubr.bf16.mxu0 0
      %5894 = vmatmul.mubr.bf16.gmra.mxu0 %v5738
      %v5895 = vpop.f32.mrf.mxu0
      %v5896 = vadd.f32 0.0, %v5895
      %v5897 = vpop.f32.mrf.mxu0
      %v5898 = vpop.f32.mrf.mxu0
      %v5899 = vadd.f32 0.0, %v5898
      %v5900 = vpop.f32.mrf.mxu0
      %5901 = vmatprep.mubr.bf16.mxu0 0
      %5902 = vmatmul.mubr.bf16.gmra.mxu0 %v5741
      %v5903 = vpop.f32.mrf.mxu0
      %v5904 = vadd.f32 0.0, %v5903
      %v5905 = vpop.f32.mrf.mxu0
      %v5906 = vpop.f32.mrf.mxu0
      %v5907 = vadd.f32 0.0, %v5906
      %v5908 = vpop.f32.mrf.mxu0
      %5909 = vmatprep.mubr.bf16.mxu0 0
      %5910 = vmatmul.mubr.bf16.gmra.mxu0 %v5744
      %v5911 = vpop.f32.mrf.mxu0
      %v5912 = vadd.f32 0.0, %v5911
      %v5913 = vpop.f32.mrf.mxu0
      %v5914 = vpop.f32.mrf.mxu0
      %v5915 = vadd.f32 0.0, %v5914
      %v5916 = vpop.f32.mrf.mxu0
      %5917 = vmatprep.mubr.bf16.mxu0 0
      %5918 = vmatmul.mubr.bf16.gmra.mxu0 %v5747
      %v5919 = vpop.f32.mrf.mxu0
      %v5920 = vadd.f32 0.0, %v5919
      %v5921 = vpop.f32.mrf.mxu0
      %v5922 = vpop.f32.mrf.mxu0
      %v5923 = vadd.f32 0.0, %v5922
      %v5924 = vpop.f32.mrf.mxu0
      %5925 = vdwg.mxu0
      %v5926 = vadd.f32 %v5446, %v5784
      %v5927 = vadd.f32 %v5449, %v5787
      %v5928 = vadd.f32 %v5454, %v5792
      %v5929 = vadd.f32 %v5457, %v5795
      %v5930 = vadd.f32 %v5462, %v5800
      %v5931 = vadd.f32 %v5465, %v5803
      %v5932 = vadd.f32 %v5470, %v5808
      %v5933 = vadd.f32 %v5473, %v5811
      %v5934 = vadd.f32 %v5478, %v5816
      %v5935 = vadd.f32 %v5481, %v5819
      %v5936 = vadd.f32 %v5486, %v5824
      %v5937 = vadd.f32 %v5489, %v5827
      %v5938 = vadd.f32 %v5494, %v5832
      %v5939 = vadd.f32 %v5497, %v5835
      %v5940 = vadd.f32 %v5502, %v5840
      %v5941 = vadd.f32 %v5505, %v5843
      %v5942 = vadd.f32 %v5510, %v5848
      %v5943 = vadd.f32 %v5513, %v5851
      %v5944 = vadd.f32 %v5518, %v5856
      %v5945 = vadd.f32 %v5521, %v5859
      %v5946 = vadd.f32 %v5526, %v5864
      %v5947 = vadd.f32 %v5529, %v5867
      %v5948 = vadd.f32 %v5534, %v5872
      %v5949 = vadd.f32 %v5537, %v5875
      %v5950 = vadd.f32 %v5542, %v5880
      %v5951 = vadd.f32 %v5545, %v5883
      %v5952 = vadd.f32 %v5550, %v5888
      %v5953 = vadd.f32 %v5553, %v5891
      %v5954 = vadd.f32 %v5558, %v5896
      %v5955 = vadd.f32 %v5561, %v5899
      %v5956 = vadd.f32 %v5566, %v5904
      %v5957 = vadd.f32 %v5569, %v5907
      %v5958 = vadd.f32 %v5574, %v5912
      %v5959 = vadd.f32 %v5577, %v5915
      %v5960 = vadd.f32 %v5582, %v5920
      %v5961 = vadd.f32 %v5585, %v5923
      %v5962 = vld [vmem:[#allocation2 + $0x8] sm:$0x8]
      %v5963 = vld [vmem:[#allocation2 + $0xc] sm:$0xf]
      %v5964 = vld [vmem:[#allocation2 + $0x10] sm:$0xf]
      %v5965 = vld [vmem:[#allocation2 + $0x14] sm:$0xf]
      %v5966 = vld [vmem:[#allocation2 + $0x18] sm:$0xf]
      %v5967 = vld [vmem:[#allocation2 + $0x1c] sm:$0xf]
      %v5968 = vld [vmem:[#allocation2 + $0x20] sm:$0xf]
      %v5969 = vld [vmem:[#allocation2 + $0x24] sm:$0xf]
      %v5970 = vld [vmem:[#allocation2 + $0x28] sm:$0xf]
      %v5971 = vld [vmem:[#allocation2 + $0x2c] sm:$0xf]
      %v5972 = vld [vmem:[#allocation2 + $0x30] sm:$0xf]
      %v5973 = vld [vmem:[#allocation2 + $0x34] sm:$0xf]
      %v5974 = vld [vmem:[#allocation2 + $0x38] sm:$0xf]
      %v5975 = vld [vmem:[#allocation2 + $0x3c] sm:$0xf]
      %v5976 = vld [vmem:[#allocation2 + $0x40] sm:$0xf]
      %v5977 = vld [vmem:[#allocation2 + $0x44] sm:$0xf]
      %v5978 = vld [vmem:[#allocation2 + $0x48] sm:$0xf]
      %v5979 = vld [vmem:[#allocation2 + $0x4c] sm:$0xf]
      %v5980 = vld [vmem:[#allocation2 + $0x50] sm:$0xf]
      %v5981 = vld [vmem:[#allocation2 + $0x54] sm:$0xf]
      %v5982 = vld [vmem:[#allocation2 + $0x58] sm:$0xf]
      %v5983 = vld [vmem:[#allocation2 + $0x5c] sm:$0xf]
      %v5984 = vld [vmem:[#allocation2 + $0x60] sm:$0xf]
      %v5985 = vld [vmem:[#allocation2 + $0x64] sm:$0xf]
      %v5986 = vld [vmem:[#allocation2 + $0x68] sm:$0xf]
      %v5987 = vld [vmem:[#allocation2 + $0x6c] sm:$0xf]
      %v5988 = vld [vmem:[#allocation2 + $0x70] sm:$0xf]
      %v5989 = vld [vmem:[#allocation2 + $0x74] sm:$0xf]
      %v5990 = vld [vmem:[#allocation2 + $0x78] sm:$0xf]
      %v5991 = vld [vmem:[#allocation2 + $0x7c] sm:$0xf]
      %v5992 = vld [vmem:[#allocation2 + $0x80] sm:$0xf]
      %v5993 = vld [vmem:[#allocation2 + $0x84] sm:$0xf]
      %v5994 = vld [vmem:[#allocation2 + $0x88] sm:$0xf]
      %v5995 = vld [vmem:[#allocation2 + $0x8c] sm:$0xf]
      %v5996 = vld [vmem:[#allocation2 + $0x90] sm:$0xf]
      %v5997 = vld [vmem:[#allocation2 + $0x94] sm:$0xf]
      %v5998 = vld [vmem:[#allocation2 + $0x98] sm:$0xf]
      %s5999 = scalar_lea.vmem %s3, 48
      %v6000 = vld [vmem:[%s5999] sm:$0xf]
      %v6001 = vld [vmem:[%s5999 + $0x4] sm:$0xf]
      %v6002 = vld [vmem:[%s5999 + $0x8] sm:$0xf]
      %v6003 = vld [vmem:[%s5999 + $0xc] sm:$0xf]
      %v6041 = vunpack.c.l.b16 %v5962
      %v6042 = vunpack.c.l.b16 %v5963
      %v6043 = vunpack.c.l.b16 %v5964
      %v6044 = vunpack.c.l.b16 %v5965
      %v6045 = vunpack.c.l.b16 %v5966
      %v6046 = vunpack.c.l.b16 %v5967
      %v6047 = vunpack.c.l.b16 %v5968
      %v6048 = vunpack.c.l.b16 %v5969
      %v6049 = vunpack.c.l.b16 %v5970
      %v6050 = vunpack.c.l.b16 %v5971
      %v6051 = vunpack.c.l.b16 %v5972
      %v6052 = vunpack.c.l.b16 %v5973
      %v6053 = vunpack.c.l.b16 %v5974
      %v6054 = vunpack.c.l.b16 %v5975
      %v6055 = vunpack.c.l.b16 %v5976
      %v6056 = vunpack.c.l.b16 %v5977
      %v6057 = vunpack.c.l.b16 %v5978
      %v6058 = vunpack.c.l.b16 %v5979
      %v6059 = vunpack.c.l.b16 %v5980
      %v6060 = vunpack.c.l.b16 %v5981
      %v6061 = vunpack.c.l.b16 %v5982
      %v6062 = vunpack.c.l.b16 %v5983
      %v6063 = vunpack.c.l.b16 %v5984
      %v6064 = vunpack.c.l.b16 %v5985
      %v6065 = vunpack.c.l.b16 %v5986
      %v6066 = vunpack.c.l.b16 %v5987
      %v6067 = vunpack.c.l.b16 %v5988
      %v6068 = vunpack.c.l.b16 %v5989
      %v6069 = vunpack.c.l.b16 %v5990
      %v6070 = vunpack.c.l.b16 %v5991
      %v6071 = vunpack.c.l.b16 %v5992
      %v6072 = vunpack.c.l.b16 %v5993
      %v6073 = vunpack.c.l.b16 %v5994
      %v6074 = vunpack.c.l.b16 %v5995
      %v6075 = vunpack.c.l.b16 %v5996
      %v6076 = vunpack.c.l.b16 %v5997
      %v6077 = vunpack.c.l.b16 %v5998
      %v6078 = vpack.c.b16 %v6042, %v6041
      %v6079 = vpack.c.b16 %v6044, %v6043
      %v6080 = vpack.c.b16 %v6046, %v6045
      %v6081 = vpack.c.b16 %v6048, %v6047
      %v6082 = vpack.c.b16 %v6050, %v6049
      %v6083 = vpack.c.b16 %v6052, %v6051
      %v6084 = vpack.c.b16 %v6054, %v6053
      %v6085 = vpack.c.b16 %v6056, %v6055
      %v6086 = vpack.c.b16 %v6058, %v6057
      %v6087 = vpack.c.b16 %v6060, %v6059
      %v6088 = vpack.c.b16 %v6062, %v6061
      %v6089 = vpack.c.b16 %v6064, %v6063
      %v6090 = vpack.c.b16 %v6066, %v6065
      %v6091 = vpack.c.b16 %v6068, %v6067
      %v6092 = vpack.c.b16 %v6070, %v6069
      %v6093 = vpack.c.b16 %v6072, %v6071
      %v6094 = vpack.c.b16 %v6074, %v6073
      %v6095 = vpack.c.b16 %v6076, %v6075
      %v6096 = vpack.c.b16 %v6077, %v6077
      %v6098 = vshrl.u32 %v6078, 16
      %v6100 = vrot.slane %v6098, 3
      %v6101 = vshll.u32 %v6078, 16
      %v6103 = vrot.slane %v6101, 4
      %v6104 = vor.u32 %v6100, %v6103
      %v6106 = vshrl.u32 %v6079, 16
      %v6108 = vrot.slane %v6106, 3
      %v6109 = vshll.u32 %v6079, 16
      %v6111 = vrot.slane %v6109, 4
      %v6112 = vor.u32 %v6108, %v6111
      %v6113 = vsel %vm5597, %v6104, %v6112
      %v6115 = vshrl.u32 %v6080, 16
      %v6117 = vrot.slane %v6115, 3
      %v6118 = vshll.u32 %v6080, 16
      %v6120 = vrot.slane %v6118, 4
      %v6121 = vor.u32 %v6117, %v6120
      %v6122 = vsel %vm5597, %v6112, %v6121
      %v6124 = vshrl.u32 %v6081, 16
      %v6126 = vrot.slane %v6124, 3
      %v6127 = vshll.u32 %v6081, 16
      %v6129 = vrot.slane %v6127, 4
      %v6130 = vor.u32 %v6126, %v6129
      %v6131 = vsel %vm5597, %v6121, %v6130
      %v6133 = vshrl.u32 %v6082, 16
      %v6135 = vrot.slane %v6133, 3
      %v6136 = vshll.u32 %v6082, 16
      %v6138 = vrot.slane %v6136, 4
      %v6139 = vor.u32 %v6135, %v6138
      %v6140 = vsel %vm5597, %v6130, %v6139
      %v6142 = vshrl.u32 %v6083, 16
      %v6144 = vrot.slane %v6142, 3
      %v6145 = vshll.u32 %v6083, 16
      %v6147 = vrot.slane %v6145, 4
      %v6148 = vor.u32 %v6144, %v6147
      %v6149 = vsel %vm5597, %v6139, %v6148
      %v6151 = vshrl.u32 %v6084, 16
      %v6153 = vrot.slane %v6151, 3
      %v6154 = vshll.u32 %v6084, 16
      %v6156 = vrot.slane %v6154, 4
      %v6157 = vor.u32 %v6153, %v6156
      %v6158 = vsel %vm5597, %v6148, %v6157
      %v6160 = vshrl.u32 %v6085, 16
      %v6162 = vrot.slane %v6160, 3
      %v6163 = vshll.u32 %v6085, 16
      %v6165 = vrot.slane %v6163, 4
      %v6166 = vor.u32 %v6162, %v6165
      %v6167 = vsel %vm5597, %v6157, %v6166
      %v6169 = vshrl.u32 %v6086, 16
      %v6171 = vrot.slane %v6169, 3
      %v6172 = vshll.u32 %v6086, 16
      %v6174 = vrot.slane %v6172, 4
      %v6175 = vor.u32 %v6171, %v6174
      %v6176 = vsel %vm5597, %v6166, %v6175
      %v6178 = vshrl.u32 %v6087, 16
      %v6180 = vrot.slane %v6178, 3
      %v6181 = vshll.u32 %v6087, 16
      %v6183 = vrot.slane %v6181, 4
      %v6184 = vor.u32 %v6180, %v6183
      %v6185 = vsel %vm5597, %v6175, %v6184
      %v6187 = vshrl.u32 %v6088, 16
      %v6189 = vrot.slane %v6187, 3
      %v6190 = vshll.u32 %v6088, 16
      %v6192 = vrot.slane %v6190, 4
      %v6193 = vor.u32 %v6189, %v6192
      %v6194 = vsel %vm5597, %v6184, %v6193
      %v6196 = vshrl.u32 %v6089, 16
      %v6198 = vrot.slane %v6196, 3
      %v6199 = vshll.u32 %v6089, 16
      %v6201 = vrot.slane %v6199, 4
      %v6202 = vor.u32 %v6198, %v6201
      %v6203 = vsel %vm5597, %v6193, %v6202
      %v6205 = vshrl.u32 %v6090, 16
      %v6207 = vrot.slane %v6205, 3
      %v6208 = vshll.u32 %v6090, 16
      %v6210 = vrot.slane %v6208, 4
      %v6211 = vor.u32 %v6207, %v6210
      %v6212 = vsel %vm5597, %v6202, %v6211
      %v6214 = vshrl.u32 %v6091, 16
      %v6216 = vrot.slane %v6214, 3
      %v6217 = vshll.u32 %v6091, 16
      %v6219 = vrot.slane %v6217, 4
      %v6220 = vor.u32 %v6216, %v6219
      %v6221 = vsel %vm5597, %v6211, %v6220
      %v6223 = vshrl.u32 %v6092, 16
      %v6225 = vrot.slane %v6223, 3
      %v6226 = vshll.u32 %v6092, 16
      %v6228 = vrot.slane %v6226, 4
      %v6229 = vor.u32 %v6225, %v6228
      %v6230 = vsel %vm5597, %v6220, %v6229
      %v6232 = vshrl.u32 %v6093, 16
      %v6234 = vrot.slane %v6232, 3
      %v6235 = vshll.u32 %v6093, 16
      %v6237 = vrot.slane %v6235, 4
      %v6238 = vor.u32 %v6234, %v6237
      %v6239 = vsel %vm5597, %v6229, %v6238
      %v6241 = vshrl.u32 %v6094, 16
      %v6243 = vrot.slane %v6241, 3
      %v6244 = vshll.u32 %v6094, 16
      %v6246 = vrot.slane %v6244, 4
      %v6247 = vor.u32 %v6243, %v6246
      %v6248 = vsel %vm5597, %v6238, %v6247
      %v6250 = vshrl.u32 %v6095, 16
      %v6252 = vrot.slane %v6250, 3
      %v6253 = vshll.u32 %v6095, 16
      %v6255 = vrot.slane %v6253, 4
      %v6256 = vor.u32 %v6252, %v6255
      %v6257 = vsel %vm5597, %v6247, %v6256
      %v6259 = vshrl.u32 %v6096, 16
      %v6261 = vrot.slane %v6259, 3
      %v6262 = vshll.u32 %v6096, 16
      %v6264 = vrot.slane %v6262, 4
      %v6265 = vor.u32 %v6261, %v6264
      %v6266 = vsel %vm5597, %v6256, %v6265
      %v6271 = vunpack.c.l.b16 %v6000
      %v6272 = vunpack.c.l.b16 %v6001
      %v6273 = vunpack.c.l.b16 %v6002
      %v6274 = vunpack.c.l.b16 %v6003
      %v6275 = vpack.c.b16 %v6272, %v6271
      %v6276 = vpack.c.b16 %v6274, %v6273
      %v6280 = vsel %vm4940, %v6113, 0
      %v6283 = vsel %vm4940, %v6122, 0
      %v6286 = vsel %vm4940, %v6131, 0
      %v6289 = vsel %vm4940, %v6140, 0
      %v6292 = vsel %vm4940, %v6149, 0
      %v6295 = vsel %vm4940, %v6158, 0
      %v6298 = vsel %vm4940, %v6167, 0
      %v6301 = vsel %vm4940, %v6176, 0
      %v6304 = vsel %vm4940, %v6185, 0
      %v6307 = vsel %vm4940, %v6194, 0
      %v6310 = vsel %vm4940, %v6203, 0
      %v6313 = vsel %vm4940, %v6212, 0
      %v6316 = vsel %vm4940, %v6221, 0
      %v6319 = vsel %vm4940, %v6230, 0
      %v6322 = vsel %vm4940, %v6239, 0
      %v6325 = vsel %vm4940, %v6248, 0
      %v6328 = vsel %vm4940, %v6257, 0
      %v6331 = vsel %vm4940, %v6266, 0
      %6333 = vmatprep.subr.bf16.mxu0 0
      %6334 = vmatpush1.bf16.msra.mxu0 0
      %6335 = vmatprep.subr.bf16.mxu0 0
      %6336 = vmatpush1.bf16.msra.mxu0 0
      %6337 = vmatprep.subr.bf16.mxu0 0
      %6338 = vmatpush1.bf16.msra.mxu0 0
      %6339 = vmatprep.subr.bf16.mxu0 0
      %6340 = vmatpush1.bf16.msra.mxu0 0
      %6341 = vmatprep.subr.bf16.mxu0 0
      %6342 = vmatpush1.bf16.msra.mxu0 0
      %6343 = vmatprep.subr.bf16.mxu0 0
      %6344 = vmatpush1.bf16.msra.mxu0 0
      %6345 = vmatprep.subr.bf16.mxu0 0
      %6346 = vmatpush1.bf16.msra.mxu0 %v6276
      %6347 = vmatprep.subr.bf16.mxu0 0
      %6348 = vmatpush1.bf16.msra.mxu0 %v6275
      %6349 = vmatprep.subr.bf16.mxu0 0
      %6350 = vmatpush2.bf16.msra.mxu0 0
      %6351 = vmatprep.subr.bf16.mxu0 0
      %6352 = vmatpush2.bf16.msra.mxu0 0
      %6353 = vmatprep.subr.bf16.mxu0 0
      %6354 = vmatpush2.bf16.msra.mxu0 0
      %6355 = vmatprep.subr.bf16.mxu0 0
      %6356 = vmatpush2.bf16.msra.mxu0 0
      %6357 = vmatprep.subr.bf16.mxu0 0
      %6358 = vmatpush2.bf16.msra.mxu0 0
      %6359 = vmatprep.subr.bf16.mxu0 0
      %6360 = vmatpush2.bf16.msra.mxu0 0
      %6361 = vmatprep.subr.bf16.mxu0 0
      %6362 = vmatpush2.bf16.msra.mxu0 0
      %6363 = vmatprep.subr.bf16.mxu0 0
      %6364 = vmatpush2.bf16.msra.mxu0 0
      %6365 = vmatprep.mubr.bf16.mxu0 0
      %6366 = vmatmul.mubr.bf16.gmra.mxu0 %v6280
      %v6367 = vpop.f32.mrf.mxu0
      %v6368 = vadd.f32 0.0, %v6367
      %v6369 = vpop.f32.mrf.mxu0
      %v6370 = vpop.f32.mrf.mxu0
      %v6371 = vadd.f32 0.0, %v6370
      %v6372 = vpop.f32.mrf.mxu0
      %6373 = vmatprep.mubr.bf16.mxu0 0
      %6374 = vmatmul.mubr.bf16.gmra.mxu0 %v6283
      %v6375 = vpop.f32.mrf.mxu0
      %v6376 = vadd.f32 0.0, %v6375
      %v6377 = vpop.f32.mrf.mxu0
      %v6378 = vpop.f32.mrf.mxu0
      %v6379 = vadd.f32 0.0, %v6378
      %v6380 = vpop.f32.mrf.mxu0
      %6381 = vmatprep.mubr.bf16.mxu0 0
      %6382 = vmatmul.mubr.bf16.gmra.mxu0 %v6286
      %v6383 = vpop.f32.mrf.mxu0
      %v6384 = vadd.f32 0.0, %v6383
      %v6385 = vpop.f32.mrf.mxu0
      %v6386 = vpop.f32.mrf.mxu0
      %v6387 = vadd.f32 0.0, %v6386
      %v6388 = vpop.f32.mrf.mxu0
      %6389 = vmatprep.mubr.bf16.mxu0 0
      %6390 = vmatmul.mubr.bf16.gmra.mxu0 %v6289
      %v6391 = vpop.f32.mrf.mxu0
      %v6392 = vadd.f32 0.0, %v6391
      %v6393 = vpop.f32.mrf.mxu0
      %v6394 = vpop.f32.mrf.mxu0
      %v6395 = vadd.f32 0.0, %v6394
      %v6396 = vpop.f32.mrf.mxu0
      %6397 = vmatprep.mubr.bf16.mxu0 0
      %6398 = vmatmul.mubr.bf16.gmra.mxu0 %v6292
      %v6399 = vpop.f32.mrf.mxu0
      %v6400 = vadd.f32 0.0, %v6399
      %v6401 = vpop.f32.mrf.mxu0
      %v6402 = vpop.f32.mrf.mxu0
      %v6403 = vadd.f32 0.0, %v6402
      %v6404 = vpop.f32.mrf.mxu0
      %6405 = vmatprep.mubr.bf16.mxu0 0
      %6406 = vmatmul.mubr.bf16.gmra.mxu0 %v6295
      %v6407 = vpop.f32.mrf.mxu0
      %v6408 = vadd.f32 0.0, %v6407
      %v6409 = vpop.f32.mrf.mxu0
      %v6410 = vpop.f32.mrf.mxu0
      %v6411 = vadd.f32 0.0, %v6410
      %v6412 = vpop.f32.mrf.mxu0
      %6413 = vmatprep.mubr.bf16.mxu0 0
      %6414 = vmatmul.mubr.bf16.gmra.mxu0 %v6298
      %v6415 = vpop.f32.mrf.mxu0
      %v6416 = vadd.f32 0.0, %v6415
      %v6417 = vpop.f32.mrf.mxu0
      %v6418 = vpop.f32.mrf.mxu0
      %v6419 = vadd.f32 0.0, %v6418
      %v6420 = vpop.f32.mrf.mxu0
      %6421 = vmatprep.mubr.bf16.mxu0 0
      %6422 = vmatmul.mubr.bf16.gmra.mxu0 %v6301
      %v6423 = vpop.f32.mrf.mxu0
      %v6424 = vadd.f32 0.0, %v6423
      %v6425 = vpop.f32.mrf.mxu0
      %v6426 = vpop.f32.mrf.mxu0
      %v6427 = vadd.f32 0.0, %v6426
      %v6428 = vpop.f32.mrf.mxu0
      %6429 = vmatprep.mubr.bf16.mxu0 0
      %6430 = vmatmul.mubr.bf16.gmra.mxu0 %v6304
      %v6431 = vpop.f32.mrf.mxu0
      %v6432 = vadd.f32 0.0, %v6431
      %v6433 = vpop.f32.mrf.mxu0
      %v6434 = vpop.f32.mrf.mxu0
      %v6435 = vadd.f32 0.0, %v6434
      %v6436 = vpop.f32.mrf.mxu0
      %6437 = vmatprep.mubr.bf16.mxu0 0
      %6438 = vmatmul.mubr.bf16.gmra.mxu0 %v6307
      %v6439 = vpop.f32.mrf.mxu0
      %v6440 = vadd.f32 0.0, %v6439
      %v6441 = vpop.f32.mrf.mxu0
      %v6442 = vpop.f32.mrf.mxu0
      %v6443 = vadd.f32 0.0, %v6442
      %v6444 = vpop.f32.mrf.mxu0
      %6445 = vmatprep.mubr.bf16.mxu0 0
      %6446 = vmatmul.mubr.bf16.gmra.mxu0 %v6310
      %v6447 = vpop.f32.mrf.mxu0
      %v6448 = vadd.f32 0.0, %v6447
      %v6449 = vpop.f32.mrf.mxu0
      %v6450 = vpop.f32.mrf.mxu0
      %v6451 = vadd.f32 0.0, %v6450
      %v6452 = vpop.f32.mrf.mxu0
      %6453 = vmatprep.mubr.bf16.mxu0 0
      %6454 = vmatmul.mubr.bf16.gmra.mxu0 %v6313
      %v6455 = vpop.f32.mrf.mxu0
      %v6456 = vadd.f32 0.0, %v6455
      %v6457 = vpop.f32.mrf.mxu0
      %v6458 = vpop.f32.mrf.mxu0
      %v6459 = vadd.f32 0.0, %v6458
      %v6460 = vpop.f32.mrf.mxu0
      %6461 = vmatprep.mubr.bf16.mxu0 0
      %6462 = vmatmul.mubr.bf16.gmra.mxu0 %v6316
      %v6463 = vpop.f32.mrf.mxu0
      %v6464 = vadd.f32 0.0, %v6463
      %v6465 = vpop.f32.mrf.mxu0
      %v6466 = vpop.f32.mrf.mxu0
      %v6467 = vadd.f32 0.0, %v6466
      %v6468 = vpop.f32.mrf.mxu0
      %6469 = vmatprep.mubr.bf16.mxu0 0
      %6470 = vmatmul.mubr.bf16.gmra.mxu0 %v6319
      %v6471 = vpop.f32.mrf.mxu0
      %v6472 = vadd.f32 0.0, %v6471
      %v6473 = vpop.f32.mrf.mxu0
      %v6474 = vpop.f32.mrf.mxu0
      %v6475 = vadd.f32 0.0, %v6474
      %v6476 = vpop.f32.mrf.mxu0
      %6477 = vmatprep.mubr.bf16.mxu0 0
      %6478 = vmatmul.mubr.bf16.gmra.mxu0 %v6322
      %v6479 = vpop.f32.mrf.mxu0
      %v6480 = vadd.f32 0.0, %v6479
      %v6481 = vpop.f32.mrf.mxu0
      %v6482 = vpop.f32.mrf.mxu0
      %v6483 = vadd.f32 0.0, %v6482
      %v6484 = vpop.f32.mrf.mxu0
      %6485 = vmatprep.mubr.bf16.mxu0 0
      %6486 = vmatmul.mubr.bf16.gmra.mxu0 %v6325
      %v6487 = vpop.f32.mrf.mxu0
      %v6488 = vadd.f32 0.0, %v6487
      %v6489 = vpop.f32.mrf.mxu0
      %v6490 = vpop.f32.mrf.mxu0
      %v6491 = vadd.f32 0.0, %v6490
      %v6492 = vpop.f32.mrf.mxu0
      %6493 = vmatprep.mubr.bf16.mxu0 0
      %6494 = vmatmul.mubr.bf16.gmra.mxu0 %v6328
      %v6495 = vpop.f32.mrf.mxu0
      %v6496 = vadd.f32 0.0, %v6495
      %v6497 = vpop.f32.mrf.mxu0
      %v6498 = vpop.f32.mrf.mxu0
      %v6499 = vadd.f32 0.0, %v6498
      %v6500 = vpop.f32.mrf.mxu0
      %6501 = vmatprep.mubr.bf16.mxu0 0
      %6502 = vmatmul.mubr.bf16.gmra.mxu0 %v6331
      %v6503 = vpop.f32.mrf.mxu0
      %v6504 = vadd.f32 0.0, %v6503
      %v6505 = vpop.f32.mrf.mxu0
      %v6506 = vpop.f32.mrf.mxu0
      %v6507 = vadd.f32 0.0, %v6506
      %v6508 = vpop.f32.mrf.mxu0
      %6509 = vdwg.mxu0
      %v6510 = vadd.f32 %v5926, %v6368
      %v6511 = vadd.f32 %v5927, %v6371
      %v6512 = vadd.f32 %v5928, %v6376
      %v6513 = vadd.f32 %v5929, %v6379
      %v6514 = vadd.f32 %v5930, %v6384
      %v6515 = vadd.f32 %v5931, %v6387
      %v6516 = vadd.f32 %v5932, %v6392
      %v6517 = vadd.f32 %v5933, %v6395
      %v6518 = vadd.f32 %v5934, %v6400
      %v6519 = vadd.f32 %v5935, %v6403
      %v6520 = vadd.f32 %v5936, %v6408
      %v6521 = vadd.f32 %v5937, %v6411
      %v6522 = vadd.f32 %v5938, %v6416
      %v6523 = vadd.f32 %v5939, %v6419
      %v6524 = vadd.f32 %v5940, %v6424
      %v6525 = vadd.f32 %v5941, %v6427
      %v6526 = vadd.f32 %v5942, %v6432
      %v6527 = vadd.f32 %v5943, %v6435
      %v6528 = vadd.f32 %v5944, %v6440
      %v6529 = vadd.f32 %v5945, %v6443
      %v6530 = vadd.f32 %v5946, %v6448
      %v6531 = vadd.f32 %v5947, %v6451
      %v6532 = vadd.f32 %v5948, %v6456
      %v6533 = vadd.f32 %v5949, %v6459
      %v6534 = vadd.f32 %v5950, %v6464
      %v6535 = vadd.f32 %v5951, %v6467
      %v6536 = vadd.f32 %v5952, %v6472
      %v6537 = vadd.f32 %v5953, %v6475
      %v6538 = vadd.f32 %v5954, %v6480
      %v6539 = vadd.f32 %v5955, %v6483
      %v6540 = vadd.f32 %v5956, %v6488
      %v6541 = vadd.f32 %v5957, %v6491
      %v6542 = vadd.f32 %v5958, %v6496
      %v6543 = vadd.f32 %v5959, %v6499
      %v6544 = vadd.f32 %v5960, %v6504
      %v6545 = vadd.f32 %v5961, %v6507
      %s6546 = scalar_lea.vmem %s3, 64
      %v6547 = vld [vmem:[%s6546] sm:$0xf]
      %v6548 = vld [vmem:[%s6546 + $0x4] sm:$0xf]
      %v6549 = vld [vmem:[%s6546 + $0x8] sm:$0xf]
      %v6550 = vld [vmem:[%s6546 + $0xc] sm:$0xf]
      %v6551 = vpack.c.b16 %v6043, %v6042
      %v6552 = vpack.c.b16 %v6045, %v6044
      %v6553 = vpack.c.b16 %v6047, %v6046
      %v6554 = vpack.c.b16 %v6049, %v6048
      %v6555 = vpack.c.b16 %v6051, %v6050
      %v6556 = vpack.c.b16 %v6053, %v6052
      %v6557 = vpack.c.b16 %v6055, %v6054
      %v6558 = vpack.c.b16 %v6057, %v6056
      %v6559 = vpack.c.b16 %v6059, %v6058
      %v6560 = vpack.c.b16 %v6061, %v6060
      %v6561 = vpack.c.b16 %v6063, %v6062
      %v6562 = vpack.c.b16 %v6065, %v6064
      %v6563 = vpack.c.b16 %v6067, %v6066
      %v6564 = vpack.c.b16 %v6069, %v6068
      %v6565 = vpack.c.b16 %v6071, %v6070
      %v6566 = vpack.c.b16 %v6073, %v6072
      %v6567 = vpack.c.b16 %v6075, %v6074
      %v6568 = vpack.c.b16 %v6077, %v6076
      %v6573 = vunpack.c.l.b16 %v6547
      %v6574 = vunpack.c.l.b16 %v6548
      %v6575 = vunpack.c.l.b16 %v6549
      %v6576 = vunpack.c.l.b16 %v6550
      %v6577 = vpack.c.b16 %v6574, %v6573
      %v6578 = vpack.c.b16 %v6576, %v6575
      %v6582 = vsel %vm4940, %v6551, 0
      %v6585 = vsel %vm4940, %v6552, 0
      %v6588 = vsel %vm4940, %v6553, 0
      %v6591 = vsel %vm4940, %v6554, 0
      %v6594 = vsel %vm4940, %v6555, 0
      %v6597 = vsel %vm4940, %v6556, 0
      %v6600 = vsel %vm4940, %v6557, 0
      %v6603 = vsel %vm4940, %v6558, 0
      %v6606 = vsel %vm4940, %v6559, 0
      %v6609 = vsel %vm4940, %v6560, 0
      %v6612 = vsel %vm4940, %v6561, 0
      %v6615 = vsel %vm4940, %v6562, 0
      %v6618 = vsel %vm4940, %v6563, 0
      %v6621 = vsel %vm4940, %v6564, 0
      %v6624 = vsel %vm4940, %v6565, 0
      %v6627 = vsel %vm4940, %v6566, 0
      %v6630 = vsel %vm4940, %v6567, 0
      %v6633 = vsel %vm4940, %v6568, 0
      %6635 = vmatprep.subr.bf16.mxu0 0
      %6636 = vmatpush1.bf16.msra.mxu0 0
      %6637 = vmatprep.subr.bf16.mxu0 0
      %6638 = vmatpush1.bf16.msra.mxu0 0
      %6639 = vmatprep.subr.bf16.mxu0 0
      %6640 = vmatpush1.bf16.msra.mxu0 0
      %6641 = vmatprep.subr.bf16.mxu0 0
      %6642 = vmatpush1.bf16.msra.mxu0 0
      %6643 = vmatprep.subr.bf16.mxu0 0
      %6644 = vmatpush1.bf16.msra.mxu0 0
      %6645 = vmatprep.subr.bf16.mxu0 0
      %6646 = vmatpush1.bf16.msra.mxu0 0
      %6647 = vmatprep.subr.bf16.mxu0 0
      %6648 = vmatpush1.bf16.msra.mxu0 %v6578
      %6649 = vmatprep.subr.bf16.mxu0 0
      %6650 = vmatpush1.bf16.msra.mxu0 %v6577
      %6651 = vmatprep.subr.bf16.mxu0 0
      %6652 = vmatpush2.bf16.msra.mxu0 0
      %6653 = vmatprep.subr.bf16.mxu0 0
      %6654 = vmatpush2.bf16.msra.mxu0 0
      %6655 = vmatprep.subr.bf16.mxu0 0
      %6656 = vmatpush2.bf16.msra.mxu0 0
      %6657 = vmatprep.subr.bf16.mxu0 0
      %6658 = vmatpush2.bf16.msra.mxu0 0
      %6659 = vmatprep.subr.bf16.mxu0 0
      %6660 = vmatpush2.bf16.msra.mxu0 0
      %6661 = vmatprep.subr.bf16.mxu0 0
      %6662 = vmatpush2.bf16.msra.mxu0 0
      %6663 = vmatprep.subr.bf16.mxu0 0
      %6664 = vmatpush2.bf16.msra.mxu0 0
      %6665 = vmatprep.subr.bf16.mxu0 0
      %6666 = vmatpush2.bf16.msra.mxu0 0
      %6667 = vmatprep.mubr.bf16.mxu0 0
      %6668 = vmatmul.mubr.bf16.gmra.mxu0 %v6582
      %v6669 = vpop.f32.mrf.mxu0
      %v6670 = vadd.f32 0.0, %v6669
      %v6671 = vpop.f32.mrf.mxu0
      %v6672 = vpop.f32.mrf.mxu0
      %v6673 = vadd.f32 0.0, %v6672
      %v6674 = vpop.f32.mrf.mxu0
      %6675 = vmatprep.mubr.bf16.mxu0 0
      %6676 = vmatmul.mubr.bf16.gmra.mxu0 %v6585
      %v6677 = vpop.f32.mrf.mxu0
      %v6678 = vadd.f32 0.0, %v6677
      %v6679 = vpop.f32.mrf.mxu0
      %v6680 = vpop.f32.mrf.mxu0
      %v6681 = vadd.f32 0.0, %v6680
      %v6682 = vpop.f32.mrf.mxu0
      %6683 = vmatprep.mubr.bf16.mxu0 0
      %6684 = vmatmul.mubr.bf16.gmra.mxu0 %v6588
      %v6685 = vpop.f32.mrf.mxu0
      %v6686 = vadd.f32 0.0, %v6685
      %v6687 = vpop.f32.mrf.mxu0
      %v6688 = vpop.f32.mrf.mxu0
      %v6689 = vadd.f32 0.0, %v6688
      %v6690 = vpop.f32.mrf.mxu0
      %6691 = vmatprep.mubr.bf16.mxu0 0
      %6692 = vmatmul.mubr.bf16.gmra.mxu0 %v6591
      %v6693 = vpop.f32.mrf.mxu0
      %v6694 = vadd.f32 0.0, %v6693
      %v6695 = vpop.f32.mrf.mxu0
      %v6696 = vpop.f32.mrf.mxu0
      %v6697 = vadd.f32 0.0, %v6696
      %v6698 = vpop.f32.mrf.mxu0
      %6699 = vmatprep.mubr.bf16.mxu0 0
      %6700 = vmatmul.mubr.bf16.gmra.mxu0 %v6594
      %v6701 = vpop.f32.mrf.mxu0
      %v6702 = vadd.f32 0.0, %v6701
      %v6703 = vpop.f32.mrf.mxu0
      %v6704 = vpop.f32.mrf.mxu0
      %v6705 = vadd.f32 0.0, %v6704
      %v6706 = vpop.f32.mrf.mxu0
      %6707 = vmatprep.mubr.bf16.mxu0 0
      %6708 = vmatmul.mubr.bf16.gmra.mxu0 %v6597
      %v6709 = vpop.f32.mrf.mxu0
      %v6710 = vadd.f32 0.0, %v6709
      %v6711 = vpop.f32.mrf.mxu0
      %v6712 = vpop.f32.mrf.mxu0
      %v6713 = vadd.f32 0.0, %v6712
      %v6714 = vpop.f32.mrf.mxu0
      %6715 = vmatprep.mubr.bf16.mxu0 0
      %6716 = vmatmul.mubr.bf16.gmra.mxu0 %v6600
      %v6717 = vpop.f32.mrf.mxu0
      %v6718 = vadd.f32 0.0, %v6717
      %v6719 = vpop.f32.mrf.mxu0
      %v6720 = vpop.f32.mrf.mxu0
      %v6721 = vadd.f32 0.0, %v6720
      %v6722 = vpop.f32.mrf.mxu0
      %6723 = vmatprep.mubr.bf16.mxu0 0
      %6724 = vmatmul.mubr.bf16.gmra.mxu0 %v6603
      %v6725 = vpop.f32.mrf.mxu0
      %v6726 = vadd.f32 0.0, %v6725
      %v6727 = vpop.f32.mrf.mxu0
      %v6728 = vpop.f32.mrf.mxu0
      %v6729 = vadd.f32 0.0, %v6728
      %v6730 = vpop.f32.mrf.mxu0
      %6731 = vmatprep.mubr.bf16.mxu0 0
      %6732 = vmatmul.mubr.bf16.gmra.mxu0 %v6606
      %v6733 = vpop.f32.mrf.mxu0
      %v6734 = vadd.f32 0.0, %v6733
      %v6735 = vpop.f32.mrf.mxu0
      %v6736 = vpop.f32.mrf.mxu0
      %v6737 = vadd.f32 0.0, %v6736
      %v6738 = vpop.f32.mrf.mxu0
      %6739 = vmatprep.mubr.bf16.mxu0 0
      %6740 = vmatmul.mubr.bf16.gmra.mxu0 %v6609
      %v6741 = vpop.f32.mrf.mxu0
      %v6742 = vadd.f32 0.0, %v6741
      %v6743 = vpop.f32.mrf.mxu0
      %v6744 = vpop.f32.mrf.mxu0
      %v6745 = vadd.f32 0.0, %v6744
      %v6746 = vpop.f32.mrf.mxu0
      %6747 = vmatprep.mubr.bf16.mxu0 0
      %6748 = vmatmul.mubr.bf16.gmra.mxu0 %v6612
      %v6749 = vpop.f32.mrf.mxu0
      %v6750 = vadd.f32 0.0, %v6749
      %v6751 = vpop.f32.mrf.mxu0
      %v6752 = vpop.f32.mrf.mxu0
      %v6753 = vadd.f32 0.0, %v6752
      %v6754 = vpop.f32.mrf.mxu0
      %6755 = vmatprep.mubr.bf16.mxu0 0
      %6756 = vmatmul.mubr.bf16.gmra.mxu0 %v6615
      %v6757 = vpop.f32.mrf.mxu0
      %v6758 = vadd.f32 0.0, %v6757
      %v6759 = vpop.f32.mrf.mxu0
      %v6760 = vpop.f32.mrf.mxu0
      %v6761 = vadd.f32 0.0, %v6760
      %v6762 = vpop.f32.mrf.mxu0
      %6763 = vmatprep.mubr.bf16.mxu0 0
      %6764 = vmatmul.mubr.bf16.gmra.mxu0 %v6618
      %v6765 = vpop.f32.mrf.mxu0
      %v6766 = vadd.f32 0.0, %v6765
      %v6767 = vpop.f32.mrf.mxu0
      %v6768 = vpop.f32.mrf.mxu0
      %v6769 = vadd.f32 0.0, %v6768
      %v6770 = vpop.f32.mrf.mxu0
      %6771 = vmatprep.mubr.bf16.mxu0 0
      %6772 = vmatmul.mubr.bf16.gmra.mxu0 %v6621
      %v6773 = vpop.f32.mrf.mxu0
      %v6774 = vadd.f32 0.0, %v6773
      %v6775 = vpop.f32.mrf.mxu0
      %v6776 = vpop.f32.mrf.mxu0
      %v6777 = vadd.f32 0.0, %v6776
      %v6778 = vpop.f32.mrf.mxu0
      %6779 = vmatprep.mubr.bf16.mxu0 0
      %6780 = vmatmul.mubr.bf16.gmra.mxu0 %v6624
      %v6781 = vpop.f32.mrf.mxu0
      %v6782 = vadd.f32 0.0, %v6781
      %v6783 = vpop.f32.mrf.mxu0
      %v6784 = vpop.f32.mrf.mxu0
      %v6785 = vadd.f32 0.0, %v6784
      %v6786 = vpop.f32.mrf.mxu0
      %6787 = vmatprep.mubr.bf16.mxu0 0
      %6788 = vmatmul.mubr.bf16.gmra.mxu0 %v6627
      %v6789 = vpop.f32.mrf.mxu0
      %v6790 = vadd.f32 0.0, %v6789
      %v6791 = vpop.f32.mrf.mxu0
      %v6792 = vpop.f32.mrf.mxu0
      %v6793 = vadd.f32 0.0, %v6792
      %v6794 = vpop.f32.mrf.mxu0
      %6795 = vmatprep.mubr.bf16.mxu0 0
      %6796 = vmatmul.mubr.bf16.gmra.mxu0 %v6630
      %v6797 = vpop.f32.mrf.mxu0
      %v6798 = vadd.f32 0.0, %v6797
      %v6799 = vpop.f32.mrf.mxu0
      %v6800 = vpop.f32.mrf.mxu0
      %v6801 = vadd.f32 0.0, %v6800
      %v6802 = vpop.f32.mrf.mxu0
      %6803 = vmatprep.mubr.bf16.mxu0 0
      %6804 = vmatmul.mubr.bf16.gmra.mxu0 %v6633
      %v6805 = vpop.f32.mrf.mxu0
      %v6806 = vadd.f32 0.0, %v6805
      %v6807 = vpop.f32.mrf.mxu0
      %v6808 = vpop.f32.mrf.mxu0
      %v6809 = vadd.f32 0.0, %v6808
      %v6810 = vpop.f32.mrf.mxu0
      %6811 = vdwg.mxu0
      %v6812 = vadd.f32 %v6510, %v6670
      %v6813 = vadd.f32 %v6511, %v6673
      %v6814 = vadd.f32 %v6512, %v6678
      %v6815 = vadd.f32 %v6513, %v6681
      %v6816 = vadd.f32 %v6514, %v6686
      %v6817 = vadd.f32 %v6515, %v6689
      %v6818 = vadd.f32 %v6516, %v6694
      %v6819 = vadd.f32 %v6517, %v6697
      %v6820 = vadd.f32 %v6518, %v6702
      %v6821 = vadd.f32 %v6519, %v6705
      %v6822 = vadd.f32 %v6520, %v6710
      %v6823 = vadd.f32 %v6521, %v6713
      %v6824 = vadd.f32 %v6522, %v6718
      %v6825 = vadd.f32 %v6523, %v6721
      %v6826 = vadd.f32 %v6524, %v6726
      %v6827 = vadd.f32 %v6525, %v6729
      %v6828 = vadd.f32 %v6526, %v6734
      %v6829 = vadd.f32 %v6527, %v6737
      %v6830 = vadd.f32 %v6528, %v6742
      %v6831 = vadd.f32 %v6529, %v6745
      %v6832 = vadd.f32 %v6530, %v6750
      %v6833 = vadd.f32 %v6531, %v6753
      %v6834 = vadd.f32 %v6532, %v6758
      %v6835 = vadd.f32 %v6533, %v6761
      %v6836 = vadd.f32 %v6534, %v6766
      %v6837 = vadd.f32 %v6535, %v6769
      %v6838 = vadd.f32 %v6536, %v6774
      %v6839 = vadd.f32 %v6537, %v6777
      %v6840 = vadd.f32 %v6538, %v6782
      %v6841 = vadd.f32 %v6539, %v6785
      %v6842 = vadd.f32 %v6540, %v6790
      %v6843 = vadd.f32 %v6541, %v6793
      %v6844 = vadd.f32 %v6542, %v6798
      %v6845 = vadd.f32 %v6543, %v6801
      %v6846 = vadd.f32 %v6544, %v6806
      %v6847 = vadd.f32 %v6545, %v6809
      %v6848 = vld [vmem:[#allocation2 + $0xc] sm:$0xf]
      %v6849 = vld [vmem:[#allocation2 + $0x10] sm:$0xf]
      %v6850 = vld [vmem:[#allocation2 + $0x14] sm:$0xf]
      %v6851 = vld [vmem:[#allocation2 + $0x18] sm:$0xf]
      %v6852 = vld [vmem:[#allocation2 + $0x1c] sm:$0xf]
      %v6853 = vld [vmem:[#allocation2 + $0x20] sm:$0xf]
      %v6854 = vld [vmem:[#allocation2 + $0x24] sm:$0xf]
      %v6855 = vld [vmem:[#allocation2 + $0x28] sm:$0xf]
      %v6856 = vld [vmem:[#allocation2 + $0x2c] sm:$0xf]
      %v6857 = vld [vmem:[#allocation2 + $0x30] sm:$0xf]
      %v6858 = vld [vmem:[#allocation2 + $0x34] sm:$0xf]
      %v6859 = vld [vmem:[#allocation2 + $0x38] sm:$0xf]
      %v6860 = vld [vmem:[#allocation2 + $0x3c] sm:$0xf]
      %v6861 = vld [vmem:[#allocation2 + $0x40] sm:$0xf]
      %v6862 = vld [vmem:[#allocation2 + $0x44] sm:$0xf]
      %v6863 = vld [vmem:[#allocation2 + $0x48] sm:$0xf]
      %v6864 = vld [vmem:[#allocation2 + $0x4c] sm:$0xf]
      %v6865 = vld [vmem:[#allocation2 + $0x50] sm:$0xf]
      %v6866 = vld [vmem:[#allocation2 + $0x54] sm:$0xf]
      %v6867 = vld [vmem:[#allocation2 + $0x58] sm:$0xf]
      %v6868 = vld [vmem:[#allocation2 + $0x5c] sm:$0xf]
      %v6869 = vld [vmem:[#allocation2 + $0x60] sm:$0xf]
      %v6870 = vld [vmem:[#allocation2 + $0x64] sm:$0xf]
      %v6871 = vld [vmem:[#allocation2 + $0x68] sm:$0xf]
      %v6872 = vld [vmem:[#allocation2 + $0x6c] sm:$0xf]
      %v6873 = vld [vmem:[#allocation2 + $0x70] sm:$0xf]
      %v6874 = vld [vmem:[#allocation2 + $0x74] sm:$0xf]
      %v6875 = vld [vmem:[#allocation2 + $0x78] sm:$0xf]
      %v6876 = vld [vmem:[#allocation2 + $0x7c] sm:$0xf]
      %v6877 = vld [vmem:[#allocation2 + $0x80] sm:$0xf]
      %v6878 = vld [vmem:[#allocation2 + $0x84] sm:$0xf]
      %v6879 = vld [vmem:[#allocation2 + $0x88] sm:$0xf]
      %v6880 = vld [vmem:[#allocation2 + $0x8c] sm:$0xf]
      %v6881 = vld [vmem:[#allocation2 + $0x90] sm:$0xf]
      %v6882 = vld [vmem:[#allocation2 + $0x94] sm:$0xf]
      %v6883 = vld [vmem:[#allocation2 + $0x98] sm:$0xf]
      %v6884 = vld [vmem:[#allocation2 + $0x9c] sm:$0x1]
      %s6885 = scalar_lea.vmem %s3, 80
      %v6886 = vld [vmem:[%s6885] sm:$0xf]
      %v6887 = vld [vmem:[%s6885 + $0x4] sm:$0xf]
      %v6888 = vld [vmem:[%s6885 + $0x8] sm:$0xf]
      %v6889 = vld [vmem:[%s6885 + $0xc] sm:$0xf]
      %v6927 = vunpack.c.l.b16 %v6848
      %v6928 = vunpack.c.l.b16 %v6849
      %v6929 = vunpack.c.l.b16 %v6850
      %v6930 = vunpack.c.l.b16 %v6851
      %v6931 = vunpack.c.l.b16 %v6852
      %v6932 = vunpack.c.l.b16 %v6853
      %v6933 = vunpack.c.l.b16 %v6854
      %v6934 = vunpack.c.l.b16 %v6855
      %v6935 = vunpack.c.l.b16 %v6856
      %v6936 = vunpack.c.l.b16 %v6857
      %v6937 = vunpack.c.l.b16 %v6858
      %v6938 = vunpack.c.l.b16 %v6859
      %v6939 = vunpack.c.l.b16 %v6860
      %v6940 = vunpack.c.l.b16 %v6861
      %v6941 = vunpack.c.l.b16 %v6862
      %v6942 = vunpack.c.l.b16 %v6863
      %v6943 = vunpack.c.l.b16 %v6864
      %v6944 = vunpack.c.l.b16 %v6865
      %v6945 = vunpack.c.l.b16 %v6866
      %v6946 = vunpack.c.l.b16 %v6867
      %v6947 = vunpack.c.l.b16 %v6868
      %v6948 = vunpack.c.l.b16 %v6869
      %v6949 = vunpack.c.l.b16 %v6870
      %v6950 = vunpack.c.l.b16 %v6871
      %v6951 = vunpack.c.l.b16 %v6872
      %v6952 = vunpack.c.l.b16 %v6873
      %v6953 = vunpack.c.l.b16 %v6874
      %v6954 = vunpack.c.l.b16 %v6875
      %v6955 = vunpack.c.l.b16 %v6876
      %v6956 = vunpack.c.l.b16 %v6877
      %v6957 = vunpack.c.l.b16 %v6878
      %v6958 = vunpack.c.l.b16 %v6879
      %v6959 = vunpack.c.l.b16 %v6880
      %v6960 = vunpack.c.l.b16 %v6881
      %v6961 = vunpack.c.l.b16 %v6882
      %v6962 = vunpack.c.l.b16 %v6883
      %v6963 = vunpack.c.l.b16 %v6884
      %v6964 = vpack.c.b16 %v6928, %v6927
      %v6965 = vpack.c.b16 %v6930, %v6929
      %v6966 = vpack.c.b16 %v6932, %v6931
      %v6967 = vpack.c.b16 %v6934, %v6933
      %v6968 = vpack.c.b16 %v6936, %v6935
      %v6969 = vpack.c.b16 %v6938, %v6937
      %v6970 = vpack.c.b16 %v6940, %v6939
      %v6971 = vpack.c.b16 %v6942, %v6941
      %v6972 = vpack.c.b16 %v6944, %v6943
      %v6973 = vpack.c.b16 %v6946, %v6945
      %v6974 = vpack.c.b16 %v6948, %v6947
      %v6975 = vpack.c.b16 %v6950, %v6949
      %v6976 = vpack.c.b16 %v6952, %v6951
      %v6977 = vpack.c.b16 %v6954, %v6953
      %v6978 = vpack.c.b16 %v6956, %v6955
      %v6979 = vpack.c.b16 %v6958, %v6957
      %v6980 = vpack.c.b16 %v6960, %v6959
      %v6981 = vpack.c.b16 %v6962, %v6961
      %v6982 = vpack.c.b16 %v6963, %v6963
      %v6984 = vshrl.u32 %v6964, 16
      %v6986 = vshll.u32 %v6964, 16
      %v6988 = vrot.slane %v6986, 1
      %v6989 = vor.u32 %v6984, %v6988
      %v6991 = vshll.u32 %v6965, 16
      %v6993 = vrot.slane %v6991, 1
      %v6994 = vsel %vm361, %v6989, %v6993
      %v6995 = vshrl.u32 %v6965, 16
      %v6997 = vor.u32 %v6995, %v6993
      %v6999 = vshll.u32 %v6966, 16
      %v7001 = vrot.slane %v6999, 1
      %v7002 = vsel %vm361, %v6997, %v7001
      %v7003 = vshrl.u32 %v6966, 16
      %v7005 = vor.u32 %v7003, %v7001
      %v7007 = vshll.u32 %v6967, 16
      %v7009 = vrot.slane %v7007, 1
      %v7010 = vsel %vm361, %v7005, %v7009
      %v7011 = vshrl.u32 %v6967, 16
      %v7013 = vor.u32 %v7011, %v7009
      %v7015 = vshll.u32 %v6968, 16
      %v7017 = vrot.slane %v7015, 1
      %v7018 = vsel %vm361, %v7013, %v7017
      %v7019 = vshrl.u32 %v6968, 16
      %v7021 = vor.u32 %v7019, %v7017
      %v7023 = vshll.u32 %v6969, 16
      %v7025 = vrot.slane %v7023, 1
      %v7026 = vsel %vm361, %v7021, %v7025
      %v7027 = vshrl.u32 %v6969, 16
      %v7029 = vor.u32 %v7027, %v7025
      %v7031 = vshll.u32 %v6970, 16
      %v7033 = vrot.slane %v7031, 1
      %v7034 = vsel %vm361, %v7029, %v7033
      %v7035 = vshrl.u32 %v6970, 16
      %v7037 = vor.u32 %v7035, %v7033
      %v7039 = vshll.u32 %v6971, 16
      %v7041 = vrot.slane %v7039, 1
      %v7042 = vsel %vm361, %v7037, %v7041
      %v7043 = vshrl.u32 %v6971, 16
      %v7045 = vor.u32 %v7043, %v7041
      %v7047 = vshll.u32 %v6972, 16
      %v7049 = vrot.slane %v7047, 1
      %v7050 = vsel %vm361, %v7045, %v7049
      %v7051 = vshrl.u32 %v6972, 16
      %v7053 = vor.u32 %v7051, %v7049
      %v7055 = vshll.u32 %v6973, 16
      %v7057 = vrot.slane %v7055, 1
      %v7058 = vsel %vm361, %v7053, %v7057
      %v7059 = vshrl.u32 %v6973, 16
      %v7061 = vor.u32 %v7059, %v7057
      %v7063 = vshll.u32 %v6974, 16
      %v7065 = vrot.slane %v7063, 1
      %v7066 = vsel %vm361, %v7061, %v7065
      %v7067 = vshrl.u32 %v6974, 16
      %v7069 = vor.u32 %v7067, %v7065
      %v7071 = vshll.u32 %v6975, 16
      %v7073 = vrot.slane %v7071, 1
      %v7074 = vsel %vm361, %v7069, %v7073
      %v7075 = vshrl.u32 %v6975, 16
      %v7077 = vor.u32 %v7075, %v7073
      %v7079 = vshll.u32 %v6976, 16
      %v7081 = vrot.slane %v7079, 1
      %v7082 = vsel %vm361, %v7077, %v7081
      %v7083 = vshrl.u32 %v6976, 16
      %v7085 = vor.u32 %v7083, %v7081
      %v7087 = vshll.u32 %v6977, 16
      %v7089 = vrot.slane %v7087, 1
      %v7090 = vsel %vm361, %v7085, %v7089
      %v7091 = vshrl.u32 %v6977, 16
      %v7093 = vor.u32 %v7091, %v7089
      %v7095 = vshll.u32 %v6978, 16
      %v7097 = vrot.slane %v7095, 1
      %v7098 = vsel %vm361, %v7093, %v7097
      %v7099 = vshrl.u32 %v6978, 16
      %v7101 = vor.u32 %v7099, %v7097
      %v7103 = vshll.u32 %v6979, 16
      %v7105 = vrot.slane %v7103, 1
      %v7106 = vsel %vm361, %v7101, %v7105
      %v7107 = vshrl.u32 %v6979, 16
      %v7109 = vor.u32 %v7107, %v7105
      %v7111 = vshll.u32 %v6980, 16
      %v7113 = vrot.slane %v7111, 1
      %v7114 = vsel %vm361, %v7109, %v7113
      %v7115 = vshrl.u32 %v6980, 16
      %v7117 = vor.u32 %v7115, %v7113
      %v7119 = vshll.u32 %v6981, 16
      %v7121 = vrot.slane %v7119, 1
      %v7122 = vsel %vm361, %v7117, %v7121
      %v7123 = vshrl.u32 %v6981, 16
      %v7125 = vor.u32 %v7123, %v7121
      %v7127 = vshll.u32 %v6982, 16
      %v7129 = vrot.slane %v7127, 1
      %v7130 = vsel %vm361, %v7125, %v7129
      %v7135 = vunpack.c.l.b16 %v6886
      %v7136 = vunpack.c.l.b16 %v6887
      %v7137 = vunpack.c.l.b16 %v6888
      %v7138 = vunpack.c.l.b16 %v6889
      %v7139 = vpack.c.b16 %v7136, %v7135
      %v7140 = vpack.c.b16 %v7138, %v7137
      %v7144 = vsel %vm4940, %v6994, 0
      %v7147 = vsel %vm4940, %v7002, 0
      %v7150 = vsel %vm4940, %v7010, 0
      %v7153 = vsel %vm4940, %v7018, 0
      %v7156 = vsel %vm4940, %v7026, 0
      %v7159 = vsel %vm4940, %v7034, 0
      %v7162 = vsel %vm4940, %v7042, 0
      %v7165 = vsel %vm4940, %v7050, 0
      %v7168 = vsel %vm4940, %v7058, 0
      %v7171 = vsel %vm4940, %v7066, 0
      %v7174 = vsel %vm4940, %v7074, 0
      %v7177 = vsel %vm4940, %v7082, 0
      %v7180 = vsel %vm4940, %v7090, 0
      %v7183 = vsel %vm4940, %v7098, 0
      %v7186 = vsel %vm4940, %v7106, 0
      %v7189 = vsel %vm4940, %v7114, 0
      %v7192 = vsel %vm4940, %v7122, 0
      %v7195 = vsel %vm4940, %v7130, 0
      %7197 = vmatprep.subr.bf16.mxu0 0
      %7198 = vmatpush1.bf16.msra.mxu0 0
      %7199 = vmatprep.subr.bf16.mxu0 0
      %7200 = vmatpush1.bf16.msra.mxu0 0
      %7201 = vmatprep.subr.bf16.mxu0 0
      %7202 = vmatpush1.bf16.msra.mxu0 0
      %7203 = vmatprep.subr.bf16.mxu0 0
      %7204 = vmatpush1.bf16.msra.mxu0 0
      %7205 = vmatprep.subr.bf16.mxu0 0
      %7206 = vmatpush1.bf16.msra.mxu0 0
      %7207 = vmatprep.subr.bf16.mxu0 0
      %7208 = vmatpush1.bf16.msra.mxu0 0
      %7209 = vmatprep.subr.bf16.mxu0 0
      %7210 = vmatpush1.bf16.msra.mxu0 %v7140
      %7211 = vmatprep.subr.bf16.mxu0 0
      %7212 = vmatpush1.bf16.msra.mxu0 %v7139
      %7213 = vmatprep.subr.bf16.mxu0 0
      %7214 = vmatpush2.bf16.msra.mxu0 0
      %7215 = vmatprep.subr.bf16.mxu0 0
      %7216 = vmatpush2.bf16.msra.mxu0 0
      %7217 = vmatprep.subr.bf16.mxu0 0
      %7218 = vmatpush2.bf16.msra.mxu0 0
      %7219 = vmatprep.subr.bf16.mxu0 0
      %7220 = vmatpush2.bf16.msra.mxu0 0
      %7221 = vmatprep.subr.bf16.mxu0 0
      %7222 = vmatpush2.bf16.msra.mxu0 0
      %7223 = vmatprep.subr.bf16.mxu0 0
      %7224 = vmatpush2.bf16.msra.mxu0 0
      %7225 = vmatprep.subr.bf16.mxu0 0
      %7226 = vmatpush2.bf16.msra.mxu0 0
      %7227 = vmatprep.subr.bf16.mxu0 0
      %7228 = vmatpush2.bf16.msra.mxu0 0
      %7229 = vmatprep.mubr.bf16.mxu0 0
      %7230 = vmatmul.mubr.bf16.gmra.mxu0 %v7144
      %v7231 = vpop.f32.mrf.mxu0
      %v7232 = vadd.f32 0.0, %v7231
      %v7233 = vpop.f32.mrf.mxu0
      %v7234 = vpop.f32.mrf.mxu0
      %v7235 = vadd.f32 0.0, %v7234
      %v7236 = vpop.f32.mrf.mxu0
      %7237 = vmatprep.mubr.bf16.mxu0 0
      %7238 = vmatmul.mubr.bf16.gmra.mxu0 %v7147
      %v7239 = vpop.f32.mrf.mxu0
      %v7240 = vadd.f32 0.0, %v7239
      %v7241 = vpop.f32.mrf.mxu0
      %v7242 = vpop.f32.mrf.mxu0
      %v7243 = vadd.f32 0.0, %v7242
      %v7244 = vpop.f32.mrf.mxu0
      %7245 = vmatprep.mubr.bf16.mxu0 0
      %7246 = vmatmul.mubr.bf16.gmra.mxu0 %v7150
      %v7247 = vpop.f32.mrf.mxu0
      %v7248 = vadd.f32 0.0, %v7247
      %v7249 = vpop.f32.mrf.mxu0
      %v7250 = vpop.f32.mrf.mxu0
      %v7251 = vadd.f32 0.0, %v7250
      %v7252 = vpop.f32.mrf.mxu0
      %7253 = vmatprep.mubr.bf16.mxu0 0
      %7254 = vmatmul.mubr.bf16.gmra.mxu0 %v7153
      %v7255 = vpop.f32.mrf.mxu0
      %v7256 = vadd.f32 0.0, %v7255
      %v7257 = vpop.f32.mrf.mxu0
      %v7258 = vpop.f32.mrf.mxu0
      %v7259 = vadd.f32 0.0, %v7258
      %v7260 = vpop.f32.mrf.mxu0
      %7261 = vmatprep.mubr.bf16.mxu0 0
      %7262 = vmatmul.mubr.bf16.gmra.mxu0 %v7156
      %v7263 = vpop.f32.mrf.mxu0
      %v7264 = vadd.f32 0.0, %v7263
      %v7265 = vpop.f32.mrf.mxu0
      %v7266 = vpop.f32.mrf.mxu0
      %v7267 = vadd.f32 0.0, %v7266
      %v7268 = vpop.f32.mrf.mxu0
      %7269 = vmatprep.mubr.bf16.mxu0 0
      %7270 = vmatmul.mubr.bf16.gmra.mxu0 %v7159
      %v7271 = vpop.f32.mrf.mxu0
      %v7272 = vadd.f32 0.0, %v7271
      %v7273 = vpop.f32.mrf.mxu0
      %v7274 = vpop.f32.mrf.mxu0
      %v7275 = vadd.f32 0.0, %v7274
      %v7276 = vpop.f32.mrf.mxu0
      %7277 = vmatprep.mubr.bf16.mxu0 0
      %7278 = vmatmul.mubr.bf16.gmra.mxu0 %v7162
      %v7279 = vpop.f32.mrf.mxu0
      %v7280 = vadd.f32 0.0, %v7279
      %v7281 = vpop.f32.mrf.mxu0
      %v7282 = vpop.f32.mrf.mxu0
      %v7283 = vadd.f32 0.0, %v7282
      %v7284 = vpop.f32.mrf.mxu0
      %7285 = vmatprep.mubr.bf16.mxu0 0
      %7286 = vmatmul.mubr.bf16.gmra.mxu0 %v7165
      %v7287 = vpop.f32.mrf.mxu0
      %v7288 = vadd.f32 0.0, %v7287
      %v7289 = vpop.f32.mrf.mxu0
      %v7290 = vpop.f32.mrf.mxu0
      %v7291 = vadd.f32 0.0, %v7290
      %v7292 = vpop.f32.mrf.mxu0
      %7293 = vmatprep.mubr.bf16.mxu0 0
      %7294 = vmatmul.mubr.bf16.gmra.mxu0 %v7168
      %v7295 = vpop.f32.mrf.mxu0
      %v7296 = vadd.f32 0.0, %v7295
      %v7297 = vpop.f32.mrf.mxu0
      %v7298 = vpop.f32.mrf.mxu0
      %v7299 = vadd.f32 0.0, %v7298
      %v7300 = vpop.f32.mrf.mxu0
      %7301 = vmatprep.mubr.bf16.mxu0 0
      %7302 = vmatmul.mubr.bf16.gmra.mxu0 %v7171
      %v7303 = vpop.f32.mrf.mxu0
      %v7304 = vadd.f32 0.0, %v7303
      %v7305 = vpop.f32.mrf.mxu0
      %v7306 = vpop.f32.mrf.mxu0
      %v7307 = vadd.f32 0.0, %v7306
      %v7308 = vpop.f32.mrf.mxu0
      %7309 = vmatprep.mubr.bf16.mxu0 0
      %7310 = vmatmul.mubr.bf16.gmra.mxu0 %v7174
      %v7311 = vpop.f32.mrf.mxu0
      %v7312 = vadd.f32 0.0, %v7311
      %v7313 = vpop.f32.mrf.mxu0
      %v7314 = vpop.f32.mrf.mxu0
      %v7315 = vadd.f32 0.0, %v7314
      %v7316 = vpop.f32.mrf.mxu0
      %7317 = vmatprep.mubr.bf16.mxu0 0
      %7318 = vmatmul.mubr.bf16.gmra.mxu0 %v7177
      %v7319 = vpop.f32.mrf.mxu0
      %v7320 = vadd.f32 0.0, %v7319
      %v7321 = vpop.f32.mrf.mxu0
      %v7322 = vpop.f32.mrf.mxu0
      %v7323 = vadd.f32 0.0, %v7322
      %v7324 = vpop.f32.mrf.mxu0
      %7325 = vmatprep.mubr.bf16.mxu0 0
      %7326 = vmatmul.mubr.bf16.gmra.mxu0 %v7180
      %v7327 = vpop.f32.mrf.mxu0
      %v7328 = vadd.f32 0.0, %v7327
      %v7329 = vpop.f32.mrf.mxu0
      %v7330 = vpop.f32.mrf.mxu0
      %v7331 = vadd.f32 0.0, %v7330
      %v7332 = vpop.f32.mrf.mxu0
      %7333 = vmatprep.mubr.bf16.mxu0 0
      %7334 = vmatmul.mubr.bf16.gmra.mxu0 %v7183
      %v7335 = vpop.f32.mrf.mxu0
      %v7336 = vadd.f32 0.0, %v7335
      %v7337 = vpop.f32.mrf.mxu0
      %v7338 = vpop.f32.mrf.mxu0
      %v7339 = vadd.f32 0.0, %v7338
      %v7340 = vpop.f32.mrf.mxu0
      %7341 = vmatprep.mubr.bf16.mxu0 0
      %7342 = vmatmul.mubr.bf16.gmra.mxu0 %v7186
      %v7343 = vpop.f32.mrf.mxu0
      %v7344 = vadd.f32 0.0, %v7343
      %v7345 = vpop.f32.mrf.mxu0
      %v7346 = vpop.f32.mrf.mxu0
      %v7347 = vadd.f32 0.0, %v7346
      %v7348 = vpop.f32.mrf.mxu0
      %7349 = vmatprep.mubr.bf16.mxu0 0
      %7350 = vmatmul.mubr.bf16.gmra.mxu0 %v7189
      %v7351 = vpop.f32.mrf.mxu0
      %v7352 = vadd.f32 0.0, %v7351
      %v7353 = vpop.f32.mrf.mxu0
      %v7354 = vpop.f32.mrf.mxu0
      %v7355 = vadd.f32 0.0, %v7354
      %v7356 = vpop.f32.mrf.mxu0
      %7357 = vmatprep.mubr.bf16.mxu0 0
      %7358 = vmatmul.mubr.bf16.gmra.mxu0 %v7192
      %v7359 = vpop.f32.mrf.mxu0
      %v7360 = vadd.f32 0.0, %v7359
      %v7361 = vpop.f32.mrf.mxu0
      %v7362 = vpop.f32.mrf.mxu0
      %v7363 = vadd.f32 0.0, %v7362
      %v7364 = vpop.f32.mrf.mxu0
      %7365 = vmatprep.mubr.bf16.mxu0 0
      %7366 = vmatmul.mubr.bf16.gmra.mxu0 %v7195
      %v7367 = vpop.f32.mrf.mxu0
      %v7368 = vadd.f32 0.0, %v7367
      %v7369 = vpop.f32.mrf.mxu0
      %v7370 = vpop.f32.mrf.mxu0
      %v7371 = vadd.f32 0.0, %v7370
      %v7372 = vpop.f32.mrf.mxu0
      %7373 = vdwg.mxu0
      %v7374 = vadd.f32 %v6812, %v7232
      %v7375 = vadd.f32 %v6813, %v7235
      %v7376 = vadd.f32 %v6814, %v7240
      %v7377 = vadd.f32 %v6815, %v7243
      %v7378 = vadd.f32 %v6816, %v7248
      %v7379 = vadd.f32 %v6817, %v7251
      %v7380 = vadd.f32 %v6818, %v7256
      %v7381 = vadd.f32 %v6819, %v7259
      %v7382 = vadd.f32 %v6820, %v7264
      %v7383 = vadd.f32 %v6821, %v7267
      %v7384 = vadd.f32 %v6822, %v7272
      %v7385 = vadd.f32 %v6823, %v7275
      %v7386 = vadd.f32 %v6824, %v7280
      %v7387 = vadd.f32 %v6825, %v7283
      %v7388 = vadd.f32 %v6826, %v7288
      %v7389 = vadd.f32 %v6827, %v7291
      %v7390 = vadd.f32 %v6828, %v7296
      %v7391 = vadd.f32 %v6829, %v7299
      %v7392 = vadd.f32 %v6830, %v7304
      %v7393 = vadd.f32 %v6831, %v7307
      %v7394 = vadd.f32 %v6832, %v7312
      %v7395 = vadd.f32 %v6833, %v7315
      %v7396 = vadd.f32 %v6834, %v7320
      %v7397 = vadd.f32 %v6835, %v7323
      %v7398 = vadd.f32 %v6836, %v7328
      %v7399 = vadd.f32 %v6837, %v7331
      %v7400 = vadd.f32 %v6838, %v7336
      %v7401 = vadd.f32 %v6839, %v7339
      %v7402 = vadd.f32 %v6840, %v7344
      %v7403 = vadd.f32 %v6841, %v7347
      %v7404 = vadd.f32 %v6842, %v7352
      %v7405 = vadd.f32 %v6843, %v7355
      %v7406 = vadd.f32 %v6844, %v7360
      %v7407 = vadd.f32 %v6845, %v7363
      %v7408 = vadd.f32 %v6846, %v7368
      %v7409 = vadd.f32 %v6847, %v7371
      %v7410 = vld [vmem:[#allocation2 + $0x14] sm:$0xf]
      %v7411 = vld [vmem:[#allocation2 + $0x18] sm:$0xf]
      %v7412 = vld [vmem:[#allocation2 + $0x1c] sm:$0xf]
      %v7413 = vld [vmem:[#allocation2 + $0x20] sm:$0xf]
      %v7414 = vld [vmem:[#allocation2 + $0x24] sm:$0xf]
      %v7415 = vld [vmem:[#allocation2 + $0x28] sm:$0xf]
      %v7416 = vld [vmem:[#allocation2 + $0x2c] sm:$0xf]
      %v7417 = vld [vmem:[#allocation2 + $0x30] sm:$0xf]
      %v7418 = vld [vmem:[#allocation2 + $0x34] sm:$0xf]
      %v7419 = vld [vmem:[#allocation2 + $0x38] sm:$0xf]
      %v7420 = vld [vmem:[#allocation2 + $0x3c] sm:$0xf]
      %v7421 = vld [vmem:[#allocation2 + $0x40] sm:$0xf]
      %v7422 = vld [vmem:[#allocation2 + $0x44] sm:$0xf]
      %v7423 = vld [vmem:[#allocation2 + $0x48] sm:$0xf]
      %v7424 = vld [vmem:[#allocation2 + $0x4c] sm:$0xf]
      %v7425 = vld [vmem:[#allocation2 + $0x50] sm:$0xf]
      %v7426 = vld [vmem:[#allocation2 + $0x54] sm:$0xf]
      %v7427 = vld [vmem:[#allocation2 + $0x58] sm:$0xf]
      %v7428 = vld [vmem:[#allocation2 + $0x5c] sm:$0xf]
      %v7429 = vld [vmem:[#allocation2 + $0x60] sm:$0xf]
      %v7430 = vld [vmem:[#allocation2 + $0x64] sm:$0xf]
      %v7431 = vld [vmem:[#allocation2 + $0x68] sm:$0xf]
      %v7432 = vld [vmem:[#allocation2 + $0x6c] sm:$0xf]
      %v7433 = vld [vmem:[#allocation2 + $0x70] sm:$0xf]
      %v7434 = vld [vmem:[#allocation2 + $0x74] sm:$0xf]
      %v7435 = vld [vmem:[#allocation2 + $0x78] sm:$0xf]
      %v7436 = vld [vmem:[#allocation2 + $0x7c] sm:$0xf]
      %v7437 = vld [vmem:[#allocation2 + $0x80] sm:$0xf]
      %v7438 = vld [vmem:[#allocation2 + $0x84] sm:$0xf]
      %v7439 = vld [vmem:[#allocation2 + $0x88] sm:$0xf]
      %v7440 = vld [vmem:[#allocation2 + $0x8c] sm:$0xf]
      %v7441 = vld [vmem:[#allocation2 + $0x90] sm:$0xf]
      %v7442 = vld [vmem:[#allocation2 + $0x94] sm:$0xf]
      %v7443 = vld [vmem:[#allocation2 + $0x98] sm:$0xf]
      %v7444 = vld [vmem:[#allocation2 + $0x9c] sm:$0xf]
      %v7445 = vld [vmem:[#allocation2 + $0xa0] sm:$0xf]
      %v7446 = vld [vmem:[#allocation2 + $0xa4] sm:$0x1]
      %s7447 = scalar_lea.vmem %s3, 96
      %v7448 = vld [vmem:[%s7447] sm:$0xf]
      %v7449 = vld [vmem:[%s7447 + $0x4] sm:$0xf]
      %v7450 = vld [vmem:[%s7447 + $0x8] sm:$0xf]
      %v7451 = vld [vmem:[%s7447 + $0xc] sm:$0xf]
      %v7489 = vunpack.c.l.b16 %v7410
      %v7490 = vunpack.c.l.b16 %v7411
      %v7491 = vunpack.c.l.b16 %v7412
      %v7492 = vunpack.c.l.b16 %v7413
      %v7493 = vunpack.c.l.b16 %v7414
      %v7494 = vunpack.c.l.b16 %v7415
      %v7495 = vunpack.c.l.b16 %v7416
      %v7496 = vunpack.c.l.b16 %v7417
      %v7497 = vunpack.c.l.b16 %v7418
      %v7498 = vunpack.c.l.b16 %v7419
      %v7499 = vunpack.c.l.b16 %v7420
      %v7500 = vunpack.c.l.b16 %v7421
      %v7501 = vunpack.c.l.b16 %v7422
      %v7502 = vunpack.c.l.b16 %v7423
      %v7503 = vunpack.c.l.b16 %v7424
      %v7504 = vunpack.c.l.b16 %v7425
      %v7505 = vunpack.c.l.b16 %v7426
      %v7506 = vunpack.c.l.b16 %v7427
      %v7507 = vunpack.c.l.b16 %v7428
      %v7508 = vunpack.c.l.b16 %v7429
      %v7509 = vunpack.c.l.b16 %v7430
      %v7510 = vunpack.c.l.b16 %v7431
      %v7511 = vunpack.c.l.b16 %v7432
      %v7512 = vunpack.c.l.b16 %v7433
      %v7513 = vunpack.c.l.b16 %v7434
      %v7514 = vunpack.c.l.b16 %v7435
      %v7515 = vunpack.c.l.b16 %v7436
      %v7516 = vunpack.c.l.b16 %v7437
      %v7517 = vunpack.c.l.b16 %v7438
      %v7518 = vunpack.c.l.b16 %v7439
      %v7519 = vunpack.c.l.b16 %v7440
      %v7520 = vunpack.c.l.b16 %v7441
      %v7521 = vunpack.c.l.b16 %v7442
      %v7522 = vunpack.c.l.b16 %v7443
      %v7523 = vunpack.c.l.b16 %v7444
      %v7524 = vunpack.c.l.b16 %v7445
      %v7525 = vunpack.c.l.b16 %v7446
      %v7526 = vpack.c.b16 %v7490, %v7489
      %v7527 = vpack.c.b16 %v7492, %v7491
      %v7528 = vpack.c.b16 %v7494, %v7493
      %v7529 = vpack.c.b16 %v7496, %v7495
      %v7530 = vpack.c.b16 %v7498, %v7497
      %v7531 = vpack.c.b16 %v7500, %v7499
      %v7532 = vpack.c.b16 %v7502, %v7501
      %v7533 = vpack.c.b16 %v7504, %v7503
      %v7534 = vpack.c.b16 %v7506, %v7505
      %v7535 = vpack.c.b16 %v7508, %v7507
      %v7536 = vpack.c.b16 %v7510, %v7509
      %v7537 = vpack.c.b16 %v7512, %v7511
      %v7538 = vpack.c.b16 %v7514, %v7513
      %v7539 = vpack.c.b16 %v7516, %v7515
      %v7540 = vpack.c.b16 %v7518, %v7517
      %v7541 = vpack.c.b16 %v7520, %v7519
      %v7542 = vpack.c.b16 %v7522, %v7521
      %v7543 = vpack.c.b16 %v7524, %v7523
      %v7544 = vpack.c.b16 %v7525, %v7525
      %v7546 = vshrl.u32 %v7526, 16
      %v7548 = vshll.u32 %v7526, 16
      %v7550 = vrot.slane %v7548, 1
      %v7551 = vor.u32 %v7546, %v7550
      %v7553 = vshll.u32 %v7527, 16
      %v7555 = vrot.slane %v7553, 1
      %v7556 = vsel %vm361, %v7551, %v7555
      %v7557 = vshrl.u32 %v7527, 16
      %v7559 = vor.u32 %v7557, %v7555
      %v7561 = vshll.u32 %v7528, 16
      %v7563 = vrot.slane %v7561, 1
      %v7564 = vsel %vm361, %v7559, %v7563
      %v7565 = vshrl.u32 %v7528, 16
      %v7567 = vor.u32 %v7565, %v7563
      %v7569 = vshll.u32 %v7529, 16
      %v7571 = vrot.slane %v7569, 1
      %v7572 = vsel %vm361, %v7567, %v7571
      %v7573 = vshrl.u32 %v7529, 16
      %v7575 = vor.u32 %v7573, %v7571
      %v7577 = vshll.u32 %v7530, 16
      %v7579 = vrot.slane %v7577, 1
      %v7580 = vsel %vm361, %v7575, %v7579
      %v7581 = vshrl.u32 %v7530, 16
      %v7583 = vor.u32 %v7581, %v7579
      %v7585 = vshll.u32 %v7531, 16
      %v7587 = vrot.slane %v7585, 1
      %v7588 = vsel %vm361, %v7583, %v7587
      %v7589 = vshrl.u32 %v7531, 16
      %v7591 = vor.u32 %v7589, %v7587
      %v7593 = vshll.u32 %v7532, 16
      %v7595 = vrot.slane %v7593, 1
      %v7596 = vsel %vm361, %v7591, %v7595
      %v7597 = vshrl.u32 %v7532, 16
      %v7599 = vor.u32 %v7597, %v7595
      %v7601 = vshll.u32 %v7533, 16
      %v7603 = vrot.slane %v7601, 1
      %v7604 = vsel %vm361, %v7599, %v7603
      %v7605 = vshrl.u32 %v7533, 16
      %v7607 = vor.u32 %v7605, %v7603
      %v7609 = vshll.u32 %v7534, 16
      %v7611 = vrot.slane %v7609, 1
      %v7612 = vsel %vm361, %v7607, %v7611
      %v7613 = vshrl.u32 %v7534, 16
      %v7615 = vor.u32 %v7613, %v7611
      %v7617 = vshll.u32 %v7535, 16
      %v7619 = vrot.slane %v7617, 1
      %v7620 = vsel %vm361, %v7615, %v7619
      %v7621 = vshrl.u32 %v7535, 16
      %v7623 = vor.u32 %v7621, %v7619
      %v7625 = vshll.u32 %v7536, 16
      %v7627 = vrot.slane %v7625, 1
      %v7628 = vsel %vm361, %v7623, %v7627
      %v7629 = vshrl.u32 %v7536, 16
      %v7631 = vor.u32 %v7629, %v7627
      %v7633 = vshll.u32 %v7537, 16
      %v7635 = vrot.slane %v7633, 1
      %v7636 = vsel %vm361, %v7631, %v7635
      %v7637 = vshrl.u32 %v7537, 16
      %v7639 = vor.u32 %v7637, %v7635
      %v7641 = vshll.u32 %v7538, 16
      %v7643 = vrot.slane %v7641, 1
      %v7644 = vsel %vm361, %v7639, %v7643
      %v7645 = vshrl.u32 %v7538, 16
      %v7647 = vor.u32 %v7645, %v7643
      %v7649 = vshll.u32 %v7539, 16
      %v7651 = vrot.slane %v7649, 1
      %v7652 = vsel %vm361, %v7647, %v7651
      %v7653 = vshrl.u32 %v7539, 16
      %v7655 = vor.u32 %v7653, %v7651
      %v7657 = vshll.u32 %v7540, 16
      %v7659 = vrot.slane %v7657, 1
      %v7660 = vsel %vm361, %v7655, %v7659
      %v7661 = vshrl.u32 %v7540, 16
      %v7663 = vor.u32 %v7661, %v7659
      %v7665 = vshll.u32 %v7541, 16
      %v7667 = vrot.slane %v7665, 1
      %v7668 = vsel %vm361, %v7663, %v7667
      %v7669 = vshrl.u32 %v7541, 16
      %v7671 = vor.u32 %v7669, %v7667
      %v7673 = vshll.u32 %v7542, 16
      %v7675 = vrot.slane %v7673, 1
      %v7676 = vsel %vm361, %v7671, %v7675
      %v7677 = vshrl.u32 %v7542, 16
      %v7679 = vor.u32 %v7677, %v7675
      %v7681 = vshll.u32 %v7543, 16
      %v7683 = vrot.slane %v7681, 1
      %v7684 = vsel %vm361, %v7679, %v7683
      %v7685 = vshrl.u32 %v7543, 16
      %v7687 = vor.u32 %v7685, %v7683
      %v7689 = vshll.u32 %v7544, 16
      %v7691 = vrot.slane %v7689, 1
      %v7692 = vsel %vm361, %v7687, %v7691
      %v7697 = vunpack.c.l.b16 %v7448
      %v7698 = vunpack.c.l.b16 %v7449
      %v7699 = vunpack.c.l.b16 %v7450
      %v7700 = vunpack.c.l.b16 %v7451
      %v7701 = vpack.c.b16 %v7698, %v7697
      %v7702 = vpack.c.b16 %v7700, %v7699
      %v7706 = vsel %vm4940, %v7556, 0
      %v7709 = vsel %vm4940, %v7564, 0
      %v7712 = vsel %vm4940, %v7572, 0
      %v7715 = vsel %vm4940, %v7580, 0
      %v7718 = vsel %vm4940, %v7588, 0
      %v7721 = vsel %vm4940, %v7596, 0
      %v7724 = vsel %vm4940, %v7604, 0
      %v7727 = vsel %vm4940, %v7612, 0
      %v7730 = vsel %vm4940, %v7620, 0
      %v7733 = vsel %vm4940, %v7628, 0
      %v7736 = vsel %vm4940, %v7636, 0
      %v7739 = vsel %vm4940, %v7644, 0
      %v7742 = vsel %vm4940, %v7652, 0
      %v7745 = vsel %vm4940, %v7660, 0
      %v7748 = vsel %vm4940, %v7668, 0
      %v7751 = vsel %vm4940, %v7676, 0
      %v7754 = vsel %vm4940, %v7684, 0
      %v7757 = vsel %vm4940, %v7692, 0
      %7759 = vmatprep.subr.bf16.mxu0 0
      %7760 = vmatpush1.bf16.msra.mxu0 0
      %7761 = vmatprep.subr.bf16.mxu0 0
      %7762 = vmatpush1.bf16.msra.mxu0 0
      %7763 = vmatprep.subr.bf16.mxu0 0
      %7764 = vmatpush1.bf16.msra.mxu0 0
      %7765 = vmatprep.subr.bf16.mxu0 0
      %7766 = vmatpush1.bf16.msra.mxu0 0
      %7767 = vmatprep.subr.bf16.mxu0 0
      %7768 = vmatpush1.bf16.msra.mxu0 0
      %7769 = vmatprep.subr.bf16.mxu0 0
      %7770 = vmatpush1.bf16.msra.mxu0 0
      %7771 = vmatprep.subr.bf16.mxu0 0
      %7772 = vmatpush1.bf16.msra.mxu0 %v7702
      %7773 = vmatprep.subr.bf16.mxu0 0
      %7774 = vmatpush1.bf16.msra.mxu0 %v7701
      %7775 = vmatprep.subr.bf16.mxu0 0
      %7776 = vmatpush2.bf16.msra.mxu0 0
      %7777 = vmatprep.subr.bf16.mxu0 0
      %7778 = vmatpush2.bf16.msra.mxu0 0
      %7779 = vmatprep.subr.bf16.mxu0 0
      %7780 = vmatpush2.bf16.msra.mxu0 0
      %7781 = vmatprep.subr.bf16.mxu0 0
      %7782 = vmatpush2.bf16.msra.mxu0 0
      %7783 = vmatprep.subr.bf16.mxu0 0
      %7784 = vmatpush2.bf16.msra.mxu0 0
      %7785 = vmatprep.subr.bf16.mxu0 0
      %7786 = vmatpush2.bf16.msra.mxu0 0
      %7787 = vmatprep.subr.bf16.mxu0 0
      %7788 = vmatpush2.bf16.msra.mxu0 0
      %7789 = vmatprep.subr.bf16.mxu0 0
      %7790 = vmatpush2.bf16.msra.mxu0 0
      %7791 = vmatprep.mubr.bf16.mxu0 0
      %7792 = vmatmul.mubr.bf16.gmra.mxu0 %v7706
      %v7793 = vpop.f32.mrf.mxu0
      %v7794 = vadd.f32 0.0, %v7793
      %v7795 = vpop.f32.mrf.mxu0
      %v7796 = vpop.f32.mrf.mxu0
      %v7797 = vadd.f32 0.0, %v7796
      %v7798 = vpop.f32.mrf.mxu0
      %7799 = vmatprep.mubr.bf16.mxu0 0
      %7800 = vmatmul.mubr.bf16.gmra.mxu0 %v7709
      %v7801 = vpop.f32.mrf.mxu0
      %v7802 = vadd.f32 0.0, %v7801
      %v7803 = vpop.f32.mrf.mxu0
      %v7804 = vpop.f32.mrf.mxu0
      %v7805 = vadd.f32 0.0, %v7804
      %v7806 = vpop.f32.mrf.mxu0
      %7807 = vmatprep.mubr.bf16.mxu0 0
      %7808 = vmatmul.mubr.bf16.gmra.mxu0 %v7712
      %v7809 = vpop.f32.mrf.mxu0
      %v7810 = vadd.f32 0.0, %v7809
      %v7811 = vpop.f32.mrf.mxu0
      %v7812 = vpop.f32.mrf.mxu0
      %v7813 = vadd.f32 0.0, %v7812
      %v7814 = vpop.f32.mrf.mxu0
      %7815 = vmatprep.mubr.bf16.mxu0 0
      %7816 = vmatmul.mubr.bf16.gmra.mxu0 %v7715
      %v7817 = vpop.f32.mrf.mxu0
      %v7818 = vadd.f32 0.0, %v7817
      %v7819 = vpop.f32.mrf.mxu0
      %v7820 = vpop.f32.mrf.mxu0
      %v7821 = vadd.f32 0.0, %v7820
      %v7822 = vpop.f32.mrf.mxu0
      %7823 = vmatprep.mubr.bf16.mxu0 0
      %7824 = vmatmul.mubr.bf16.gmra.mxu0 %v7718
      %v7825 = vpop.f32.mrf.mxu0
      %v7826 = vadd.f32 0.0, %v7825
      %v7827 = vpop.f32.mrf.mxu0
      %v7828 = vpop.f32.mrf.mxu0
      %v7829 = vadd.f32 0.0, %v7828
      %v7830 = vpop.f32.mrf.mxu0
      %7831 = vmatprep.mubr.bf16.mxu0 0
      %7832 = vmatmul.mubr.bf16.gmra.mxu0 %v7721
      %v7833 = vpop.f32.mrf.mxu0
      %v7834 = vadd.f32 0.0, %v7833
      %v7835 = vpop.f32.mrf.mxu0
      %v7836 = vpop.f32.mrf.mxu0
      %v7837 = vadd.f32 0.0, %v7836
      %v7838 = vpop.f32.mrf.mxu0
      %7839 = vmatprep.mubr.bf16.mxu0 0
      %7840 = vmatmul.mubr.bf16.gmra.mxu0 %v7724
      %v7841 = vpop.f32.mrf.mxu0
      %v7842 = vadd.f32 0.0, %v7841
      %v7843 = vpop.f32.mrf.mxu0
      %v7844 = vpop.f32.mrf.mxu0
      %v7845 = vadd.f32 0.0, %v7844
      %v7846 = vpop.f32.mrf.mxu0
      %7847 = vmatprep.mubr.bf16.mxu0 0
      %7848 = vmatmul.mubr.bf16.gmra.mxu0 %v7727
      %v7849 = vpop.f32.mrf.mxu0
      %v7850 = vadd.f32 0.0, %v7849
      %v7851 = vpop.f32.mrf.mxu0
      %v7852 = vpop.f32.mrf.mxu0
      %v7853 = vadd.f32 0.0, %v7852
      %v7854 = vpop.f32.mrf.mxu0
      %7855 = vmatprep.mubr.bf16.mxu0 0
      %7856 = vmatmul.mubr.bf16.gmra.mxu0 %v7730
      %v7857 = vpop.f32.mrf.mxu0
      %v7858 = vadd.f32 0.0, %v7857
      %v7859 = vpop.f32.mrf.mxu0
      %v7860 = vpop.f32.mrf.mxu0
      %v7861 = vadd.f32 0.0, %v7860
      %v7862 = vpop.f32.mrf.mxu0
      %7863 = vmatprep.mubr.bf16.mxu0 0
      %7864 = vmatmul.mubr.bf16.gmra.mxu0 %v7733
      %v7865 = vpop.f32.mrf.mxu0
      %v7866 = vadd.f32 0.0, %v7865
      %v7867 = vpop.f32.mrf.mxu0
      %v7868 = vpop.f32.mrf.mxu0
      %v7869 = vadd.f32 0.0, %v7868
      %v7870 = vpop.f32.mrf.mxu0
      %7871 = vmatprep.mubr.bf16.mxu0 0
      %7872 = vmatmul.mubr.bf16.gmra.mxu0 %v7736
      %v7873 = vpop.f32.mrf.mxu0
      %v7874 = vadd.f32 0.0, %v7873
      %v7875 = vpop.f32.mrf.mxu0
      %v7876 = vpop.f32.mrf.mxu0
      %v7877 = vadd.f32 0.0, %v7876
      %v7878 = vpop.f32.mrf.mxu0
      %7879 = vmatprep.mubr.bf16.mxu0 0
      %7880 = vmatmul.mubr.bf16.gmra.mxu0 %v7739
      %v7881 = vpop.f32.mrf.mxu0
      %v7882 = vadd.f32 0.0, %v7881
      %v7883 = vpop.f32.mrf.mxu0
      %v7884 = vpop.f32.mrf.mxu0
      %v7885 = vadd.f32 0.0, %v7884
      %v7886 = vpop.f32.mrf.mxu0
      %7887 = vmatprep.mubr.bf16.mxu0 0
      %7888 = vmatmul.mubr.bf16.gmra.mxu0 %v7742
      %v7889 = vpop.f32.mrf.mxu0
      %v7890 = vadd.f32 0.0, %v7889
      %v7891 = vpop.f32.mrf.mxu0
      %v7892 = vpop.f32.mrf.mxu0
      %v7893 = vadd.f32 0.0, %v7892
      %v7894 = vpop.f32.mrf.mxu0
      %7895 = vmatprep.mubr.bf16.mxu0 0
      %7896 = vmatmul.mubr.bf16.gmra.mxu0 %v7745
      %v7897 = vpop.f32.mrf.mxu0
      %v7898 = vadd.f32 0.0, %v7897
      %v7899 = vpop.f32.mrf.mxu0
      %v7900 = vpop.f32.mrf.mxu0
      %v7901 = vadd.f32 0.0, %v7900
      %v7902 = vpop.f32.mrf.mxu0
      %7903 = vmatprep.mubr.bf16.mxu0 0
      %7904 = vmatmul.mubr.bf16.gmra.mxu0 %v7748
      %v7905 = vpop.f32.mrf.mxu0
      %v7906 = vadd.f32 0.0, %v7905
      %v7907 = vpop.f32.mrf.mxu0
      %v7908 = vpop.f32.mrf.mxu0
      %v7909 = vadd.f32 0.0, %v7908
      %v7910 = vpop.f32.mrf.mxu0
      %7911 = vmatprep.mubr.bf16.mxu0 0
      %7912 = vmatmul.mubr.bf16.gmra.mxu0 %v7751
      %v7913 = vpop.f32.mrf.mxu0
      %v7914 = vadd.f32 0.0, %v7913
      %v7915 = vpop.f32.mrf.mxu0
      %v7916 = vpop.f32.mrf.mxu0
      %v7917 = vadd.f32 0.0, %v7916
      %v7918 = vpop.f32.mrf.mxu0
      %7919 = vmatprep.mubr.bf16.mxu0 0
      %7920 = vmatmul.mubr.bf16.gmra.mxu0 %v7754
      %v7921 = vpop.f32.mrf.mxu0
      %v7922 = vadd.f32 0.0, %v7921
      %v7923 = vpop.f32.mrf.mxu0
      %v7924 = vpop.f32.mrf.mxu0
      %v7925 = vadd.f32 0.0, %v7924
      %v7926 = vpop.f32.mrf.mxu0
      %7927 = vmatprep.mubr.bf16.mxu0 0
      %7928 = vmatmul.mubr.bf16.gmra.mxu0 %v7757
      %v7929 = vpop.f32.mrf.mxu0
      %v7930 = vadd.f32 0.0, %v7929
      %v7931 = vpop.f32.mrf.mxu0
      %v7932 = vpop.f32.mrf.mxu0
      %v7933 = vadd.f32 0.0, %v7932
      %v7934 = vpop.f32.mrf.mxu0
      %7935 = vdwg.mxu0
      %v7936 = vadd.f32 %v7374, %v7794
      %v7937 = vadd.f32 %v7375, %v7797
      %v7938 = vadd.f32 %v7376, %v7802
      %v7939 = vadd.f32 %v7377, %v7805
      %v7940 = vadd.f32 %v7378, %v7810
      %v7941 = vadd.f32 %v7379, %v7813
      %v7942 = vadd.f32 %v7380, %v7818
      %v7943 = vadd.f32 %v7381, %v7821
      %v7944 = vadd.f32 %v7382, %v7826
      %v7945 = vadd.f32 %v7383, %v7829
      %v7946 = vadd.f32 %v7384, %v7834
      %v7947 = vadd.f32 %v7385, %v7837
      %v7948 = vadd.f32 %v7386, %v7842
      %v7949 = vadd.f32 %v7387, %v7845
      %v7950 = vadd.f32 %v7388, %v7850
      %v7951 = vadd.f32 %v7389, %v7853
      %v7952 = vadd.f32 %v7390, %v7858
      %v7953 = vadd.f32 %v7391, %v7861
      %v7954 = vadd.f32 %v7392, %v7866
      %v7955 = vadd.f32 %v7393, %v7869
      %v7956 = vadd.f32 %v7394, %v7874
      %v7957 = vadd.f32 %v7395, %v7877
      %v7958 = vadd.f32 %v7396, %v7882
      %v7959 = vadd.f32 %v7397, %v7885
      %v7960 = vadd.f32 %v7398, %v7890
      %v7961 = vadd.f32 %v7399, %v7893
      %v7962 = vadd.f32 %v7400, %v7898
      %v7963 = vadd.f32 %v7401, %v7901
      %v7964 = vadd.f32 %v7402, %v7906
      %v7965 = vadd.f32 %v7403, %v7909
      %v7966 = vadd.f32 %v7404, %v7914
      %v7967 = vadd.f32 %v7405, %v7917
      %v7968 = vadd.f32 %v7406, %v7922
      %v7969 = vadd.f32 %v7407, %v7925
      %v7970 = vadd.f32 %v7408, %v7930
      %v7971 = vadd.f32 %v7409, %v7933
      %v7972 = vld [vmem:[#allocation2 + $0x14] sm:$0xe]
      %s7973 = scalar_lea.vmem %s3, 112
      %v7974 = vld [vmem:[%s7973] sm:$0xf]
      %v7975 = vld [vmem:[%s7973 + $0x4] sm:$0xf]
      %v7976 = vld [vmem:[%s7973 + $0x8] sm:$0xf]
      %v7977 = vld [vmem:[%s7973 + $0xc] sm:$0xf]
      %v7979 = vunpack.c.l.b16 %v7972
      %v7980 = vpack.c.b16 %v7490, %v7979
      %v7981 = vrot.slane %v7980, 1
      %v7982 = vrot.slane %v7527, 1
      %v7983 = vsel %vm979, %v7981, %v7982
      %v7984 = vrot.slane %v7528, 1
      %v7985 = vsel %vm979, %v7982, %v7984
      %v7986 = vrot.slane %v7529, 1
      %v7987 = vsel %vm979, %v7984, %v7986
      %v7988 = vrot.slane %v7530, 1
      %v7989 = vsel %vm979, %v7986, %v7988
      %v7990 = vrot.slane %v7531, 1
      %v7991 = vsel %vm979, %v7988, %v7990
      %v7992 = vrot.slane %v7532, 1
      %v7993 = vsel %vm979, %v7990, %v7992
      %v7994 = vrot.slane %v7533, 1
      %v7995 = vsel %vm979, %v7992, %v7994
      %v7996 = vrot.slane %v7534, 1
      %v7997 = vsel %vm979, %v7994, %v7996
      %v7998 = vrot.slane %v7535, 1
      %v7999 = vsel %vm979, %v7996, %v7998
      %v8000 = vrot.slane %v7536, 1
      %v8001 = vsel %vm979, %v7998, %v8000
      %v8002 = vrot.slane %v7537, 1
      %v8003 = vsel %vm979, %v8000, %v8002
      %v8004 = vrot.slane %v7538, 1
      %v8005 = vsel %vm979, %v8002, %v8004
      %v8006 = vrot.slane %v7539, 1
      %v8007 = vsel %vm979, %v8004, %v8006
      %v8008 = vrot.slane %v7540, 1
      %v8009 = vsel %vm979, %v8006, %v8008
      %v8010 = vrot.slane %v7541, 1
      %v8011 = vsel %vm979, %v8008, %v8010
      %v8012 = vrot.slane %v7542, 1
      %v8013 = vsel %vm979, %v8010, %v8012
      %v8014 = vrot.slane %v7543, 1
      %v8015 = vsel %vm979, %v8012, %v8014
      %v8016 = vrot.slane %v7544, 1
      %v8017 = vsel %vm979, %v8014, %v8016
      %v8022 = vunpack.c.l.b16 %v7974
      %v8023 = vunpack.c.l.b16 %v7975
      %v8024 = vunpack.c.l.b16 %v7976
      %v8025 = vunpack.c.l.b16 %v7977
      %v8026 = vpack.c.b16 %v8023, %v8022
      %v8027 = vpack.c.b16 %v8025, %v8024
      %v8031 = vsel %vm4940, %v7983, 0
      %v8034 = vsel %vm4940, %v7985, 0
      %v8037 = vsel %vm4940, %v7987, 0
      %v8040 = vsel %vm4940, %v7989, 0
      %v8043 = vsel %vm4940, %v7991, 0
      %v8046 = vsel %vm4940, %v7993, 0
      %v8049 = vsel %vm4940, %v7995, 0
      %v8052 = vsel %vm4940, %v7997, 0
      %v8055 = vsel %vm4940, %v7999, 0
      %v8058 = vsel %vm4940, %v8001, 0
      %v8061 = vsel %vm4940, %v8003, 0
      %v8064 = vsel %vm4940, %v8005, 0
      %v8067 = vsel %vm4940, %v8007, 0
      %v8070 = vsel %vm4940, %v8009, 0
      %v8073 = vsel %vm4940, %v8011, 0
      %v8076 = vsel %vm4940, %v8013, 0
      %v8079 = vsel %vm4940, %v8015, 0
      %v8082 = vsel %vm4940, %v8017, 0
      %8084 = vmatprep.subr.bf16.mxu0 0
      %8085 = vmatpush1.bf16.msra.mxu0 0
      %8086 = vmatprep.subr.bf16.mxu0 0
      %8087 = vmatpush1.bf16.msra.mxu0 0
      %8088 = vmatprep.subr.bf16.mxu0 0
      %8089 = vmatpush1.bf16.msra.mxu0 0
      %8090 = vmatprep.subr.bf16.mxu0 0
      %8091 = vmatpush1.bf16.msra.mxu0 0
      %8092 = vmatprep.subr.bf16.mxu0 0
      %8093 = vmatpush1.bf16.msra.mxu0 0
      %8094 = vmatprep.subr.bf16.mxu0 0
      %8095 = vmatpush1.bf16.msra.mxu0 0
      %8096 = vmatprep.subr.bf16.mxu0 0
      %8097 = vmatpush1.bf16.msra.mxu0 %v8027
      %8098 = vmatprep.subr.bf16.mxu0 0
      %8099 = vmatpush1.bf16.msra.mxu0 %v8026
      %8100 = vmatprep.subr.bf16.mxu0 0
      %8101 = vmatpush2.bf16.msra.mxu0 0
      %8102 = vmatprep.subr.bf16.mxu0 0
      %8103 = vmatpush2.bf16.msra.mxu0 0
      %8104 = vmatprep.subr.bf16.mxu0 0
      %8105 = vmatpush2.bf16.msra.mxu0 0
      %8106 = vmatprep.subr.bf16.mxu0 0
      %8107 = vmatpush2.bf16.msra.mxu0 0
      %8108 = vmatprep.subr.bf16.mxu0 0
      %8109 = vmatpush2.bf16.msra.mxu0 0
      %8110 = vmatprep.subr.bf16.mxu0 0
      %8111 = vmatpush2.bf16.msra.mxu0 0
      %8112 = vmatprep.subr.bf16.mxu0 0
      %8113 = vmatpush2.bf16.msra.mxu0 0
      %8114 = vmatprep.subr.bf16.mxu0 0
      %8115 = vmatpush2.bf16.msra.mxu0 0
      %8116 = vmatprep.mubr.bf16.mxu0 0
      %8117 = vmatmul.mubr.bf16.gmra.mxu0 %v8031
      %v8118 = vpop.f32.mrf.mxu0
      %v8119 = vadd.f32 0.0, %v8118
      %v8120 = vpop.f32.mrf.mxu0
      %v8121 = vpop.f32.mrf.mxu0
      %v8122 = vadd.f32 0.0, %v8121
      %v8123 = vpop.f32.mrf.mxu0
      %8124 = vmatprep.mubr.bf16.mxu0 0
      %8125 = vmatmul.mubr.bf16.gmra.mxu0 %v8034
      %v8126 = vpop.f32.mrf.mxu0
      %v8127 = vadd.f32 0.0, %v8126
      %v8128 = vpop.f32.mrf.mxu0
      %v8129 = vpop.f32.mrf.mxu0
      %v8130 = vadd.f32 0.0, %v8129
      %v8131 = vpop.f32.mrf.mxu0
      %8132 = vmatprep.mubr.bf16.mxu0 0
      %8133 = vmatmul.mubr.bf16.gmra.mxu0 %v8037
      %v8134 = vpop.f32.mrf.mxu0
      %v8135 = vadd.f32 0.0, %v8134
      %v8136 = vpop.f32.mrf.mxu0
      %v8137 = vpop.f32.mrf.mxu0
      %v8138 = vadd.f32 0.0, %v8137
      %v8139 = vpop.f32.mrf.mxu0
      %8140 = vmatprep.mubr.bf16.mxu0 0
      %8141 = vmatmul.mubr.bf16.gmra.mxu0 %v8040
      %v8142 = vpop.f32.mrf.mxu0
      %v8143 = vadd.f32 0.0, %v8142
      %v8144 = vpop.f32.mrf.mxu0
      %v8145 = vpop.f32.mrf.mxu0
      %v8146 = vadd.f32 0.0, %v8145
      %v8147 = vpop.f32.mrf.mxu0
      %8148 = vmatprep.mubr.bf16.mxu0 0
      %8149 = vmatmul.mubr.bf16.gmra.mxu0 %v8043
      %v8150 = vpop.f32.mrf.mxu0
      %v8151 = vadd.f32 0.0, %v8150
      %v8152 = vpop.f32.mrf.mxu0
      %v8153 = vpop.f32.mrf.mxu0
      %v8154 = vadd.f32 0.0, %v8153
      %v8155 = vpop.f32.mrf.mxu0
      %8156 = vmatprep.mubr.bf16.mxu0 0
      %8157 = vmatmul.mubr.bf16.gmra.mxu0 %v8046
      %v8158 = vpop.f32.mrf.mxu0
      %v8159 = vadd.f32 0.0, %v8158
      %v8160 = vpop.f32.mrf.mxu0
      %v8161 = vpop.f32.mrf.mxu0
      %v8162 = vadd.f32 0.0, %v8161
      %v8163 = vpop.f32.mrf.mxu0
      %8164 = vmatprep.mubr.bf16.mxu0 0
      %8165 = vmatmul.mubr.bf16.gmra.mxu0 %v8049
      %v8166 = vpop.f32.mrf.mxu0
      %v8167 = vadd.f32 0.0, %v8166
      %v8168 = vpop.f32.mrf.mxu0
      %v8169 = vpop.f32.mrf.mxu0
      %v8170 = vadd.f32 0.0, %v8169
      %v8171 = vpop.f32.mrf.mxu0
      %8172 = vmatprep.mubr.bf16.mxu0 0
      %8173 = vmatmul.mubr.bf16.gmra.mxu0 %v8052
      %v8174 = vpop.f32.mrf.mxu0
      %v8175 = vadd.f32 0.0, %v8174
      %v8176 = vpop.f32.mrf.mxu0
      %v8177 = vpop.f32.mrf.mxu0
      %v8178 = vadd.f32 0.0, %v8177
      %v8179 = vpop.f32.mrf.mxu0
      %8180 = vmatprep.mubr.bf16.mxu0 0
      %8181 = vmatmul.mubr.bf16.gmra.mxu0 %v8055
      %v8182 = vpop.f32.mrf.mxu0
      %v8183 = vadd.f32 0.0, %v8182
      %v8184 = vpop.f32.mrf.mxu0
      %v8185 = vpop.f32.mrf.mxu0
      %v8186 = vadd.f32 0.0, %v8185
      %v8187 = vpop.f32.mrf.mxu0
      %8188 = vmatprep.mubr.bf16.mxu0 0
      %8189 = vmatmul.mubr.bf16.gmra.mxu0 %v8058
      %v8190 = vpop.f32.mrf.mxu0
      %v8191 = vadd.f32 0.0, %v8190
      %v8192 = vpop.f32.mrf.mxu0
      %v8193 = vpop.f32.mrf.mxu0
      %v8194 = vadd.f32 0.0, %v8193
      %v8195 = vpop.f32.mrf.mxu0
      %8196 = vmatprep.mubr.bf16.mxu0 0
      %8197 = vmatmul.mubr.bf16.gmra.mxu0 %v8061
      %v8198 = vpop.f32.mrf.mxu0
      %v8199 = vadd.f32 0.0, %v8198
      %v8200 = vpop.f32.mrf.mxu0
      %v8201 = vpop.f32.mrf.mxu0
      %v8202 = vadd.f32 0.0, %v8201
      %v8203 = vpop.f32.mrf.mxu0
      %8204 = vmatprep.mubr.bf16.mxu0 0
      %8205 = vmatmul.mubr.bf16.gmra.mxu0 %v8064
      %v8206 = vpop.f32.mrf.mxu0
      %v8207 = vadd.f32 0.0, %v8206
      %v8208 = vpop.f32.mrf.mxu0
      %v8209 = vpop.f32.mrf.mxu0
      %v8210 = vadd.f32 0.0, %v8209
      %v8211 = vpop.f32.mrf.mxu0
      %8212 = vmatprep.mubr.bf16.mxu0 0
      %8213 = vmatmul.mubr.bf16.gmra.mxu0 %v8067
      %v8214 = vpop.f32.mrf.mxu0
      %v8215 = vadd.f32 0.0, %v8214
      %v8216 = vpop.f32.mrf.mxu0
      %v8217 = vpop.f32.mrf.mxu0
      %v8218 = vadd.f32 0.0, %v8217
      %v8219 = vpop.f32.mrf.mxu0
      %8220 = vmatprep.mubr.bf16.mxu0 0
      %8221 = vmatmul.mubr.bf16.gmra.mxu0 %v8070
      %v8222 = vpop.f32.mrf.mxu0
      %v8223 = vadd.f32 0.0, %v8222
      %v8224 = vpop.f32.mrf.mxu0
      %v8225 = vpop.f32.mrf.mxu0
      %v8226 = vadd.f32 0.0, %v8225
      %v8227 = vpop.f32.mrf.mxu0
      %8228 = vmatprep.mubr.bf16.mxu0 0
      %8229 = vmatmul.mubr.bf16.gmra.mxu0 %v8073
      %v8230 = vpop.f32.mrf.mxu0
      %v8231 = vadd.f32 0.0, %v8230
      %v8232 = vpop.f32.mrf.mxu0
      %v8233 = vpop.f32.mrf.mxu0
      %v8234 = vadd.f32 0.0, %v8233
      %v8235 = vpop.f32.mrf.mxu0
      %8236 = vmatprep.mubr.bf16.mxu0 0
      %8237 = vmatmul.mubr.bf16.gmra.mxu0 %v8076
      %v8238 = vpop.f32.mrf.mxu0
      %v8239 = vadd.f32 0.0, %v8238
      %v8240 = vpop.f32.mrf.mxu0
      %v8241 = vpop.f32.mrf.mxu0
      %v8242 = vadd.f32 0.0, %v8241
      %v8243 = vpop.f32.mrf.mxu0
      %8244 = vmatprep.mubr.bf16.mxu0 0
      %8245 = vmatmul.mubr.bf16.gmra.mxu0 %v8079
      %v8246 = vpop.f32.mrf.mxu0
      %v8247 = vadd.f32 0.0, %v8246
      %v8248 = vpop.f32.mrf.mxu0
      %v8249 = vpop.f32.mrf.mxu0
      %v8250 = vadd.f32 0.0, %v8249
      %v8251 = vpop.f32.mrf.mxu0
      %8252 = vmatprep.mubr.bf16.mxu0 0
      %8253 = vmatmul.mubr.bf16.gmra.mxu0 %v8082
      %v8254 = vpop.f32.mrf.mxu0
      %v8255 = vadd.f32 0.0, %v8254
      %v8256 = vpop.f32.mrf.mxu0
      %v8257 = vpop.f32.mrf.mxu0
      %v8258 = vadd.f32 0.0, %v8257
      %v8259 = vpop.f32.mrf.mxu0
      %8260 = vdwg.mxu0
      %v8261 = vadd.f32 %v7936, %v8119
      %v8262 = vadd.f32 %v7937, %v8122
      %v8263 = vadd.f32 %v7938, %v8127
      %v8264 = vadd.f32 %v7939, %v8130
      %v8265 = vadd.f32 %v7940, %v8135
      %v8266 = vadd.f32 %v7941, %v8138
      %v8267 = vadd.f32 %v7942, %v8143
      %v8268 = vadd.f32 %v7943, %v8146
      %v8269 = vadd.f32 %v7944, %v8151
      %v8270 = vadd.f32 %v7945, %v8154
      %v8271 = vadd.f32 %v7946, %v8159
      %v8272 = vadd.f32 %v7947, %v8162
      %v8273 = vadd.f32 %v7948, %v8167
      %v8274 = vadd.f32 %v7949, %v8170
      %v8275 = vadd.f32 %v7950, %v8175
      %v8276 = vadd.f32 %v7951, %v8178
      %v8277 = vadd.f32 %v7952, %v8183
      %v8278 = vadd.f32 %v7953, %v8186
      %v8279 = vadd.f32 %v7954, %v8191
      %v8280 = vadd.f32 %v7955, %v8194
      %v8281 = vadd.f32 %v7956, %v8199
      %v8282 = vadd.f32 %v7957, %v8202
      %v8283 = vadd.f32 %v7958, %v8207
      %v8284 = vadd.f32 %v7959, %v8210
      %v8285 = vadd.f32 %v7960, %v8215
      %v8286 = vadd.f32 %v7961, %v8218
      %v8287 = vadd.f32 %v7962, %v8223
      %v8288 = vadd.f32 %v7963, %v8226
      %v8289 = vadd.f32 %v7964, %v8231
      %v8290 = vadd.f32 %v7965, %v8234
      %v8291 = vadd.f32 %v7966, %v8239
      %v8292 = vadd.f32 %v7967, %v8242
      %v8293 = vadd.f32 %v7968, %v8247
      %v8294 = vadd.f32 %v7969, %v8250
      %v8295 = vadd.f32 %v7970, %v8255
      %v8296 = vadd.f32 %v7971, %v8258
      %v8297 = vld [vmem:[#allocation2 + $0xa4] sm:$0x3]
      %s8298 = scalar_lea.vmem %s3, 128
      %v8299 = vld [vmem:[%s8298] sm:$0xf]
      %v8300 = vld [vmem:[%s8298 + $0x4] sm:$0xf]
      %v8301 = vld [vmem:[%s8298 + $0x8] sm:$0xf]
      %v8302 = vld [vmem:[%s8298 + $0xc] sm:$0xf]
      %v8304 = vunpack.c.l.b16 %v8297
      %v8305 = vpack.c.b16 %v8304, %v8304
      %v8307 = vshrl.u32 %v7980, 16
      %v8309 = vrot.slane %v8307, 1
      %v8310 = vshll.u32 %v7980, 16
      %v8312 = vrot.slane %v8310, 2
      %v8313 = vor.u32 %v8309, %v8312
      %v8314 = vrot.slane %v7557, 1
      %v8315 = vrot.slane %v7553, 2
      %v8316 = vor.u32 %v8314, %v8315
      %v8317 = vsel %vm1744, %v8313, %v8316
      %v8318 = vrot.slane %v7565, 1
      %v8319 = vrot.slane %v7561, 2
      %v8320 = vor.u32 %v8318, %v8319
      %v8321 = vsel %vm1744, %v8316, %v8320
      %v8322 = vrot.slane %v7573, 1
      %v8323 = vrot.slane %v7569, 2
      %v8324 = vor.u32 %v8322, %v8323
      %v8325 = vsel %vm1744, %v8320, %v8324
      %v8326 = vrot.slane %v7581, 1
      %v8327 = vrot.slane %v7577, 2
      %v8328 = vor.u32 %v8326, %v8327
      %v8329 = vsel %vm1744, %v8324, %v8328
      %v8330 = vrot.slane %v7589, 1
      %v8331 = vrot.slane %v7585, 2
      %v8332 = vor.u32 %v8330, %v8331
      %v8333 = vsel %vm1744, %v8328, %v8332
      %v8334 = vrot.slane %v7597, 1
      %v8335 = vrot.slane %v7593, 2
      %v8336 = vor.u32 %v8334, %v8335
      %v8337 = vsel %vm1744, %v8332, %v8336
      %v8338 = vrot.slane %v7605, 1
      %v8339 = vrot.slane %v7601, 2
      %v8340 = vor.u32 %v8338, %v8339
      %v8341 = vsel %vm1744, %v8336, %v8340
      %v8342 = vrot.slane %v7613, 1
      %v8343 = vrot.slane %v7609, 2
      %v8344 = vor.u32 %v8342, %v8343
      %v8345 = vsel %vm1744, %v8340, %v8344
      %v8346 = vrot.slane %v7621, 1
      %v8347 = vrot.slane %v7617, 2
      %v8348 = vor.u32 %v8346, %v8347
      %v8349 = vsel %vm1744, %v8344, %v8348
      %v8350 = vrot.slane %v7629, 1
      %v8351 = vrot.slane %v7625, 2
      %v8352 = vor.u32 %v8350, %v8351
      %v8353 = vsel %vm1744, %v8348, %v8352
      %v8354 = vrot.slane %v7637, 1
      %v8355 = vrot.slane %v7633, 2
      %v8356 = vor.u32 %v8354, %v8355
      %v8357 = vsel %vm1744, %v8352, %v8356
      %v8358 = vrot.slane %v7645, 1
      %v8359 = vrot.slane %v7641, 2
      %v8360 = vor.u32 %v8358, %v8359
      %v8361 = vsel %vm1744, %v8356, %v8360
      %v8362 = vrot.slane %v7653, 1
      %v8363 = vrot.slane %v7649, 2
      %v8364 = vor.u32 %v8362, %v8363
      %v8365 = vsel %vm1744, %v8360, %v8364
      %v8366 = vrot.slane %v7661, 1
      %v8367 = vrot.slane %v7657, 2
      %v8368 = vor.u32 %v8366, %v8367
      %v8369 = vsel %vm1744, %v8364, %v8368
      %v8370 = vrot.slane %v7669, 1
      %v8371 = vrot.slane %v7665, 2
      %v8372 = vor.u32 %v8370, %v8371
      %v8373 = vsel %vm1744, %v8368, %v8372
      %v8374 = vrot.slane %v7677, 1
      %v8375 = vrot.slane %v7673, 2
      %v8376 = vor.u32 %v8374, %v8375
      %v8377 = vsel %vm1744, %v8372, %v8376
      %v8378 = vrot.slane %v7685, 1
      %v8379 = vrot.slane %v7681, 2
      %v8380 = vor.u32 %v8378, %v8379
      %v8381 = vsel %vm1744, %v8376, %v8380
      %v8383 = vshrl.u32 %v8305, 16
      %v8385 = vrot.slane %v8383, 1
      %v8386 = vshll.u32 %v8305, 16
      %v8388 = vrot.slane %v8386, 2
      %v8389 = vor.u32 %v8385, %v8388
      %v8390 = vsel %vm1744, %v8380, %v8389
      %v8395 = vunpack.c.l.b16 %v8299
      %v8396 = vunpack.c.l.b16 %v8300
      %v8397 = vunpack.c.l.b16 %v8301
      %v8398 = vunpack.c.l.b16 %v8302
      %v8399 = vpack.c.b16 %v8396, %v8395
      %v8400 = vpack.c.b16 %v8398, %v8397
      %v8404 = vsel %vm4940, %v8317, 0
      %v8407 = vsel %vm4940, %v8321, 0
      %v8410 = vsel %vm4940, %v8325, 0
      %v8413 = vsel %vm4940, %v8329, 0
      %v8416 = vsel %vm4940, %v8333, 0
      %v8419 = vsel %vm4940, %v8337, 0
      %v8422 = vsel %vm4940, %v8341, 0
      %v8425 = vsel %vm4940, %v8345, 0
      %v8428 = vsel %vm4940, %v8349, 0
      %v8431 = vsel %vm4940, %v8353, 0
      %v8434 = vsel %vm4940, %v8357, 0
      %v8437 = vsel %vm4940, %v8361, 0
      %v8440 = vsel %vm4940, %v8365, 0
      %v8443 = vsel %vm4940, %v8369, 0
      %v8446 = vsel %vm4940, %v8373, 0
      %v8449 = vsel %vm4940, %v8377, 0
      %v8452 = vsel %vm4940, %v8381, 0
      %v8455 = vsel %vm4940, %v8390, 0
      %8457 = vmatprep.subr.bf16.mxu0 0
      %8458 = vmatpush1.bf16.msra.mxu0 0
      %8459 = vmatprep.subr.bf16.mxu0 0
      %8460 = vmatpush1.bf16.msra.mxu0 0
      %8461 = vmatprep.subr.bf16.mxu0 0
      %8462 = vmatpush1.bf16.msra.mxu0 0
      %8463 = vmatprep.subr.bf16.mxu0 0
      %8464 = vmatpush1.bf16.msra.mxu0 0
      %8465 = vmatprep.subr.bf16.mxu0 0
      %8466 = vmatpush1.bf16.msra.mxu0 0
      %8467 = vmatprep.subr.bf16.mxu0 0
      %8468 = vmatpush1.bf16.msra.mxu0 0
      %8469 = vmatprep.subr.bf16.mxu0 0
      %8470 = vmatpush1.bf16.msra.mxu0 %v8400
      %8471 = vmatprep.subr.bf16.mxu0 0
      %8472 = vmatpush1.bf16.msra.mxu0 %v8399
      %8473 = vmatprep.subr.bf16.mxu0 0
      %8474 = vmatpush2.bf16.msra.mxu0 0
      %8475 = vmatprep.subr.bf16.mxu0 0
      %8476 = vmatpush2.bf16.msra.mxu0 0
      %8477 = vmatprep.subr.bf16.mxu0 0
      %8478 = vmatpush2.bf16.msra.mxu0 0
      %8479 = vmatprep.subr.bf16.mxu0 0
      %8480 = vmatpush2.bf16.msra.mxu0 0
      %8481 = vmatprep.subr.bf16.mxu0 0
      %8482 = vmatpush2.bf16.msra.mxu0 0
      %8483 = vmatprep.subr.bf16.mxu0 0
      %8484 = vmatpush2.bf16.msra.mxu0 0
      %8485 = vmatprep.subr.bf16.mxu0 0
      %8486 = vmatpush2.bf16.msra.mxu0 0
      %8487 = vmatprep.subr.bf16.mxu0 0
      %8488 = vmatpush2.bf16.msra.mxu0 0
      %8489 = vmatprep.mubr.bf16.mxu0 0
      %8490 = vmatmul.mubr.bf16.gmra.mxu0 %v8404
      %v8491 = vpop.f32.mrf.mxu0
      %v8492 = vadd.f32 0.0, %v8491
      %v8493 = vpop.f32.mrf.mxu0
      %v8494 = vpop.f32.mrf.mxu0
      %v8495 = vadd.f32 0.0, %v8494
      %v8496 = vpop.f32.mrf.mxu0
      %8497 = vmatprep.mubr.bf16.mxu0 0
      %8498 = vmatmul.mubr.bf16.gmra.mxu0 %v8407
      %v8499 = vpop.f32.mrf.mxu0
      %v8500 = vadd.f32 0.0, %v8499
      %v8501 = vpop.f32.mrf.mxu0
      %v8502 = vpop.f32.mrf.mxu0
      %v8503 = vadd.f32 0.0, %v8502
      %v8504 = vpop.f32.mrf.mxu0
      %8505 = vmatprep.mubr.bf16.mxu0 0
      %8506 = vmatmul.mubr.bf16.gmra.mxu0 %v8410
      %v8507 = vpop.f32.mrf.mxu0
      %v8508 = vadd.f32 0.0, %v8507
      %v8509 = vpop.f32.mrf.mxu0
      %v8510 = vpop.f32.mrf.mxu0
      %v8511 = vadd.f32 0.0, %v8510
      %v8512 = vpop.f32.mrf.mxu0
      %8513 = vmatprep.mubr.bf16.mxu0 0
      %8514 = vmatmul.mubr.bf16.gmra.mxu0 %v8413
      %v8515 = vpop.f32.mrf.mxu0
      %v8516 = vadd.f32 0.0, %v8515
      %v8517 = vpop.f32.mrf.mxu0
      %v8518 = vpop.f32.mrf.mxu0
      %v8519 = vadd.f32 0.0, %v8518
      %v8520 = vpop.f32.mrf.mxu0
      %8521 = vmatprep.mubr.bf16.mxu0 0
      %8522 = vmatmul.mubr.bf16.gmra.mxu0 %v8416
      %v8523 = vpop.f32.mrf.mxu0
      %v8524 = vadd.f32 0.0, %v8523
      %v8525 = vpop.f32.mrf.mxu0
      %v8526 = vpop.f32.mrf.mxu0
      %v8527 = vadd.f32 0.0, %v8526
      %v8528 = vpop.f32.mrf.mxu0
      %8529 = vmatprep.mubr.bf16.mxu0 0
      %8530 = vmatmul.mubr.bf16.gmra.mxu0 %v8419
      %v8531 = vpop.f32.mrf.mxu0
      %v8532 = vadd.f32 0.0, %v8531
      %v8533 = vpop.f32.mrf.mxu0
      %v8534 = vpop.f32.mrf.mxu0
      %v8535 = vadd.f32 0.0, %v8534
      %v8536 = vpop.f32.mrf.mxu0
      %8537 = vmatprep.mubr.bf16.mxu0 0
      %8538 = vmatmul.mubr.bf16.gmra.mxu0 %v8422
      %v8539 = vpop.f32.mrf.mxu0
      %v8540 = vadd.f32 0.0, %v8539
      %v8541 = vpop.f32.mrf.mxu0
      %v8542 = vpop.f32.mrf.mxu0
      %v8543 = vadd.f32 0.0, %v8542
      %v8544 = vpop.f32.mrf.mxu0
      %8545 = vmatprep.mubr.bf16.mxu0 0
      %8546 = vmatmul.mubr.bf16.gmra.mxu0 %v8425
      %v8547 = vpop.f32.mrf.mxu0
      %v8548 = vadd.f32 0.0, %v8547
      %v8549 = vpop.f32.mrf.mxu0
      %v8550 = vpop.f32.mrf.mxu0
      %v8551 = vadd.f32 0.0, %v8550
      %v8552 = vpop.f32.mrf.mxu0
      %8553 = vmatprep.mubr.bf16.mxu0 0
      %8554 = vmatmul.mubr.bf16.gmra.mxu0 %v8428
      %v8555 = vpop.f32.mrf.mxu0
      %v8556 = vadd.f32 0.0, %v8555
      %v8557 = vpop.f32.mrf.mxu0
      %v8558 = vpop.f32.mrf.mxu0
      %v8559 = vadd.f32 0.0, %v8558
      %v8560 = vpop.f32.mrf.mxu0
      %8561 = vmatprep.mubr.bf16.mxu0 0
      %8562 = vmatmul.mubr.bf16.gmra.mxu0 %v8431
      %v8563 = vpop.f32.mrf.mxu0
      %v8564 = vadd.f32 0.0, %v8563
      %v8565 = vpop.f32.mrf.mxu0
      %v8566 = vpop.f32.mrf.mxu0
      %v8567 = vadd.f32 0.0, %v8566
      %v8568 = vpop.f32.mrf.mxu0
      %8569 = vmatprep.mubr.bf16.mxu0 0
      %8570 = vmatmul.mubr.bf16.gmra.mxu0 %v8434
      %v8571 = vpop.f32.mrf.mxu0
      %v8572 = vadd.f32 0.0, %v8571
      %v8573 = vpop.f32.mrf.mxu0
      %v8574 = vpop.f32.mrf.mxu0
      %v8575 = vadd.f32 0.0, %v8574
      %v8576 = vpop.f32.mrf.mxu0
      %8577 = vmatprep.mubr.bf16.mxu0 0
      %8578 = vmatmul.mubr.bf16.gmra.mxu0 %v8437
      %v8579 = vpop.f32.mrf.mxu0
      %v8580 = vadd.f32 0.0, %v8579
      %v8581 = vpop.f32.mrf.mxu0
      %v8582 = vpop.f32.mrf.mxu0
      %v8583 = vadd.f32 0.0, %v8582
      %v8584 = vpop.f32.mrf.mxu0
      %8585 = vmatprep.mubr.bf16.mxu0 0
      %8586 = vmatmul.mubr.bf16.gmra.mxu0 %v8440
      %v8587 = vpop.f32.mrf.mxu0
      %v8588 = vadd.f32 0.0, %v8587
      %v8589 = vpop.f32.mrf.mxu0
      %v8590 = vpop.f32.mrf.mxu0
      %v8591 = vadd.f32 0.0, %v8590
      %v8592 = vpop.f32.mrf.mxu0
      %8593 = vmatprep.mubr.bf16.mxu0 0
      %8594 = vmatmul.mubr.bf16.gmra.mxu0 %v8443
      %v8595 = vpop.f32.mrf.mxu0
      %v8596 = vadd.f32 0.0, %v8595
      %v8597 = vpop.f32.mrf.mxu0
      %v8598 = vpop.f32.mrf.mxu0
      %v8599 = vadd.f32 0.0, %v8598
      %v8600 = vpop.f32.mrf.mxu0
      %8601 = vmatprep.mubr.bf16.mxu0 0
      %8602 = vmatmul.mubr.bf16.gmra.mxu0 %v8446
      %v8603 = vpop.f32.mrf.mxu0
      %v8604 = vadd.f32 0.0, %v8603
      %v8605 = vpop.f32.mrf.mxu0
      %v8606 = vpop.f32.mrf.mxu0
      %v8607 = vadd.f32 0.0, %v8606
      %v8608 = vpop.f32.mrf.mxu0
      %8609 = vmatprep.mubr.bf16.mxu0 0
      %8610 = vmatmul.mubr.bf16.gmra.mxu0 %v8449
      %v8611 = vpop.f32.mrf.mxu0
      %v8612 = vadd.f32 0.0, %v8611
      %v8613 = vpop.f32.mrf.mxu0
      %v8614 = vpop.f32.mrf.mxu0
      %v8615 = vadd.f32 0.0, %v8614
      %v8616 = vpop.f32.mrf.mxu0
      %8617 = vmatprep.mubr.bf16.mxu0 0
      %8618 = vmatmul.mubr.bf16.gmra.mxu0 %v8452
      %v8619 = vpop.f32.mrf.mxu0
      %v8620 = vadd.f32 0.0, %v8619
      %v8621 = vpop.f32.mrf.mxu0
      %v8622 = vpop.f32.mrf.mxu0
      %v8623 = vadd.f32 0.0, %v8622
      %v8624 = vpop.f32.mrf.mxu0
      %8625 = vmatprep.mubr.bf16.mxu0 0
      %8626 = vmatmul.mubr.bf16.gmra.mxu0 %v8455
      %v8627 = vpop.f32.mrf.mxu0
      %v8628 = vadd.f32 0.0, %v8627
      %v8629 = vpop.f32.mrf.mxu0
      %v8630 = vpop.f32.mrf.mxu0
      %v8631 = vadd.f32 0.0, %v8630
      %v8632 = vpop.f32.mrf.mxu0
      %8633 = vdwg.mxu0
      %v8634 = vadd.f32 %v8261, %v8492
      %v8635 = vadd.f32 %v8262, %v8495
      %v8636 = vadd.f32 %v8263, %v8500
      %v8637 = vadd.f32 %v8264, %v8503
      %v8638 = vadd.f32 %v8265, %v8508
      %v8639 = vadd.f32 %v8266, %v8511
      %v8640 = vadd.f32 %v8267, %v8516
      %v8641 = vadd.f32 %v8268, %v8519
      %v8642 = vadd.f32 %v8269, %v8524
      %v8643 = vadd.f32 %v8270, %v8527
      %v8644 = vadd.f32 %v8271, %v8532
      %v8645 = vadd.f32 %v8272, %v8535
      %v8646 = vadd.f32 %v8273, %v8540
      %v8647 = vadd.f32 %v8274, %v8543
      %v8648 = vadd.f32 %v8275, %v8548
      %v8649 = vadd.f32 %v8276, %v8551
      %v8650 = vadd.f32 %v8277, %v8556
      %v8651 = vadd.f32 %v8278, %v8559
      %v8652 = vadd.f32 %v8279, %v8564
      %v8653 = vadd.f32 %v8280, %v8567
      %v8654 = vadd.f32 %v8281, %v8572
      %v8655 = vadd.f32 %v8282, %v8575
      %v8656 = vadd.f32 %v8283, %v8580
      %v8657 = vadd.f32 %v8284, %v8583
      %v8658 = vadd.f32 %v8285, %v8588
      %v8659 = vadd.f32 %v8286, %v8591
      %v8660 = vadd.f32 %v8287, %v8596
      %v8661 = vadd.f32 %v8288, %v8599
      %v8662 = vadd.f32 %v8289, %v8604
      %v8663 = vadd.f32 %v8290, %v8607
      %v8664 = vadd.f32 %v8291, %v8612
      %v8665 = vadd.f32 %v8292, %v8615
      %v8666 = vadd.f32 %v8293, %v8620
      %v8667 = vadd.f32 %v8294, %v8623
      %v8668 = vadd.f32 %v8295, %v8628
      %v8669 = vadd.f32 %v8296, %v8631
      %v8670 = vld [vmem:[%s4] sm:$0x1]
      %v8672 = vlaneseq
      %v8673 = vshrl.u32 %v8672, 7
      %v8674 = vsub.s32 0, %v8673
      %v8675 = vrot.slane %v8670, %v8674
      %v8677 = vadd.f32 %v8634, %v8675
      %v8678 = vadd.f32 %v8635, %v8675
      %v8679 = vadd.f32 %v8636, %v8675
      %v8680 = vadd.f32 %v8637, %v8675
      %v8681 = vadd.f32 %v8638, %v8675
      %v8682 = vadd.f32 %v8639, %v8675
      %v8683 = vadd.f32 %v8640, %v8675
      %v8684 = vadd.f32 %v8641, %v8675
      %v8685 = vadd.f32 %v8642, %v8675
      %v8686 = vadd.f32 %v8643, %v8675
      %v8687 = vadd.f32 %v8644, %v8675
      %v8688 = vadd.f32 %v8645, %v8675
      %v8689 = vadd.f32 %v8646, %v8675
      %v8690 = vadd.f32 %v8647, %v8675
      %v8691 = vadd.f32 %v8648, %v8675
      %v8692 = vadd.f32 %v8649, %v8675
      %v8693 = vadd.f32 %v8650, %v8675
      %v8694 = vadd.f32 %v8651, %v8675
      %v8695 = vadd.f32 %v8652, %v8675
      %v8696 = vadd.f32 %v8653, %v8675
      %v8697 = vadd.f32 %v8654, %v8675
      %v8698 = vadd.f32 %v8655, %v8675
      %v8699 = vadd.f32 %v8656, %v8675
      %v8700 = vadd.f32 %v8657, %v8675
      %v8701 = vadd.f32 %v8658, %v8675
      %v8702 = vadd.f32 %v8659, %v8675
      %v8703 = vadd.f32 %v8660, %v8675
      %v8704 = vadd.f32 %v8661, %v8675
      %v8705 = vadd.f32 %v8662, %v8675
      %v8706 = vadd.f32 %v8663, %v8675
      %v8707 = vadd.f32 %v8664, %v8675
      %v8708 = vadd.f32 %v8665, %v8675
      %v8709 = vadd.f32 %v8666, %v8675
      %v8710 = vadd.f32 %v8667, %v8675
      %v8711 = vadd.f32 %v8668, %v8675
      %v8712 = vadd.f32 %v8669, %v8675
      %8713 = vxpose.xlu0.b32.start [1/16] %v8677, 128
      %8714 = vxpose.xlu0.b32.cont [2/16] %v8678, 128
      %8715 = vxpose.xlu0.b32.cont [3/16] %v8679, 128
      %8716 = vxpose.xlu0.b32.cont [4/16] %v8680, 128
      %8717 = vxpose.xlu0.b32.cont [5/16] %v8681, 128
      %8718 = vxpose.xlu0.b32.cont [6/16] %v8682, 128
      %8719 = vxpose.xlu0.b32.cont [7/16] %v8683, 128
      %8720 = vxpose.xlu0.b32.cont [8/16] %v8684, 128
      %8721 = vxpose.xlu0.b32.cont [9/16] %v8685, 128
      %8722 = vxpose.xlu0.b32.cont [10/16] %v8686, 128
      %8723 = vxpose.xlu0.b32.cont [11/16] %v8687, 128
      %8724 = vxpose.xlu0.b32.cont [12/16] %v8688, 128
      %8725 = vxpose.xlu0.b32.cont [13/16] %v8689, 128
      %8726 = vxpose.xlu0.b32.cont [14/16] %v8690, 128
      %8727 = vxpose.xlu0.b32.cont [15/16] %v8691, 128
      %8728 = vxpose.xlu0.b32.end [16/16] %v8692, 128
      %v8729 = vpop.trf.xlu0
      %v8730 = vpop.trf.xlu0
      %v8731 = vpop.trf.xlu0
      %v8732 = vpop.trf.xlu0
      %v8733 = vpop.trf.xlu0
      %v8734 = vpop.trf.xlu0
      %v8735 = vpop.trf.xlu0
      %v8736 = vpop.trf.xlu0
      %v8737 = vpop.trf.xlu0
      %v8738 = vpop.trf.xlu0
      %v8739 = vpop.trf.xlu0
      %v8740 = vpop.trf.xlu0
      %v8741 = vpop.trf.xlu0
      %v8742 = vpop.trf.xlu0
      %v8743 = vpop.trf.xlu0
      %v8744 = vpop.trf.xlu0
      %8745 = vxpose.xlu0.b32.start [1/16] %v8693, 128
      %8746 = vxpose.xlu0.b32.cont [2/16] %v8694, 128
      %8747 = vxpose.xlu0.b32.cont [3/16] %v8695, 128
      %8748 = vxpose.xlu0.b32.cont [4/16] %v8696, 128
      %8749 = vxpose.xlu0.b32.cont [5/16] %v8697, 128
      %8750 = vxpose.xlu0.b32.cont [6/16] %v8698, 128
      %8751 = vxpose.xlu0.b32.cont [7/16] %v8699, 128
      %8752 = vxpose.xlu0.b32.cont [8/16] %v8700, 128
      %8753 = vxpose.xlu0.b32.cont [9/16] %v8701, 128
      %8754 = vxpose.xlu0.b32.cont [10/16] %v8702, 128
      %8755 = vxpose.xlu0.b32.cont [11/16] %v8703, 128
      %8756 = vxpose.xlu0.b32.cont [12/16] %v8704, 128
      %8757 = vxpose.xlu0.b32.cont [13/16] %v8705, 128
      %8758 = vxpose.xlu0.b32.cont [14/16] %v8706, 128
      %8759 = vxpose.xlu0.b32.cont [15/16] %v8707, 128
      %8760 = vxpose.xlu0.b32.end [16/16] %v8708, 128
      %v8761 = vpop.trf.xlu0
      %v8762 = vpop.trf.xlu0
      %v8763 = vpop.trf.xlu0
      %v8764 = vpop.trf.xlu0
      %v8765 = vpop.trf.xlu0
      %v8766 = vpop.trf.xlu0
      %v8767 = vpop.trf.xlu0
      %v8768 = vpop.trf.xlu0
      %v8769 = vpop.trf.xlu0
      %v8770 = vpop.trf.xlu0
      %v8771 = vpop.trf.xlu0
      %v8772 = vpop.trf.xlu0
      %v8773 = vpop.trf.xlu0
      %v8774 = vpop.trf.xlu0
      %v8775 = vpop.trf.xlu0
      %v8776 = vpop.trf.xlu0
      %8777 = vxpose.xlu0.b32.start [1/16] %v8709, 128
      %8778 = vxpose.xlu0.b32.cont [2/16] %v8710, 128
      %8779 = vxpose.xlu0.b32.cont [3/16] %v8711, 128
      %8780 = vxpose.xlu0.b32.cont [4/16] %v8712, 128
      %8781 = vxpose.xlu0.b32.cont [5/16] 0.0, 128
      %8782 = vxpose.xlu0.b32.cont [6/16] 0.0, 128
      %8783 = vxpose.xlu0.b32.cont [7/16] 0.0, 128
      %8784 = vxpose.xlu0.b32.cont [8/16] 0.0, 128
      %8785 = vxpose.xlu0.b32.cont [9/16] 0.0, 128
      %8786 = vxpose.xlu0.b32.cont [10/16] 0.0, 128
      %8787 = vxpose.xlu0.b32.cont [11/16] 0.0, 128
      %8788 = vxpose.xlu0.b32.cont [12/16] 0.0, 128
      %8789 = vxpose.xlu0.b32.cont [13/16] 0.0, 128
      %8790 = vxpose.xlu0.b32.cont [14/16] 0.0, 128
      %8791 = vxpose.xlu0.b32.cont [15/16] 0.0, 128
      %8792 = vxpose.xlu0.b32.end [16/16] 0.0, 128
      %v8793 = vpop.trf.xlu0
      %v8794 = vpop.trf.xlu0
      %v8795 = vpop.trf.xlu0
      %v8796 = vpop.trf.xlu0
      %v8797 = vpop.trf.xlu0
      %v8798 = vpop.trf.xlu0
      %v8799 = vpop.trf.xlu0
      %v8800 = vpop.trf.xlu0
      %v8801 = vpop.trf.xlu0
      %v8802 = vpop.trf.xlu0
      %v8803 = vpop.trf.xlu0
      %v8804 = vpop.trf.xlu0
      %v8805 = vpop.trf.xlu0
      %v8806 = vpop.trf.xlu0
      %v8807 = vpop.trf.xlu0
      %v8808 = vpop.trf.xlu0
      %v8811 = vcombine.low %v8729, %v8761
      %8813 = vst [vmem:[%s224] sm:$0xff] %v8811
      %8814 = vst.msk [vmem:[%s224 + $0x8] sm:$0xf] %vm4564, %v8793
      %p8815 = scmp.lt.s32.totalorder %s16, 1
      %s8816 = scalar_select %p8815, %s16, 1
      %s8817 = smul.addr %s8816, 3
      %s8818 = smul.addr %s8817, 4
      %s8819 = scalar_lea.vmem %s5, %s8818
      // Predicated region
      $region41: #{forward.1} parent=39 // pred_check
        %p8820 = pneg %p144
      $region42: #{forward.1} parent=39 // pred_check_branch
        %8822 = sbr.rel (%p8820) target = $region44
      $region43: #{forward.1} parent=39 // pred_region
        _
      $region44: #{forward.1} parent=39 // pred_fallthru
        _
    $region40: #{forward.1} parent=5 // pred_fallthru
      _
    %p8823 = scmp.le.s32.totalorder 2, %s11
    // Predicated region
    $region45: #{forward.1} parent=5 // pred_check
      %p8824 = pneg %p8823
    $region46: #{forward.1} parent=5 // pred_check_branch
      %8826 = sbr.rel (%p8824) target = $region48
    $region47: #{forward.1} parent=5 // pred_region
      %s8827 = ssub.s32 %s11, 2
      // Predicated region
      $region49: #{forward.1} parent=47 // pred_check
        %p8828 = pneg %p150
      $region50: #{forward.1} parent=47 // pred_check_branch
        %8830 = sbr.rel (%p8828) target = $region52
      $region51: #{forward.1} parent=47 // pred_region
        %p8831 = scmp.lt.s32.totalorder %s17, 1
        %s8832 = scalar_select %p8831, %s17, 1
        %s8833 = smul.addr %s8832, 3
        %s8834 = smul.addr %s8833, 4
        %s8835 = scalar_lea.vmem %s5, %s8834
      $region52: #{forward.1} parent=47 // pred_fallthru
        _
    $region48: #{forward.1} parent=5 // pred_fallthru
      _
  $region6: #{forward.1} parent=0 // loop_footer
    %s15 = sadd.s32 1, %s11
  $region7: #{forward.1} parent=0 // loop_footer_branch
    %10 = sbr.rel target = $region3
  $region8: #{forward.1} parent=0 // loop_exit
    _

</llo_original>
